<compile_context>
chip_gen: v5e
topology: v5e:2x2
jax: 0.10.0
libtpu: 0.0.40
codegen_flags: <defaults>
</compile_context>

<pallas_src>
import math

import jax
import jax.numpy as jnp
from jax.experimental import pallas as pl
from jax.experimental.pallas import tpu as pltpu

LANE = 128
_BN_EPS = 1e-5


def _round_up(x, m):
    return (x + m - 1) // m * m


# ----------------------------- in-kernel helpers -----------------------------

def _erf(x):
    # Abramowitz & Stegun 7.1.26 (|err| < 1.5e-7 -> float32-exact in practice).
    a1, a2, a3, a4, a5 = (0.254829592, -0.284496736, 1.421413741,
                          -1.453152027, 1.061405429)
    p = 0.3275911
    sgn = jnp.where(x < 0.0, -1.0, 1.0)
    ax = jnp.abs(x)
    t = 1.0 / (1.0 + p * ax)
    poly = ((((a5 * t + a4) * t + a3) * t + a2) * t + a1) * t
    return sgn * (1.0 - poly * jnp.exp(-ax * ax))


def _gelu(x):
    # Exact GELU (PyTorch nn.GELU default, approximate='none'), f32.
    return 0.5 * x * (1.0 + _erf(x * (1.0 / math.sqrt(2.0))))


# --------------------------------- kernel ------------------------------------

def up_conv_kernel(x2_ref, x1_ref, w1a_ref, w1b_ref, b1_ref, w2_ref, b2_ref,
                   o_ref, mid_ref):
    # x2_ref : (H+4, W+2, C2p)      halo-padded x2      (bf16, resident per batch)
    # x1_ref : (H+4, W+2, C1p)      halo-padded up(x1)  (bf16, resident per batch)
    # w1a_ref: (9, C2p,  Cmid_p)    conv1 taps for the x2 channel block (BN1 folded)
    # w1b_ref: (9, C1p,  Cmid_p)    conv1 taps for the x1 channel block (BN1 folded)
    # b1_ref : (1, Cmid_p)          folded BN1 bias (f32)
    # w2_ref : (9, Cmid_p, Cout_p)  conv2 taps (BN2 folded)
    # b2_ref : (1, Cout_p)          folded BN2 bias (f32)
    # o_ref  : (BH, W, Cout_p)      output row band (f32, lane-dense)
    # mid_ref: (BH+2, Wm, Cmid_p)   bf16 staging scratch, interior at cols [8, 8+W)
    bh, w, cout = o_ref.shape
    cmid = mid_ref.shape[-1]
    wm = mid_ref.shape[1]
    c2p = x2_ref.shape[-1]
    c1p = x1_ref.shape[-1]

    band = pl.program_id(1)
    nbands = pl.num_programs(1)
    row0 = band * bh                     # first padded-input row used by this band

    # ---- conv1 over BH+2 extended rows (band + 1-row hid halo each side):
    # 9 taps x 2 channel groups, each an accumulating MXU dot that reads its tap
    # slice straight from the resident input refs (no im2col buffer).
    m1 = (bh + 2) * w
    acc1 = None
    for t in range(9):
        dy, dx = t // 3, t % 3
        a2 = x2_ref[pl.ds(row0 + dy, bh + 2), dx:dx + w, :].reshape(m1, c2p)
        d = jnp.dot(a2, w1a_ref[t], preferred_element_type=jnp.float32)
        acc1 = d if acc1 is None else acc1 + d
        a1 = x1_ref[pl.ds(row0 + dy, bh + 2), dx:dx + w, :].reshape(m1, c1p)
        acc1 = acc1 + jnp.dot(a1, w1b_ref[t], preferred_element_type=jnp.float32)

    hid = _gelu(acc1 + b1_ref[0:1, :])                     # BN1 bias + GELU (f32)
    hid = hid.astype(jnp.bfloat16).reshape(bh + 2, w, cmid)

    # ---- stage conv2's zero-halo input.  Interior starts at the sublane-aligned
    # column 8 and the buffer width is a multiple of 8, so the stores are aligned;
    # only the halo columns/rows are (re)zeroed each step (nothing is carried
    # across grid iterations -> megacore-safe).
    mid_ref[:, 0:8, :] = jnp.zeros((bh + 2, 8, cmid), jnp.bfloat16)
    mid_ref[:, 8 + w:wm, :] = jnp.zeros((bh + 2, wm - 8 - w, cmid), jnp.bfloat16)
    mid_ref[:, 8:8 + w, :] = hid

    @pl.when(band == 0)
    def _():                             # hid row -1 is conv2's zero padding
        mid_ref[0:1, :, :] = jnp.zeros((1, wm, cmid), jnp.bfloat16)

    @pl.when(band == nbands - 1)
    def _():                             # hid row H is conv2's zero padding
        mid_ref[bh + 1:bh + 2, :, :] = jnp.zeros((1, wm, cmid), jnp.bfloat16)

    # ---- conv2: 9 accumulating MXU dots read straight from the staging scratch.
    m2 = bh * w
    acc2 = None
    for t in range(9):
        dy, dx = t // 3, t % 3
        ms = mid_ref[dy:dy + bh, 7 + dx:7 + dx + w, :].reshape(m2, cmid)
        d = jnp.dot(ms, w2_ref[t], preferred_element_type=jnp.float32)
        acc2 = d if acc2 is None else acc2 + d

    y = _gelu(acc2 + b2_ref[0:1, :])
    o_ref[...] = y.reshape(bh, w, cout).astype(o_ref.dtype)


# ------------------------------ sizing helpers --------------------------------

def _vmem_limit_bytes():
    """Generation-aware scoped-VMEM limit (v7x: 64 MiB physical, v5e/v6e: 128)."""
    cap = 64 * 1024 * 1024
    try:
        cap = int(getattr(pltpu.get_tpu_info(), "vmem_capacity_bytes", cap))
    except Exception:
        pass
    return int(max(32 * 1024 * 1024, min(cap - 16 * 1024 * 1024, 96 * 1024 * 1024)))


def _pick_band_rows(h, w, cmid_p, cout_p, budget_bytes):
    """Largest divisor of h whose per-band working set fits `budget_bytes`
    (prefer >=2 bands so the pipeline / megacore has something to overlap)."""
    wm = 8 + _round_up(w + 1, 8)

    def footprint(bh):
        mid = (bh + 2) * wm * cmid_p * 2                      # bf16 staging scratch
        acc1 = (bh + 2) * w * cmid_p * 4                      # f32 conv1 accumulator
        hidb = (bh + 2) * w * cmid_p * 2                      # bf16 hid value
        acc2 = bh * w * cout_p * 4                            # f32 conv2 accumulator
        outb = 2 * bh * w * cout_p * 4                        # double-buffered output
        taps = 2 * (bh + 2) * w * max(cmid_p, cout_p) * 2     # live tap slices (rough)
        return mid + acc1 + hidb + acc2 + outb + taps

    divisors = [d for d in range(1, h + 1) if h % d == 0]
    fitting = [d for d in divisors if footprint(d) <= budget_bytes]
    if not fitting:
        return 1
    multi = [d for d in fitting if 8 <= d < h]
    return max(multi) if multi else max(fitting)


# ------------------------------ JAX glue --------------------------------------

def _interp_matrix(n_in, n_out):
    """(n_out, n_in) bilinear weights for align_corners=True resize (gather-free)."""
    src = jnp.arange(n_out, dtype=jnp.float32) * ((n_in - 1) / max(n_out - 1, 1))
    i0f = jnp.floor(src)
    frac = src - i0f
    i0 = jnp.clip(i0f.astype(jnp.int32), 0, n_in - 1)
    i1 = jnp.minimum(i0 + 1, n_in - 1)
    cols = jnp.arange(n_in, dtype=jnp.int32)
    w0 = (cols[None, :] == i0[:, None]).astype(jnp.float32) * (1.0 - frac)[:, None]
    w1 = (cols[None, :] == i1[:, None]).astype(jnp.float32) * frac[:, None]
    return w0 + w1


def _upsample2x_nhwc(x_nchw):
    """nn.Upsample(scale_factor=2, bilinear, align_corners=True); NCHW in -> NHWC out.
    Expressed as two small einsums (dot_general), not gathers, so it fuses."""
    _, _, h, w = x_nchw.shape
    mh = _interp_matrix(h, 2 * h)
    mw = _interp_matrix(w, 2 * w)
    y = jnp.einsum('oh,nchw->nowc', mh, x_nchw)
    return jnp.einsum('pw,nowc->nopc', mw, y)


def up_forward(x1, x2, params):
    """PyTorch-semantics forward of `Up` (eval mode).  x1, x2 are NCHW float32."""
    n, c1, _, _ = x1.shape
    n2, c2, H, W = x2.shape
    assert n == n2

    w1_t, w2_t = params["w1"], params["w2"]           # PyTorch [Cout, Cin, 3, 3]
    cmid, cin = w1_t.shape[0], w1_t.shape[1]
    cout = w2_t.shape[0]
    assert cin == c1 + c2 and w2_t.shape[1] == cmid

    c1p, c2p = _round_up(c1, LANE), _round_up(c2, LANE)
    cmidp, coutp = _round_up(cmid, LANE), _round_up(cout, LANE)

    # ---- fold eval-mode BatchNorm into the conv weights / a per-channel bias.
    s1 = params["g1"] / jnp.sqrt(params["v1"] + _BN_EPS)
    b1 = params["beta1"] - params["m1"] * s1
    s2 = params["g2"] / jnp.sqrt(params["v2"] + _BN_EPS)
    b2 = params["beta2"] - params["m2"] * s2

    w1_hwio = jnp.transpose(w1_t, (2, 3, 1, 0)) * s1[None, None, None, :]
    w2_hwio = jnp.transpose(w2_t, (2, 3, 1, 0)) * s2[None, None, None, :]

    def pack_w(w_hwio, ci_p, co_p):
        ci, co = w_hwio.shape[2], w_hwio.shape[3]
        w_p = jnp.pad(w_hwio, ((0, 0), (0, 0), (0, ci_p - ci), (0, co_p - co)))
        return w_p.reshape(9, ci_p, co_p).astype(jnp.bfloat16)

    # concat order is [x2, x1] -> the first c2 conv input channels belong to x2.
    w1a = pack_w(w1_hwio[:, :, :c2, :], c2p, cmidp)
    w1b = pack_w(w1_hwio[:, :, c2:, :], c1p, cmidp)
    w2k = pack_w(w2_hwio, cmidp, coutp)
    b1k = jnp.pad(b1, (0, cmidp - cmid)).reshape(1, cmidp).astype(jnp.float32)
    b2k = jnp.pad(b2, (0, coutp - cout)).reshape(1, coutp).astype(jnp.float32)

    # ---- glue: upsample x1 (gather-free), pad to x2's size plus the 3x3 halo
    # (2 rows / 1 col), lane-pad channels, cast bf16.  x2 / x1 stay SEPARATE
    # kernel inputs so the channel concat is never materialized in HBM.
    x1u = _upsample2x_nhwc(x1)                                  # (n, 2h1, 2w1, c1)
    diff_y = H - x1u.shape[1]
    diff_x = W - x1u.shape[2]
    x1k = jnp.pad(x1u, ((0, 0),
                        (2 + diff_y // 2, 2 + diff_y - diff_y // 2),
                        (1 + diff_x // 2, 1 + diff_x - diff_x // 2),
                        (0, c1p - c1))).astype(jnp.bfloat16)
    x2k = jnp.pad(jnp.transpose(x2, (0, 2, 3, 1)),
                  ((0, 0), (2, 2), (1, 1), (0, c2p - c2))).astype(jnp.bfloat16)

    # ---- row-band grid, sized per generation so the working set fits VMEM.
    vmem_limit = _vmem_limit_bytes()
    resident = (2 * (H + 4) * (W + 2) * (c1p + c2p) * 2
                + 2 * 9 * ((c1p + c2p) * cmidp + cmidp * coutp) * 2)
    budget = max(2 * 1024 * 1024, (vmem_limit - resident) // 2)
    bh = _pick_band_rows(H, W, cmidp, coutp, budget)
    nbands = H // bh
    wm = 8 + _round_up(W + 1, 8)

    out_nhwc = pl.pallas_call(
        up_conv_kernel,
        out_shape=jax.ShapeDtypeStruct((n, H, W, coutp), jnp.float32),
        grid_spec=pltpu.PrefetchScalarGridSpec(
            num_scalar_prefetch=0,
            grid=(n, nbands),
            in_specs=[
                pl.BlockSpec((None, H + 4, W + 2, c2p), lambda b, r: (b, 0, 0, 0)),
                pl.BlockSpec((None, H + 4, W + 2, c1p), lambda b, r: (b, 0, 0, 0)),
                pl.BlockSpec((9, c2p, cmidp), lambda b, r: (0, 0, 0)),
                pl.BlockSpec((9, c1p, cmidp), lambda b, r: (0, 0, 0)),
                pl.BlockSpec((1, cmidp), lambda b, r: (0, 0)),
                pl.BlockSpec((9, cmidp, coutp), lambda b, r: (0, 0, 0)),
                pl.BlockSpec((1, coutp), lambda b, r: (0, 0)),
            ],
            out_specs=pl.BlockSpec((None, bh, W, coutp), lambda b, r: (b, r, 0, 0)),
            scratch_shapes=[pltpu.VMEM((bh + 2, wm, cmidp), jnp.bfloat16)],
        ),
        compiler_params=pltpu.CompilerParams(
            dimension_semantics=("parallel", "parallel"),
            vmem_limit_bytes=vmem_limit),
    )(x2k, x1k, w1a, w1b, b1k, w2k, b2k)

    # drop channel padding; the module contract is NCHW float32.
    # TODO(synk): emit bf16 / NHWC directly if the downstream consumer allows.
    return jnp.transpose(out_nhwc[..., :cout], (0, 3, 1, 2))


# --------------------------- params & f32 reference ---------------------------

def make_up_params(key, in_channels, out_channels):
    """Deterministic synthetic parameters in PyTorch layouts (eval-mode BN)."""
    cmid = in_channels // 2
    ks = jax.random.split(key, 10)
    return {
        "w1": 0.1 * jax.random.normal(ks[0], (cmid, in_channels, 3, 3), jnp.float32),
        "w2": 0.1 * jax.random.normal(ks[1], (out_channels, cmid, 3, 3), jnp.float32),
        "g1": 1.0 + 0.1 * jax.random.normal(ks[2], (cmid,), jnp.float32),
        "beta1": 0.1 * jax.random.normal(ks[3], (cmid,), jnp.float32),
        "m1": 0.1 * jax.random.normal(ks[4], (cmid,), jnp.float32),
        "v1": 0.5 + jnp.abs(jax.random.normal(ks[5], (cmid,), jnp.float32)),
        "g2": 1.0 + 0.1 * jax.random.normal(ks[6], (out_channels,), jnp.float32),
        "beta2": 0.1 * jax.random.normal(ks[7], (out_channels,), jnp.float32),
        "m2": 0.1 * jax.random.normal(ks[8], (out_channels,), jnp.float32),
        "v2": 0.5 + jnp.abs(jax.random.normal(ks[9], (out_channels,), jnp.float32)),
    }


def up_reference(x1, x2, params):
    """Pure-JAX f32 reference with PyTorch semantics (gather-based upsample)."""
    def upsample(x):
        _, _, h, w = x.shape

        def coords(ni, no):
            src = jnp.arange(no, dtype=jnp.float32) * (ni - 1) / (no - 1)
            i0 = jnp.clip(jnp.floor(src).astype(jnp.int32), 0, ni - 1)
            i1 = jnp.minimum(i0 + 1, ni - 1)
            return i0, i1, src - i0.astype(jnp.float32)

        y0, y1, fy = coords(h, 2 * h)
        x0, x1i, fx = coords(w, 2 * w)
        rows = (x[:, :, y0, :] * (1.0 - fy)[None, None, :, None]
                + x[:, :, y1, :] * fy[None, None, :, None])
        return (rows[:, :, :, x0] * (1.0 - fx)[None, None, None, :]
                + rows[:, :, :, x1i] * fx[None, None, None, :])

    x1u = upsample(x1)
    diff_y = x2.shape[2] - x1u.shape[2]
    diff_x = x2.shape[3] - x1u.shape[3]
    x1u = jnp.pad(x1u, ((0, 0), (0, 0),
                        (diff_y // 2, diff_y - diff_y // 2),
                        (diff_x // 2, diff_x - diff_x // 2)))
    x = jnp.concatenate([x2, x1u], axis=1)

    def conv_bn_gelu(x, w, g, beta, m, v):
        y = jax.lax.conv_general_dilated(
            x, w, window_strides=(1, 1), padding=((1, 1), (1, 1)),
            dimension_numbers=("NCHW", "OIHW", "NCHW"))
        y = ((y - m[None, :, None, None]) / jnp.sqrt(v + _BN_EPS)[None, :, None, None]
             * g[None, :, None, None] + beta[None, :, None, None])
        return jax.nn.gelu(y, approximate=False)

    y = conv_bn_gelu(x, params["w1"], params["g1"], params["beta1"],
                     params["m1"], params["v1"])
    return conv_bn_gelu(y, params["w2"], params["g2"], params["beta2"],
                        params["m2"], params["v2"])


# ----------------------------------- main --------------------------------------

if __name__ == "__main__":
    key = jax.random.PRNGKey(0)
    k1, k2, kp = jax.random.split(key, 3)

    # small shapes consistent with the module: up(x1) must match x2's spatial size.
    N, c1, c2 = 2, 4, 4
    in_channels = c1 + c2              # conv in_channels after the channel concat
    out_channels = 4
    x1 = jax.random.normal(k1, (N, c1, 8, 8), jnp.float32)      # NCHW
    x2 = jax.random.normal(k2, (N, c2, 16, 16), jnp.float32)    # NCHW
    params = make_up_params(kp, in_channels, out_channels)

    out = jax.block_until_ready(jax.jit(up_forward)(x1, x2, params))
    assert out.shape == (N, out_channels, 16, 16)
    assert bool(jnp.all(jnp.isfinite(out)))

    # bf16 MXU matmuls vs f32 reference -> tolerance, not bit-exact.
    ref = jax.block_until_ready(jax.jit(up_reference)(x1, x2, params))
    max_err = float(jnp.max(jnp.abs(out - ref)))
    assert max_err < 5e-2, f"max abs err vs reference: {max_err}"
    print("KERNEL_OK")
</pallas_src>

<mosaic_0001>
module attributes {stable_mosaic.version = 11 : i64} {
  func.func @up_conv_kernel(%arg0: i32, %arg1: i32, %arg2: memref<1x20x18x128xbf16, #tpu.memory_space<vmem>>, %arg3: memref<1x20x18x128xbf16, #tpu.memory_space<vmem>>, %arg4: memref<9x128x128xbf16, #tpu.memory_space<vmem>>, %arg5: memref<9x128x128xbf16, #tpu.memory_space<vmem>>, %arg6: memref<1x128xf32, #tpu.memory_space<vmem>>, %arg7: memref<9x128x128xbf16, #tpu.memory_space<vmem>>, %arg8: memref<1x128xf32, #tpu.memory_space<vmem>>, %arg9: memref<1x8x16x128xf32, #tpu.memory_space<vmem>>, %arg10: memref<10x32x128xbf16, #tpu.memory_space<vmem>>) attributes {dimension_semantics = [#tpu.dimension_semantics<parallel>, #tpu.dimension_semantics<parallel>], iteration_bounds = array<i64: 2, 2>, scalar_prefetch = 0 : i64, scratch_operands = 1 : i64, tpu.core_type = #tpu.core_type<tc>, window_params = [{transform_indices = @transform_0, window_bounds = array<i64: 1, 20, 18, 128>}, {transform_indices = @transform_1, window_bounds = array<i64: 1, 20, 18, 128>}, {pipeline_mode = #tpu.pipeline_mode<synchronous>, transform_indices = @transform_2, window_bounds = array<i64: 9, 128, 128>}, {pipeline_mode = #tpu.pipeline_mode<synchronous>, transform_indices = @transform_3, window_bounds = array<i64: 9, 128, 128>}, {pipeline_mode = #tpu.pipeline_mode<synchronous>, transform_indices = @transform_4, window_bounds = array<i64: 1, 128>}, {pipeline_mode = #tpu.pipeline_mode<synchronous>, transform_indices = @transform_5, window_bounds = array<i64: 9, 128, 128>}, {pipeline_mode = #tpu.pipeline_mode<synchronous>, transform_indices = @transform_6, window_bounds = array<i64: 1, 128>}, {transform_indices = @transform_7, window_bounds = array<i64: 1, 8, 16, 128>}]} {
    %c8_i32 = arith.constant 8 : i32
    %0 = arith.muli %arg1, %c8_i32 : i32
    %c0_i32 = arith.constant 0 : i32
    %1 = arith.addi %0, %c0_i32 : i32
    %c0 = arith.constant 0 : index
    %2 = arith.index_cast %1 : i32 to index
    %c0_0 = arith.constant 0 : index
    %c0_1 = arith.constant 0 : index
    %3 = vector.load %arg2[%c0, %2, %c0_0, %c0_1] : memref<1x20x18x128xbf16, #tpu.memory_space<vmem>>, vector<1x10x16x128xbf16>
    %4 = vector.shape_cast %3 : vector<1x10x16x128xbf16> to vector<10x16x128xbf16>
    %5 = vector.shape_cast %4 : vector<10x16x128xbf16> to vector<160x128xbf16>
    %c0_2 = arith.constant 0 : index
    %c0_3 = arith.constant 0 : index
    %c0_4 = arith.constant 0 : index
    %6 = vector.load %arg4[%c0_2, %c0_3, %c0_4] : memref<9x128x128xbf16, #tpu.memory_space<vmem>>, vector<1x128x128xbf16>
    %7 = vector.shape_cast %6 : vector<1x128x128xbf16> to vector<128x128xbf16>
    %cst = arith.constant dense<0.000000e+00> : vector<160x128xf32>
    %8 = tpu.matmul %5, %7, %cst {dimension_numbers = #tpu.dot_dimension_numbers<[1], [0], [0], [1], [0, 0, 1, 1], [], []>} : vector<160x128xbf16>, vector<128x128xbf16>, vector<160x128xf32> -> vector<160x128xf32>
    %c0_i32_5 = arith.constant 0 : i32
    %9 = arith.addi %0, %c0_i32_5 : i32
    %c0_6 = arith.constant 0 : index
    %10 = arith.index_cast %9 : i32 to index
    %c0_7 = arith.constant 0 : index
    %c0_8 = arith.constant 0 : index
    %11 = vector.load %arg3[%c0_6, %10, %c0_7, %c0_8] : memref<1x20x18x128xbf16, #tpu.memory_space<vmem>>, vector<1x10x16x128xbf16>
    %12 = vector.shape_cast %11 : vector<1x10x16x128xbf16> to vector<10x16x128xbf16>
    %13 = vector.shape_cast %12 : vector<10x16x128xbf16> to vector<160x128xbf16>
    %c0_9 = arith.constant 0 : index
    %c0_10 = arith.constant 0 : index
    %c0_11 = arith.constant 0 : index
    %14 = vector.load %arg5[%c0_9, %c0_10, %c0_11] : memref<9x128x128xbf16, #tpu.memory_space<vmem>>, vector<1x128x128xbf16>
    %15 = vector.shape_cast %14 : vector<1x128x128xbf16> to vector<128x128xbf16>
    %cst_12 = arith.constant dense<0.000000e+00> : vector<160x128xf32>
    %16 = tpu.matmul %13, %15, %cst_12 {dimension_numbers = #tpu.dot_dimension_numbers<[1], [0], [0], [1], [0, 0, 1, 1], [], []>} : vector<160x128xbf16>, vector<128x128xbf16>, vector<160x128xf32> -> vector<160x128xf32>
    %17 = arith.addf %8, %16 : vector<160x128xf32>
    %c0_i32_13 = arith.constant 0 : i32
    %18 = arith.addi %0, %c0_i32_13 : i32
    %c0_14 = arith.constant 0 : index
    %19 = arith.index_cast %18 : i32 to index
    %c1 = arith.constant 1 : index
    %c0_15 = arith.constant 0 : index
    %20 = vector.load %arg2[%c0_14, %19, %c1, %c0_15] : memref<1x20x18x128xbf16, #tpu.memory_space<vmem>>, vector<1x10x16x128xbf16>
    %21 = vector.shape_cast %20 : vector<1x10x16x128xbf16> to vector<10x16x128xbf16>
    %22 = vector.shape_cast %21 : vector<10x16x128xbf16> to vector<160x128xbf16>
    %c1_16 = arith.constant 1 : index
    %c0_17 = arith.constant 0 : index
    %c0_18 = arith.constant 0 : index
    %23 = vector.load %arg4[%c1_16, %c0_17, %c0_18] : memref<9x128x128xbf16, #tpu.memory_space<vmem>>, vector<1x128x128xbf16>
    %24 = vector.shape_cast %23 : vector<1x128x128xbf16> to vector<128x128xbf16>
    %cst_19 = arith.constant dense<0.000000e+00> : vector<160x128xf32>
    %25 = tpu.matmul %22, %24, %cst_19 {dimension_numbers = #tpu.dot_dimension_numbers<[1], [0], [0], [1], [0, 0, 1, 1], [], []>} : vector<160x128xbf16>, vector<128x128xbf16>, vector<160x128xf32> -> vector<160x128xf32>
    %26 = arith.addf %17, %25 : vector<160x128xf32>
    %c0_i32_20 = arith.constant 0 : i32
    %27 = arith.addi %0, %c0_i32_20 : i32
    %c0_21 = arith.constant 0 : index
    %28 = arith.index_cast %27 : i32 to index
    %c1_22 = arith.constant 1 : index
    %c0_23 = arith.constant 0 : index
    %29 = vector.load %arg3[%c0_21, %28, %c1_22, %c0_23] : memref<1x20x18x128xbf16, #tpu.memory_space<vmem>>, vector<1x10x16x128xbf16>
    %30 = vector.shape_cast %29 : vector<1x10x16x128xbf16> to vector<10x16x128xbf16>
    %31 = vector.shape_cast %30 : vector<10x16x128xbf16> to vector<160x128xbf16>
    %c1_24 = arith.constant 1 : index
    %c0_25 = arith.constant 0 : index
    %c0_26 = arith.constant 0 : index
    %32 = vector.load %arg5[%c1_24, %c0_25, %c0_26] : memref<9x128x128xbf16, #tpu.memory_space<vmem>>, vector<1x128x128xbf16>
    %33 = vector.shape_cast %32 : vector<1x128x128xbf16> to vector<128x128xbf16>
    %cst_27 = arith.constant dense<0.000000e+00> : vector<160x128xf32>
    %34 = tpu.matmul %31, %33, %cst_27 {dimension_numbers = #tpu.dot_dimension_numbers<[1], [0], [0], [1], [0, 0, 1, 1], [], []>} : vector<160x128xbf16>, vector<128x128xbf16>, vector<160x128xf32> -> vector<160x128xf32>
    %35 = arith.addf %26, %34 : vector<160x128xf32>
    %c0_i32_28 = arith.constant 0 : i32
    %36 = arith.addi %0, %c0_i32_28 : i32
    %c0_29 = arith.constant 0 : index
    %37 = arith.index_cast %36 : i32 to index
    %c2 = arith.constant 2 : index
    %c0_30 = arith.constant 0 : index
    %38 = vector.load %arg2[%c0_29, %37, %c2, %c0_30] : memref<1x20x18x128xbf16, #tpu.memory_space<vmem>>, vector<1x10x16x128xbf16>
    %39 = vector.shape_cast %38 : vector<1x10x16x128xbf16> to vector<10x16x128xbf16>
    %40 = vector.shape_cast %39 : vector<10x16x128xbf16> to vector<160x128xbf16>
    %c2_31 = arith.constant 2 : index
    %c0_32 = arith.constant 0 : index
    %c0_33 = arith.constant 0 : index
    %41 = vector.load %arg4[%c2_31, %c0_32, %c0_33] : memref<9x128x128xbf16, #tpu.memory_space<vmem>>, vector<1x128x128xbf16>
    %42 = vector.shape_cast %41 : vector<1x128x128xbf16> to vector<128x128xbf16>
    %cst_34 = arith.constant dense<0.000000e+00> : vector<160x128xf32>
    %43 = tpu.matmul %40, %42, %cst_34 {dimension_numbers = #tpu.dot_dimension_numbers<[1], [0], [0], [1], [0, 0, 1, 1], [], []>} : vector<160x128xbf16>, vector<128x128xbf16>, vector<160x128xf32> -> vector<160x128xf32>
    %44 = arith.addf %35, %43 : vector<160x128xf32>
    %c0_i32_35 = arith.constant 0 : i32
    %45 = arith.addi %0, %c0_i32_35 : i32
    %c0_36 = arith.constant 0 : index
    %46 = arith.index_cast %45 : i32 to index
    %c2_37 = arith.constant 2 : index
    %c0_38 = arith.constant 0 : index
    %47 = vector.load %arg3[%c0_36, %46, %c2_37, %c0_38] : memref<1x20x18x128xbf16, #tpu.memory_space<vmem>>, vector<1x10x16x128xbf16>
    %48 = vector.shape_cast %47 : vector<1x10x16x128xbf16> to vector<10x16x128xbf16>
    %49 = vector.shape_cast %48 : vector<10x16x128xbf16> to vector<160x128xbf16>
    %c2_39 = arith.constant 2 : index
    %c0_40 = arith.constant 0 : index
    %c0_41 = arith.constant 0 : index
    %50 = vector.load %arg5[%c2_39, %c0_40, %c0_41] : memref<9x128x128xbf16, #tpu.memory_space<vmem>>, vector<1x128x128xbf16>
    %51 = vector.shape_cast %50 : vector<1x128x128xbf16> to vector<128x128xbf16>
    %cst_42 = arith.constant dense<0.000000e+00> : vector<160x128xf32>
    %52 = tpu.matmul %49, %51, %cst_42 {dimension_numbers = #tpu.dot_dimension_numbers<[1], [0], [0], [1], [0, 0, 1, 1], [], []>} : vector<160x128xbf16>, vector<128x128xbf16>, vector<160x128xf32> -> vector<160x128xf32>
    %53 = arith.addf %44, %52 : vector<160x128xf32>
    %c1_i32 = arith.constant 1 : i32
    %54 = arith.addi %0, %c1_i32 : i32
    %c0_43 = arith.constant 0 : index
    %55 = arith.index_cast %54 : i32 to index
    %c0_44 = arith.constant 0 : index
    %c0_45 = arith.constant 0 : index
    %56 = vector.load %arg2[%c0_43, %55, %c0_44, %c0_45] : memref<1x20x18x128xbf16, #tpu.memory_space<vmem>>, vector<1x10x16x128xbf16>
    %57 = vector.shape_cast %56 : vector<1x10x16x128xbf16> to vector<10x16x128xbf16>
    %58 = vector.shape_cast %57 : vector<10x16x128xbf16> to vector<160x128xbf16>
    %c3 = arith.constant 3 : index
    %c0_46 = arith.constant 0 : index
    %c0_47 = arith.constant 0 : index
    %59 = vector.load %arg4[%c3, %c0_46, %c0_47] : memref<9x128x128xbf16, #tpu.memory_space<vmem>>, vector<1x128x128xbf16>
    %60 = vector.shape_cast %59 : vector<1x128x128xbf16> to vector<128x128xbf16>
    %cst_48 = arith.constant dense<0.000000e+00> : vector<160x128xf32>
    %61 = tpu.matmul %58, %60, %cst_48 {dimension_numbers = #tpu.dot_dimension_numbers<[1], [0], [0], [1], [0, 0, 1, 1], [], []>} : vector<160x128xbf16>, vector<128x128xbf16>, vector<160x128xf32> -> vector<160x128xf32>
    %62 = arith.addf %53, %61 : vector<160x128xf32>
    %c1_i32_49 = arith.constant 1 : i32
    %63 = arith.addi %0, %c1_i32_49 : i32
    %c0_50 = arith.constant 0 : index
    %64 = arith.index_cast %63 : i32 to index
    %c0_51 = arith.constant 0 : index
    %c0_52 = arith.constant 0 : index
    %65 = vector.load %arg3[%c0_50, %64, %c0_51, %c0_52] : memref<1x20x18x128xbf16, #tpu.memory_space<vmem>>, vector<1x10x16x128xbf16>
    %66 = vector.shape_cast %65 : vector<1x10x16x128xbf16> to vector<10x16x128xbf16>
    %67 = vector.shape_cast %66 : vector<10x16x128xbf16> to vector<160x128xbf16>
    %c3_53 = arith.constant 3 : index
    %c0_54 = arith.constant 0 : index
    %c0_55 = arith.constant 0 : index
    %68 = vector.load %arg5[%c3_53, %c0_54, %c0_55] : memref<9x128x128xbf16, #tpu.memory_space<vmem>>, vector<1x128x128xbf16>
    %69 = vector.shape_cast %68 : vector<1x128x128xbf16> to vector<128x128xbf16>
    %cst_56 = arith.constant dense<0.000000e+00> : vector<160x128xf32>
    %70 = tpu.matmul %67, %69, %cst_56 {dimension_numbers = #tpu.dot_dimension_numbers<[1], [0], [0], [1], [0, 0, 1, 1], [], []>} : vector<160x128xbf16>, vector<128x128xbf16>, vector<160x128xf32> -> vector<160x128xf32>
    %71 = arith.addf %62, %70 : vector<160x128xf32>
    %c1_i32_57 = arith.constant 1 : i32
    %72 = arith.addi %0, %c1_i32_57 : i32
    %c0_58 = arith.constant 0 : index
    %73 = arith.index_cast %72 : i32 to index
    %c1_59 = arith.constant 1 : index
    %c0_60 = arith.constant 0 : index
    %74 = vector.load %arg2[%c0_58, %73, %c1_59, %c0_60] : memref<1x20x18x128xbf16, #tpu.memory_space<vmem>>, vector<1x10x16x128xbf16>
    %75 = vector.shape_cast %74 : vector<1x10x16x128xbf16> to vector<10x16x128xbf16>
    %76 = vector.shape_cast %75 : vector<10x16x128xbf16> to vector<160x128xbf16>
    %c4 = arith.constant 4 : index
    %c0_61 = arith.constant 0 : index
    %c0_62 = arith.constant 0 : index
    %77 = vector.load %arg4[%c4, %c0_61, %c0_62] : memref<9x128x128xbf16, #tpu.memory_space<vmem>>, vector<1x128x128xbf16>
    %78 = vector.shape_cast %77 : vector<1x128x128xbf16> to vector<128x128xbf16>
    %cst_63 = arith.constant dense<0.000000e+00> : vector<160x128xf32>
    %79 = tpu.matmul %76, %78, %cst_63 {dimension_numbers = #tpu.dot_dimension_numbers<[1], [0], [0], [1], [0, 0, 1, 1], [], []>} : vector<160x128xbf16>, vector<128x128xbf16>, vector<160x128xf32> -> vector<160x128xf32>
    %80 = arith.addf %71, %79 : vector<160x128xf32>
    %c1_i32_64 = arith.constant 1 : i32
    %81 = arith.addi %0, %c1_i32_64 : i32
    %c0_65 = arith.constant 0 : index
    %82 = arith.index_cast %81 : i32 to index
    %c1_66 = arith.constant 1 : index
    %c0_67 = arith.constant 0 : index
    %83 = vector.load %arg3[%c0_65, %82, %c1_66, %c0_67] : memref<1x20x18x128xbf16, #tpu.memory_space<vmem>>, vector<1x10x16x128xbf16>
    %84 = vector.shape_cast %83 : vector<1x10x16x128xbf16> to vector<10x16x128xbf16>
    %85 = vector.shape_cast %84 : vector<10x16x128xbf16> to vector<160x128xbf16>
    %c4_68 = arith.constant 4 : index
    %c0_69 = arith.constant 0 : index
    %c0_70 = arith.constant 0 : index
    %86 = vector.load %arg5[%c4_68, %c0_69, %c0_70] : memref<9x128x128xbf16, #tpu.memory_space<vmem>>, vector<1x128x128xbf16>
    %87 = vector.shape_cast %86 : vector<1x128x128xbf16> to vector<128x128xbf16>
    %cst_71 = arith.constant dense<0.000000e+00> : vector<160x128xf32>
    %88 = tpu.matmul %85, %87, %cst_71 {dimension_numbers = #tpu.dot_dimension_numbers<[1], [0], [0], [1], [0, 0, 1, 1], [], []>} : vector<160x128xbf16>, vector<128x128xbf16>, vector<160x128xf32> -> vector<160x128xf32>
    %89 = arith.addf %80, %88 : vector<160x128xf32>
    %c1_i32_72 = arith.constant 1 : i32
    %90 = arith.addi %0, %c1_i32_72 : i32
    %c0_73 = arith.constant 0 : index
    %91 = arith.index_cast %90 : i32 to index
    %c2_74 = arith.constant 2 : index
    %c0_75 = arith.constant 0 : index
    %92 = vector.load %arg2[%c0_73, %91, %c2_74, %c0_75] : memref<1x20x18x128xbf16, #tpu.memory_space<vmem>>, vector<1x10x16x128xbf16>
    %93 = vector.shape_cast %92 : vector<1x10x16x128xbf16> to vector<10x16x128xbf16>
    %94 = vector.shape_cast %93 : vector<10x16x128xbf16> to vector<160x128xbf16>
    %c5 = arith.constant 5 : index
    %c0_76 = arith.constant 0 : index
    %c0_77 = arith.constant 0 : index
    %95 = vector.load %arg4[%c5, %c0_76, %c0_77] : memref<9x128x128xbf16, #tpu.memory_space<vmem>>, vector<1x128x128xbf16>
    %96 = vector.shape_cast %95 : vector<1x128x128xbf16> to vector<128x128xbf16>
    %cst_78 = arith.constant dense<0.000000e+00> : vector<160x128xf32>
    %97 = tpu.matmul %94, %96, %cst_78 {dimension_numbers = #tpu.dot_dimension_numbers<[1], [0], [0], [1], [0, 0, 1, 1], [], []>} : vector<160x128xbf16>, vector<128x128xbf16>, vector<160x128xf32> -> vector<160x128xf32>
    %98 = arith.addf %89, %97 : vector<160x128xf32>
    %c1_i32_79 = arith.constant 1 : i32
    %99 = arith.addi %0, %c1_i32_79 : i32
    %c0_80 = arith.constant 0 : index
    %100 = arith.index_cast %99 : i32 to index
    %c2_81 = arith.constant 2 : index
    %c0_82 = arith.constant 0 : index
    %101 = vector.load %arg3[%c0_80, %100, %c2_81, %c0_82] : memref<1x20x18x128xbf16, #tpu.memory_space<vmem>>, vector<1x10x16x128xbf16>
    %102 = vector.shape_cast %101 : vector<1x10x16x128xbf16> to vector<10x16x128xbf16>
    %103 = vector.shape_cast %102 : vector<10x16x128xbf16> to vector<160x128xbf16>
    %c5_83 = arith.constant 5 : index
    %c0_84 = arith.constant 0 : index
    %c0_85 = arith.constant 0 : index
    %104 = vector.load %arg5[%c5_83, %c0_84, %c0_85] : memref<9x128x128xbf16, #tpu.memory_space<vmem>>, vector<1x128x128xbf16>
    %105 = vector.shape_cast %104 : vector<1x128x128xbf16> to vector<128x128xbf16>
    %cst_86 = arith.constant dense<0.000000e+00> : vector<160x128xf32>
    %106 = tpu.matmul %103, %105, %cst_86 {dimension_numbers = #tpu.dot_dimension_numbers<[1], [0], [0], [1], [0, 0, 1, 1], [], []>} : vector<160x128xbf16>, vector<128x128xbf16>, vector<160x128xf32> -> vector<160x128xf32>
    %107 = arith.addf %98, %106 : vector<160x128xf32>
    %c2_i32 = arith.constant 2 : i32
    %108 = arith.addi %0, %c2_i32 : i32
    %c0_87 = arith.constant 0 : index
    %109 = arith.index_cast %108 : i32 to index
    %c0_88 = arith.constant 0 : index
    %c0_89 = arith.constant 0 : index
    %110 = vector.load %arg2[%c0_87, %109, %c0_88, %c0_89] : memref<1x20x18x128xbf16, #tpu.memory_space<vmem>>, vector<1x10x16x128xbf16>
    %111 = vector.shape_cast %110 : vector<1x10x16x128xbf16> to vector<10x16x128xbf16>
    %112 = vector.shape_cast %111 : vector<10x16x128xbf16> to vector<160x128xbf16>
    %c6 = arith.constant 6 : index
    %c0_90 = arith.constant 0 : index
    %c0_91 = arith.constant 0 : index
    %113 = vector.load %arg4[%c6, %c0_90, %c0_91] : memref<9x128x128xbf16, #tpu.memory_space<vmem>>, vector<1x128x128xbf16>
    %114 = vector.shape_cast %113 : vector<1x128x128xbf16> to vector<128x128xbf16>
    %cst_92 = arith.constant dense<0.000000e+00> : vector<160x128xf32>
    %115 = tpu.matmul %112, %114, %cst_92 {dimension_numbers = #tpu.dot_dimension_numbers<[1], [0], [0], [1], [0, 0, 1, 1], [], []>} : vector<160x128xbf16>, vector<128x128xbf16>, vector<160x128xf32> -> vector<160x128xf32>
    %116 = arith.addf %107, %115 : vector<160x128xf32>
    %c2_i32_93 = arith.constant 2 : i32
    %117 = arith.addi %0, %c2_i32_93 : i32
    %c0_94 = arith.constant 0 : index
    %118 = arith.index_cast %117 : i32 to index
    %c0_95 = arith.constant 0 : index
    %c0_96 = arith.constant 0 : index
    %119 = vector.load %arg3[%c0_94, %118, %c0_95, %c0_96] : memref<1x20x18x128xbf16, #tpu.memory_space<vmem>>, vector<1x10x16x128xbf16>
    %120 = vector.shape_cast %119 : vector<1x10x16x128xbf16> to vector<10x16x128xbf16>
    %121 = vector.shape_cast %120 : vector<10x16x128xbf16> to vector<160x128xbf16>
    %c6_97 = arith.constant 6 : index
    %c0_98 = arith.constant 0 : index
    %c0_99 = arith.constant 0 : index
    %122 = vector.load %arg5[%c6_97, %c0_98, %c0_99] : memref<9x128x128xbf16, #tpu.memory_space<vmem>>, vector<1x128x128xbf16>
    %123 = vector.shape_cast %122 : vector<1x128x128xbf16> to vector<128x128xbf16>
    %cst_100 = arith.constant dense<0.000000e+00> : vector<160x128xf32>
    %124 = tpu.matmul %121, %123, %cst_100 {dimension_numbers = #tpu.dot_dimension_numbers<[1], [0], [0], [1], [0, 0, 1, 1], [], []>} : vector<160x128xbf16>, vector<128x128xbf16>, vector<160x128xf32> -> vector<160x128xf32>
    %125 = arith.addf %116, %124 : vector<160x128xf32>
    %c2_i32_101 = arith.constant 2 : i32
    %126 = arith.addi %0, %c2_i32_101 : i32
    %c0_102 = arith.constant 0 : index
    %127 = arith.index_cast %126 : i32 to index
    %c1_103 = arith.constant 1 : index
    %c0_104 = arith.constant 0 : index
    %128 = vector.load %arg2[%c0_102, %127, %c1_103, %c0_104] : memref<1x20x18x128xbf16, #tpu.memory_space<vmem>>, vector<1x10x16x128xbf16>
    %129 = vector.shape_cast %128 : vector<1x10x16x128xbf16> to vector<10x16x128xbf16>
    %130 = vector.shape_cast %129 : vector<10x16x128xbf16> to vector<160x128xbf16>
    %c7 = arith.constant 7 : index
    %c0_105 = arith.constant 0 : index
    %c0_106 = arith.constant 0 : index
    %131 = vector.load %arg4[%c7, %c0_105, %c0_106] : memref<9x128x128xbf16, #tpu.memory_space<vmem>>, vector<1x128x128xbf16>
    %132 = vector.shape_cast %131 : vector<1x128x128xbf16> to vector<128x128xbf16>
    %cst_107 = arith.constant dense<0.000000e+00> : vector<160x128xf32>
    %133 = tpu.matmul %130, %132, %cst_107 {dimension_numbers = #tpu.dot_dimension_numbers<[1], [0], [0], [1], [0, 0, 1, 1], [], []>} : vector<160x128xbf16>, vector<128x128xbf16>, vector<160x128xf32> -> vector<160x128xf32>
    %134 = arith.addf %125, %133 : vector<160x128xf32>
    %c2_i32_108 = arith.constant 2 : i32
    %135 = arith.addi %0, %c2_i32_108 : i32
    %c0_109 = arith.constant 0 : index
    %136 = arith.index_cast %135 : i32 to index
    %c1_110 = arith.constant 1 : index
    %c0_111 = arith.constant 0 : index
    %137 = vector.load %arg3[%c0_109, %136, %c1_110, %c0_111] : memref<1x20x18x128xbf16, #tpu.memory_space<vmem>>, vector<1x10x16x128xbf16>
    %138 = vector.shape_cast %137 : vector<1x10x16x128xbf16> to vector<10x16x128xbf16>
    %139 = vector.shape_cast %138 : vector<10x16x128xbf16> to vector<160x128xbf16>
    %c7_112 = arith.constant 7 : index
    %c0_113 = arith.constant 0 : index
    %c0_114 = arith.constant 0 : index
    %140 = vector.load %arg5[%c7_112, %c0_113, %c0_114] : memref<9x128x128xbf16, #tpu.memory_space<vmem>>, vector<1x128x128xbf16>
    %141 = vector.shape_cast %140 : vector<1x128x128xbf16> to vector<128x128xbf16>
    %cst_115 = arith.constant dense<0.000000e+00> : vector<160x128xf32>
    %142 = tpu.matmul %139, %141, %cst_115 {dimension_numbers = #tpu.dot_dimension_numbers<[1], [0], [0], [1], [0, 0, 1, 1], [], []>} : vector<160x128xbf16>, vector<128x128xbf16>, vector<160x128xf32> -> vector<160x128xf32>
    %143 = arith.addf %134, %142 : vector<160x128xf32>
    %c2_i32_116 = arith.constant 2 : i32
    %144 = arith.addi %0, %c2_i32_116 : i32
    %c0_117 = arith.constant 0 : index
    %145 = arith.index_cast %144 : i32 to index
    %c2_118 = arith.constant 2 : index
    %c0_119 = arith.constant 0 : index
    %146 = vector.load %arg2[%c0_117, %145, %c2_118, %c0_119] : memref<1x20x18x128xbf16, #tpu.memory_space<vmem>>, vector<1x10x16x128xbf16>
    %147 = vector.shape_cast %146 : vector<1x10x16x128xbf16> to vector<10x16x128xbf16>
    %148 = vector.shape_cast %147 : vector<10x16x128xbf16> to vector<160x128xbf16>
    %c8 = arith.constant 8 : index
    %c0_120 = arith.constant 0 : index
    %c0_121 = arith.constant 0 : index
    %149 = vector.load %arg4[%c8, %c0_120, %c0_121] : memref<9x128x128xbf16, #tpu.memory_space<vmem>>, vector<1x128x128xbf16>
    %150 = vector.shape_cast %149 : vector<1x128x128xbf16> to vector<128x128xbf16>
    %cst_122 = arith.constant dense<0.000000e+00> : vector<160x128xf32>
    %151 = tpu.matmul %148, %150, %cst_122 {dimension_numbers = #tpu.dot_dimension_numbers<[1], [0], [0], [1], [0, 0, 1, 1], [], []>} : vector<160x128xbf16>, vector<128x128xbf16>, vector<160x128xf32> -> vector<160x128xf32>
    %152 = arith.addf %143, %151 : vector<160x128xf32>
    %c2_i32_123 = arith.constant 2 : i32
    %153 = arith.addi %0, %c2_i32_123 : i32
    %c0_124 = arith.constant 0 : index
    %154 = arith.index_cast %153 : i32 to index
    %c2_125 = arith.constant 2 : index
    %c0_126 = arith.constant 0 : index
    %155 = vector.load %arg3[%c0_124, %154, %c2_125, %c0_126] : memref<1x20x18x128xbf16, #tpu.memory_space<vmem>>, vector<1x10x16x128xbf16>
    %156 = vector.shape_cast %155 : vector<1x10x16x128xbf16> to vector<10x16x128xbf16>
    %157 = vector.shape_cast %156 : vector<10x16x128xbf16> to vector<160x128xbf16>
    %c8_127 = arith.constant 8 : index
    %c0_128 = arith.constant 0 : index
    %c0_129 = arith.constant 0 : index
    %158 = vector.load %arg5[%c8_127, %c0_128, %c0_129] : memref<9x128x128xbf16, #tpu.memory_space<vmem>>, vector<1x128x128xbf16>
    %159 = vector.shape_cast %158 : vector<1x128x128xbf16> to vector<128x128xbf16>
    %cst_130 = arith.constant dense<0.000000e+00> : vector<160x128xf32>
    %160 = tpu.matmul %157, %159, %cst_130 {dimension_numbers = #tpu.dot_dimension_numbers<[1], [0], [0], [1], [0, 0, 1, 1], [], []>} : vector<160x128xbf16>, vector<128x128xbf16>, vector<160x128xf32> -> vector<160x128xf32>
    %161 = arith.addf %152, %160 : vector<160x128xf32>
    %c0_131 = arith.constant 0 : index
    %c0_132 = arith.constant 0 : index
    %162 = vector.load %arg6[%c0_131, %c0_132] : memref<1x128xf32, #tpu.memory_space<vmem>>, vector<1x128xf32>
    %163 = vector.broadcast %162 : vector<1x128xf32> to vector<160x128xf32>
    %164 = arith.addf %161, %163 : vector<160x128xf32>
    %cst_133 = arith.constant 5.000000e-01 : f32
    %165 = vector.broadcast %cst_133 : f32 to vector<160x128xf32>
    %166 = arith.mulf %165, %164 : vector<160x128xf32>
    %cst_134 = arith.constant 0.707106769 : f32
    %167 = vector.broadcast %cst_134 : f32 to vector<160x128xf32>
    %168 = arith.mulf %164, %167 : vector<160x128xf32>
    %cst_135 = arith.constant 0.000000e+00 : f32
    %169 = vector.broadcast %cst_135 : f32 to vector<160x128xf32>
    %170 = arith.cmpf olt, %168, %169 : vector<160x128xf32>
    %cst_136 = arith.constant -1.000000e+00 : f32
    %cst_137 = arith.constant 1.000000e+00 : f32
    %171 = vector.broadcast %cst_136 : f32 to vector<160x128xf32>
    %172 = vector.broadcast %cst_137 : f32 to vector<160x128xf32>
    %173 = arith.select %170, %171, %172 : vector<160x128xi1>, vector<160x128xf32>
    %174 = math.absf %168 : vector<160x128xf32>
    %cst_138 = arith.constant 0.327591091 : f32
    %175 = vector.broadcast %cst_138 : f32 to vector<160x128xf32>
    %176 = arith.mulf %175, %174 : vector<160x128xf32>
    %cst_139 = arith.constant 1.000000e+00 : f32
    %177 = vector.broadcast %cst_139 : f32 to vector<160x128xf32>
    %178 = arith.addf %177, %176 : vector<160x128xf32>
    %cst_140 = arith.constant 1.000000e+00 : f32
    %179 = vector.broadcast %cst_140 : f32 to vector<160x128xf32>
    %180 = arith.divf %179, %178 : vector<160x128xf32>
    %cst_141 = arith.constant 1.06140542 : f32
    %181 = vector.broadcast %cst_141 : f32 to vector<160x128xf32>
    %182 = arith.mulf %181, %180 : vector<160x128xf32>
    %cst_142 = arith.constant -1.45315206 : f32
    %183 = vector.broadcast %cst_142 : f32 to vector<160x128xf32>
    %184 = arith.addf %182, %183 : vector<160x128xf32>
    %185 = arith.mulf %184, %180 : vector<160x128xf32>
    %cst_143 = arith.constant 1.42141378 : f32
    %186 = vector.broadcast %cst_143 : f32 to vector<160x128xf32>
    %187 = arith.addf %185, %186 : vector<160x128xf32>
    %188 = arith.mulf %187, %180 : vector<160x128xf32>
    %cst_144 = arith.constant -0.284496725 : f32
    %189 = vector.broadcast %cst_144 : f32 to vector<160x128xf32>
    %190 = arith.addf %188, %189 : vector<160x128xf32>
    %191 = arith.mulf %190, %180 : vector<160x128xf32>
    %cst_145 = arith.constant 0.254829586 : f32
    %192 = vector.broadcast %cst_145 : f32 to vector<160x128xf32>
    %193 = arith.addf %191, %192 : vector<160x128xf32>
    %194 = arith.mulf %193, %180 : vector<160x128xf32>
    %cst_146 = arith.constant 0.000000e+00 : f32
    %195 = vector.broadcast %cst_146 : f32 to vector<160x128xf32>
    %196 = arith.subf %195, %174 : vector<160x128xf32>
    %197 = arith.mulf %196, %174 : vector<160x128xf32>
    %198 = math.exp %197 : vector<160x128xf32>
    %199 = arith.mulf %194, %198 : vector<160x128xf32>
    %cst_147 = arith.constant 1.000000e+00 : f32
    %200 = vector.broadcast %cst_147 : f32 to vector<160x128xf32>
    %201 = arith.subf %200, %199 : vector<160x128xf32>
    %202 = arith.mulf %173, %201 : vector<160x128xf32>
    %cst_148 = arith.constant 1.000000e+00 : f32
    %203 = vector.broadcast %cst_148 : f32 to vector<160x128xf32>
    %204 = arith.addf %203, %202 : vector<160x128xf32>
    %205 = arith.mulf %166, %204 : vector<160x128xf32>
    %206 = arith.truncf %205 : vector<160x128xf32> to vector<160x128xbf16>
    %207 = vector.shape_cast %206 : vector<160x128xbf16> to vector<10x16x128xbf16>
    %cst_149 = arith.constant 0.000000e+00 : bf16
    %208 = vector.broadcast %cst_149 : bf16 to vector<10x8x128xbf16>
    %c0_150 = arith.constant 0 : index
    %c0_151 = arith.constant 0 : index
    %c0_152 = arith.constant 0 : index
    %209 = vector.load %arg10[%c0_150, %c0_151, %c0_152] : memref<10x32x128xbf16, #tpu.memory_space<vmem>>, vector<10x8x128xbf16>
    tpu.vector_store %arg10[%c0_150, %c0_151, %c0_152], %208 {strides = array<i32>} : memref<10x32x128xbf16, #tpu.memory_space<vmem>>, vector<10x8x128xbf16>,
    %cst_153 = arith.constant 0.000000e+00 : bf16
    %210 = vector.broadcast %cst_153 : bf16 to vector<10x8x128xbf16>
    %c0_154 = arith.constant 0 : index
    %c24 = arith.constant 24 : index
    %c0_155 = arith.constant 0 : index
    %211 = vector.load %arg10[%c0_154, %c24, %c0_155] : memref<10x32x128xbf16, #tpu.memory_space<vmem>>, vector<10x8x128xbf16>
    tpu.vector_store %arg10[%c0_154, %c24, %c0_155], %210 {strides = array<i32>} : memref<10x32x128xbf16, #tpu.memory_space<vmem>>, vector<10x8x128xbf16>,
    %c0_156 = arith.constant 0 : index
    %c8_157 = arith.constant 8 : index
    %c0_158 = arith.constant 0 : index
    %212 = vector.load %arg10[%c0_156, %c8_157, %c0_158] : memref<10x32x128xbf16, #tpu.memory_space<vmem>>, vector<10x16x128xbf16>
    tpu.vector_store %arg10[%c0_156, %c8_157, %c0_158], %207 {strides = array<i32>} : memref<10x32x128xbf16, #tpu.memory_space<vmem>>, vector<10x16x128xbf16>,
    %c0_i32_159 = arith.constant 0 : i32
    %213 = arith.cmpi eq, %arg1, %c0_i32_159 : i32
    %214 = arith.extui %213 : i1 to i32
    %c0_i32_160 = arith.constant 0 : i32
    %215 = arith.cmpi ne, %214, %c0_i32_160 : i32
    scf.if %215 {
      %cst_247 = arith.constant 0.000000e+00 : bf16
      %320 = vector.broadcast %cst_247 : bf16 to vector<1x32x128xbf16>
      %c0_248 = arith.constant 0 : index
      %c0_249 = arith.constant 0 : index
      %c0_250 = arith.constant 0 : index
      %321 = vector.load %arg10[%c0_248, %c0_249, %c0_250] : memref<10x32x128xbf16, #tpu.memory_space<vmem>>, vector<1x32x128xbf16>
      tpu.vector_store %arg10[%c0_248, %c0_249, %c0_250], %320 {strides = array<i32>} : memref<10x32x128xbf16, #tpu.memory_space<vmem>>, vector<1x32x128xbf16>,
    } else {
    }
    %c1_i32_161 = arith.constant 1 : i32
    %216 = arith.cmpi eq, %arg1, %c1_i32_161 : i32
    %217 = arith.extui %216 : i1 to i32
    %c0_i32_162 = arith.constant 0 : i32
    %218 = arith.cmpi ne, %217, %c0_i32_162 : i32
    scf.if %218 {
      %cst_247 = arith.constant 0.000000e+00 : bf16
      %320 = vector.broadcast %cst_247 : bf16 to vector<1x32x128xbf16>
      %c9_248 = arith.constant 9 : index
      %c0_249 = arith.constant 0 : index
      %c0_250 = arith.constant 0 : index
      %321 = vector.load %arg10[%c9_248, %c0_249, %c0_250] : memref<10x32x128xbf16, #tpu.memory_space<vmem>>, vector<1x32x128xbf16>
      tpu.vector_store %arg10[%c9_248, %c0_249, %c0_250], %320 {strides = array<i32>} : memref<10x32x128xbf16, #tpu.memory_space<vmem>>, vector<1x32x128xbf16>,
    } else {
    }
    %c0_163 = arith.constant 0 : index
    %c7_164 = arith.constant 7 : index
    %c0_165 = arith.constant 0 : index
    %219 = vector.load %arg10[%c0_163, %c7_164, %c0_165] : memref<10x32x128xbf16, #tpu.memory_space<vmem>>, vector<8x16x128xbf16>
    %220 = vector.shape_cast %219 : vector<8x16x128xbf16> to vector<128x128xbf16>
    %c0_166 = arith.constant 0 : index
    %c0_167 = arith.constant 0 : index
    %c0_168 = arith.constant 0 : index
    %221 = vector.load %arg7[%c0_166, %c0_167, %c0_168] : memref<9x128x128xbf16, #tpu.memory_space<vmem>>, vector<1x128x128xbf16>
    %222 = vector.shape_cast %221 : vector<1x128x128xbf16> to vector<128x128xbf16>
    %cst_169 = arith.constant dense<0.000000e+00> : vector<128x128xf32>
    %223 = tpu.matmul %220, %222, %cst_169 {dimension_numbers = #tpu.dot_dimension_numbers<[1], [0], [0], [1], [0, 0, 1, 1], [], []>} : vector<128x128xbf16>, vector<128x128xbf16>, vector<128x128xf32> -> vector<128x128xf32>
    %c0_170 = arith.constant 0 : index
    %c8_171 = arith.constant 8 : index
    %c0_172 = arith.constant 0 : index
    %224 = vector.load %arg10[%c0_170, %c8_171, %c0_172] : memref<10x32x128xbf16, #tpu.memory_space<vmem>>, vector<8x16x128xbf16>
    %225 = vector.shape_cast %224 : vector<8x16x128xbf16> to vector<128x128xbf16>
    %c1_173 = arith.constant 1 : index
    %c0_174 = arith.constant 0 : index
    %c0_175 = arith.constant 0 : index
    %226 = vector.load %arg7[%c1_173, %c0_174, %c0_175] : memref<9x128x128xbf16, #tpu.memory_space<vmem>>, vector<1x128x128xbf16>
    %227 = vector.shape_cast %226 : vector<1x128x128xbf16> to vector<128x128xbf16>
    %cst_176 = arith.constant dense<0.000000e+00> : vector<128x128xf32>
    %228 = tpu.matmul %225, %227, %cst_176 {dimension_numbers = #tpu.dot_dimension_numbers<[1], [0], [0], [1], [0, 0, 1, 1], [], []>} : vector<128x128xbf16>, vector<128x128xbf16>, vector<128x128xf32> -> vector<128x128xf32>
    %229 = arith.addf %223, %228 : vector<128x128xf32>
    %c0_177 = arith.constant 0 : index
    %c9 = arith.constant 9 : index
    %c0_178 = arith.constant 0 : index
    %230 = vector.load %arg10[%c0_177, %c9, %c0_178] : memref<10x32x128xbf16, #tpu.memory_space<vmem>>, vector<8x16x128xbf16>
    %231 = vector.shape_cast %230 : vector<8x16x128xbf16> to vector<128x128xbf16>
    %c2_179 = arith.constant 2 : index
    %c0_180 = arith.constant 0 : index
    %c0_181 = arith.constant 0 : index
    %232 = vector.load %arg7[%c2_179, %c0_180, %c0_181] : memref<9x128x128xbf16, #tpu.memory_space<vmem>>, vector<1x128x128xbf16>
    %233 = vector.shape_cast %232 : vector<1x128x128xbf16> to vector<128x128xbf16>
    %cst_182 = arith.constant dense<0.000000e+00> : vector<128x128xf32>
    %234 = tpu.matmul %231, %233, %cst_182 {dimension_numbers = #tpu.dot_dimension_numbers<[1], [0], [0], [1], [0, 0, 1, 1], [], []>} : vector<128x128xbf16>, vector<128x128xbf16>, vector<128x128xf32> -> vector<128x128xf32>
    %235 = arith.addf %229, %234 : vector<128x128xf32>
    %c1_183 = arith.constant 1 : index
    %c7_184 = arith.constant 7 : index
    %c0_185 = arith.constant 0 : index
    %236 = vector.load %arg10[%c1_183, %c7_184, %c0_185] : memref<10x32x128xbf16, #tpu.memory_space<vmem>>, vector<8x16x128xbf16>
    %237 = vector.shape_cast %236 : vector<8x16x128xbf16> to vector<128x128xbf16>
    %c3_186 = arith.constant 3 : index
    %c0_187 = arith.constant 0 : index
    %c0_188 = arith.constant 0 : index
    %238 = vector.load %arg7[%c3_186, %c0_187, %c0_188] : memref<9x128x128xbf16, #tpu.memory_space<vmem>>, vector<1x128x128xbf16>
    %239 = vector.shape_cast %238 : vector<1x128x128xbf16> to vector<128x128xbf16>
    %cst_189 = arith.constant dense<0.000000e+00> : vector<128x128xf32>
    %240 = tpu.matmul %237, %239, %cst_189 {dimension_numbers = #tpu.dot_dimension_numbers<[1], [0], [0], [1], [0, 0, 1, 1], [], []>} : vector<128x128xbf16>, vector<128x128xbf16>, vector<128x128xf32> -> vector<128x128xf32>
    %241 = arith.addf %235, %240 : vector<128x128xf32>
    %c1_190 = arith.constant 1 : index
    %c8_191 = arith.constant 8 : index
    %c0_192 = arith.constant 0 : index
    %242 = vector.load %arg10[%c1_190, %c8_191, %c0_192] : memref<10x32x128xbf16, #tpu.memory_space<vmem>>, vector<8x16x128xbf16>
    %243 = vector.shape_cast %242 : vector<8x16x128xbf16> to vector<128x128xbf16>
    %c4_193 = arith.constant 4 : index
    %c0_194 = arith.constant 0 : index
    %c0_195 = arith.constant 0 : index
    %244 = vector.load %arg7[%c4_193, %c0_194, %c0_195] : memref<9x128x128xbf16, #tpu.memory_space<vmem>>, vector<1x128x128xbf16>
    %245 = vector.shape_cast %244 : vector<1x128x128xbf16> to vector<128x128xbf16>
    %cst_196 = arith.constant dense<0.000000e+00> : vector<128x128xf32>
    %246 = tpu.matmul %243, %245, %cst_196 {dimension_numbers = #tpu.dot_dimension_numbers<[1], [0], [0], [1], [0, 0, 1, 1], [], []>} : vector<128x128xbf16>, vector<128x128xbf16>, vector<128x128xf32> -> vector<128x128xf32>
    %247 = arith.addf %241, %246 : vector<128x128xf32>
    %c1_197 = arith.constant 1 : index
    %c9_198 = arith.constant 9 : index
    %c0_199 = arith.constant 0 : index
    %248 = vector.load %arg10[%c1_197, %c9_198, %c0_199] : memref<10x32x128xbf16, #tpu.memory_space<vmem>>, vector<8x16x128xbf16>
    %249 = vector.shape_cast %248 : vector<8x16x128xbf16> to vector<128x128xbf16>
    %c5_200 = arith.constant 5 : index
    %c0_201 = arith.constant 0 : index
    %c0_202 = arith.constant 0 : index
    %250 = vector.load %arg7[%c5_200, %c0_201, %c0_202] : memref<9x128x128xbf16, #tpu.memory_space<vmem>>, vector<1x128x128xbf16>
    %251 = vector.shape_cast %250 : vector<1x128x128xbf16> to vector<128x128xbf16>
    %cst_203 = arith.constant dense<0.000000e+00> : vector<128x128xf32>
    %252 = tpu.matmul %249, %251, %cst_203 {dimension_numbers = #tpu.dot_dimension_numbers<[1], [0], [0], [1], [0, 0, 1, 1], [], []>} : vector<128x128xbf16>, vector<128x128xbf16>, vector<128x128xf32> -> vector<128x128xf32>
    %253 = arith.addf %247, %252 : vector<128x128xf32>
    %c2_204 = arith.constant 2 : index
    %c7_205 = arith.constant 7 : index
    %c0_206 = arith.constant 0 : index
    %254 = vector.load %arg10[%c2_204, %c7_205, %c0_206] : memref<10x32x128xbf16, #tpu.memory_space<vmem>>, vector<8x16x128xbf16>
    %255 = vector.shape_cast %254 : vector<8x16x128xbf16> to vector<128x128xbf16>
    %c6_207 = arith.constant 6 : index
    %c0_208 = arith.constant 0 : index
    %c0_209 = arith.constant 0 : index
    %256 = vector.load %arg7[%c6_207, %c0_208, %c0_209] : memref<9x128x128xbf16, #tpu.memory_space<vmem>>, vector<1x128x128xbf16>
    %257 = vector.shape_cast %256 : vector<1x128x128xbf16> to vector<128x128xbf16>
    %cst_210 = arith.constant dense<0.000000e+00> : vector<128x128xf32>
    %258 = tpu.matmul %255, %257, %cst_210 {dimension_numbers = #tpu.dot_dimension_numbers<[1], [0], [0], [1], [0, 0, 1, 1], [], []>} : vector<128x128xbf16>, vector<128x128xbf16>, vector<128x128xf32> -> vector<128x128xf32>
    %259 = arith.addf %253, %258 : vector<128x128xf32>
    %c2_211 = arith.constant 2 : index
    %c8_212 = arith.constant 8 : index
    %c0_213 = arith.constant 0 : index
    %260 = vector.load %arg10[%c2_211, %c8_212, %c0_213] : memref<10x32x128xbf16, #tpu.memory_space<vmem>>, vector<8x16x128xbf16>
    %261 = vector.shape_cast %260 : vector<8x16x128xbf16> to vector<128x128xbf16>
    %c7_214 = arith.constant 7 : index
    %c0_215 = arith.constant 0 : index
    %c0_216 = arith.constant 0 : index
    %262 = vector.load %arg7[%c7_214, %c0_215, %c0_216] : memref<9x128x128xbf16, #tpu.memory_space<vmem>>, vector<1x128x128xbf16>
    %263 = vector.shape_cast %262 : vector<1x128x128xbf16> to vector<128x128xbf16>
    %cst_217 = arith.constant dense<0.000000e+00> : vector<128x128xf32>
    %264 = tpu.matmul %261, %263, %cst_217 {dimension_numbers = #tpu.dot_dimension_numbers<[1], [0], [0], [1], [0, 0, 1, 1], [], []>} : vector<128x128xbf16>, vector<128x128xbf16>, vector<128x128xf32> -> vector<128x128xf32>
    %265 = arith.addf %259, %264 : vector<128x128xf32>
    %c2_218 = arith.constant 2 : index
    %c9_219 = arith.constant 9 : index
    %c0_220 = arith.constant 0 : index
    %266 = vector.load %arg10[%c2_218, %c9_219, %c0_220] : memref<10x32x128xbf16, #tpu.memory_space<vmem>>, vector<8x16x128xbf16>
    %267 = vector.shape_cast %266 : vector<8x16x128xbf16> to vector<128x128xbf16>
    %c8_221 = arith.constant 8 : index
    %c0_222 = arith.constant 0 : index
    %c0_223 = arith.constant 0 : index
    %268 = vector.load %arg7[%c8_221, %c0_222, %c0_223] : memref<9x128x128xbf16, #tpu.memory_space<vmem>>, vector<1x128x128xbf16>
    %269 = vector.shape_cast %268 : vector<1x128x128xbf16> to vector<128x128xbf16>
    %cst_224 = arith.constant dense<0.000000e+00> : vector<128x128xf32>
    %270 = tpu.matmul %267, %269, %cst_224 {dimension_numbers = #tpu.dot_dimension_numbers<[1], [0], [0], [1], [0, 0, 1, 1], [], []>} : vector<128x128xbf16>, vector<128x128xbf16>, vector<128x128xf32> -> vector<128x128xf32>
    %271 = arith.addf %265, %270 : vector<128x128xf32>
    %c0_225 = arith.constant 0 : index
    %c0_226 = arith.constant 0 : index
    %272 = vector.load %arg8[%c0_225, %c0_226] : memref<1x128xf32, #tpu.memory_space<vmem>>, vector<1x128xf32>
    %273 = vector.broadcast %272 : vector<1x128xf32> to vector<128x128xf32>
    %274 = arith.addf %271, %273 : vector<128x128xf32>
    %cst_227 = arith.constant 5.000000e-01 : f32
    %275 = vector.broadcast %cst_227 : f32 to vector<128x128xf32>
    %276 = arith.mulf %275, %274 : vector<128x128xf32>
    %cst_228 = arith.constant 0.707106769 : f32
    %277 = vector.broadcast %cst_228 : f32 to vector<128x128xf32>
    %278 = arith.mulf %274, %277 : vector<128x128xf32>
    %cst_229 = arith.constant 0.000000e+00 : f32
    %279 = vector.broadcast %cst_229 : f32 to vector<128x128xf32>
    %280 = arith.cmpf olt, %278, %279 : vector<128x128xf32>
    %cst_230 = arith.constant -1.000000e+00 : f32
    %cst_231 = arith.constant 1.000000e+00 : f32
    %281 = vector.broadcast %cst_230 : f32 to vector<128x128xf32>
    %282 = vector.broadcast %cst_231 : f32 to vector<128x128xf32>
    %283 = arith.select %280, %281, %282 : vector<128x128xi1>, vector<128x128xf32>
    %284 = math.absf %278 : vector<128x128xf32>
    %cst_232 = arith.constant 0.327591091 : f32
    %285 = vector.broadcast %cst_232 : f32 to vector<128x128xf32>
    %286 = arith.mulf %285, %284 : vector<128x128xf32>
    %cst_233 = arith.constant 1.000000e+00 : f32
    %287 = vector.broadcast %cst_233 : f32 to vector<128x128xf32>
    %288 = arith.addf %287, %286 : vector<128x128xf32>
    %cst_234 = arith.constant 1.000000e+00 : f32
    %289 = vector.broadcast %cst_234 : f32 to vector<128x128xf32>
    %290 = arith.divf %289, %288 : vector<128x128xf32>
    %cst_235 = arith.constant 1.06140542 : f32
    %291 = vector.broadcast %cst_235 : f32 to vector<128x128xf32>
    %292 = arith.mulf %291, %290 : vector<128x128xf32>
    %cst_236 = arith.constant -1.45315206 : f32
    %293 = vector.broadcast %cst_236 : f32 to vector<128x128xf32>
    %294 = arith.addf %292, %293 : vector<128x128xf32>
    %295 = arith.mulf %294, %290 : vector<128x128xf32>
    %cst_237 = arith.constant 1.42141378 : f32
    %296 = vector.broadcast %cst_237 : f32 to vector<128x128xf32>
    %297 = arith.addf %295, %296 : vector<128x128xf32>
    %298 = arith.mulf %297, %290 : vector<128x128xf32>
    %cst_238 = arith.constant -0.284496725 : f32
    %299 = vector.broadcast %cst_238 : f32 to vector<128x128xf32>
    %300 = arith.addf %298, %299 : vector<128x128xf32>
    %301 = arith.mulf %300, %290 : vector<128x128xf32>
    %cst_239 = arith.constant 0.254829586 : f32
    %302 = vector.broadcast %cst_239 : f32 to vector<128x128xf32>
    %303 = arith.addf %301, %302 : vector<128x128xf32>
    %304 = arith.mulf %303, %290 : vector<128x128xf32>
    %cst_240 = arith.constant 0.000000e+00 : f32
    %305 = vector.broadcast %cst_240 : f32 to vector<128x128xf32>
    %306 = arith.subf %305, %284 : vector<128x128xf32>
    %307 = arith.mulf %306, %284 : vector<128x128xf32>
    %308 = math.exp %307 : vector<128x128xf32>
    %309 = arith.mulf %304, %308 : vector<128x128xf32>
    %cst_241 = arith.constant 1.000000e+00 : f32
    %310 = vector.broadcast %cst_241 : f32 to vector<128x128xf32>
    %311 = arith.subf %310, %309 : vector<128x128xf32>
    %312 = arith.mulf %283, %311 : vector<128x128xf32>
    %cst_242 = arith.constant 1.000000e+00 : f32
    %313 = vector.broadcast %cst_242 : f32 to vector<128x128xf32>
    %314 = arith.addf %313, %312 : vector<128x128xf32>
    %315 = arith.mulf %276, %314 : vector<128x128xf32>
    %316 = vector.shape_cast %315 : vector<128x128xf32> to vector<8x16x128xf32>
    %c0_243 = arith.constant 0 : index
    %c0_244 = arith.constant 0 : index
    %c0_245 = arith.constant 0 : index
    %c0_246 = arith.constant 0 : index
    %317 = vector.load %arg9[%c0_243, %c0_244, %c0_245, %c0_246] : memref<1x8x16x128xf32, #tpu.memory_space<vmem>>, vector<1x8x16x128xf32>
    %318 = vector.shape_cast %317 : vector<1x8x16x128xf32> to vector<8x16x128xf32>
    %319 = vector.shape_cast %316 : vector<8x16x128xf32> to vector<1x8x16x128xf32>
    tpu.vector_store %arg9[%c0_243, %c0_244, %c0_245, %c0_246], %319 {strides = array<i32>} : memref<1x8x16x128xf32, #tpu.memory_space<vmem>>, vector<1x8x16x128xf32>,
    return
  }
  func.func @transform_0(%arg0: i32, %arg1: i32) -> (i32, i32, i32, i32) {
    %c0_i32 = arith.constant 0 : i32
    %c0_i32_0 = arith.constant 0 : i32
    %c0_i32_1 = arith.constant 0 : i32
    %c0_i32_2 = arith.constant 0 : i32
    return %arg0, %c0_i32, %c0_i32_0, %c0_i32_1 : i32, i32, i32, i32
  }
  func.func @transform_1(%arg0: i32, %arg1: i32) -> (i32, i32, i32, i32) {
    %c0_i32 = arith.constant 0 : i32
    %c0_i32_0 = arith.constant 0 : i32
    %c0_i32_1 = arith.constant 0 : i32
    %c0_i32_2 = arith.constant 0 : i32
    return %arg0, %c0_i32, %c0_i32_0, %c0_i32_1 : i32, i32, i32, i32
  }
  func.func @transform_2(%arg0: i32, %arg1: i32) -> (i32, i32, i32) {
    %c0_i32 = arith.constant 0 : i32
    %c0_i32_0 = arith.constant 0 : i32
    %c0_i32_1 = arith.constant 0 : i32
    %c0_i32_2 = arith.constant 0 : i32
    return %c0_i32, %c0_i32_0, %c0_i32_1 : i32, i32, i32
  }
  func.func @transform_3(%arg0: i32, %arg1: i32) -> (i32, i32, i32) {
    %c0_i32 = arith.constant 0 : i32
    %c0_i32_0 = arith.constant 0 : i32
    %c0_i32_1 = arith.constant 0 : i32
    %c0_i32_2 = arith.constant 0 : i32
    return %c0_i32, %c0_i32_0, %c0_i32_1 : i32, i32, i32
  }
  func.func @transform_4(%arg0: i32, %arg1: i32) -> (i32, i32) {
    %c0_i32 = arith.constant 0 : i32
    %c0_i32_0 = arith.constant 0 : i32
    %c0_i32_1 = arith.constant 0 : i32
    return %c0_i32, %c0_i32_0 : i32, i32
  }
  func.func @transform_5(%arg0: i32, %arg1: i32) -> (i32, i32, i32) {
    %c0_i32 = arith.constant 0 : i32
    %c0_i32_0 = arith.constant 0 : i32
    %c0_i32_1 = arith.constant 0 : i32
    %c0_i32_2 = arith.constant 0 : i32
    return %c0_i32, %c0_i32_0, %c0_i32_1 : i32, i32, i32
  }
  func.func @transform_6(%arg0: i32, %arg1: i32) -> (i32, i32) {
    %c0_i32 = arith.constant 0 : i32
    %c0_i32_0 = arith.constant 0 : i32
    %c0_i32_1 = arith.constant 0 : i32
    return %c0_i32, %c0_i32_0 : i32, i32
  }
  func.func @transform_7(%arg0: i32, %arg1: i32) -> (i32, i32, i32, i32) {
    %c0_i32 = arith.constant 0 : i32
    %c0_i32_0 = arith.constant 0 : i32
    %c0_i32_1 = arith.constant 0 : i32
    return %arg0, %arg1, %c0_i32, %c0_i32_0 : i32, i32, i32, i32
  }
}

</mosaic_0001>

<llo_original>
// kernel: up_forward.1
$region0: #{up_forward.1}
  #allocation0 [shape = 'u32[]', space=smem, size = 0x4, offset = 0x4, fixed_abs, tag = 'smem constant byte address 0x4 - core index']
  #allocation1 [shape = 'u32[72,128]{1,0:T(1,128)}', space=vmem, size = 0x9000, scoped, tag = 'internal scratch']
  #allocation2 [shape = 'bf16[10,32,128]{2,1,0:T(8,128)(2,1)}', space=vmem, size = 0x14000, scoped, tag = 'scratch operand']
  %s0 = inlined_call_operand.vmem [shape: bf16[2,20,18,128], index: 0, kind: input, shape index: {}]
  %s1 = inlined_call_operand.vmem [shape: bf16[2,20,18,128], index: 1, kind: input, shape index: {}]
  %s2 = inlined_call_operand.vmem [shape: bf16[9,128,128], index: 2, kind: input, shape index: {}]
  %s3 = inlined_call_operand.vmem [shape: bf16[9,128,128], index: 3, kind: input, shape index: {}]
  %s4 = inlined_call_operand.vmem [shape: f32[1,128], index: 4, kind: input, shape index: {}]
  %s5 = inlined_call_operand.vmem [shape: bf16[9,128,128], index: 5, kind: input, shape index: {}]
  %s6 = inlined_call_operand.vmem [shape: f32[1,128], index: 6, kind: input, shape index: {}]
  %s7 = inlined_call_operand.vmem [shape: f32[2,16,16,128], index: 7, kind: output, shape index: {}]
  %s8 = sld [smem:[#allocation0]]
  $region69: #{up_forward.1} parent=0
    _
  %s10 = ssub.s32 1, %s8
  %s11 = scalar_select 0, %s10, %s8
  loop: start=0, step=1, limit=6
  $region2: #{up_forward.1} parent=0 // loop_pre_header
    _
  $region3: #{up_forward.1} parent=0 // loop_header
    %s13 = sphi 0, %s17
    %p14 = scmp.ge.s32.totalorder %s13, 6
    %s20 = sphi 0, %s32
    %s21 = sphi 0, %s28
    %s22 = sphi 0, %s20
    %s23 = sphi 0, %s21
    %s24 = sphi 0, %s22
    %s25 = sphi 0, %s23
    %s35 = sphi 0, %s37
    %s38 = sphi 0, %s35
    %s39 = sphi 0, %s38
    %s55 = sphi 0, %s39
    %s61 = sphi 0, %s63
    %s64 = sphi 0, %s61
    %s65 = sphi 0, %s64
    %s81 = sphi 0, %s65
    %s85 = sphi 0, %s85
    %s87 = sphi 0, %s85
    %s88 = sphi 0, %s87
    %s102 = sphi 0, %s88
    %s106 = sphi 0, %s106
    %s108 = sphi 0, %s106
    %s109 = sphi 0, %s108
    %s123 = sphi 0, %s109
    %s127 = sphi 0, %s127
    %s129 = sphi 0, %s127
    %s130 = sphi 0, %s129
    %s144 = sphi 0, %s130
    %s148 = sphi 0, %s148
    %s150 = sphi 0, %s148
    %s151 = sphi 0, %s150
    %s165 = sphi 0, %s151
    %s169 = sphi 0, %s169
    %s171 = sphi 0, %s169
    %s172 = sphi 0, %s171
    %s186 = sphi 0, %s172
    %s194 = sphi 0, %s196
    %s197 = sphi 0, %s194
    %s198 = sphi 0, %s197
    %s214 = sphi 0, %s198
  $region4: #{up_forward.1} parent=0 // loop_header_branch
    %16 = sbr.rel (%p14) target = $region8
  $region5: #{up_forward.1} parent=0 // loop_body
    %s18 = ssub.s32 %s13, 1
    %s19 = ssub.s32 %s13, 2
    %s26 = sadd.s32 1, %s21
    %p27 = scmp.ge.s32.totalorder %s26, 2
    %s28 = scalar_select %p27, 0, %s26
    %s29 = sadd.s32 1, %s20
    %s30 = scalar_select %p27, %s29, %s20
    %p31 = scmp.ge.s32.totalorder %s30, 2
    %s32 = scalar_select %p31, 0, %s30
    %s33 = ssub.s32 %s20, %s32
    %p34 = scmp.eq.s32.totalorder %s33, 0
    %s36 = sadd.s32 %s35, 1
    %s37 = scalar_select %p34, %s35, %s36
    %p40 = pneg %p34
    %p41 = scmp.eq.s32.totalorder %s13, 3
    %p42 = por %p40, %p41
    %p43 = scmp.ne.s32.totalorder %s35, %s38
    %p44 = scmp.eq.s32.totalorder %s13, 0
    %p45 = por %p43, %p44
    %p46 = scmp.ne.s32.totalorder %s35, %s38
    %p47 = scmp.eq.s32.totalorder %s18, 3
    %p48 = por %p46, %p47
    %p49 = scmp.ne.s32.totalorder %s38, %s39
    %p50 = scmp.eq.s32.totalorder %s18, 0
    %p51 = por %p49, %p50
    %p52 = scmp.ne.s32.totalorder %s38, %s39
    %p53 = scmp.eq.s32.totalorder %s19, 3
    %p54 = por %p52, %p53
    %p56 = scmp.ne.s32.totalorder %s39, %s55
    %p57 = scmp.eq.s32.totalorder %s19, 0
    %p58 = por %p56, %p57
    %s59 = ssub.s32 %s20, %s32
    %p60 = scmp.eq.s32.totalorder %s59, 0
    %s62 = sadd.s32 %s61, 1
    %s63 = scalar_select %p60, %s61, %s62
    %p66 = pneg %p60
    %p67 = scmp.eq.s32.totalorder %s13, 3
    %p68 = por %p66, %p67
    %p69 = scmp.ne.s32.totalorder %s61, %s64
    %p70 = scmp.eq.s32.totalorder %s13, 0
    %p71 = por %p69, %p70
    %p72 = scmp.ne.s32.totalorder %s61, %s64
    %p73 = scmp.eq.s32.totalorder %s18, 3
    %p74 = por %p72, %p73
    %p75 = scmp.ne.s32.totalorder %s64, %s65
    %p76 = scmp.eq.s32.totalorder %s18, 0
    %p77 = por %p75, %p76
    %p78 = scmp.ne.s32.totalorder %s64, %s65
    %p79 = scmp.eq.s32.totalorder %s19, 3
    %p80 = por %p78, %p79
    %p82 = scmp.ne.s32.totalorder %s65, %s81
    %p83 = scmp.eq.s32.totalorder %s19, 0
    %p84 = por %p82, %p83
    %s86 = sadd.s32 %s85, 1
    %p89 = scmp.eq.s32.totalorder %s13, 3
    %p90 = scmp.ne.s32.totalorder %s85, %s87
    %p91 = scmp.eq.s32.totalorder %s13, 0
    %p92 = por %p90, %p91
    %p93 = scmp.ne.s32.totalorder %s85, %s87
    %p94 = scmp.eq.s32.totalorder %s18, 3
    %p95 = por %p93, %p94
    %p96 = scmp.ne.s32.totalorder %s87, %s88
    %p97 = scmp.eq.s32.totalorder %s18, 0
    %p98 = por %p96, %p97
    %p99 = scmp.ne.s32.totalorder %s87, %s88
    %p100 = scmp.eq.s32.totalorder %s19, 3
    %p101 = por %p99, %p100
    %p103 = scmp.ne.s32.totalorder %s88, %s102
    %p104 = scmp.eq.s32.totalorder %s19, 0
    %p105 = por %p103, %p104
    %s107 = sadd.s32 %s106, 1
    %p110 = scmp.eq.s32.totalorder %s13, 3
    %p111 = scmp.ne.s32.totalorder %s106, %s108
    %p112 = scmp.eq.s32.totalorder %s13, 0
    %p113 = por %p111, %p112
    %p114 = scmp.ne.s32.totalorder %s106, %s108
    %p115 = scmp.eq.s32.totalorder %s18, 3
    %p116 = por %p114, %p115
    %p117 = scmp.ne.s32.totalorder %s108, %s109
    %p118 = scmp.eq.s32.totalorder %s18, 0
    %p119 = por %p117, %p118
    %p120 = scmp.ne.s32.totalorder %s108, %s109
    %p121 = scmp.eq.s32.totalorder %s19, 3
    %p122 = por %p120, %p121
    %p124 = scmp.ne.s32.totalorder %s109, %s123
    %p125 = scmp.eq.s32.totalorder %s19, 0
    %p126 = por %p124, %p125
    %s128 = sadd.s32 %s127, 1
    %p131 = scmp.eq.s32.totalorder %s13, 3
    %p132 = scmp.ne.s32.totalorder %s127, %s129
    %p133 = scmp.eq.s32.totalorder %s13, 0
    %p134 = por %p132, %p133
    %p135 = scmp.ne.s32.totalorder %s127, %s129
    %p136 = scmp.eq.s32.totalorder %s18, 3
    %p137 = por %p135, %p136
    %p138 = scmp.ne.s32.totalorder %s129, %s130
    %p139 = scmp.eq.s32.totalorder %s18, 0
    %p140 = por %p138, %p139
    %p141 = scmp.ne.s32.totalorder %s129, %s130
    %p142 = scmp.eq.s32.totalorder %s19, 3
    %p143 = por %p141, %p142
    %p145 = scmp.ne.s32.totalorder %s130, %s144
    %p146 = scmp.eq.s32.totalorder %s19, 0
    %p147 = por %p145, %p146
    %s149 = sadd.s32 %s148, 1
    %p152 = scmp.eq.s32.totalorder %s13, 3
    %p153 = scmp.ne.s32.totalorder %s148, %s150
    %p154 = scmp.eq.s32.totalorder %s13, 0
    %p155 = por %p153, %p154
    %p156 = scmp.ne.s32.totalorder %s148, %s150
    %p157 = scmp.eq.s32.totalorder %s18, 3
    %p158 = por %p156, %p157
    %p159 = scmp.ne.s32.totalorder %s150, %s151
    %p160 = scmp.eq.s32.totalorder %s18, 0
    %p161 = por %p159, %p160
    %p162 = scmp.ne.s32.totalorder %s150, %s151
    %p163 = scmp.eq.s32.totalorder %s19, 3
    %p164 = por %p162, %p163
    %p166 = scmp.ne.s32.totalorder %s151, %s165
    %p167 = scmp.eq.s32.totalorder %s19, 0
    %p168 = por %p166, %p167
    %s170 = sadd.s32 %s169, 1
    %p173 = scmp.eq.s32.totalorder %s13, 3
    %p174 = scmp.ne.s32.totalorder %s169, %s171
    %p175 = scmp.eq.s32.totalorder %s13, 0
    %p176 = por %p174, %p175
    %p177 = scmp.ne.s32.totalorder %s169, %s171
    %p178 = scmp.eq.s32.totalorder %s18, 3
    %p179 = por %p177, %p178
    %p180 = scmp.ne.s32.totalorder %s171, %s172
    %p181 = scmp.eq.s32.totalorder %s18, 0
    %p182 = por %p180, %p181
    %p183 = scmp.ne.s32.totalorder %s171, %s172
    %p184 = scmp.eq.s32.totalorder %s19, 3
    %p185 = por %p183, %p184
    %p187 = scmp.ne.s32.totalorder %s172, %s186
    %p188 = scmp.eq.s32.totalorder %s19, 0
    %p189 = por %p187, %p188
    %s190 = ssub.s32 %s20, %s32
    %s191 = ssub.s32 %s21, %s28
    %s192 = sor.u32 %s190, %s191
    %p193 = scmp.eq.s32.totalorder %s192, 0
    %s195 = sadd.s32 %s194, 1
    %s196 = scalar_select %p193, %s194, %s195
    %p199 = pneg %p193
    %p200 = scmp.eq.s32.totalorder %s13, 3
    %p201 = por %p199, %p200
    %p202 = scmp.ne.s32.totalorder %s194, %s197
    %p203 = scmp.eq.s32.totalorder %s13, 0
    %p204 = por %p202, %p203
    %p205 = scmp.ne.s32.totalorder %s194, %s197
    %p206 = scmp.eq.s32.totalorder %s18, 3
    %p207 = por %p205, %p206
    %p208 = scmp.ne.s32.totalorder %s197, %s198
    %p209 = scmp.eq.s32.totalorder %s18, 0
    %p210 = por %p208, %p209
    %p211 = scmp.ne.s32.totalorder %s197, %s198
    %p212 = scmp.eq.s32.totalorder %s19, 3
    %p213 = por %p211, %p212
    %p215 = scmp.ne.s32.totalorder %s198, %s214
    %p216 = scmp.eq.s32.totalorder %s19, 0
    %p217 = por %p215, %p216
    %p218 = scmp.le.s32.totalorder 1, %s13
    %p219 = scmp.lt.s32.totalorder %s13, 5
    %p220 = pnand %p218, %p219
    %p221 = pneg %p220
    // Predicated region
    $region9: #{up_forward.1} parent=5 // pred_check
      _
    $region10: #{up_forward.1} parent=5 // pred_check_branch
      %223 = sbr.rel (%p220) target = $region12
    $region11: #{up_forward.1} parent=5 // pred_region
      %s224 = ssub.s32 %s13, 1
      // Predicated region
      $region13: #{up_forward.1} parent=11 // pred_check
        %p225 = pneg %p98
      $region14: #{up_forward.1} parent=11 // pred_check_branch
        %227 = sbr.rel (%p225) target = $region16
      $region15: #{up_forward.1} parent=11 // pred_region
        _
      $region16: #{up_forward.1} parent=11 // pred_fallthru
        _
      // Predicated region
      $region17: #{up_forward.1} parent=11 // pred_check
        %p228 = pneg %p119
      $region18: #{up_forward.1} parent=11 // pred_check_branch
        %230 = sbr.rel (%p228) target = $region20
      $region19: #{up_forward.1} parent=11 // pred_region
        _
      $region20: #{up_forward.1} parent=11 // pred_fallthru
        _
      // Predicated region
      $region21: #{up_forward.1} parent=11 // pred_check
        %p231 = pneg %p140
      $region22: #{up_forward.1} parent=11 // pred_check_branch
        %233 = sbr.rel (%p231) target = $region24
      $region23: #{up_forward.1} parent=11 // pred_region
        _
      $region24: #{up_forward.1} parent=11 // pred_fallthru
        _
      // Predicated region
      $region25: #{up_forward.1} parent=11 // pred_check
        %p234 = pneg %p161
      $region26: #{up_forward.1} parent=11 // pred_check_branch
        %236 = sbr.rel (%p234) target = $region28
      $region27: #{up_forward.1} parent=11 // pred_region
        _
      $region28: #{up_forward.1} parent=11 // pred_fallthru
        _
      // Predicated region
      $region29: #{up_forward.1} parent=11 // pred_check
        %p237 = pneg %p182
      $region30: #{up_forward.1} parent=11 // pred_check_branch
        %239 = sbr.rel (%p237) target = $region32
      $region31: #{up_forward.1} parent=11 // pred_region
        _
      $region32: #{up_forward.1} parent=11 // pred_fallthru
        _
    $region12: #{up_forward.1} parent=5 // pred_fallthru
      _
    %p240 = scmp.lt.s32.totalorder %s13, 4
    // Predicated region
    $region33: #{up_forward.1} parent=5 // pred_check
      %p241 = pneg %p240
    $region34: #{up_forward.1} parent=5 // pred_check_branch
      %243 = sbr.rel (%p241) target = $region36
    $region35: #{up_forward.1} parent=5 // pred_region
      // Predicated region
      $region37: #{up_forward.1} parent=35 // pred_check
        %p244 = pneg %p45
      $region38: #{up_forward.1} parent=35 // pred_check_branch
        %246 = sbr.rel (%p244) target = $region40
      $region39: #{up_forward.1} parent=35 // pred_region
        %p247 = scmp.lt.s32.totalorder %s20, 1
        %s248 = scalar_select %p247, %s20, 1
        %s249 = smul.addr %s248, 60
        %s250 = smul.addr %s249, 4
        %s251 = scalar_lea.vmem %s0, %s250
      $region40: #{up_forward.1} parent=35 // pred_fallthru
        _
      // Predicated region
      $region41: #{up_forward.1} parent=35 // pred_check
        %p252 = pneg %p71
      $region42: #{up_forward.1} parent=35 // pred_check_branch
        %254 = sbr.rel (%p252) target = $region44
      $region43: #{up_forward.1} parent=35 // pred_region
        %p255 = scmp.lt.s32.totalorder %s20, 1
        %s256 = scalar_select %p255, %s20, 1
        %s257 = smul.addr %s256, 60
        %s258 = smul.addr %s257, 4
        %s259 = scalar_lea.vmem %s1, %s258
      $region44: #{up_forward.1} parent=35 // pred_fallthru
        _
    $region36: #{up_forward.1} parent=5 // pred_fallthru
      _
    %p260 = scmp.le.s32.totalorder 1, %s13
    %p261 = scmp.lt.s32.totalorder %s13, 5
    %p262 = pnand %p260, %p261
    %p263 = pneg %p262
    // Predicated region
    $region45: #{up_forward.1} parent=5 // pred_check
      _
    $region46: #{up_forward.1} parent=5 // pred_check_branch
      %265 = sbr.rel (%p262) target = $region48
    $region47: #{up_forward.1} parent=5 // pred_region
      %s266 = ssub.s32 %s13, 1
      %p267 = scmp.lt.s32.totalorder %s22, 1
      %s268 = scalar_select %p267, %s22, 1
      %s269 = smul.addr %s268, 60
      %s270 = smul.addr %s269, 4
      %s271 = scalar_lea.vmem %s0, %s270
      %p272 = pneg %p51
      %p273 = pneg %p48
      %p274 = scmp.lt.s32.totalorder %s22, 1
      %s275 = scalar_select %p274, %s22, 1
      %s276 = smul.addr %s275, 60
      %s277 = smul.addr %s276, 4
      %s278 = scalar_lea.vmem %s1, %s277
      %p279 = pneg %p77
      %p280 = pneg %p74
      %p281 = pneg %p98
      %p282 = pneg %p95
      %p283 = pneg %p119
      %p284 = pneg %p116
      %p285 = pneg %p140
      %p286 = pneg %p137
      %p287 = pneg %p161
      %p288 = pneg %p158
      %p289 = pneg %p182
      %p290 = pneg %p179
      %p291 = pneg %p210
      %p292 = pneg %p207
      %s293 = smul.u32 8, %s23
      %p294 = scmp.lt.s32.totalorder %s22, 1
      %s295 = scalar_select %p294, %s22, 1
      %p296 = scmp.lt.s32.totalorder %s293, 15
      %s297 = scalar_select %p296, %s293, 15
      %s298 = smul.addr %s297, 2
      %s299 = smul.addr %s295, 32
      %s300 = sadd.s32 %s298, %s299
      %s301 = smul.addr %s300, 8
      %s302 = scalar_lea.vmem %s7, %s301
      %p303 = scmp.lt.s32.totalorder %s22, 1
      %s304 = scalar_select %p303, %s22, 1
      %s305 = smul.addr %s304, 60
      %s306 = smul.addr %s305, 4
      %s307 = scalar_lea.vmem %s0, %s306
      %p308 = scmp.lt.s32.totalorder %s22, 1
      %s309 = scalar_select %p308, %s22, 1
      %s310 = smul.addr %s309, 60
      %s311 = smul.addr %s310, 4
      %s312 = scalar_lea.vmem %s1, %s311
      %s313 = smul.u32 8, %s23
      %p314 = scmp.lt.s32.totalorder %s22, 1
      %s315 = scalar_select %p314, %s22, 1
      %p316 = scmp.lt.s32.totalorder %s313, 15
      %s317 = scalar_select %p316, %s313, 15
      %s318 = smul.addr %s317, 2
      %s319 = smul.addr %s315, 32
      %s320 = sadd.s32 %s318, %s319
      %s321 = smul.addr %s320, 8
      %s322 = scalar_lea.vmem %s7, %s321
      %s323 = smul.u32 8, %s23
      %s325 = smul.u32 %s23, 8
      %s326 = smul.u32 %s325, 3
      %s327 = smul.addr %s326, 4
      %s328 = scalar_lea.vmem %s307, %s327
      %v329 = vld [vmem:[%s328] sm:$0xf]
      %v330 = vld [vmem:[%s328 + $0x4] sm:$0xf]
      %v331 = vld [vmem:[%s328 + $0xc] sm:$0xf]
      %v332 = vld [vmem:[%s328 + $0x10] sm:$0xf]
      %v333 = vld [vmem:[%s328 + $0x18] sm:$0xf]
      %v334 = vld [vmem:[%s328 + $0x1c] sm:$0xf]
      %v335 = vld [vmem:[%s328 + $0x24] sm:$0xf]
      %v336 = vld [vmem:[%s328 + $0x28] sm:$0xf]
      %v337 = vld [vmem:[%s328 + $0x30] sm:$0xf]
      %v338 = vld [vmem:[%s328 + $0x34] sm:$0xf]
      %v339 = vld [vmem:[%s328 + $0x3c] sm:$0xf]
      %v340 = vld [vmem:[%s328 + $0x40] sm:$0xf]
      %v341 = vld [vmem:[%s328 + $0x48] sm:$0xf]
      %v342 = vld [vmem:[%s328 + $0x4c] sm:$0xf]
      %v343 = vld [vmem:[%s328 + $0x54] sm:$0xf]
      %v344 = vld [vmem:[%s328 + $0x58] sm:$0xf]
      %v345 = vld [vmem:[%s328 + $0x60] sm:$0xf]
      %v346 = vld [vmem:[%s328 + $0x64] sm:$0xf]
      %v347 = vld [vmem:[%s328 + $0x6c] sm:$0xf]
      %v348 = vld [vmem:[%s328 + $0x70] sm:$0xf]
      %v349 = vld [vmem:[%s2] sm:$0xf]
      %v350 = vld [vmem:[%s2 + $0x4] sm:$0xf]
      %v351 = vld [vmem:[%s2 + $0x8] sm:$0xf]
      %v352 = vld [vmem:[%s2 + $0xc] sm:$0xf]
      %v353 = vld [vmem:[%s2 + $0x10] sm:$0xf]
      %v354 = vld [vmem:[%s2 + $0x14] sm:$0xf]
      %v355 = vld [vmem:[%s2 + $0x18] sm:$0xf]
      %v356 = vld [vmem:[%s2 + $0x1c] sm:$0xf]
      %v357 = vld [vmem:[%s2 + $0x20] sm:$0xf]
      %v358 = vld [vmem:[%s2 + $0x24] sm:$0xf]
      %v359 = vld [vmem:[%s2 + $0x28] sm:$0xf]
      %v360 = vld [vmem:[%s2 + $0x2c] sm:$0xf]
      %v361 = vld [vmem:[%s2 + $0x30] sm:$0xf]
      %v362 = vld [vmem:[%s2 + $0x34] sm:$0xf]
      %v363 = vld [vmem:[%s2 + $0x38] sm:$0xf]
      %v364 = vld [vmem:[%s2 + $0x3c] sm:$0xf]
      %s365 = smul.addr %s326, 4
      %s366 = scalar_lea.vmem %s312, %s365
      %v367 = vld [vmem:[%s366] sm:$0xf]
      %v368 = vld [vmem:[%s366 + $0x4] sm:$0xf]
      %v369 = vld [vmem:[%s366 + $0xc] sm:$0xf]
      %v370 = vld [vmem:[%s366 + $0x10] sm:$0xf]
      %v371 = vld [vmem:[%s366 + $0x18] sm:$0xf]
      %v372 = vld [vmem:[%s366 + $0x1c] sm:$0xf]
      %v373 = vld [vmem:[%s366 + $0x24] sm:$0xf]
      %v374 = vld [vmem:[%s366 + $0x28] sm:$0xf]
      %v375 = vld [vmem:[%s366 + $0x30] sm:$0xf]
      %v376 = vld [vmem:[%s366 + $0x34] sm:$0xf]
      %v377 = vld [vmem:[%s366 + $0x3c] sm:$0xf]
      %v378 = vld [vmem:[%s366 + $0x40] sm:$0xf]
      %v379 = vld [vmem:[%s366 + $0x48] sm:$0xf]
      %v380 = vld [vmem:[%s366 + $0x4c] sm:$0xf]
      %v381 = vld [vmem:[%s366 + $0x54] sm:$0xf]
      %v382 = vld [vmem:[%s366 + $0x58] sm:$0xf]
      %v383 = vld [vmem:[%s366 + $0x60] sm:$0xf]
      %v384 = vld [vmem:[%s366 + $0x64] sm:$0xf]
      %v385 = vld [vmem:[%s366 + $0x6c] sm:$0xf]
      %v386 = vld [vmem:[%s366 + $0x70] sm:$0xf]
      %v387 = vld [vmem:[%s3] sm:$0xf]
      %v388 = vld [vmem:[%s3 + $0x4] sm:$0xf]
      %v389 = vld [vmem:[%s3 + $0x8] sm:$0xf]
      %v390 = vld [vmem:[%s3 + $0xc] sm:$0xf]
      %v391 = vld [vmem:[%s3 + $0x10] sm:$0xf]
      %v392 = vld [vmem:[%s3 + $0x14] sm:$0xf]
      %v393 = vld [vmem:[%s3 + $0x18] sm:$0xf]
      %v394 = vld [vmem:[%s3 + $0x1c] sm:$0xf]
      %v395 = vld [vmem:[%s3 + $0x20] sm:$0xf]
      %v396 = vld [vmem:[%s3 + $0x24] sm:$0xf]
      %v397 = vld [vmem:[%s3 + $0x28] sm:$0xf]
      %v398 = vld [vmem:[%s3 + $0x2c] sm:$0xf]
      %v399 = vld [vmem:[%s3 + $0x30] sm:$0xf]
      %v400 = vld [vmem:[%s3 + $0x34] sm:$0xf]
      %v401 = vld [vmem:[%s3 + $0x38] sm:$0xf]
      %v402 = vld [vmem:[%s3 + $0x3c] sm:$0xf]
      %v423 = vunpack.c.l.b16 %v367
      %v424 = vunpack.c.l.b16 %v368
      %v425 = vunpack.c.l.b16 %v369
      %v426 = vunpack.c.l.b16 %v370
      %v427 = vunpack.c.l.b16 %v371
      %v428 = vunpack.c.l.b16 %v372
      %v429 = vunpack.c.l.b16 %v373
      %v430 = vunpack.c.l.b16 %v374
      %v431 = vunpack.c.l.b16 %v375
      %v432 = vunpack.c.l.b16 %v376
      %v433 = vunpack.c.l.b16 %v377
      %v434 = vunpack.c.l.b16 %v378
      %v435 = vunpack.c.l.b16 %v379
      %v436 = vunpack.c.l.b16 %v380
      %v437 = vunpack.c.l.b16 %v381
      %v438 = vunpack.c.l.b16 %v382
      %v439 = vunpack.c.l.b16 %v383
      %v440 = vunpack.c.l.b16 %v384
      %v441 = vunpack.c.l.b16 %v385
      %v442 = vunpack.c.l.b16 %v386
      %v443 = vpack.c.b16 %v424, %v423
      %v444 = vpack.c.b16 %v426, %v425
      %v445 = vpack.c.b16 %v428, %v427
      %v446 = vpack.c.b16 %v430, %v429
      %v447 = vpack.c.b16 %v432, %v431
      %v448 = vpack.c.b16 %v434, %v433
      %v449 = vpack.c.b16 %v436, %v435
      %v450 = vpack.c.b16 %v438, %v437
      %v451 = vpack.c.b16 %v440, %v439
      %v452 = vpack.c.b16 %v442, %v441
      %v479 = vunpack.c.l.b16 %v387
      %v480 = vunpack.c.l.b16 %v388
      %v481 = vunpack.c.l.b16 %v389
      %v482 = vunpack.c.l.b16 %v390
      %v483 = vunpack.c.l.b16 %v391
      %v484 = vunpack.c.l.b16 %v392
      %v485 = vunpack.c.l.b16 %v393
      %v486 = vunpack.c.l.b16 %v394
      %v487 = vunpack.c.l.b16 %v395
      %v488 = vunpack.c.l.b16 %v396
      %v489 = vunpack.c.l.b16 %v397
      %v490 = vunpack.c.l.b16 %v398
      %v491 = vunpack.c.l.b16 %v399
      %v492 = vunpack.c.l.b16 %v400
      %v493 = vunpack.c.l.b16 %v401
      %v494 = vunpack.c.l.b16 %v402
      %v495 = vpack.c.b16 %v480, %v479
      %v496 = vpack.c.b16 %v482, %v481
      %v497 = vpack.c.b16 %v484, %v483
      %v498 = vpack.c.b16 %v486, %v485
      %v499 = vpack.c.b16 %v488, %v487
      %v500 = vpack.c.b16 %v490, %v489
      %v501 = vpack.c.b16 %v492, %v491
      %v502 = vpack.c.b16 %v494, %v493
      %511 = vmatpush.bf16.msra.mxu0 %v502
      %512 = vmatpush.bf16.msra.mxu0 %v501
      %513 = vmatpush.bf16.msra.mxu0 %v500
      %514 = vmatpush.bf16.msra.mxu0 %v499
      %515 = vmatpush.bf16.msra.mxu0 %v498
      %516 = vmatpush.bf16.msra.mxu0 %v497
      %517 = vmatpush.bf16.msra.mxu0 %v496
      %518 = vmatpush.bf16.msra.mxu0 %v495
      %519 = vmatmul.bf16.gmra.mxu0 %v443
      %v520 = vpop.f32.mrf.mxu0
      %v521 = vadd.f32 0.0, %v520
      %v522 = vpop.f32.mrf.mxu0
      %v523 = vadd.f32 0.0, %v522
      %524 = vmatmul.bf16.gmra.mxu0 %v444
      %v525 = vpop.f32.mrf.mxu0
      %v526 = vadd.f32 0.0, %v525
      %v527 = vpop.f32.mrf.mxu0
      %v528 = vadd.f32 0.0, %v527
      %529 = vmatmul.bf16.gmra.mxu0 %v445
      %v530 = vpop.f32.mrf.mxu0
      %v531 = vadd.f32 0.0, %v530
      %v532 = vpop.f32.mrf.mxu0
      %v533 = vadd.f32 0.0, %v532
      %534 = vmatmul.bf16.gmra.mxu0 %v446
      %v535 = vpop.f32.mrf.mxu0
      %v536 = vadd.f32 0.0, %v535
      %v537 = vpop.f32.mrf.mxu0
      %v538 = vadd.f32 0.0, %v537
      %539 = vmatmul.bf16.gmra.mxu0 %v447
      %v540 = vpop.f32.mrf.mxu0
      %v541 = vadd.f32 0.0, %v540
      %v542 = vpop.f32.mrf.mxu0
      %v543 = vadd.f32 0.0, %v542
      %544 = vmatmul.bf16.gmra.mxu0 %v448
      %v545 = vpop.f32.mrf.mxu0
      %v546 = vadd.f32 0.0, %v545
      %v547 = vpop.f32.mrf.mxu0
      %v548 = vadd.f32 0.0, %v547
      %549 = vmatmul.bf16.gmra.mxu0 %v449
      %v550 = vpop.f32.mrf.mxu0
      %v551 = vadd.f32 0.0, %v550
      %v552 = vpop.f32.mrf.mxu0
      %v553 = vadd.f32 0.0, %v552
      %554 = vmatmul.bf16.gmra.mxu0 %v450
      %v555 = vpop.f32.mrf.mxu0
      %v556 = vadd.f32 0.0, %v555
      %v557 = vpop.f32.mrf.mxu0
      %v558 = vadd.f32 0.0, %v557
      %559 = vmatmul.bf16.gmra.mxu0 %v451
      %v560 = vpop.f32.mrf.mxu0
      %v561 = vadd.f32 0.0, %v560
      %v562 = vpop.f32.mrf.mxu0
      %v563 = vadd.f32 0.0, %v562
      %564 = vmatmul.bf16.gmra.mxu0 %v452
      %v565 = vpop.f32.mrf.mxu0
      %v566 = vadd.f32 0.0, %v565
      %v567 = vpop.f32.mrf.mxu0
      %v568 = vadd.f32 0.0, %v567
      %569 = vdwg.mxu0
      %v590 = vunpack.c.l.b16 %v329
      %v591 = vunpack.c.l.b16 %v330
      %v592 = vunpack.c.l.b16 %v331
      %v593 = vunpack.c.l.b16 %v332
      %v594 = vunpack.c.l.b16 %v333
      %v595 = vunpack.c.l.b16 %v334
      %v596 = vunpack.c.l.b16 %v335
      %v597 = vunpack.c.l.b16 %v336
      %v598 = vunpack.c.l.b16 %v337
      %v599 = vunpack.c.l.b16 %v338
      %v600 = vunpack.c.l.b16 %v339
      %v601 = vunpack.c.l.b16 %v340
      %v602 = vunpack.c.l.b16 %v341
      %v603 = vunpack.c.l.b16 %v342
      %v604 = vunpack.c.l.b16 %v343
      %v605 = vunpack.c.l.b16 %v344
      %v606 = vunpack.c.l.b16 %v345
      %v607 = vunpack.c.l.b16 %v346
      %v608 = vunpack.c.l.b16 %v347
      %v609 = vunpack.c.l.b16 %v348
      %v610 = vpack.c.b16 %v591, %v590
      %v611 = vpack.c.b16 %v593, %v592
      %v612 = vpack.c.b16 %v595, %v594
      %v613 = vpack.c.b16 %v597, %v596
      %v614 = vpack.c.b16 %v599, %v598
      %v615 = vpack.c.b16 %v601, %v600
      %v616 = vpack.c.b16 %v603, %v602
      %v617 = vpack.c.b16 %v605, %v604
      %v618 = vpack.c.b16 %v607, %v606
      %v619 = vpack.c.b16 %v609, %v608
      %v646 = vunpack.c.l.b16 %v349
      %v647 = vunpack.c.l.b16 %v350
      %v648 = vunpack.c.l.b16 %v351
      %v649 = vunpack.c.l.b16 %v352
      %v650 = vunpack.c.l.b16 %v353
      %v651 = vunpack.c.l.b16 %v354
      %v652 = vunpack.c.l.b16 %v355
      %v653 = vunpack.c.l.b16 %v356
      %v654 = vunpack.c.l.b16 %v357
      %v655 = vunpack.c.l.b16 %v358
      %v656 = vunpack.c.l.b16 %v359
      %v657 = vunpack.c.l.b16 %v360
      %v658 = vunpack.c.l.b16 %v361
      %v659 = vunpack.c.l.b16 %v362
      %v660 = vunpack.c.l.b16 %v363
      %v661 = vunpack.c.l.b16 %v364
      %v662 = vpack.c.b16 %v647, %v646
      %v663 = vpack.c.b16 %v649, %v648
      %v664 = vpack.c.b16 %v651, %v650
      %v665 = vpack.c.b16 %v653, %v652
      %v666 = vpack.c.b16 %v655, %v654
      %v667 = vpack.c.b16 %v657, %v656
      %v668 = vpack.c.b16 %v659, %v658
      %v669 = vpack.c.b16 %v661, %v660
      %678 = vmatpush.bf16.msra.mxu0 %v669
      %679 = vmatpush.bf16.msra.mxu0 %v668
      %680 = vmatpush.bf16.msra.mxu0 %v667
      %681 = vmatpush.bf16.msra.mxu0 %v666
      %682 = vmatpush.bf16.msra.mxu0 %v665
      %683 = vmatpush.bf16.msra.mxu0 %v664
      %684 = vmatpush.bf16.msra.mxu0 %v663
      %685 = vmatpush.bf16.msra.mxu0 %v662
      %686 = vmatmul.bf16.gmra.mxu0 %v610
      %v687 = vpop.f32.mrf.mxu0
      %v688 = vadd.f32 %v521, %v687
      %v689 = vpop.f32.mrf.mxu0
      %v690 = vadd.f32 %v523, %v689
      %691 = vmatmul.bf16.gmra.mxu0 %v611
      %v692 = vpop.f32.mrf.mxu0
      %v693 = vadd.f32 %v526, %v692
      %v694 = vpop.f32.mrf.mxu0
      %v695 = vadd.f32 %v528, %v694
      %696 = vmatmul.bf16.gmra.mxu0 %v612
      %v697 = vpop.f32.mrf.mxu0
      %v698 = vadd.f32 %v531, %v697
      %v699 = vpop.f32.mrf.mxu0
      %v700 = vadd.f32 %v533, %v699
      %701 = vmatmul.bf16.gmra.mxu0 %v613
      %v702 = vpop.f32.mrf.mxu0
      %v703 = vadd.f32 %v536, %v702
      %v704 = vpop.f32.mrf.mxu0
      %v705 = vadd.f32 %v538, %v704
      %706 = vmatmul.bf16.gmra.mxu0 %v614
      %v707 = vpop.f32.mrf.mxu0
      %v708 = vadd.f32 %v541, %v707
      %v709 = vpop.f32.mrf.mxu0
      %v710 = vadd.f32 %v543, %v709
      %711 = vmatmul.bf16.gmra.mxu0 %v615
      %v712 = vpop.f32.mrf.mxu0
      %v713 = vadd.f32 %v546, %v712
      %v714 = vpop.f32.mrf.mxu0
      %v715 = vadd.f32 %v548, %v714
      %716 = vmatmul.bf16.gmra.mxu0 %v616
      %v717 = vpop.f32.mrf.mxu0
      %v718 = vadd.f32 %v551, %v717
      %v719 = vpop.f32.mrf.mxu0
      %v720 = vadd.f32 %v553, %v719
      %721 = vmatmul.bf16.gmra.mxu0 %v617
      %v722 = vpop.f32.mrf.mxu0
      %v723 = vadd.f32 %v556, %v722
      %v724 = vpop.f32.mrf.mxu0
      %v725 = vadd.f32 %v558, %v724
      %726 = vmatmul.bf16.gmra.mxu0 %v618
      %v727 = vpop.f32.mrf.mxu0
      %v728 = vadd.f32 %v561, %v727
      %v729 = vpop.f32.mrf.mxu0
      %v730 = vadd.f32 %v563, %v729
      %731 = vmatmul.bf16.gmra.mxu0 %v619
      %v732 = vpop.f32.mrf.mxu0
      %v733 = vadd.f32 %v566, %v732
      %v734 = vpop.f32.mrf.mxu0
      %v735 = vadd.f32 %v568, %v734
      %736 = vdwg.mxu0
      %v737 = vld [vmem:[%s328] sm:$0xf]
      %v738 = vld [vmem:[%s328 + $0x4] sm:$0xf]
      %v739 = vld [vmem:[%s328 + $0x8] sm:$0x1]
      %v740 = vld [vmem:[%s328 + $0xc] sm:$0xf]
      %v741 = vld [vmem:[%s328 + $0x10] sm:$0xf]
      %v742 = vld [vmem:[%s328 + $0x14] sm:$0x1]
      %v743 = vld [vmem:[%s328 + $0x18] sm:$0xf]
      %v744 = vld [vmem:[%s328 + $0x1c] sm:$0xf]
      %v745 = vld [vmem:[%s328 + $0x20] sm:$0x1]
      %v746 = vld [vmem:[%s328 + $0x24] sm:$0xf]
      %v747 = vld [vmem:[%s328 + $0x28] sm:$0xf]
      %v748 = vld [vmem:[%s328 + $0x2c] sm:$0x1]
      %v749 = vld [vmem:[%s328 + $0x30] sm:$0xf]
      %v750 = vld [vmem:[%s328 + $0x34] sm:$0xf]
      %v751 = vld [vmem:[%s328 + $0x38] sm:$0x1]
      %v752 = vld [vmem:[%s328 + $0x3c] sm:$0xf]
      %v753 = vld [vmem:[%s328 + $0x40] sm:$0xf]
      %v754 = vld [vmem:[%s328 + $0x44] sm:$0x1]
      %v755 = vld [vmem:[%s328 + $0x48] sm:$0xf]
      %v756 = vld [vmem:[%s328 + $0x4c] sm:$0xf]
      %v757 = vld [vmem:[%s328 + $0x50] sm:$0x1]
      %v758 = vld [vmem:[%s328 + $0x54] sm:$0xf]
      %v759 = vld [vmem:[%s328 + $0x58] sm:$0xf]
      %v760 = vld [vmem:[%s328 + $0x5c] sm:$0x1]
      %v761 = vld [vmem:[%s328 + $0x60] sm:$0xf]
      %v762 = vld [vmem:[%s328 + $0x64] sm:$0xf]
      %v763 = vld [vmem:[%s328 + $0x68] sm:$0x1]
      %v764 = vld [vmem:[%s328 + $0x6c] sm:$0xf]
      %v765 = vld [vmem:[%s328 + $0x70] sm:$0xf]
      %v766 = vld [vmem:[%s328 + $0x74] sm:$0x1]
      %vm767 = vsmask.f32 3328
      %vm768 = vsmask.f32 7440
      %vm769 = vmor %vm767, %vm768
      %v771 = vshrl.u32 %v737, 16
      %v773 = vrot.slane %v771, 4
      %v774 = vshll.u32 %v737, 16
      %v776 = vrot.slane %v774, 5
      %v777 = vor.u32 %v773, %v776
      %v778 = vrot.slane %v777, 4
      %v780 = vshll.u32 %v738, 16
      %v782 = vrot.slane %v780, 5
      %v783 = vsel %vm769, %v778, %v782
      %v784 = vshrl.u32 %v738, 16
      %v786 = vrot.slane %v784, 4
      %v787 = vor.u32 %v786, %v782
      %v788 = vrot.slane %v787, 4
      %v790 = vshll.u32 %v739, 16
      %v792 = vrot.slane %v790, 5
      %v793 = vsel %vm769, %v788, %v792
      %v795 = vshrl.u32 %v740, 16
      %v797 = vrot.slane %v795, 4
      %v798 = vshll.u32 %v740, 16
      %v800 = vrot.slane %v798, 5
      %v801 = vor.u32 %v797, %v800
      %v802 = vrot.slane %v801, 4
      %v804 = vshll.u32 %v741, 16
      %v806 = vrot.slane %v804, 5
      %v807 = vsel %vm769, %v802, %v806
      %v808 = vshrl.u32 %v741, 16
      %v810 = vrot.slane %v808, 4
      %v811 = vor.u32 %v810, %v806
      %v812 = vrot.slane %v811, 4
      %v814 = vshll.u32 %v742, 16
      %v816 = vrot.slane %v814, 5
      %v817 = vsel %vm769, %v812, %v816
      %v819 = vshrl.u32 %v743, 16
      %v821 = vrot.slane %v819, 4
      %v822 = vshll.u32 %v743, 16
      %v824 = vrot.slane %v822, 5
      %v825 = vor.u32 %v821, %v824
      %v826 = vrot.slane %v825, 4
      %v828 = vshll.u32 %v744, 16
      %v830 = vrot.slane %v828, 5
      %v831 = vsel %vm769, %v826, %v830
      %v832 = vshrl.u32 %v744, 16
      %v834 = vrot.slane %v832, 4
      %v835 = vor.u32 %v834, %v830
      %v836 = vrot.slane %v835, 4
      %v838 = vshll.u32 %v745, 16
      %v840 = vrot.slane %v838, 5
      %v841 = vsel %vm769, %v836, %v840
      %v843 = vshrl.u32 %v746, 16
      %v845 = vrot.slane %v843, 4
      %v846 = vshll.u32 %v746, 16
      %v848 = vrot.slane %v846, 5
      %v849 = vor.u32 %v845, %v848
      %v850 = vrot.slane %v849, 4
      %v852 = vshll.u32 %v747, 16
      %v854 = vrot.slane %v852, 5
      %v855 = vsel %vm769, %v850, %v854
      %v856 = vshrl.u32 %v747, 16
      %v858 = vrot.slane %v856, 4
      %v859 = vor.u32 %v858, %v854
      %v860 = vrot.slane %v859, 4
      %v862 = vshll.u32 %v748, 16
      %v864 = vrot.slane %v862, 5
      %v865 = vsel %vm769, %v860, %v864
      %v867 = vshrl.u32 %v749, 16
      %v869 = vrot.slane %v867, 4
      %v870 = vshll.u32 %v749, 16
      %v872 = vrot.slane %v870, 5
      %v873 = vor.u32 %v869, %v872
      %v874 = vrot.slane %v873, 4
      %v876 = vshll.u32 %v750, 16
      %v878 = vrot.slane %v876, 5
      %v879 = vsel %vm769, %v874, %v878
      %v880 = vshrl.u32 %v750, 16
      %v882 = vrot.slane %v880, 4
      %v883 = vor.u32 %v882, %v878
      %v884 = vrot.slane %v883, 4
      %v886 = vshll.u32 %v751, 16
      %v888 = vrot.slane %v886, 5
      %v889 = vsel %vm769, %v884, %v888
      %v891 = vshrl.u32 %v752, 16
      %v893 = vrot.slane %v891, 4
      %v894 = vshll.u32 %v752, 16
      %v896 = vrot.slane %v894, 5
      %v897 = vor.u32 %v893, %v896
      %v898 = vrot.slane %v897, 4
      %v900 = vshll.u32 %v753, 16
      %v902 = vrot.slane %v900, 5
      %v903 = vsel %vm769, %v898, %v902
      %v904 = vshrl.u32 %v753, 16
      %v906 = vrot.slane %v904, 4
      %v907 = vor.u32 %v906, %v902
      %v908 = vrot.slane %v907, 4
      %v910 = vshll.u32 %v754, 16
      %v912 = vrot.slane %v910, 5
      %v913 = vsel %vm769, %v908, %v912
      %v915 = vshrl.u32 %v755, 16
      %v917 = vrot.slane %v915, 4
      %v918 = vshll.u32 %v755, 16
      %v920 = vrot.slane %v918, 5
      %v921 = vor.u32 %v917, %v920
      %v922 = vrot.slane %v921, 4
      %v924 = vshll.u32 %v756, 16
      %v926 = vrot.slane %v924, 5
      %v927 = vsel %vm769, %v922, %v926
      %v928 = vshrl.u32 %v756, 16
      %v930 = vrot.slane %v928, 4
      %v931 = vor.u32 %v930, %v926
      %v932 = vrot.slane %v931, 4
      %v934 = vshll.u32 %v757, 16
      %v936 = vrot.slane %v934, 5
      %v937 = vsel %vm769, %v932, %v936
      %v939 = vshrl.u32 %v758, 16
      %v941 = vrot.slane %v939, 4
      %v942 = vshll.u32 %v758, 16
      %v944 = vrot.slane %v942, 5
      %v945 = vor.u32 %v941, %v944
      %v946 = vrot.slane %v945, 4
      %v948 = vshll.u32 %v759, 16
      %v950 = vrot.slane %v948, 5
      %v951 = vsel %vm769, %v946, %v950
      %v952 = vshrl.u32 %v759, 16
      %v954 = vrot.slane %v952, 4
      %v955 = vor.u32 %v954, %v950
      %v956 = vrot.slane %v955, 4
      %v958 = vshll.u32 %v760, 16
      %v960 = vrot.slane %v958, 5
      %v961 = vsel %vm769, %v956, %v960
      %v963 = vshrl.u32 %v761, 16
      %v965 = vrot.slane %v963, 4
      %v966 = vshll.u32 %v761, 16
      %v968 = vrot.slane %v966, 5
      %v969 = vor.u32 %v965, %v968
      %v970 = vrot.slane %v969, 4
      %v972 = vshll.u32 %v762, 16
      %v974 = vrot.slane %v972, 5
      %v975 = vsel %vm769, %v970, %v974
      %v976 = vshrl.u32 %v762, 16
      %v978 = vrot.slane %v976, 4
      %v979 = vor.u32 %v978, %v974
      %v980 = vrot.slane %v979, 4
      %v982 = vshll.u32 %v763, 16
      %v984 = vrot.slane %v982, 5
      %v985 = vsel %vm769, %v980, %v984
      %v987 = vshrl.u32 %v764, 16
      %v989 = vrot.slane %v987, 4
      %v990 = vshll.u32 %v764, 16
      %v992 = vrot.slane %v990, 5
      %v993 = vor.u32 %v989, %v992
      %v994 = vrot.slane %v993, 4
      %v996 = vshll.u32 %v765, 16
      %v998 = vrot.slane %v996, 5
      %v999 = vsel %vm769, %v994, %v998
      %v1000 = vshrl.u32 %v765, 16
      %v1002 = vrot.slane %v1000, 4
      %v1003 = vor.u32 %v1002, %v998
      %v1004 = vrot.slane %v1003, 4
      %v1006 = vshll.u32 %v766, 16
      %v1008 = vrot.slane %v1006, 5
      %v1009 = vsel %vm769, %v1004, %v1008
      %s1010 = scalar_lea.vmem %s2, 64
      %v1011 = vld [vmem:[%s1010] sm:$0xf]
      %v1012 = vld [vmem:[%s1010 + $0x4] sm:$0xf]
      %v1013 = vld [vmem:[%s1010 + $0x8] sm:$0xf]
      %v1014 = vld [vmem:[%s1010 + $0xc] sm:$0xf]
      %v1015 = vld [vmem:[%s1010 + $0x10] sm:$0xf]
      %v1016 = vld [vmem:[%s1010 + $0x14] sm:$0xf]
      %v1017 = vld [vmem:[%s1010 + $0x18] sm:$0xf]
      %v1018 = vld [vmem:[%s1010 + $0x1c] sm:$0xf]
      %v1019 = vld [vmem:[%s1010 + $0x20] sm:$0xf]
      %v1020 = vld [vmem:[%s1010 + $0x24] sm:$0xf]
      %v1021 = vld [vmem:[%s1010 + $0x28] sm:$0xf]
      %v1022 = vld [vmem:[%s1010 + $0x2c] sm:$0xf]
      %v1023 = vld [vmem:[%s1010 + $0x30] sm:$0xf]
      %v1024 = vld [vmem:[%s1010 + $0x34] sm:$0xf]
      %v1025 = vld [vmem:[%s1010 + $0x38] sm:$0xf]
      %v1026 = vld [vmem:[%s1010 + $0x3c] sm:$0xf]
      %v1027 = vunpack.c.l.b16 %v783
      %v1028 = vunpack.c.l.b16 %v793
      %v1029 = vunpack.c.l.b16 %v807
      %v1030 = vunpack.c.l.b16 %v817
      %v1031 = vunpack.c.l.b16 %v831
      %v1032 = vunpack.c.l.b16 %v841
      %v1033 = vunpack.c.l.b16 %v855
      %v1034 = vunpack.c.l.b16 %v865
      %v1035 = vunpack.c.l.b16 %v879
      %v1036 = vunpack.c.l.b16 %v889
      %v1037 = vunpack.c.l.b16 %v903
      %v1038 = vunpack.c.l.b16 %v913
      %v1039 = vunpack.c.l.b16 %v927
      %v1040 = vunpack.c.l.b16 %v937
      %v1041 = vunpack.c.l.b16 %v951
      %v1042 = vunpack.c.l.b16 %v961
      %v1043 = vunpack.c.l.b16 %v975
      %v1044 = vunpack.c.l.b16 %v985
      %v1045 = vunpack.c.l.b16 %v999
      %v1046 = vunpack.c.l.b16 %v1009
      %v1047 = vpack.c.b16 %v1028, %v1027
      %v1048 = vpack.c.b16 %v1030, %v1029
      %v1049 = vpack.c.b16 %v1032, %v1031
      %v1050 = vpack.c.b16 %v1034, %v1033
      %v1051 = vpack.c.b16 %v1036, %v1035
      %v1052 = vpack.c.b16 %v1038, %v1037
      %v1053 = vpack.c.b16 %v1040, %v1039
      %v1054 = vpack.c.b16 %v1042, %v1041
      %v1055 = vpack.c.b16 %v1044, %v1043
      %v1056 = vpack.c.b16 %v1046, %v1045
      %v1083 = vunpack.c.l.b16 %v1011
      %v1084 = vunpack.c.l.b16 %v1012
      %v1085 = vunpack.c.l.b16 %v1013
      %v1086 = vunpack.c.l.b16 %v1014
      %v1087 = vunpack.c.l.b16 %v1015
      %v1088 = vunpack.c.l.b16 %v1016
      %v1089 = vunpack.c.l.b16 %v1017
      %v1090 = vunpack.c.l.b16 %v1018
      %v1091 = vunpack.c.l.b16 %v1019
      %v1092 = vunpack.c.l.b16 %v1020
      %v1093 = vunpack.c.l.b16 %v1021
      %v1094 = vunpack.c.l.b16 %v1022
      %v1095 = vunpack.c.l.b16 %v1023
      %v1096 = vunpack.c.l.b16 %v1024
      %v1097 = vunpack.c.l.b16 %v1025
      %v1098 = vunpack.c.l.b16 %v1026
      %v1099 = vpack.c.b16 %v1084, %v1083
      %v1100 = vpack.c.b16 %v1086, %v1085
      %v1101 = vpack.c.b16 %v1088, %v1087
      %v1102 = vpack.c.b16 %v1090, %v1089
      %v1103 = vpack.c.b16 %v1092, %v1091
      %v1104 = vpack.c.b16 %v1094, %v1093
      %v1105 = vpack.c.b16 %v1096, %v1095
      %v1106 = vpack.c.b16 %v1098, %v1097
      %1115 = vmatpush.bf16.msra.mxu0 %v1106
      %1116 = vmatpush.bf16.msra.mxu0 %v1105
      %1117 = vmatpush.bf16.msra.mxu0 %v1104
      %1118 = vmatpush.bf16.msra.mxu0 %v1103
      %1119 = vmatpush.bf16.msra.mxu0 %v1102
      %1120 = vmatpush.bf16.msra.mxu0 %v1101
      %1121 = vmatpush.bf16.msra.mxu0 %v1100
      %1122 = vmatpush.bf16.msra.mxu0 %v1099
      %1123 = vmatmul.bf16.gmra.mxu0 %v1047
      %v1124 = vpop.f32.mrf.mxu0
      %v1125 = vadd.f32 0.0, %v1124
      %v1126 = vpop.f32.mrf.mxu0
      %v1127 = vadd.f32 0.0, %v1126
      %1128 = vmatmul.bf16.gmra.mxu0 %v1048
      %v1129 = vpop.f32.mrf.mxu0
      %v1130 = vadd.f32 0.0, %v1129
      %v1131 = vpop.f32.mrf.mxu0
      %v1132 = vadd.f32 0.0, %v1131
      %1133 = vmatmul.bf16.gmra.mxu0 %v1049
      %v1134 = vpop.f32.mrf.mxu0
      %v1135 = vadd.f32 0.0, %v1134
      %v1136 = vpop.f32.mrf.mxu0
      %v1137 = vadd.f32 0.0, %v1136
      %1138 = vmatmul.bf16.gmra.mxu0 %v1050
      %v1139 = vpop.f32.mrf.mxu0
      %v1140 = vadd.f32 0.0, %v1139
      %v1141 = vpop.f32.mrf.mxu0
      %v1142 = vadd.f32 0.0, %v1141
      %1143 = vmatmul.bf16.gmra.mxu0 %v1051
      %v1144 = vpop.f32.mrf.mxu0
      %v1145 = vadd.f32 0.0, %v1144
      %v1146 = vpop.f32.mrf.mxu0
      %v1147 = vadd.f32 0.0, %v1146
      %1148 = vmatmul.bf16.gmra.mxu0 %v1052
      %v1149 = vpop.f32.mrf.mxu0
      %v1150 = vadd.f32 0.0, %v1149
      %v1151 = vpop.f32.mrf.mxu0
      %v1152 = vadd.f32 0.0, %v1151
      %1153 = vmatmul.bf16.gmra.mxu0 %v1053
      %v1154 = vpop.f32.mrf.mxu0
      %v1155 = vadd.f32 0.0, %v1154
      %v1156 = vpop.f32.mrf.mxu0
      %v1157 = vadd.f32 0.0, %v1156
      %1158 = vmatmul.bf16.gmra.mxu0 %v1054
      %v1159 = vpop.f32.mrf.mxu0
      %v1160 = vadd.f32 0.0, %v1159
      %v1161 = vpop.f32.mrf.mxu0
      %v1162 = vadd.f32 0.0, %v1161
      %1163 = vmatmul.bf16.gmra.mxu0 %v1055
      %v1164 = vpop.f32.mrf.mxu0
      %v1165 = vadd.f32 0.0, %v1164
      %v1166 = vpop.f32.mrf.mxu0
      %v1167 = vadd.f32 0.0, %v1166
      %1168 = vmatmul.bf16.gmra.mxu0 %v1056
      %v1169 = vpop.f32.mrf.mxu0
      %v1170 = vadd.f32 0.0, %v1169
      %v1171 = vpop.f32.mrf.mxu0
      %v1172 = vadd.f32 0.0, %v1171
      %1173 = vdwg.mxu0
      %v1174 = vadd.f32 %v688, %v1125
      %v1175 = vadd.f32 %v690, %v1127
      %v1176 = vadd.f32 %v693, %v1130
      %v1177 = vadd.f32 %v695, %v1132
      %v1178 = vadd.f32 %v698, %v1135
      %v1179 = vadd.f32 %v700, %v1137
      %v1180 = vadd.f32 %v703, %v1140
      %v1181 = vadd.f32 %v705, %v1142
      %v1182 = vadd.f32 %v708, %v1145
      %v1183 = vadd.f32 %v710, %v1147
      %v1184 = vadd.f32 %v713, %v1150
      %v1185 = vadd.f32 %v715, %v1152
      %v1186 = vadd.f32 %v718, %v1155
      %v1187 = vadd.f32 %v720, %v1157
      %v1188 = vadd.f32 %v723, %v1160
      %v1189 = vadd.f32 %v725, %v1162
      %v1190 = vadd.f32 %v728, %v1165
      %v1191 = vadd.f32 %v730, %v1167
      %v1192 = vadd.f32 %v733, %v1170
      %v1193 = vadd.f32 %v735, %v1172
      %v1194 = vld [vmem:[%s366] sm:$0xf]
      %v1195 = vld [vmem:[%s366 + $0x4] sm:$0xf]
      %v1196 = vld [vmem:[%s366 + $0x8] sm:$0x1]
      %v1197 = vld [vmem:[%s366 + $0xc] sm:$0xf]
      %v1198 = vld [vmem:[%s366 + $0x10] sm:$0xf]
      %v1199 = vld [vmem:[%s366 + $0x14] sm:$0x1]
      %v1200 = vld [vmem:[%s366 + $0x18] sm:$0xf]
      %v1201 = vld [vmem:[%s366 + $0x1c] sm:$0xf]
      %v1202 = vld [vmem:[%s366 + $0x20] sm:$0x1]
      %v1203 = vld [vmem:[%s366 + $0x24] sm:$0xf]
      %v1204 = vld [vmem:[%s366 + $0x28] sm:$0xf]
      %v1205 = vld [vmem:[%s366 + $0x2c] sm:$0x1]
      %v1206 = vld [vmem:[%s366 + $0x30] sm:$0xf]
      %v1207 = vld [vmem:[%s366 + $0x34] sm:$0xf]
      %v1208 = vld [vmem:[%s366 + $0x38] sm:$0x1]
      %v1209 = vld [vmem:[%s366 + $0x3c] sm:$0xf]
      %v1210 = vld [vmem:[%s366 + $0x40] sm:$0xf]
      %v1211 = vld [vmem:[%s366 + $0x44] sm:$0x1]
      %v1212 = vld [vmem:[%s366 + $0x48] sm:$0xf]
      %v1213 = vld [vmem:[%s366 + $0x4c] sm:$0xf]
      %v1214 = vld [vmem:[%s366 + $0x50] sm:$0x1]
      %v1215 = vld [vmem:[%s366 + $0x54] sm:$0xf]
      %v1216 = vld [vmem:[%s366 + $0x58] sm:$0xf]
      %v1217 = vld [vmem:[%s366 + $0x5c] sm:$0x1]
      %v1218 = vld [vmem:[%s366 + $0x60] sm:$0xf]
      %v1219 = vld [vmem:[%s366 + $0x64] sm:$0xf]
      %v1220 = vld [vmem:[%s366 + $0x68] sm:$0x1]
      %v1221 = vld [vmem:[%s366 + $0x6c] sm:$0xf]
      %v1222 = vld [vmem:[%s366 + $0x70] sm:$0xf]
      %v1223 = vld [vmem:[%s366 + $0x74] sm:$0x1]
      %v1225 = vshrl.u32 %v1194, 16
      %v1227 = vrot.slane %v1225, 4
      %v1228 = vshll.u32 %v1194, 16
      %v1230 = vrot.slane %v1228, 5
      %v1231 = vor.u32 %v1227, %v1230
      %v1232 = vrot.slane %v1231, 4
      %v1234 = vshll.u32 %v1195, 16
      %v1236 = vrot.slane %v1234, 5
      %v1237 = vsel %vm769, %v1232, %v1236
      %v1238 = vshrl.u32 %v1195, 16
      %v1240 = vrot.slane %v1238, 4
      %v1241 = vor.u32 %v1240, %v1236
      %v1242 = vrot.slane %v1241, 4
      %v1244 = vshll.u32 %v1196, 16
      %v1246 = vrot.slane %v1244, 5
      %v1247 = vsel %vm769, %v1242, %v1246
      %v1249 = vshrl.u32 %v1197, 16
      %v1251 = vrot.slane %v1249, 4
      %v1252 = vshll.u32 %v1197, 16
      %v1254 = vrot.slane %v1252, 5
      %v1255 = vor.u32 %v1251, %v1254
      %v1256 = vrot.slane %v1255, 4
      %v1258 = vshll.u32 %v1198, 16
      %v1260 = vrot.slane %v1258, 5
      %v1261 = vsel %vm769, %v1256, %v1260
      %v1262 = vshrl.u32 %v1198, 16
      %v1264 = vrot.slane %v1262, 4
      %v1265 = vor.u32 %v1264, %v1260
      %v1266 = vrot.slane %v1265, 4
      %v1268 = vshll.u32 %v1199, 16
      %v1270 = vrot.slane %v1268, 5
      %v1271 = vsel %vm769, %v1266, %v1270
      %v1273 = vshrl.u32 %v1200, 16
      %v1275 = vrot.slane %v1273, 4
      %v1276 = vshll.u32 %v1200, 16
      %v1278 = vrot.slane %v1276, 5
      %v1279 = vor.u32 %v1275, %v1278
      %v1280 = vrot.slane %v1279, 4
      %v1282 = vshll.u32 %v1201, 16
      %v1284 = vrot.slane %v1282, 5
      %v1285 = vsel %vm769, %v1280, %v1284
      %v1286 = vshrl.u32 %v1201, 16
      %v1288 = vrot.slane %v1286, 4
      %v1289 = vor.u32 %v1288, %v1284
      %v1290 = vrot.slane %v1289, 4
      %v1292 = vshll.u32 %v1202, 16
      %v1294 = vrot.slane %v1292, 5
      %v1295 = vsel %vm769, %v1290, %v1294
      %v1297 = vshrl.u32 %v1203, 16
      %v1299 = vrot.slane %v1297, 4
      %v1300 = vshll.u32 %v1203, 16
      %v1302 = vrot.slane %v1300, 5
      %v1303 = vor.u32 %v1299, %v1302
      %v1304 = vrot.slane %v1303, 4
      %v1306 = vshll.u32 %v1204, 16
      %v1308 = vrot.slane %v1306, 5
      %v1309 = vsel %vm769, %v1304, %v1308
      %v1310 = vshrl.u32 %v1204, 16
      %v1312 = vrot.slane %v1310, 4
      %v1313 = vor.u32 %v1312, %v1308
      %v1314 = vrot.slane %v1313, 4
      %v1316 = vshll.u32 %v1205, 16
      %v1318 = vrot.slane %v1316, 5
      %v1319 = vsel %vm769, %v1314, %v1318
      %v1321 = vshrl.u32 %v1206, 16
      %v1323 = vrot.slane %v1321, 4
      %v1324 = vshll.u32 %v1206, 16
      %v1326 = vrot.slane %v1324, 5
      %v1327 = vor.u32 %v1323, %v1326
      %v1328 = vrot.slane %v1327, 4
      %v1330 = vshll.u32 %v1207, 16
      %v1332 = vrot.slane %v1330, 5
      %v1333 = vsel %vm769, %v1328, %v1332
      %v1334 = vshrl.u32 %v1207, 16
      %v1336 = vrot.slane %v1334, 4
      %v1337 = vor.u32 %v1336, %v1332
      %v1338 = vrot.slane %v1337, 4
      %v1340 = vshll.u32 %v1208, 16
      %v1342 = vrot.slane %v1340, 5
      %v1343 = vsel %vm769, %v1338, %v1342
      %v1345 = vshrl.u32 %v1209, 16
      %v1347 = vrot.slane %v1345, 4
      %v1348 = vshll.u32 %v1209, 16
      %v1350 = vrot.slane %v1348, 5
      %v1351 = vor.u32 %v1347, %v1350
      %v1352 = vrot.slane %v1351, 4
      %v1354 = vshll.u32 %v1210, 16
      %v1356 = vrot.slane %v1354, 5
      %v1357 = vsel %vm769, %v1352, %v1356
      %v1358 = vshrl.u32 %v1210, 16
      %v1360 = vrot.slane %v1358, 4
      %v1361 = vor.u32 %v1360, %v1356
      %v1362 = vrot.slane %v1361, 4
      %v1364 = vshll.u32 %v1211, 16
      %v1366 = vrot.slane %v1364, 5
      %v1367 = vsel %vm769, %v1362, %v1366
      %v1369 = vshrl.u32 %v1212, 16
      %v1371 = vrot.slane %v1369, 4
      %v1372 = vshll.u32 %v1212, 16
      %v1374 = vrot.slane %v1372, 5
      %v1375 = vor.u32 %v1371, %v1374
      %v1376 = vrot.slane %v1375, 4
      %v1378 = vshll.u32 %v1213, 16
      %v1380 = vrot.slane %v1378, 5
      %v1381 = vsel %vm769, %v1376, %v1380
      %v1382 = vshrl.u32 %v1213, 16
      %v1384 = vrot.slane %v1382, 4
      %v1385 = vor.u32 %v1384, %v1380
      %v1386 = vrot.slane %v1385, 4
      %v1388 = vshll.u32 %v1214, 16
      %v1390 = vrot.slane %v1388, 5
      %v1391 = vsel %vm769, %v1386, %v1390
      %v1393 = vshrl.u32 %v1215, 16
      %v1395 = vrot.slane %v1393, 4
      %v1396 = vshll.u32 %v1215, 16
      %v1398 = vrot.slane %v1396, 5
      %v1399 = vor.u32 %v1395, %v1398
      %v1400 = vrot.slane %v1399, 4
      %v1402 = vshll.u32 %v1216, 16
      %v1404 = vrot.slane %v1402, 5
      %v1405 = vsel %vm769, %v1400, %v1404
      %v1406 = vshrl.u32 %v1216, 16
      %v1408 = vrot.slane %v1406, 4
      %v1409 = vor.u32 %v1408, %v1404
      %v1410 = vrot.slane %v1409, 4
      %v1412 = vshll.u32 %v1217, 16
      %v1414 = vrot.slane %v1412, 5
      %v1415 = vsel %vm769, %v1410, %v1414
      %v1417 = vshrl.u32 %v1218, 16
      %v1419 = vrot.slane %v1417, 4
      %v1420 = vshll.u32 %v1218, 16
      %v1422 = vrot.slane %v1420, 5
      %v1423 = vor.u32 %v1419, %v1422
      %v1424 = vrot.slane %v1423, 4
      %v1426 = vshll.u32 %v1219, 16
      %v1428 = vrot.slane %v1426, 5
      %v1429 = vsel %vm769, %v1424, %v1428
      %v1430 = vshrl.u32 %v1219, 16
      %v1432 = vrot.slane %v1430, 4
      %v1433 = vor.u32 %v1432, %v1428
      %v1434 = vrot.slane %v1433, 4
      %v1436 = vshll.u32 %v1220, 16
      %v1438 = vrot.slane %v1436, 5
      %v1439 = vsel %vm769, %v1434, %v1438
      %v1441 = vshrl.u32 %v1221, 16
      %v1443 = vrot.slane %v1441, 4
      %v1444 = vshll.u32 %v1221, 16
      %v1446 = vrot.slane %v1444, 5
      %v1447 = vor.u32 %v1443, %v1446
      %v1448 = vrot.slane %v1447, 4
      %v1450 = vshll.u32 %v1222, 16
      %v1452 = vrot.slane %v1450, 5
      %v1453 = vsel %vm769, %v1448, %v1452
      %v1454 = vshrl.u32 %v1222, 16
      %v1456 = vrot.slane %v1454, 4
      %v1457 = vor.u32 %v1456, %v1452
      %v1458 = vrot.slane %v1457, 4
      %v1460 = vshll.u32 %v1223, 16
      %v1462 = vrot.slane %v1460, 5
      %v1463 = vsel %vm769, %v1458, %v1462
      %s1464 = scalar_lea.vmem %s3, 64
      %v1465 = vld [vmem:[%s1464] sm:$0xf]
      %v1466 = vld [vmem:[%s1464 + $0x4] sm:$0xf]
      %v1467 = vld [vmem:[%s1464 + $0x8] sm:$0xf]
      %v1468 = vld [vmem:[%s1464 + $0xc] sm:$0xf]
      %v1469 = vld [vmem:[%s1464 + $0x10] sm:$0xf]
      %v1470 = vld [vmem:[%s1464 + $0x14] sm:$0xf]
      %v1471 = vld [vmem:[%s1464 + $0x18] sm:$0xf]
      %v1472 = vld [vmem:[%s1464 + $0x1c] sm:$0xf]
      %v1473 = vld [vmem:[%s1464 + $0x20] sm:$0xf]
      %v1474 = vld [vmem:[%s1464 + $0x24] sm:$0xf]
      %v1475 = vld [vmem:[%s1464 + $0x28] sm:$0xf]
      %v1476 = vld [vmem:[%s1464 + $0x2c] sm:$0xf]
      %v1477 = vld [vmem:[%s1464 + $0x30] sm:$0xf]
      %v1478 = vld [vmem:[%s1464 + $0x34] sm:$0xf]
      %v1479 = vld [vmem:[%s1464 + $0x38] sm:$0xf]
      %v1480 = vld [vmem:[%s1464 + $0x3c] sm:$0xf]
      %v1481 = vunpack.c.l.b16 %v1237
      %v1482 = vunpack.c.l.b16 %v1247
      %v1483 = vunpack.c.l.b16 %v1261
      %v1484 = vunpack.c.l.b16 %v1271
      %v1485 = vunpack.c.l.b16 %v1285
      %v1486 = vunpack.c.l.b16 %v1295
      %v1487 = vunpack.c.l.b16 %v1309
      %v1488 = vunpack.c.l.b16 %v1319
      %v1489 = vunpack.c.l.b16 %v1333
      %v1490 = vunpack.c.l.b16 %v1343
      %v1491 = vunpack.c.l.b16 %v1357
      %v1492 = vunpack.c.l.b16 %v1367
      %v1493 = vunpack.c.l.b16 %v1381
      %v1494 = vunpack.c.l.b16 %v1391
      %v1495 = vunpack.c.l.b16 %v1405
      %v1496 = vunpack.c.l.b16 %v1415
      %v1497 = vunpack.c.l.b16 %v1429
      %v1498 = vunpack.c.l.b16 %v1439
      %v1499 = vunpack.c.l.b16 %v1453
      %v1500 = vunpack.c.l.b16 %v1463
      %v1501 = vpack.c.b16 %v1482, %v1481
      %v1502 = vpack.c.b16 %v1484, %v1483
      %v1503 = vpack.c.b16 %v1486, %v1485
      %v1504 = vpack.c.b16 %v1488, %v1487
      %v1505 = vpack.c.b16 %v1490, %v1489
      %v1506 = vpack.c.b16 %v1492, %v1491
      %v1507 = vpack.c.b16 %v1494, %v1493
      %v1508 = vpack.c.b16 %v1496, %v1495
      %v1509 = vpack.c.b16 %v1498, %v1497
      %v1510 = vpack.c.b16 %v1500, %v1499
      %v1537 = vunpack.c.l.b16 %v1465
      %v1538 = vunpack.c.l.b16 %v1466
      %v1539 = vunpack.c.l.b16 %v1467
      %v1540 = vunpack.c.l.b16 %v1468
      %v1541 = vunpack.c.l.b16 %v1469
      %v1542 = vunpack.c.l.b16 %v1470
      %v1543 = vunpack.c.l.b16 %v1471
      %v1544 = vunpack.c.l.b16 %v1472
      %v1545 = vunpack.c.l.b16 %v1473
      %v1546 = vunpack.c.l.b16 %v1474
      %v1547 = vunpack.c.l.b16 %v1475
      %v1548 = vunpack.c.l.b16 %v1476
      %v1549 = vunpack.c.l.b16 %v1477
      %v1550 = vunpack.c.l.b16 %v1478
      %v1551 = vunpack.c.l.b16 %v1479
      %v1552 = vunpack.c.l.b16 %v1480
      %v1553 = vpack.c.b16 %v1538, %v1537
      %v1554 = vpack.c.b16 %v1540, %v1539
      %v1555 = vpack.c.b16 %v1542, %v1541
      %v1556 = vpack.c.b16 %v1544, %v1543
      %v1557 = vpack.c.b16 %v1546, %v1545
      %v1558 = vpack.c.b16 %v1548, %v1547
      %v1559 = vpack.c.b16 %v1550, %v1549
      %v1560 = vpack.c.b16 %v1552, %v1551
      %1569 = vmatpush.bf16.msra.mxu0 %v1560
      %1570 = vmatpush.bf16.msra.mxu0 %v1559
      %1571 = vmatpush.bf16.msra.mxu0 %v1558
      %1572 = vmatpush.bf16.msra.mxu0 %v1557
      %1573 = vmatpush.bf16.msra.mxu0 %v1556
      %1574 = vmatpush.bf16.msra.mxu0 %v1555
      %1575 = vmatpush.bf16.msra.mxu0 %v1554
      %1576 = vmatpush.bf16.msra.mxu0 %v1553
      %1577 = vmatmul.bf16.gmra.mxu0 %v1501
      %v1578 = vpop.f32.mrf.mxu0
      %v1579 = vadd.f32 0.0, %v1578
      %v1580 = vpop.f32.mrf.mxu0
      %v1581 = vadd.f32 0.0, %v1580
      %1582 = vmatmul.bf16.gmra.mxu0 %v1502
      %v1583 = vpop.f32.mrf.mxu0
      %v1584 = vadd.f32 0.0, %v1583
      %v1585 = vpop.f32.mrf.mxu0
      %v1586 = vadd.f32 0.0, %v1585
      %1587 = vmatmul.bf16.gmra.mxu0 %v1503
      %v1588 = vpop.f32.mrf.mxu0
      %v1589 = vadd.f32 0.0, %v1588
      %v1590 = vpop.f32.mrf.mxu0
      %v1591 = vadd.f32 0.0, %v1590
      %1592 = vmatmul.bf16.gmra.mxu0 %v1504
      %v1593 = vpop.f32.mrf.mxu0
      %v1594 = vadd.f32 0.0, %v1593
      %v1595 = vpop.f32.mrf.mxu0
      %v1596 = vadd.f32 0.0, %v1595
      %1597 = vmatmul.bf16.gmra.mxu0 %v1505
      %v1598 = vpop.f32.mrf.mxu0
      %v1599 = vadd.f32 0.0, %v1598
      %v1600 = vpop.f32.mrf.mxu0
      %v1601 = vadd.f32 0.0, %v1600
      %1602 = vmatmul.bf16.gmra.mxu0 %v1506
      %v1603 = vpop.f32.mrf.mxu0
      %v1604 = vadd.f32 0.0, %v1603
      %v1605 = vpop.f32.mrf.mxu0
      %v1606 = vadd.f32 0.0, %v1605
      %1607 = vmatmul.bf16.gmra.mxu0 %v1507
      %v1608 = vpop.f32.mrf.mxu0
      %v1609 = vadd.f32 0.0, %v1608
      %v1610 = vpop.f32.mrf.mxu0
      %v1611 = vadd.f32 0.0, %v1610
      %1612 = vmatmul.bf16.gmra.mxu0 %v1508
      %v1613 = vpop.f32.mrf.mxu0
      %v1614 = vadd.f32 0.0, %v1613
      %v1615 = vpop.f32.mrf.mxu0
      %v1616 = vadd.f32 0.0, %v1615
      %1617 = vmatmul.bf16.gmra.mxu0 %v1509
      %v1618 = vpop.f32.mrf.mxu0
      %v1619 = vadd.f32 0.0, %v1618
      %v1620 = vpop.f32.mrf.mxu0
      %v1621 = vadd.f32 0.0, %v1620
      %1622 = vmatmul.bf16.gmra.mxu0 %v1510
      %v1623 = vpop.f32.mrf.mxu0
      %v1624 = vadd.f32 0.0, %v1623
      %v1625 = vpop.f32.mrf.mxu0
      %v1626 = vadd.f32 0.0, %v1625
      %1627 = vdwg.mxu0
      %v1628 = vadd.f32 %v1174, %v1579
      %v1629 = vadd.f32 %v1175, %v1581
      %v1630 = vadd.f32 %v1176, %v1584
      %v1631 = vadd.f32 %v1177, %v1586
      %v1632 = vadd.f32 %v1178, %v1589
      %v1633 = vadd.f32 %v1179, %v1591
      %v1634 = vadd.f32 %v1180, %v1594
      %v1635 = vadd.f32 %v1181, %v1596
      %v1636 = vadd.f32 %v1182, %v1599
      %v1637 = vadd.f32 %v1183, %v1601
      %v1638 = vadd.f32 %v1184, %v1604
      %v1639 = vadd.f32 %v1185, %v1606
      %v1640 = vadd.f32 %v1186, %v1609
      %v1641 = vadd.f32 %v1187, %v1611
      %v1642 = vadd.f32 %v1188, %v1614
      %v1643 = vadd.f32 %v1189, %v1616
      %v1644 = vadd.f32 %v1190, %v1619
      %v1645 = vadd.f32 %v1191, %v1621
      %v1646 = vadd.f32 %v1192, %v1624
      %v1647 = vadd.f32 %v1193, %v1626
      %v1648 = vld [vmem:[%s328] sm:$0xe]
      %v1649 = vld [vmem:[%s328 + $0xc] sm:$0xe]
      %v1650 = vld [vmem:[%s328 + $0x18] sm:$0xe]
      %v1651 = vld [vmem:[%s328 + $0x24] sm:$0xe]
      %v1652 = vld [vmem:[%s328 + $0x30] sm:$0xe]
      %v1653 = vld [vmem:[%s328 + $0x3c] sm:$0xe]
      %v1654 = vld [vmem:[%s328 + $0x48] sm:$0xe]
      %v1655 = vld [vmem:[%s328 + $0x54] sm:$0xe]
      %v1656 = vld [vmem:[%s328 + $0x60] sm:$0xe]
      %v1657 = vld [vmem:[%s328 + $0x6c] sm:$0xe]
      %vm1688 = vcmask 1042432
      %vm1689 = vcmask 1046532
      %vm1690 = vmor %vm1688, %vm1689
      %v1691 = vrot.slane %v1648, 5
      %v1692 = vrot.slane %v1691, 4
      %v1693 = vrot.slane %v738, 5
      %v1694 = vsel %vm1690, %v1692, %v1693
      %v1695 = vrot.slane %v1693, 4
      %v1696 = vrot.slane %v739, 5
      %v1697 = vsel %vm1690, %v1695, %v1696
      %v1698 = vrot.slane %v1649, 5
      %v1699 = vrot.slane %v1698, 4
      %v1700 = vrot.slane %v741, 5
      %v1701 = vsel %vm1690, %v1699, %v1700
      %v1702 = vrot.slane %v1700, 4
      %v1703 = vrot.slane %v742, 5
      %v1704 = vsel %vm1690, %v1702, %v1703
      %v1705 = vrot.slane %v1650, 5
      %v1706 = vrot.slane %v1705, 4
      %v1707 = vrot.slane %v744, 5
      %v1708 = vsel %vm1690, %v1706, %v1707
      %v1709 = vrot.slane %v1707, 4
      %v1710 = vrot.slane %v745, 5
      %v1711 = vsel %vm1690, %v1709, %v1710
      %v1712 = vrot.slane %v1651, 5
      %v1713 = vrot.slane %v1712, 4
      %v1714 = vrot.slane %v747, 5
      %v1715 = vsel %vm1690, %v1713, %v1714
      %v1716 = vrot.slane %v1714, 4
      %v1717 = vrot.slane %v748, 5
      %v1718 = vsel %vm1690, %v1716, %v1717
      %v1719 = vrot.slane %v1652, 5
      %v1720 = vrot.slane %v1719, 4
      %v1721 = vrot.slane %v750, 5
      %v1722 = vsel %vm1690, %v1720, %v1721
      %v1723 = vrot.slane %v1721, 4
      %v1724 = vrot.slane %v751, 5
      %v1725 = vsel %vm1690, %v1723, %v1724
      %v1726 = vrot.slane %v1653, 5
      %v1727 = vrot.slane %v1726, 4
      %v1728 = vrot.slane %v753, 5
      %v1729 = vsel %vm1690, %v1727, %v1728
      %v1730 = vrot.slane %v1728, 4
      %v1731 = vrot.slane %v754, 5
      %v1732 = vsel %vm1690, %v1730, %v1731
      %v1733 = vrot.slane %v1654, 5
      %v1734 = vrot.slane %v1733, 4
      %v1735 = vrot.slane %v756, 5
      %v1736 = vsel %vm1690, %v1734, %v1735
      %v1737 = vrot.slane %v1735, 4
      %v1738 = vrot.slane %v757, 5
      %v1739 = vsel %vm1690, %v1737, %v1738
      %v1740 = vrot.slane %v1655, 5
      %v1741 = vrot.slane %v1740, 4
      %v1742 = vrot.slane %v759, 5
      %v1743 = vsel %vm1690, %v1741, %v1742
      %v1744 = vrot.slane %v1742, 4
      %v1745 = vrot.slane %v760, 5
      %v1746 = vsel %vm1690, %v1744, %v1745
      %v1747 = vrot.slane %v1656, 5
      %v1748 = vrot.slane %v1747, 4
      %v1749 = vrot.slane %v762, 5
      %v1750 = vsel %vm1690, %v1748, %v1749
      %v1751 = vrot.slane %v1749, 4
      %v1752 = vrot.slane %v763, 5
      %v1753 = vsel %vm1690, %v1751, %v1752
      %v1754 = vrot.slane %v1657, 5
      %v1755 = vrot.slane %v1754, 4
      %v1756 = vrot.slane %v765, 5
      %v1757 = vsel %vm1690, %v1755, %v1756
      %v1758 = vrot.slane %v1756, 4
      %v1759 = vrot.slane %v766, 5
      %v1760 = vsel %vm1690, %v1758, %v1759
      %s1761 = scalar_lea.vmem %s2, 128
      %v1762 = vld [vmem:[%s1761] sm:$0xf]
      %v1763 = vld [vmem:[%s1761 + $0x4] sm:$0xf]
      %v1764 = vld [vmem:[%s1761 + $0x8] sm:$0xf]
      %v1765 = vld [vmem:[%s1761 + $0xc] sm:$0xf]
      %v1766 = vld [vmem:[%s1761 + $0x10] sm:$0xf]
      %v1767 = vld [vmem:[%s1761 + $0x14] sm:$0xf]
      %v1768 = vld [vmem:[%s1761 + $0x18] sm:$0xf]
      %v1769 = vld [vmem:[%s1761 + $0x1c] sm:$0xf]
      %v1770 = vld [vmem:[%s1761 + $0x20] sm:$0xf]
      %v1771 = vld [vmem:[%s1761 + $0x24] sm:$0xf]
      %v1772 = vld [vmem:[%s1761 + $0x28] sm:$0xf]
      %v1773 = vld [vmem:[%s1761 + $0x2c] sm:$0xf]
      %v1774 = vld [vmem:[%s1761 + $0x30] sm:$0xf]
      %v1775 = vld [vmem:[%s1761 + $0x34] sm:$0xf]
      %v1776 = vld [vmem:[%s1761 + $0x38] sm:$0xf]
      %v1777 = vld [vmem:[%s1761 + $0x3c] sm:$0xf]
      %v1778 = vunpack.c.l.b16 %v1694
      %v1779 = vunpack.c.l.b16 %v1697
      %v1780 = vunpack.c.l.b16 %v1701
      %v1781 = vunpack.c.l.b16 %v1704
      %v1782 = vunpack.c.l.b16 %v1708
      %v1783 = vunpack.c.l.b16 %v1711
      %v1784 = vunpack.c.l.b16 %v1715
      %v1785 = vunpack.c.l.b16 %v1718
      %v1786 = vunpack.c.l.b16 %v1722
      %v1787 = vunpack.c.l.b16 %v1725
      %v1788 = vunpack.c.l.b16 %v1729
      %v1789 = vunpack.c.l.b16 %v1732
      %v1790 = vunpack.c.l.b16 %v1736
      %v1791 = vunpack.c.l.b16 %v1739
      %v1792 = vunpack.c.l.b16 %v1743
      %v1793 = vunpack.c.l.b16 %v1746
      %v1794 = vunpack.c.l.b16 %v1750
      %v1795 = vunpack.c.l.b16 %v1753
      %v1796 = vunpack.c.l.b16 %v1757
      %v1797 = vunpack.c.l.b16 %v1760
      %v1798 = vpack.c.b16 %v1779, %v1778
      %v1799 = vpack.c.b16 %v1781, %v1780
      %v1800 = vpack.c.b16 %v1783, %v1782
      %v1801 = vpack.c.b16 %v1785, %v1784
      %v1802 = vpack.c.b16 %v1787, %v1786
      %v1803 = vpack.c.b16 %v1789, %v1788
      %v1804 = vpack.c.b16 %v1791, %v1790
      %v1805 = vpack.c.b16 %v1793, %v1792
      %v1806 = vpack.c.b16 %v1795, %v1794
      %v1807 = vpack.c.b16 %v1797, %v1796
      %v1834 = vunpack.c.l.b16 %v1762
      %v1835 = vunpack.c.l.b16 %v1763
      %v1836 = vunpack.c.l.b16 %v1764
      %v1837 = vunpack.c.l.b16 %v1765
      %v1838 = vunpack.c.l.b16 %v1766
      %v1839 = vunpack.c.l.b16 %v1767
      %v1840 = vunpack.c.l.b16 %v1768
      %v1841 = vunpack.c.l.b16 %v1769
      %v1842 = vunpack.c.l.b16 %v1770
      %v1843 = vunpack.c.l.b16 %v1771
      %v1844 = vunpack.c.l.b16 %v1772
      %v1845 = vunpack.c.l.b16 %v1773
      %v1846 = vunpack.c.l.b16 %v1774
      %v1847 = vunpack.c.l.b16 %v1775
      %v1848 = vunpack.c.l.b16 %v1776
      %v1849 = vunpack.c.l.b16 %v1777
      %v1850 = vpack.c.b16 %v1835, %v1834
      %v1851 = vpack.c.b16 %v1837, %v1836
      %v1852 = vpack.c.b16 %v1839, %v1838
      %v1853 = vpack.c.b16 %v1841, %v1840
      %v1854 = vpack.c.b16 %v1843, %v1842
      %v1855 = vpack.c.b16 %v1845, %v1844
      %v1856 = vpack.c.b16 %v1847, %v1846
      %v1857 = vpack.c.b16 %v1849, %v1848
      %1866 = vmatpush.bf16.msra.mxu0 %v1857
      %1867 = vmatpush.bf16.msra.mxu0 %v1856
      %1868 = vmatpush.bf16.msra.mxu0 %v1855
      %1869 = vmatpush.bf16.msra.mxu0 %v1854
      %1870 = vmatpush.bf16.msra.mxu0 %v1853
      %1871 = vmatpush.bf16.msra.mxu0 %v1852
      %1872 = vmatpush.bf16.msra.mxu0 %v1851
      %1873 = vmatpush.bf16.msra.mxu0 %v1850
      %1874 = vmatmul.bf16.gmra.mxu0 %v1798
      %v1875 = vpop.f32.mrf.mxu0
      %v1876 = vadd.f32 0.0, %v1875
      %v1877 = vpop.f32.mrf.mxu0
      %v1878 = vadd.f32 0.0, %v1877
      %1879 = vmatmul.bf16.gmra.mxu0 %v1799
      %v1880 = vpop.f32.mrf.mxu0
      %v1881 = vadd.f32 0.0, %v1880
      %v1882 = vpop.f32.mrf.mxu0
      %v1883 = vadd.f32 0.0, %v1882
      %1884 = vmatmul.bf16.gmra.mxu0 %v1800
      %v1885 = vpop.f32.mrf.mxu0
      %v1886 = vadd.f32 0.0, %v1885
      %v1887 = vpop.f32.mrf.mxu0
      %v1888 = vadd.f32 0.0, %v1887
      %1889 = vmatmul.bf16.gmra.mxu0 %v1801
      %v1890 = vpop.f32.mrf.mxu0
      %v1891 = vadd.f32 0.0, %v1890
      %v1892 = vpop.f32.mrf.mxu0
      %v1893 = vadd.f32 0.0, %v1892
      %1894 = vmatmul.bf16.gmra.mxu0 %v1802
      %v1895 = vpop.f32.mrf.mxu0
      %v1896 = vadd.f32 0.0, %v1895
      %v1897 = vpop.f32.mrf.mxu0
      %v1898 = vadd.f32 0.0, %v1897
      %1899 = vmatmul.bf16.gmra.mxu0 %v1803
      %v1900 = vpop.f32.mrf.mxu0
      %v1901 = vadd.f32 0.0, %v1900
      %v1902 = vpop.f32.mrf.mxu0
      %v1903 = vadd.f32 0.0, %v1902
      %1904 = vmatmul.bf16.gmra.mxu0 %v1804
      %v1905 = vpop.f32.mrf.mxu0
      %v1906 = vadd.f32 0.0, %v1905
      %v1907 = vpop.f32.mrf.mxu0
      %v1908 = vadd.f32 0.0, %v1907
      %1909 = vmatmul.bf16.gmra.mxu0 %v1805
      %v1910 = vpop.f32.mrf.mxu0
      %v1911 = vadd.f32 0.0, %v1910
      %v1912 = vpop.f32.mrf.mxu0
      %v1913 = vadd.f32 0.0, %v1912
      %1914 = vmatmul.bf16.gmra.mxu0 %v1806
      %v1915 = vpop.f32.mrf.mxu0
      %v1916 = vadd.f32 0.0, %v1915
      %v1917 = vpop.f32.mrf.mxu0
      %v1918 = vadd.f32 0.0, %v1917
      %1919 = vmatmul.bf16.gmra.mxu0 %v1807
      %v1920 = vpop.f32.mrf.mxu0
      %v1921 = vadd.f32 0.0, %v1920
      %v1922 = vpop.f32.mrf.mxu0
      %v1923 = vadd.f32 0.0, %v1922
      %1924 = vdwg.mxu0
      %v1925 = vadd.f32 %v1628, %v1876
      %v1926 = vadd.f32 %v1629, %v1878
      %v1927 = vadd.f32 %v1630, %v1881
      %v1928 = vadd.f32 %v1631, %v1883
      %v1929 = vadd.f32 %v1632, %v1886
      %v1930 = vadd.f32 %v1633, %v1888
      %v1931 = vadd.f32 %v1634, %v1891
      %v1932 = vadd.f32 %v1635, %v1893
      %v1933 = vadd.f32 %v1636, %v1896
      %v1934 = vadd.f32 %v1637, %v1898
      %v1935 = vadd.f32 %v1638, %v1901
      %v1936 = vadd.f32 %v1639, %v1903
      %v1937 = vadd.f32 %v1640, %v1906
      %v1938 = vadd.f32 %v1641, %v1908
      %v1939 = vadd.f32 %v1642, %v1911
      %v1940 = vadd.f32 %v1643, %v1913
      %v1941 = vadd.f32 %v1644, %v1916
      %v1942 = vadd.f32 %v1645, %v1918
      %v1943 = vadd.f32 %v1646, %v1921
      %v1944 = vadd.f32 %v1647, %v1923
      %v1945 = vld [vmem:[%s366] sm:$0xe]
      %v1946 = vld [vmem:[%s366 + $0xc] sm:$0xe]
      %v1947 = vld [vmem:[%s366 + $0x18] sm:$0xe]
      %v1948 = vld [vmem:[%s366 + $0x24] sm:$0xe]
      %v1949 = vld [vmem:[%s366 + $0x30] sm:$0xe]
      %v1950 = vld [vmem:[%s366 + $0x3c] sm:$0xe]
      %v1951 = vld [vmem:[%s366 + $0x48] sm:$0xe]
      %v1952 = vld [vmem:[%s366 + $0x54] sm:$0xe]
      %v1953 = vld [vmem:[%s366 + $0x60] sm:$0xe]
      %v1954 = vld [vmem:[%s366 + $0x6c] sm:$0xe]
      %v1985 = vrot.slane %v1945, 5
      %v1986 = vrot.slane %v1985, 4
      %v1987 = vrot.slane %v1195, 5
      %v1988 = vsel %vm1690, %v1986, %v1987
      %v1989 = vrot.slane %v1987, 4
      %v1990 = vrot.slane %v1196, 5
      %v1991 = vsel %vm1690, %v1989, %v1990
      %v1992 = vrot.slane %v1946, 5
      %v1993 = vrot.slane %v1992, 4
      %v1994 = vrot.slane %v1198, 5
      %v1995 = vsel %vm1690, %v1993, %v1994
      %v1996 = vrot.slane %v1994, 4
      %v1997 = vrot.slane %v1199, 5
      %v1998 = vsel %vm1690, %v1996, %v1997
      %v1999 = vrot.slane %v1947, 5
      %v2000 = vrot.slane %v1999, 4
      %v2001 = vrot.slane %v1201, 5
      %v2002 = vsel %vm1690, %v2000, %v2001
      %v2003 = vrot.slane %v2001, 4
      %v2004 = vrot.slane %v1202, 5
      %v2005 = vsel %vm1690, %v2003, %v2004
      %v2006 = vrot.slane %v1948, 5
      %v2007 = vrot.slane %v2006, 4
      %v2008 = vrot.slane %v1204, 5
      %v2009 = vsel %vm1690, %v2007, %v2008
      %v2010 = vrot.slane %v2008, 4
      %v2011 = vrot.slane %v1205, 5
      %v2012 = vsel %vm1690, %v2010, %v2011
      %v2013 = vrot.slane %v1949, 5
      %v2014 = vrot.slane %v2013, 4
      %v2015 = vrot.slane %v1207, 5
      %v2016 = vsel %vm1690, %v2014, %v2015
      %v2017 = vrot.slane %v2015, 4
      %v2018 = vrot.slane %v1208, 5
      %v2019 = vsel %vm1690, %v2017, %v2018
      %v2020 = vrot.slane %v1950, 5
      %v2021 = vrot.slane %v2020, 4
      %v2022 = vrot.slane %v1210, 5
      %v2023 = vsel %vm1690, %v2021, %v2022
      %v2024 = vrot.slane %v2022, 4
      %v2025 = vrot.slane %v1211, 5
      %v2026 = vsel %vm1690, %v2024, %v2025
      %v2027 = vrot.slane %v1951, 5
      %v2028 = vrot.slane %v2027, 4
      %v2029 = vrot.slane %v1213, 5
      %v2030 = vsel %vm1690, %v2028, %v2029
      %v2031 = vrot.slane %v2029, 4
      %v2032 = vrot.slane %v1214, 5
      %v2033 = vsel %vm1690, %v2031, %v2032
      %v2034 = vrot.slane %v1952, 5
      %v2035 = vrot.slane %v2034, 4
      %v2036 = vrot.slane %v1216, 5
      %v2037 = vsel %vm1690, %v2035, %v2036
      %v2038 = vrot.slane %v2036, 4
      %v2039 = vrot.slane %v1217, 5
      %v2040 = vsel %vm1690, %v2038, %v2039
      %v2041 = vrot.slane %v1953, 5
      %v2042 = vrot.slane %v2041, 4
      %v2043 = vrot.slane %v1219, 5
      %v2044 = vsel %vm1690, %v2042, %v2043
      %v2045 = vrot.slane %v2043, 4
      %v2046 = vrot.slane %v1220, 5
      %v2047 = vsel %vm1690, %v2045, %v2046
      %v2048 = vrot.slane %v1954, 5
      %v2049 = vrot.slane %v2048, 4
      %v2050 = vrot.slane %v1222, 5
      %v2051 = vsel %vm1690, %v2049, %v2050
      %v2052 = vrot.slane %v2050, 4
      %v2053 = vrot.slane %v1223, 5
      %v2054 = vsel %vm1690, %v2052, %v2053
      %s2055 = scalar_lea.vmem %s3, 128
      %v2056 = vld [vmem:[%s2055] sm:$0xf]
      %v2057 = vld [vmem:[%s2055 + $0x4] sm:$0xf]
      %v2058 = vld [vmem:[%s2055 + $0x8] sm:$0xf]
      %v2059 = vld [vmem:[%s2055 + $0xc] sm:$0xf]
      %v2060 = vld [vmem:[%s2055 + $0x10] sm:$0xf]
      %v2061 = vld [vmem:[%s2055 + $0x14] sm:$0xf]
      %v2062 = vld [vmem:[%s2055 + $0x18] sm:$0xf]
      %v2063 = vld [vmem:[%s2055 + $0x1c] sm:$0xf]
      %v2064 = vld [vmem:[%s2055 + $0x20] sm:$0xf]
      %v2065 = vld [vmem:[%s2055 + $0x24] sm:$0xf]
      %v2066 = vld [vmem:[%s2055 + $0x28] sm:$0xf]
      %v2067 = vld [vmem:[%s2055 + $0x2c] sm:$0xf]
      %v2068 = vld [vmem:[%s2055 + $0x30] sm:$0xf]
      %v2069 = vld [vmem:[%s2055 + $0x34] sm:$0xf]
      %v2070 = vld [vmem:[%s2055 + $0x38] sm:$0xf]
      %v2071 = vld [vmem:[%s2055 + $0x3c] sm:$0xf]
      %v2072 = vunpack.c.l.b16 %v1988
      %v2073 = vunpack.c.l.b16 %v1991
      %v2074 = vunpack.c.l.b16 %v1995
      %v2075 = vunpack.c.l.b16 %v1998
      %v2076 = vunpack.c.l.b16 %v2002
      %v2077 = vunpack.c.l.b16 %v2005
      %v2078 = vunpack.c.l.b16 %v2009
      %v2079 = vunpack.c.l.b16 %v2012
      %v2080 = vunpack.c.l.b16 %v2016
      %v2081 = vunpack.c.l.b16 %v2019
      %v2082 = vunpack.c.l.b16 %v2023
      %v2083 = vunpack.c.l.b16 %v2026
      %v2084 = vunpack.c.l.b16 %v2030
      %v2085 = vunpack.c.l.b16 %v2033
      %v2086 = vunpack.c.l.b16 %v2037
      %v2087 = vunpack.c.l.b16 %v2040
      %v2088 = vunpack.c.l.b16 %v2044
      %v2089 = vunpack.c.l.b16 %v2047
      %v2090 = vunpack.c.l.b16 %v2051
      %v2091 = vunpack.c.l.b16 %v2054
      %v2092 = vpack.c.b16 %v2073, %v2072
      %v2093 = vpack.c.b16 %v2075, %v2074
      %v2094 = vpack.c.b16 %v2077, %v2076
      %v2095 = vpack.c.b16 %v2079, %v2078
      %v2096 = vpack.c.b16 %v2081, %v2080
      %v2097 = vpack.c.b16 %v2083, %v2082
      %v2098 = vpack.c.b16 %v2085, %v2084
      %v2099 = vpack.c.b16 %v2087, %v2086
      %v2100 = vpack.c.b16 %v2089, %v2088
      %v2101 = vpack.c.b16 %v2091, %v2090
      %v2128 = vunpack.c.l.b16 %v2056
      %v2129 = vunpack.c.l.b16 %v2057
      %v2130 = vunpack.c.l.b16 %v2058
      %v2131 = vunpack.c.l.b16 %v2059
      %v2132 = vunpack.c.l.b16 %v2060
      %v2133 = vunpack.c.l.b16 %v2061
      %v2134 = vunpack.c.l.b16 %v2062
      %v2135 = vunpack.c.l.b16 %v2063
      %v2136 = vunpack.c.l.b16 %v2064
      %v2137 = vunpack.c.l.b16 %v2065
      %v2138 = vunpack.c.l.b16 %v2066
      %v2139 = vunpack.c.l.b16 %v2067
      %v2140 = vunpack.c.l.b16 %v2068
      %v2141 = vunpack.c.l.b16 %v2069
      %v2142 = vunpack.c.l.b16 %v2070
      %v2143 = vunpack.c.l.b16 %v2071
      %v2144 = vpack.c.b16 %v2129, %v2128
      %v2145 = vpack.c.b16 %v2131, %v2130
      %v2146 = vpack.c.b16 %v2133, %v2132
      %v2147 = vpack.c.b16 %v2135, %v2134
      %v2148 = vpack.c.b16 %v2137, %v2136
      %v2149 = vpack.c.b16 %v2139, %v2138
      %v2150 = vpack.c.b16 %v2141, %v2140
      %v2151 = vpack.c.b16 %v2143, %v2142
      %2160 = vmatpush.bf16.msra.mxu0 %v2151
      %2161 = vmatpush.bf16.msra.mxu0 %v2150
      %2162 = vmatpush.bf16.msra.mxu0 %v2149
      %2163 = vmatpush.bf16.msra.mxu0 %v2148
      %2164 = vmatpush.bf16.msra.mxu0 %v2147
      %2165 = vmatpush.bf16.msra.mxu0 %v2146
      %2166 = vmatpush.bf16.msra.mxu0 %v2145
      %2167 = vmatpush.bf16.msra.mxu0 %v2144
      %2168 = vmatmul.bf16.gmra.mxu0 %v2092
      %v2169 = vpop.f32.mrf.mxu0
      %v2170 = vadd.f32 0.0, %v2169
      %v2171 = vpop.f32.mrf.mxu0
      %v2172 = vadd.f32 0.0, %v2171
      %2173 = vmatmul.bf16.gmra.mxu0 %v2093
      %v2174 = vpop.f32.mrf.mxu0
      %v2175 = vadd.f32 0.0, %v2174
      %v2176 = vpop.f32.mrf.mxu0
      %v2177 = vadd.f32 0.0, %v2176
      %2178 = vmatmul.bf16.gmra.mxu0 %v2094
      %v2179 = vpop.f32.mrf.mxu0
      %v2180 = vadd.f32 0.0, %v2179
      %v2181 = vpop.f32.mrf.mxu0
      %v2182 = vadd.f32 0.0, %v2181
      %2183 = vmatmul.bf16.gmra.mxu0 %v2095
      %v2184 = vpop.f32.mrf.mxu0
      %v2185 = vadd.f32 0.0, %v2184
      %v2186 = vpop.f32.mrf.mxu0
      %v2187 = vadd.f32 0.0, %v2186
      %2188 = vmatmul.bf16.gmra.mxu0 %v2096
      %v2189 = vpop.f32.mrf.mxu0
      %v2190 = vadd.f32 0.0, %v2189
      %v2191 = vpop.f32.mrf.mxu0
      %v2192 = vadd.f32 0.0, %v2191
      %2193 = vmatmul.bf16.gmra.mxu0 %v2097
      %v2194 = vpop.f32.mrf.mxu0
      %v2195 = vadd.f32 0.0, %v2194
      %v2196 = vpop.f32.mrf.mxu0
      %v2197 = vadd.f32 0.0, %v2196
      %2198 = vmatmul.bf16.gmra.mxu0 %v2098
      %v2199 = vpop.f32.mrf.mxu0
      %v2200 = vadd.f32 0.0, %v2199
      %v2201 = vpop.f32.mrf.mxu0
      %v2202 = vadd.f32 0.0, %v2201
      %2203 = vmatmul.bf16.gmra.mxu0 %v2099
      %v2204 = vpop.f32.mrf.mxu0
      %v2205 = vadd.f32 0.0, %v2204
      %v2206 = vpop.f32.mrf.mxu0
      %v2207 = vadd.f32 0.0, %v2206
      %2208 = vmatmul.bf16.gmra.mxu0 %v2100
      %v2209 = vpop.f32.mrf.mxu0
      %v2210 = vadd.f32 0.0, %v2209
      %v2211 = vpop.f32.mrf.mxu0
      %v2212 = vadd.f32 0.0, %v2211
      %2213 = vmatmul.bf16.gmra.mxu0 %v2101
      %v2214 = vpop.f32.mrf.mxu0
      %v2215 = vadd.f32 0.0, %v2214
      %v2216 = vpop.f32.mrf.mxu0
      %v2217 = vadd.f32 0.0, %v2216
      %2218 = vdwg.mxu0
      %v2219 = vadd.f32 %v1925, %v2170
      %v2220 = vadd.f32 %v1926, %v2172
      %v2221 = vadd.f32 %v1927, %v2175
      %v2222 = vadd.f32 %v1928, %v2177
      %v2223 = vadd.f32 %v1929, %v2180
      %v2224 = vadd.f32 %v1930, %v2182
      %v2225 = vadd.f32 %v1931, %v2185
      %v2226 = vadd.f32 %v1932, %v2187
      %v2227 = vadd.f32 %v1933, %v2190
      %v2228 = vadd.f32 %v1934, %v2192
      %v2229 = vadd.f32 %v1935, %v2195
      %v2230 = vadd.f32 %v1936, %v2197
      %v2231 = vadd.f32 %v1937, %v2200
      %v2232 = vadd.f32 %v1938, %v2202
      %v2233 = vadd.f32 %v1939, %v2205
      %v2234 = vadd.f32 %v1940, %v2207
      %v2235 = vadd.f32 %v1941, %v2210
      %v2236 = vadd.f32 %v1942, %v2212
      %v2237 = vadd.f32 %v1943, %v2215
      %v2238 = vadd.f32 %v1944, %v2217
      %s2239 = sadd.s32 %s325, 1
      %s2240 = smul.u32 %s2239, 3
      %s2241 = smul.addr %s2240, 4
      %s2242 = scalar_lea.vmem %s307, %s2241
      %v2243 = vld [vmem:[%s2242] sm:$0xf]
      %v2244 = vld [vmem:[%s2242 + $0x4] sm:$0xf]
      %v2245 = vld [vmem:[%s2242 + $0xc] sm:$0xf]
      %v2246 = vld [vmem:[%s2242 + $0x10] sm:$0xf]
      %v2247 = vld [vmem:[%s2242 + $0x18] sm:$0xf]
      %v2248 = vld [vmem:[%s2242 + $0x1c] sm:$0xf]
      %v2249 = vld [vmem:[%s2242 + $0x24] sm:$0xf]
      %v2250 = vld [vmem:[%s2242 + $0x28] sm:$0xf]
      %v2251 = vld [vmem:[%s2242 + $0x30] sm:$0xf]
      %v2252 = vld [vmem:[%s2242 + $0x34] sm:$0xf]
      %v2253 = vld [vmem:[%s2242 + $0x3c] sm:$0xf]
      %v2254 = vld [vmem:[%s2242 + $0x40] sm:$0xf]
      %v2255 = vld [vmem:[%s2242 + $0x48] sm:$0xf]
      %v2256 = vld [vmem:[%s2242 + $0x4c] sm:$0xf]
      %v2257 = vld [vmem:[%s2242 + $0x54] sm:$0xf]
      %v2258 = vld [vmem:[%s2242 + $0x58] sm:$0xf]
      %v2259 = vld [vmem:[%s2242 + $0x60] sm:$0xf]
      %v2260 = vld [vmem:[%s2242 + $0x64] sm:$0xf]
      %v2261 = vld [vmem:[%s2242 + $0x6c] sm:$0xf]
      %v2262 = vld [vmem:[%s2242 + $0x70] sm:$0xf]
      %s2263 = scalar_lea.vmem %s2, 192
      %v2264 = vld [vmem:[%s2263] sm:$0xf]
      %v2265 = vld [vmem:[%s2263 + $0x4] sm:$0xf]
      %v2266 = vld [vmem:[%s2263 + $0x8] sm:$0xf]
      %v2267 = vld [vmem:[%s2263 + $0xc] sm:$0xf]
      %v2268 = vld [vmem:[%s2263 + $0x10] sm:$0xf]
      %v2269 = vld [vmem:[%s2263 + $0x14] sm:$0xf]
      %v2270 = vld [vmem:[%s2263 + $0x18] sm:$0xf]
      %v2271 = vld [vmem:[%s2263 + $0x1c] sm:$0xf]
      %v2272 = vld [vmem:[%s2263 + $0x20] sm:$0xf]
      %v2273 = vld [vmem:[%s2263 + $0x24] sm:$0xf]
      %v2274 = vld [vmem:[%s2263 + $0x28] sm:$0xf]
      %v2275 = vld [vmem:[%s2263 + $0x2c] sm:$0xf]
      %v2276 = vld [vmem:[%s2263 + $0x30] sm:$0xf]
      %v2277 = vld [vmem:[%s2263 + $0x34] sm:$0xf]
      %v2278 = vld [vmem:[%s2263 + $0x38] sm:$0xf]
      %v2279 = vld [vmem:[%s2263 + $0x3c] sm:$0xf]
      %v2300 = vunpack.c.l.b16 %v2243
      %v2301 = vunpack.c.l.b16 %v2244
      %v2302 = vunpack.c.l.b16 %v2245
      %v2303 = vunpack.c.l.b16 %v2246
      %v2304 = vunpack.c.l.b16 %v2247
      %v2305 = vunpack.c.l.b16 %v2248
      %v2306 = vunpack.c.l.b16 %v2249
      %v2307 = vunpack.c.l.b16 %v2250
      %v2308 = vunpack.c.l.b16 %v2251
      %v2309 = vunpack.c.l.b16 %v2252
      %v2310 = vunpack.c.l.b16 %v2253
      %v2311 = vunpack.c.l.b16 %v2254
      %v2312 = vunpack.c.l.b16 %v2255
      %v2313 = vunpack.c.l.b16 %v2256
      %v2314 = vunpack.c.l.b16 %v2257
      %v2315 = vunpack.c.l.b16 %v2258
      %v2316 = vunpack.c.l.b16 %v2259
      %v2317 = vunpack.c.l.b16 %v2260
      %v2318 = vunpack.c.l.b16 %v2261
      %v2319 = vunpack.c.l.b16 %v2262
      %v2320 = vpack.c.b16 %v2301, %v2300
      %v2321 = vpack.c.b16 %v2303, %v2302
      %v2322 = vpack.c.b16 %v2305, %v2304
      %v2323 = vpack.c.b16 %v2307, %v2306
      %v2324 = vpack.c.b16 %v2309, %v2308
      %v2325 = vpack.c.b16 %v2311, %v2310
      %v2326 = vpack.c.b16 %v2313, %v2312
      %v2327 = vpack.c.b16 %v2315, %v2314
      %v2328 = vpack.c.b16 %v2317, %v2316
      %v2329 = vpack.c.b16 %v2319, %v2318
      %v2356 = vunpack.c.l.b16 %v2264
      %v2357 = vunpack.c.l.b16 %v2265
      %v2358 = vunpack.c.l.b16 %v2266
      %v2359 = vunpack.c.l.b16 %v2267
      %v2360 = vunpack.c.l.b16 %v2268
      %v2361 = vunpack.c.l.b16 %v2269
      %v2362 = vunpack.c.l.b16 %v2270
      %v2363 = vunpack.c.l.b16 %v2271
      %v2364 = vunpack.c.l.b16 %v2272
      %v2365 = vunpack.c.l.b16 %v2273
      %v2366 = vunpack.c.l.b16 %v2274
      %v2367 = vunpack.c.l.b16 %v2275
      %v2368 = vunpack.c.l.b16 %v2276
      %v2369 = vunpack.c.l.b16 %v2277
      %v2370 = vunpack.c.l.b16 %v2278
      %v2371 = vunpack.c.l.b16 %v2279
      %v2372 = vpack.c.b16 %v2357, %v2356
      %v2373 = vpack.c.b16 %v2359, %v2358
      %v2374 = vpack.c.b16 %v2361, %v2360
      %v2375 = vpack.c.b16 %v2363, %v2362
      %v2376 = vpack.c.b16 %v2365, %v2364
      %v2377 = vpack.c.b16 %v2367, %v2366
      %v2378 = vpack.c.b16 %v2369, %v2368
      %v2379 = vpack.c.b16 %v2371, %v2370
      %2388 = vmatpush.bf16.msra.mxu0 %v2379
      %2389 = vmatpush.bf16.msra.mxu0 %v2378
      %2390 = vmatpush.bf16.msra.mxu0 %v2377
      %2391 = vmatpush.bf16.msra.mxu0 %v2376
      %2392 = vmatpush.bf16.msra.mxu0 %v2375
      %2393 = vmatpush.bf16.msra.mxu0 %v2374
      %2394 = vmatpush.bf16.msra.mxu0 %v2373
      %2395 = vmatpush.bf16.msra.mxu0 %v2372
      %2396 = vmatmul.bf16.gmra.mxu0 %v2320
      %v2397 = vpop.f32.mrf.mxu0
      %v2398 = vadd.f32 0.0, %v2397
      %v2399 = vpop.f32.mrf.mxu0
      %v2400 = vadd.f32 0.0, %v2399
      %2401 = vmatmul.bf16.gmra.mxu0 %v2321
      %v2402 = vpop.f32.mrf.mxu0
      %v2403 = vadd.f32 0.0, %v2402
      %v2404 = vpop.f32.mrf.mxu0
      %v2405 = vadd.f32 0.0, %v2404
      %2406 = vmatmul.bf16.gmra.mxu0 %v2322
      %v2407 = vpop.f32.mrf.mxu0
      %v2408 = vadd.f32 0.0, %v2407
      %v2409 = vpop.f32.mrf.mxu0
      %v2410 = vadd.f32 0.0, %v2409
      %2411 = vmatmul.bf16.gmra.mxu0 %v2323
      %v2412 = vpop.f32.mrf.mxu0
      %v2413 = vadd.f32 0.0, %v2412
      %v2414 = vpop.f32.mrf.mxu0
      %v2415 = vadd.f32 0.0, %v2414
      %2416 = vmatmul.bf16.gmra.mxu0 %v2324
      %v2417 = vpop.f32.mrf.mxu0
      %v2418 = vadd.f32 0.0, %v2417
      %v2419 = vpop.f32.mrf.mxu0
      %v2420 = vadd.f32 0.0, %v2419
      %2421 = vmatmul.bf16.gmra.mxu0 %v2325
      %v2422 = vpop.f32.mrf.mxu0
      %v2423 = vadd.f32 0.0, %v2422
      %v2424 = vpop.f32.mrf.mxu0
      %v2425 = vadd.f32 0.0, %v2424
      %2426 = vmatmul.bf16.gmra.mxu0 %v2326
      %v2427 = vpop.f32.mrf.mxu0
      %v2428 = vadd.f32 0.0, %v2427
      %v2429 = vpop.f32.mrf.mxu0
      %v2430 = vadd.f32 0.0, %v2429
      %2431 = vmatmul.bf16.gmra.mxu0 %v2327
      %v2432 = vpop.f32.mrf.mxu0
      %v2433 = vadd.f32 0.0, %v2432
      %v2434 = vpop.f32.mrf.mxu0
      %v2435 = vadd.f32 0.0, %v2434
      %2436 = vmatmul.bf16.gmra.mxu0 %v2328
      %v2437 = vpop.f32.mrf.mxu0
      %v2438 = vadd.f32 0.0, %v2437
      %v2439 = vpop.f32.mrf.mxu0
      %v2440 = vadd.f32 0.0, %v2439
      %2441 = vmatmul.bf16.gmra.mxu0 %v2329
      %v2442 = vpop.f32.mrf.mxu0
      %v2443 = vadd.f32 0.0, %v2442
      %v2444 = vpop.f32.mrf.mxu0
      %v2445 = vadd.f32 0.0, %v2444
      %2446 = vdwg.mxu0
      %v2447 = vadd.f32 %v2219, %v2398
      %v2448 = vadd.f32 %v2220, %v2400
      %v2449 = vadd.f32 %v2221, %v2403
      %v2450 = vadd.f32 %v2222, %v2405
      %v2451 = vadd.f32 %v2223, %v2408
      %v2452 = vadd.f32 %v2224, %v2410
      %v2453 = vadd.f32 %v2225, %v2413
      %v2454 = vadd.f32 %v2226, %v2415
      %v2455 = vadd.f32 %v2227, %v2418
      %v2456 = vadd.f32 %v2228, %v2420
      %v2457 = vadd.f32 %v2229, %v2423
      %v2458 = vadd.f32 %v2230, %v2425
      %v2459 = vadd.f32 %v2231, %v2428
      %v2460 = vadd.f32 %v2232, %v2430
      %v2461 = vadd.f32 %v2233, %v2433
      %v2462 = vadd.f32 %v2234, %v2435
      %v2463 = vadd.f32 %v2235, %v2438
      %v2464 = vadd.f32 %v2236, %v2440
      %v2465 = vadd.f32 %v2237, %v2443
      %v2466 = vadd.f32 %v2238, %v2445
      %s2467 = smul.addr %s2240, 4
      %s2468 = scalar_lea.vmem %s312, %s2467
      %v2469 = vld [vmem:[%s2468] sm:$0xf]
      %v2470 = vld [vmem:[%s2468 + $0x4] sm:$0xf]
      %v2471 = vld [vmem:[%s2468 + $0xc] sm:$0xf]
      %v2472 = vld [vmem:[%s2468 + $0x10] sm:$0xf]
      %v2473 = vld [vmem:[%s2468 + $0x18] sm:$0xf]
      %v2474 = vld [vmem:[%s2468 + $0x1c] sm:$0xf]
      %v2475 = vld [vmem:[%s2468 + $0x24] sm:$0xf]
      %v2476 = vld [vmem:[%s2468 + $0x28] sm:$0xf]
      %v2477 = vld [vmem:[%s2468 + $0x30] sm:$0xf]
      %v2478 = vld [vmem:[%s2468 + $0x34] sm:$0xf]
      %v2479 = vld [vmem:[%s2468 + $0x3c] sm:$0xf]
      %v2480 = vld [vmem:[%s2468 + $0x40] sm:$0xf]
      %v2481 = vld [vmem:[%s2468 + $0x48] sm:$0xf]
      %v2482 = vld [vmem:[%s2468 + $0x4c] sm:$0xf]
      %v2483 = vld [vmem:[%s2468 + $0x54] sm:$0xf]
      %v2484 = vld [vmem:[%s2468 + $0x58] sm:$0xf]
      %v2485 = vld [vmem:[%s2468 + $0x60] sm:$0xf]
      %v2486 = vld [vmem:[%s2468 + $0x64] sm:$0xf]
      %v2487 = vld [vmem:[%s2468 + $0x6c] sm:$0xf]
      %v2488 = vld [vmem:[%s2468 + $0x70] sm:$0xf]
      %s2489 = scalar_lea.vmem %s3, 192
      %v2490 = vld [vmem:[%s2489] sm:$0xf]
      %v2491 = vld [vmem:[%s2489 + $0x4] sm:$0xf]
      %v2492 = vld [vmem:[%s2489 + $0x8] sm:$0xf]
      %v2493 = vld [vmem:[%s2489 + $0xc] sm:$0xf]
      %v2494 = vld [vmem:[%s2489 + $0x10] sm:$0xf]
      %v2495 = vld [vmem:[%s2489 + $0x14] sm:$0xf]
      %v2496 = vld [vmem:[%s2489 + $0x18] sm:$0xf]
      %v2497 = vld [vmem:[%s2489 + $0x1c] sm:$0xf]
      %v2498 = vld [vmem:[%s2489 + $0x20] sm:$0xf]
      %v2499 = vld [vmem:[%s2489 + $0x24] sm:$0xf]
      %v2500 = vld [vmem:[%s2489 + $0x28] sm:$0xf]
      %v2501 = vld [vmem:[%s2489 + $0x2c] sm:$0xf]
      %v2502 = vld [vmem:[%s2489 + $0x30] sm:$0xf]
      %v2503 = vld [vmem:[%s2489 + $0x34] sm:$0xf]
      %v2504 = vld [vmem:[%s2489 + $0x38] sm:$0xf]
      %v2505 = vld [vmem:[%s2489 + $0x3c] sm:$0xf]
      %v2526 = vunpack.c.l.b16 %v2469
      %v2527 = vunpack.c.l.b16 %v2470
      %v2528 = vunpack.c.l.b16 %v2471
      %v2529 = vunpack.c.l.b16 %v2472
      %v2530 = vunpack.c.l.b16 %v2473
      %v2531 = vunpack.c.l.b16 %v2474
      %v2532 = vunpack.c.l.b16 %v2475
      %v2533 = vunpack.c.l.b16 %v2476
      %v2534 = vunpack.c.l.b16 %v2477
      %v2535 = vunpack.c.l.b16 %v2478
      %v2536 = vunpack.c.l.b16 %v2479
      %v2537 = vunpack.c.l.b16 %v2480
      %v2538 = vunpack.c.l.b16 %v2481
      %v2539 = vunpack.c.l.b16 %v2482
      %v2540 = vunpack.c.l.b16 %v2483
      %v2541 = vunpack.c.l.b16 %v2484
      %v2542 = vunpack.c.l.b16 %v2485
      %v2543 = vunpack.c.l.b16 %v2486
      %v2544 = vunpack.c.l.b16 %v2487
      %v2545 = vunpack.c.l.b16 %v2488
      %v2546 = vpack.c.b16 %v2527, %v2526
      %v2547 = vpack.c.b16 %v2529, %v2528
      %v2548 = vpack.c.b16 %v2531, %v2530
      %v2549 = vpack.c.b16 %v2533, %v2532
      %v2550 = vpack.c.b16 %v2535, %v2534
      %v2551 = vpack.c.b16 %v2537, %v2536
      %v2552 = vpack.c.b16 %v2539, %v2538
      %v2553 = vpack.c.b16 %v2541, %v2540
      %v2554 = vpack.c.b16 %v2543, %v2542
      %v2555 = vpack.c.b16 %v2545, %v2544
      %v2582 = vunpack.c.l.b16 %v2490
      %v2583 = vunpack.c.l.b16 %v2491
      %v2584 = vunpack.c.l.b16 %v2492
      %v2585 = vunpack.c.l.b16 %v2493
      %v2586 = vunpack.c.l.b16 %v2494
      %v2587 = vunpack.c.l.b16 %v2495
      %v2588 = vunpack.c.l.b16 %v2496
      %v2589 = vunpack.c.l.b16 %v2497
      %v2590 = vunpack.c.l.b16 %v2498
      %v2591 = vunpack.c.l.b16 %v2499
      %v2592 = vunpack.c.l.b16 %v2500
      %v2593 = vunpack.c.l.b16 %v2501
      %v2594 = vunpack.c.l.b16 %v2502
      %v2595 = vunpack.c.l.b16 %v2503
      %v2596 = vunpack.c.l.b16 %v2504
      %v2597 = vunpack.c.l.b16 %v2505
      %v2598 = vpack.c.b16 %v2583, %v2582
      %v2599 = vpack.c.b16 %v2585, %v2584
      %v2600 = vpack.c.b16 %v2587, %v2586
      %v2601 = vpack.c.b16 %v2589, %v2588
      %v2602 = vpack.c.b16 %v2591, %v2590
      %v2603 = vpack.c.b16 %v2593, %v2592
      %v2604 = vpack.c.b16 %v2595, %v2594
      %v2605 = vpack.c.b16 %v2597, %v2596
      %2614 = vmatpush.bf16.msra.mxu0 %v2605
      %2615 = vmatpush.bf16.msra.mxu0 %v2604
      %2616 = vmatpush.bf16.msra.mxu0 %v2603
      %2617 = vmatpush.bf16.msra.mxu0 %v2602
      %2618 = vmatpush.bf16.msra.mxu0 %v2601
      %2619 = vmatpush.bf16.msra.mxu0 %v2600
      %2620 = vmatpush.bf16.msra.mxu0 %v2599
      %2621 = vmatpush.bf16.msra.mxu0 %v2598
      %2622 = vmatmul.bf16.gmra.mxu0 %v2546
      %v2623 = vpop.f32.mrf.mxu0
      %v2624 = vadd.f32 0.0, %v2623
      %v2625 = vpop.f32.mrf.mxu0
      %v2626 = vadd.f32 0.0, %v2625
      %2627 = vmatmul.bf16.gmra.mxu0 %v2547
      %v2628 = vpop.f32.mrf.mxu0
      %v2629 = vadd.f32 0.0, %v2628
      %v2630 = vpop.f32.mrf.mxu0
      %v2631 = vadd.f32 0.0, %v2630
      %2632 = vmatmul.bf16.gmra.mxu0 %v2548
      %v2633 = vpop.f32.mrf.mxu0
      %v2634 = vadd.f32 0.0, %v2633
      %v2635 = vpop.f32.mrf.mxu0
      %v2636 = vadd.f32 0.0, %v2635
      %2637 = vmatmul.bf16.gmra.mxu0 %v2549
      %v2638 = vpop.f32.mrf.mxu0
      %v2639 = vadd.f32 0.0, %v2638
      %v2640 = vpop.f32.mrf.mxu0
      %v2641 = vadd.f32 0.0, %v2640
      %2642 = vmatmul.bf16.gmra.mxu0 %v2550
      %v2643 = vpop.f32.mrf.mxu0
      %v2644 = vadd.f32 0.0, %v2643
      %v2645 = vpop.f32.mrf.mxu0
      %v2646 = vadd.f32 0.0, %v2645
      %2647 = vmatmul.bf16.gmra.mxu0 %v2551
      %v2648 = vpop.f32.mrf.mxu0
      %v2649 = vadd.f32 0.0, %v2648
      %v2650 = vpop.f32.mrf.mxu0
      %v2651 = vadd.f32 0.0, %v2650
      %2652 = vmatmul.bf16.gmra.mxu0 %v2552
      %v2653 = vpop.f32.mrf.mxu0
      %v2654 = vadd.f32 0.0, %v2653
      %v2655 = vpop.f32.mrf.mxu0
      %v2656 = vadd.f32 0.0, %v2655
      %2657 = vmatmul.bf16.gmra.mxu0 %v2553
      %v2658 = vpop.f32.mrf.mxu0
      %v2659 = vadd.f32 0.0, %v2658
      %v2660 = vpop.f32.mrf.mxu0
      %v2661 = vadd.f32 0.0, %v2660
      %2662 = vmatmul.bf16.gmra.mxu0 %v2554
      %v2663 = vpop.f32.mrf.mxu0
      %v2664 = vadd.f32 0.0, %v2663
      %v2665 = vpop.f32.mrf.mxu0
      %v2666 = vadd.f32 0.0, %v2665
      %2667 = vmatmul.bf16.gmra.mxu0 %v2555
      %v2668 = vpop.f32.mrf.mxu0
      %v2669 = vadd.f32 0.0, %v2668
      %v2670 = vpop.f32.mrf.mxu0
      %v2671 = vadd.f32 0.0, %v2670
      %2672 = vdwg.mxu0
      %v2673 = vadd.f32 %v2447, %v2624
      %v2674 = vadd.f32 %v2448, %v2626
      %v2675 = vadd.f32 %v2449, %v2629
      %v2676 = vadd.f32 %v2450, %v2631
      %v2677 = vadd.f32 %v2451, %v2634
      %v2678 = vadd.f32 %v2452, %v2636
      %v2679 = vadd.f32 %v2453, %v2639
      %v2680 = vadd.f32 %v2454, %v2641
      %v2681 = vadd.f32 %v2455, %v2644
      %v2682 = vadd.f32 %v2456, %v2646
      %v2683 = vadd.f32 %v2457, %v2649
      %v2684 = vadd.f32 %v2458, %v2651
      %v2685 = vadd.f32 %v2459, %v2654
      %v2686 = vadd.f32 %v2460, %v2656
      %v2687 = vadd.f32 %v2461, %v2659
      %v2688 = vadd.f32 %v2462, %v2661
      %v2689 = vadd.f32 %v2463, %v2664
      %v2690 = vadd.f32 %v2464, %v2666
      %v2691 = vadd.f32 %v2465, %v2669
      %v2692 = vadd.f32 %v2466, %v2671
      %v2693 = vld [vmem:[%s2242] sm:$0xf]
      %v2694 = vld [vmem:[%s2242 + $0x4] sm:$0xf]
      %v2695 = vld [vmem:[%s2242 + $0x8] sm:$0x1]
      %v2696 = vld [vmem:[%s2242 + $0xc] sm:$0xf]
      %v2697 = vld [vmem:[%s2242 + $0x10] sm:$0xf]
      %v2698 = vld [vmem:[%s2242 + $0x14] sm:$0x1]
      %v2699 = vld [vmem:[%s2242 + $0x18] sm:$0xf]
      %v2700 = vld [vmem:[%s2242 + $0x1c] sm:$0xf]
      %v2701 = vld [vmem:[%s2242 + $0x20] sm:$0x1]
      %v2702 = vld [vmem:[%s2242 + $0x24] sm:$0xf]
      %v2703 = vld [vmem:[%s2242 + $0x28] sm:$0xf]
      %v2704 = vld [vmem:[%s2242 + $0x2c] sm:$0x1]
      %v2705 = vld [vmem:[%s2242 + $0x30] sm:$0xf]
      %v2706 = vld [vmem:[%s2242 + $0x34] sm:$0xf]
      %v2707 = vld [vmem:[%s2242 + $0x38] sm:$0x1]
      %v2708 = vld [vmem:[%s2242 + $0x3c] sm:$0xf]
      %v2709 = vld [vmem:[%s2242 + $0x40] sm:$0xf]
      %v2710 = vld [vmem:[%s2242 + $0x44] sm:$0x1]
      %v2711 = vld [vmem:[%s2242 + $0x48] sm:$0xf]
      %v2712 = vld [vmem:[%s2242 + $0x4c] sm:$0xf]
      %v2713 = vld [vmem:[%s2242 + $0x50] sm:$0x1]
      %v2714 = vld [vmem:[%s2242 + $0x54] sm:$0xf]
      %v2715 = vld [vmem:[%s2242 + $0x58] sm:$0xf]
      %v2716 = vld [vmem:[%s2242 + $0x5c] sm:$0x1]
      %v2717 = vld [vmem:[%s2242 + $0x60] sm:$0xf]
      %v2718 = vld [vmem:[%s2242 + $0x64] sm:$0xf]
      %v2719 = vld [vmem:[%s2242 + $0x68] sm:$0x1]
      %v2720 = vld [vmem:[%s2242 + $0x6c] sm:$0xf]
      %v2721 = vld [vmem:[%s2242 + $0x70] sm:$0xf]
      %v2722 = vld [vmem:[%s2242 + $0x74] sm:$0x1]
      %v2724 = vshrl.u32 %v2693, 16
      %v2726 = vrot.slane %v2724, 4
      %v2727 = vshll.u32 %v2693, 16
      %v2729 = vrot.slane %v2727, 5
      %v2730 = vor.u32 %v2726, %v2729
      %v2731 = vrot.slane %v2730, 4
      %v2733 = vshll.u32 %v2694, 16
      %v2735 = vrot.slane %v2733, 5
      %v2736 = vsel %vm769, %v2731, %v2735
      %v2737 = vshrl.u32 %v2694, 16
      %v2739 = vrot.slane %v2737, 4
      %v2740 = vor.u32 %v2739, %v2735
      %v2741 = vrot.slane %v2740, 4
      %v2743 = vshll.u32 %v2695, 16
      %v2745 = vrot.slane %v2743, 5
      %v2746 = vsel %vm769, %v2741, %v2745
      %v2748 = vshrl.u32 %v2696, 16
      %v2750 = vrot.slane %v2748, 4
      %v2751 = vshll.u32 %v2696, 16
      %v2753 = vrot.slane %v2751, 5
      %v2754 = vor.u32 %v2750, %v2753
      %v2755 = vrot.slane %v2754, 4
      %v2757 = vshll.u32 %v2697, 16
      %v2759 = vrot.slane %v2757, 5
      %v2760 = vsel %vm769, %v2755, %v2759
      %v2761 = vshrl.u32 %v2697, 16
      %v2763 = vrot.slane %v2761, 4
      %v2764 = vor.u32 %v2763, %v2759
      %v2765 = vrot.slane %v2764, 4
      %v2767 = vshll.u32 %v2698, 16
      %v2769 = vrot.slane %v2767, 5
      %v2770 = vsel %vm769, %v2765, %v2769
      %v2772 = vshrl.u32 %v2699, 16
      %v2774 = vrot.slane %v2772, 4
      %v2775 = vshll.u32 %v2699, 16
      %v2777 = vrot.slane %v2775, 5
      %v2778 = vor.u32 %v2774, %v2777
      %v2779 = vrot.slane %v2778, 4
      %v2781 = vshll.u32 %v2700, 16
      %v2783 = vrot.slane %v2781, 5
      %v2784 = vsel %vm769, %v2779, %v2783
      %v2785 = vshrl.u32 %v2700, 16
      %v2787 = vrot.slane %v2785, 4
      %v2788 = vor.u32 %v2787, %v2783
      %v2789 = vrot.slane %v2788, 4
      %v2791 = vshll.u32 %v2701, 16
      %v2793 = vrot.slane %v2791, 5
      %v2794 = vsel %vm769, %v2789, %v2793
      %v2796 = vshrl.u32 %v2702, 16
      %v2798 = vrot.slane %v2796, 4
      %v2799 = vshll.u32 %v2702, 16
      %v2801 = vrot.slane %v2799, 5
      %v2802 = vor.u32 %v2798, %v2801
      %v2803 = vrot.slane %v2802, 4
      %v2805 = vshll.u32 %v2703, 16
      %v2807 = vrot.slane %v2805, 5
      %v2808 = vsel %vm769, %v2803, %v2807
      %v2809 = vshrl.u32 %v2703, 16
      %v2811 = vrot.slane %v2809, 4
      %v2812 = vor.u32 %v2811, %v2807
      %v2813 = vrot.slane %v2812, 4
      %v2815 = vshll.u32 %v2704, 16
      %v2817 = vrot.slane %v2815, 5
      %v2818 = vsel %vm769, %v2813, %v2817
      %v2820 = vshrl.u32 %v2705, 16
      %v2822 = vrot.slane %v2820, 4
      %v2823 = vshll.u32 %v2705, 16
      %v2825 = vrot.slane %v2823, 5
      %v2826 = vor.u32 %v2822, %v2825
      %v2827 = vrot.slane %v2826, 4
      %v2829 = vshll.u32 %v2706, 16
      %v2831 = vrot.slane %v2829, 5
      %v2832 = vsel %vm769, %v2827, %v2831
      %v2833 = vshrl.u32 %v2706, 16
      %v2835 = vrot.slane %v2833, 4
      %v2836 = vor.u32 %v2835, %v2831
      %v2837 = vrot.slane %v2836, 4
      %v2839 = vshll.u32 %v2707, 16
      %v2841 = vrot.slane %v2839, 5
      %v2842 = vsel %vm769, %v2837, %v2841
      %v2844 = vshrl.u32 %v2708, 16
      %v2846 = vrot.slane %v2844, 4
      %v2847 = vshll.u32 %v2708, 16
      %v2849 = vrot.slane %v2847, 5
      %v2850 = vor.u32 %v2846, %v2849
      %v2851 = vrot.slane %v2850, 4
      %v2853 = vshll.u32 %v2709, 16
      %v2855 = vrot.slane %v2853, 5
      %v2856 = vsel %vm769, %v2851, %v2855
      %v2857 = vshrl.u32 %v2709, 16
      %v2859 = vrot.slane %v2857, 4
      %v2860 = vor.u32 %v2859, %v2855
      %v2861 = vrot.slane %v2860, 4
      %v2863 = vshll.u32 %v2710, 16
      %v2865 = vrot.slane %v2863, 5
      %v2866 = vsel %vm769, %v2861, %v2865
      %v2868 = vshrl.u32 %v2711, 16
      %v2870 = vrot.slane %v2868, 4
      %v2871 = vshll.u32 %v2711, 16
      %v2873 = vrot.slane %v2871, 5
      %v2874 = vor.u32 %v2870, %v2873
      %v2875 = vrot.slane %v2874, 4
      %v2877 = vshll.u32 %v2712, 16
      %v2879 = vrot.slane %v2877, 5
      %v2880 = vsel %vm769, %v2875, %v2879
      %v2881 = vshrl.u32 %v2712, 16
      %v2883 = vrot.slane %v2881, 4
      %v2884 = vor.u32 %v2883, %v2879
      %v2885 = vrot.slane %v2884, 4
      %v2887 = vshll.u32 %v2713, 16
      %v2889 = vrot.slane %v2887, 5
      %v2890 = vsel %vm769, %v2885, %v2889
      %v2892 = vshrl.u32 %v2714, 16
      %v2894 = vrot.slane %v2892, 4
      %v2895 = vshll.u32 %v2714, 16
      %v2897 = vrot.slane %v2895, 5
      %v2898 = vor.u32 %v2894, %v2897
      %v2899 = vrot.slane %v2898, 4
      %v2901 = vshll.u32 %v2715, 16
      %v2903 = vrot.slane %v2901, 5
      %v2904 = vsel %vm769, %v2899, %v2903
      %v2905 = vshrl.u32 %v2715, 16
      %v2907 = vrot.slane %v2905, 4
      %v2908 = vor.u32 %v2907, %v2903
      %v2909 = vrot.slane %v2908, 4
      %v2911 = vshll.u32 %v2716, 16
      %v2913 = vrot.slane %v2911, 5
      %v2914 = vsel %vm769, %v2909, %v2913
      %v2916 = vshrl.u32 %v2717, 16
      %v2918 = vrot.slane %v2916, 4
      %v2919 = vshll.u32 %v2717, 16
      %v2921 = vrot.slane %v2919, 5
      %v2922 = vor.u32 %v2918, %v2921
      %v2923 = vrot.slane %v2922, 4
      %v2925 = vshll.u32 %v2718, 16
      %v2927 = vrot.slane %v2925, 5
      %v2928 = vsel %vm769, %v2923, %v2927
      %v2929 = vshrl.u32 %v2718, 16
      %v2931 = vrot.slane %v2929, 4
      %v2932 = vor.u32 %v2931, %v2927
      %v2933 = vrot.slane %v2932, 4
      %v2935 = vshll.u32 %v2719, 16
      %v2937 = vrot.slane %v2935, 5
      %v2938 = vsel %vm769, %v2933, %v2937
      %v2940 = vshrl.u32 %v2720, 16
      %v2942 = vrot.slane %v2940, 4
      %v2943 = vshll.u32 %v2720, 16
      %v2945 = vrot.slane %v2943, 5
      %v2946 = vor.u32 %v2942, %v2945
      %v2947 = vrot.slane %v2946, 4
      %v2949 = vshll.u32 %v2721, 16
      %v2951 = vrot.slane %v2949, 5
      %v2952 = vsel %vm769, %v2947, %v2951
      %v2953 = vshrl.u32 %v2721, 16
      %v2955 = vrot.slane %v2953, 4
      %v2956 = vor.u32 %v2955, %v2951
      %v2957 = vrot.slane %v2956, 4
      %v2959 = vshll.u32 %v2722, 16
      %v2961 = vrot.slane %v2959, 5
      %v2962 = vsel %vm769, %v2957, %v2961
      %s2963 = scalar_lea.vmem %s2, 256
      %v2964 = vld [vmem:[%s2963] sm:$0xf]
      %v2965 = vld [vmem:[%s2963 + $0x4] sm:$0xf]
      %v2966 = vld [vmem:[%s2963 + $0x8] sm:$0xf]
      %v2967 = vld [vmem:[%s2963 + $0xc] sm:$0xf]
      %v2968 = vld [vmem:[%s2963 + $0x10] sm:$0xf]
      %v2969 = vld [vmem:[%s2963 + $0x14] sm:$0xf]
      %v2970 = vld [vmem:[%s2963 + $0x18] sm:$0xf]
      %v2971 = vld [vmem:[%s2963 + $0x1c] sm:$0xf]
      %v2972 = vld [vmem:[%s2963 + $0x20] sm:$0xf]
      %v2973 = vld [vmem:[%s2963 + $0x24] sm:$0xf]
      %v2974 = vld [vmem:[%s2963 + $0x28] sm:$0xf]
      %v2975 = vld [vmem:[%s2963 + $0x2c] sm:$0xf]
      %v2976 = vld [vmem:[%s2963 + $0x30] sm:$0xf]
      %v2977 = vld [vmem:[%s2963 + $0x34] sm:$0xf]
      %v2978 = vld [vmem:[%s2963 + $0x38] sm:$0xf]
      %v2979 = vld [vmem:[%s2963 + $0x3c] sm:$0xf]
      %v2980 = vunpack.c.l.b16 %v2736
      %v2981 = vunpack.c.l.b16 %v2746
      %v2982 = vunpack.c.l.b16 %v2760
      %v2983 = vunpack.c.l.b16 %v2770
      %v2984 = vunpack.c.l.b16 %v2784
      %v2985 = vunpack.c.l.b16 %v2794
      %v2986 = vunpack.c.l.b16 %v2808
      %v2987 = vunpack.c.l.b16 %v2818
      %v2988 = vunpack.c.l.b16 %v2832
      %v2989 = vunpack.c.l.b16 %v2842
      %v2990 = vunpack.c.l.b16 %v2856
      %v2991 = vunpack.c.l.b16 %v2866
      %v2992 = vunpack.c.l.b16 %v2880
      %v2993 = vunpack.c.l.b16 %v2890
      %v2994 = vunpack.c.l.b16 %v2904
      %v2995 = vunpack.c.l.b16 %v2914
      %v2996 = vunpack.c.l.b16 %v2928
      %v2997 = vunpack.c.l.b16 %v2938
      %v2998 = vunpack.c.l.b16 %v2952
      %v2999 = vunpack.c.l.b16 %v2962
      %v3000 = vpack.c.b16 %v2981, %v2980
      %v3001 = vpack.c.b16 %v2983, %v2982
      %v3002 = vpack.c.b16 %v2985, %v2984
      %v3003 = vpack.c.b16 %v2987, %v2986
      %v3004 = vpack.c.b16 %v2989, %v2988
      %v3005 = vpack.c.b16 %v2991, %v2990
      %v3006 = vpack.c.b16 %v2993, %v2992
      %v3007 = vpack.c.b16 %v2995, %v2994
      %v3008 = vpack.c.b16 %v2997, %v2996
      %v3009 = vpack.c.b16 %v2999, %v2998
      %v3036 = vunpack.c.l.b16 %v2964
      %v3037 = vunpack.c.l.b16 %v2965
      %v3038 = vunpack.c.l.b16 %v2966
      %v3039 = vunpack.c.l.b16 %v2967
      %v3040 = vunpack.c.l.b16 %v2968
      %v3041 = vunpack.c.l.b16 %v2969
      %v3042 = vunpack.c.l.b16 %v2970
      %v3043 = vunpack.c.l.b16 %v2971
      %v3044 = vunpack.c.l.b16 %v2972
      %v3045 = vunpack.c.l.b16 %v2973
      %v3046 = vunpack.c.l.b16 %v2974
      %v3047 = vunpack.c.l.b16 %v2975
      %v3048 = vunpack.c.l.b16 %v2976
      %v3049 = vunpack.c.l.b16 %v2977
      %v3050 = vunpack.c.l.b16 %v2978
      %v3051 = vunpack.c.l.b16 %v2979
      %v3052 = vpack.c.b16 %v3037, %v3036
      %v3053 = vpack.c.b16 %v3039, %v3038
      %v3054 = vpack.c.b16 %v3041, %v3040
      %v3055 = vpack.c.b16 %v3043, %v3042
      %v3056 = vpack.c.b16 %v3045, %v3044
      %v3057 = vpack.c.b16 %v3047, %v3046
      %v3058 = vpack.c.b16 %v3049, %v3048
      %v3059 = vpack.c.b16 %v3051, %v3050
      %3068 = vmatpush.bf16.msra.mxu0 %v3059
      %3069 = vmatpush.bf16.msra.mxu0 %v3058
      %3070 = vmatpush.bf16.msra.mxu0 %v3057
      %3071 = vmatpush.bf16.msra.mxu0 %v3056
      %3072 = vmatpush.bf16.msra.mxu0 %v3055
      %3073 = vmatpush.bf16.msra.mxu0 %v3054
      %3074 = vmatpush.bf16.msra.mxu0 %v3053
      %3075 = vmatpush.bf16.msra.mxu0 %v3052
      %3076 = vmatmul.bf16.gmra.mxu0 %v3000
      %v3077 = vpop.f32.mrf.mxu0
      %v3078 = vadd.f32 0.0, %v3077
      %v3079 = vpop.f32.mrf.mxu0
      %v3080 = vadd.f32 0.0, %v3079
      %3081 = vmatmul.bf16.gmra.mxu0 %v3001
      %v3082 = vpop.f32.mrf.mxu0
      %v3083 = vadd.f32 0.0, %v3082
      %v3084 = vpop.f32.mrf.mxu0
      %v3085 = vadd.f32 0.0, %v3084
      %3086 = vmatmul.bf16.gmra.mxu0 %v3002
      %v3087 = vpop.f32.mrf.mxu0
      %v3088 = vadd.f32 0.0, %v3087
      %v3089 = vpop.f32.mrf.mxu0
      %v3090 = vadd.f32 0.0, %v3089
      %3091 = vmatmul.bf16.gmra.mxu0 %v3003
      %v3092 = vpop.f32.mrf.mxu0
      %v3093 = vadd.f32 0.0, %v3092
      %v3094 = vpop.f32.mrf.mxu0
      %v3095 = vadd.f32 0.0, %v3094
      %3096 = vmatmul.bf16.gmra.mxu0 %v3004
      %v3097 = vpop.f32.mrf.mxu0
      %v3098 = vadd.f32 0.0, %v3097
      %v3099 = vpop.f32.mrf.mxu0
      %v3100 = vadd.f32 0.0, %v3099
      %3101 = vmatmul.bf16.gmra.mxu0 %v3005
      %v3102 = vpop.f32.mrf.mxu0
      %v3103 = vadd.f32 0.0, %v3102
      %v3104 = vpop.f32.mrf.mxu0
      %v3105 = vadd.f32 0.0, %v3104
      %3106 = vmatmul.bf16.gmra.mxu0 %v3006
      %v3107 = vpop.f32.mrf.mxu0
      %v3108 = vadd.f32 0.0, %v3107
      %v3109 = vpop.f32.mrf.mxu0
      %v3110 = vadd.f32 0.0, %v3109
      %3111 = vmatmul.bf16.gmra.mxu0 %v3007
      %v3112 = vpop.f32.mrf.mxu0
      %v3113 = vadd.f32 0.0, %v3112
      %v3114 = vpop.f32.mrf.mxu0
      %v3115 = vadd.f32 0.0, %v3114
      %3116 = vmatmul.bf16.gmra.mxu0 %v3008
      %v3117 = vpop.f32.mrf.mxu0
      %v3118 = vadd.f32 0.0, %v3117
      %v3119 = vpop.f32.mrf.mxu0
      %v3120 = vadd.f32 0.0, %v3119
      %3121 = vmatmul.bf16.gmra.mxu0 %v3009
      %v3122 = vpop.f32.mrf.mxu0
      %v3123 = vadd.f32 0.0, %v3122
      %v3124 = vpop.f32.mrf.mxu0
      %v3125 = vadd.f32 0.0, %v3124
      %3126 = vdwg.mxu0
      %v3127 = vadd.f32 %v2673, %v3078
      %v3128 = vadd.f32 %v2674, %v3080
      %v3129 = vadd.f32 %v2675, %v3083
      %v3130 = vadd.f32 %v2676, %v3085
      %v3131 = vadd.f32 %v2677, %v3088
      %v3132 = vadd.f32 %v2678, %v3090
      %v3133 = vadd.f32 %v2679, %v3093
      %v3134 = vadd.f32 %v2680, %v3095
      %v3135 = vadd.f32 %v2681, %v3098
      %v3136 = vadd.f32 %v2682, %v3100
      %v3137 = vadd.f32 %v2683, %v3103
      %v3138 = vadd.f32 %v2684, %v3105
      %v3139 = vadd.f32 %v2685, %v3108
      %v3140 = vadd.f32 %v2686, %v3110
      %v3141 = vadd.f32 %v2687, %v3113
      %v3142 = vadd.f32 %v2688, %v3115
      %v3143 = vadd.f32 %v2689, %v3118
      %v3144 = vadd.f32 %v2690, %v3120
      %v3145 = vadd.f32 %v2691, %v3123
      %v3146 = vadd.f32 %v2692, %v3125
      %v3147 = vld [vmem:[%s2468] sm:$0xf]
      %v3148 = vld [vmem:[%s2468 + $0x4] sm:$0xf]
      %v3149 = vld [vmem:[%s2468 + $0x8] sm:$0x1]
      %v3150 = vld [vmem:[%s2468 + $0xc] sm:$0xf]
      %v3151 = vld [vmem:[%s2468 + $0x10] sm:$0xf]
      %v3152 = vld [vmem:[%s2468 + $0x14] sm:$0x1]
      %v3153 = vld [vmem:[%s2468 + $0x18] sm:$0xf]
      %v3154 = vld [vmem:[%s2468 + $0x1c] sm:$0xf]
      %v3155 = vld [vmem:[%s2468 + $0x20] sm:$0x1]
      %v3156 = vld [vmem:[%s2468 + $0x24] sm:$0xf]
      %v3157 = vld [vmem:[%s2468 + $0x28] sm:$0xf]
      %v3158 = vld [vmem:[%s2468 + $0x2c] sm:$0x1]
      %v3159 = vld [vmem:[%s2468 + $0x30] sm:$0xf]
      %v3160 = vld [vmem:[%s2468 + $0x34] sm:$0xf]
      %v3161 = vld [vmem:[%s2468 + $0x38] sm:$0x1]
      %v3162 = vld [vmem:[%s2468 + $0x3c] sm:$0xf]
      %v3163 = vld [vmem:[%s2468 + $0x40] sm:$0xf]
      %v3164 = vld [vmem:[%s2468 + $0x44] sm:$0x1]
      %v3165 = vld [vmem:[%s2468 + $0x48] sm:$0xf]
      %v3166 = vld [vmem:[%s2468 + $0x4c] sm:$0xf]
      %v3167 = vld [vmem:[%s2468 + $0x50] sm:$0x1]
      %v3168 = vld [vmem:[%s2468 + $0x54] sm:$0xf]
      %v3169 = vld [vmem:[%s2468 + $0x58] sm:$0xf]
      %v3170 = vld [vmem:[%s2468 + $0x5c] sm:$0x1]
      %v3171 = vld [vmem:[%s2468 + $0x60] sm:$0xf]
      %v3172 = vld [vmem:[%s2468 + $0x64] sm:$0xf]
      %v3173 = vld [vmem:[%s2468 + $0x68] sm:$0x1]
      %v3174 = vld [vmem:[%s2468 + $0x6c] sm:$0xf]
      %v3175 = vld [vmem:[%s2468 + $0x70] sm:$0xf]
      %v3176 = vld [vmem:[%s2468 + $0x74] sm:$0x1]
      %v3178 = vshrl.u32 %v3147, 16
      %v3180 = vrot.slane %v3178, 4
      %v3181 = vshll.u32 %v3147, 16
      %v3183 = vrot.slane %v3181, 5
      %v3184 = vor.u32 %v3180, %v3183
      %v3185 = vrot.slane %v3184, 4
      %v3187 = vshll.u32 %v3148, 16
      %v3189 = vrot.slane %v3187, 5
      %v3190 = vsel %vm769, %v3185, %v3189
      %v3191 = vshrl.u32 %v3148, 16
      %v3193 = vrot.slane %v3191, 4
      %v3194 = vor.u32 %v3193, %v3189
      %v3195 = vrot.slane %v3194, 4
      %v3197 = vshll.u32 %v3149, 16
      %v3199 = vrot.slane %v3197, 5
      %v3200 = vsel %vm769, %v3195, %v3199
      %v3202 = vshrl.u32 %v3150, 16
      %v3204 = vrot.slane %v3202, 4
      %v3205 = vshll.u32 %v3150, 16
      %v3207 = vrot.slane %v3205, 5
      %v3208 = vor.u32 %v3204, %v3207
      %v3209 = vrot.slane %v3208, 4
      %v3211 = vshll.u32 %v3151, 16
      %v3213 = vrot.slane %v3211, 5
      %v3214 = vsel %vm769, %v3209, %v3213
      %v3215 = vshrl.u32 %v3151, 16
      %v3217 = vrot.slane %v3215, 4
      %v3218 = vor.u32 %v3217, %v3213
      %v3219 = vrot.slane %v3218, 4
      %v3221 = vshll.u32 %v3152, 16
      %v3223 = vrot.slane %v3221, 5
      %v3224 = vsel %vm769, %v3219, %v3223
      %v3226 = vshrl.u32 %v3153, 16
      %v3228 = vrot.slane %v3226, 4
      %v3229 = vshll.u32 %v3153, 16
      %v3231 = vrot.slane %v3229, 5
      %v3232 = vor.u32 %v3228, %v3231
      %v3233 = vrot.slane %v3232, 4
      %v3235 = vshll.u32 %v3154, 16
      %v3237 = vrot.slane %v3235, 5
      %v3238 = vsel %vm769, %v3233, %v3237
      %v3239 = vshrl.u32 %v3154, 16
      %v3241 = vrot.slane %v3239, 4
      %v3242 = vor.u32 %v3241, %v3237
      %v3243 = vrot.slane %v3242, 4
      %v3245 = vshll.u32 %v3155, 16
      %v3247 = vrot.slane %v3245, 5
      %v3248 = vsel %vm769, %v3243, %v3247
      %v3250 = vshrl.u32 %v3156, 16
      %v3252 = vrot.slane %v3250, 4
      %v3253 = vshll.u32 %v3156, 16
      %v3255 = vrot.slane %v3253, 5
      %v3256 = vor.u32 %v3252, %v3255
      %v3257 = vrot.slane %v3256, 4
      %v3259 = vshll.u32 %v3157, 16
      %v3261 = vrot.slane %v3259, 5
      %v3262 = vsel %vm769, %v3257, %v3261
      %v3263 = vshrl.u32 %v3157, 16
      %v3265 = vrot.slane %v3263, 4
      %v3266 = vor.u32 %v3265, %v3261
      %v3267 = vrot.slane %v3266, 4
      %v3269 = vshll.u32 %v3158, 16
      %v3271 = vrot.slane %v3269, 5
      %v3272 = vsel %vm769, %v3267, %v3271
      %v3274 = vshrl.u32 %v3159, 16
      %v3276 = vrot.slane %v3274, 4
      %v3277 = vshll.u32 %v3159, 16
      %v3279 = vrot.slane %v3277, 5
      %v3280 = vor.u32 %v3276, %v3279
      %v3281 = vrot.slane %v3280, 4
      %v3283 = vshll.u32 %v3160, 16
      %v3285 = vrot.slane %v3283, 5
      %v3286 = vsel %vm769, %v3281, %v3285
      %v3287 = vshrl.u32 %v3160, 16
      %v3289 = vrot.slane %v3287, 4
      %v3290 = vor.u32 %v3289, %v3285
      %v3291 = vrot.slane %v3290, 4
      %v3293 = vshll.u32 %v3161, 16
      %v3295 = vrot.slane %v3293, 5
      %v3296 = vsel %vm769, %v3291, %v3295
      %v3298 = vshrl.u32 %v3162, 16
      %v3300 = vrot.slane %v3298, 4
      %v3301 = vshll.u32 %v3162, 16
      %v3303 = vrot.slane %v3301, 5
      %v3304 = vor.u32 %v3300, %v3303
      %v3305 = vrot.slane %v3304, 4
      %v3307 = vshll.u32 %v3163, 16
      %v3309 = vrot.slane %v3307, 5
      %v3310 = vsel %vm769, %v3305, %v3309
      %v3311 = vshrl.u32 %v3163, 16
      %v3313 = vrot.slane %v3311, 4
      %v3314 = vor.u32 %v3313, %v3309
      %v3315 = vrot.slane %v3314, 4
      %v3317 = vshll.u32 %v3164, 16
      %v3319 = vrot.slane %v3317, 5
      %v3320 = vsel %vm769, %v3315, %v3319
      %v3322 = vshrl.u32 %v3165, 16
      %v3324 = vrot.slane %v3322, 4
      %v3325 = vshll.u32 %v3165, 16
      %v3327 = vrot.slane %v3325, 5
      %v3328 = vor.u32 %v3324, %v3327
      %v3329 = vrot.slane %v3328, 4
      %v3331 = vshll.u32 %v3166, 16
      %v3333 = vrot.slane %v3331, 5
      %v3334 = vsel %vm769, %v3329, %v3333
      %v3335 = vshrl.u32 %v3166, 16
      %v3337 = vrot.slane %v3335, 4
      %v3338 = vor.u32 %v3337, %v3333
      %v3339 = vrot.slane %v3338, 4
      %v3341 = vshll.u32 %v3167, 16
      %v3343 = vrot.slane %v3341, 5
      %v3344 = vsel %vm769, %v3339, %v3343
      %v3346 = vshrl.u32 %v3168, 16
      %v3348 = vrot.slane %v3346, 4
      %v3349 = vshll.u32 %v3168, 16
      %v3351 = vrot.slane %v3349, 5
      %v3352 = vor.u32 %v3348, %v3351
      %v3353 = vrot.slane %v3352, 4
      %v3355 = vshll.u32 %v3169, 16
      %v3357 = vrot.slane %v3355, 5
      %v3358 = vsel %vm769, %v3353, %v3357
      %v3359 = vshrl.u32 %v3169, 16
      %v3361 = vrot.slane %v3359, 4
      %v3362 = vor.u32 %v3361, %v3357
      %v3363 = vrot.slane %v3362, 4
      %v3365 = vshll.u32 %v3170, 16
      %v3367 = vrot.slane %v3365, 5
      %v3368 = vsel %vm769, %v3363, %v3367
      %v3370 = vshrl.u32 %v3171, 16
      %v3372 = vrot.slane %v3370, 4
      %v3373 = vshll.u32 %v3171, 16
      %v3375 = vrot.slane %v3373, 5
      %v3376 = vor.u32 %v3372, %v3375
      %v3377 = vrot.slane %v3376, 4
      %v3379 = vshll.u32 %v3172, 16
      %v3381 = vrot.slane %v3379, 5
      %v3382 = vsel %vm769, %v3377, %v3381
      %v3383 = vshrl.u32 %v3172, 16
      %v3385 = vrot.slane %v3383, 4
      %v3386 = vor.u32 %v3385, %v3381
      %v3387 = vrot.slane %v3386, 4
      %v3389 = vshll.u32 %v3173, 16
      %v3391 = vrot.slane %v3389, 5
      %v3392 = vsel %vm769, %v3387, %v3391
      %v3394 = vshrl.u32 %v3174, 16
      %v3396 = vrot.slane %v3394, 4
      %v3397 = vshll.u32 %v3174, 16
      %v3399 = vrot.slane %v3397, 5
      %v3400 = vor.u32 %v3396, %v3399
      %v3401 = vrot.slane %v3400, 4
      %v3403 = vshll.u32 %v3175, 16
      %v3405 = vrot.slane %v3403, 5
      %v3406 = vsel %vm769, %v3401, %v3405
      %v3407 = vshrl.u32 %v3175, 16
      %v3409 = vrot.slane %v3407, 4
      %v3410 = vor.u32 %v3409, %v3405
      %v3411 = vrot.slane %v3410, 4
      %v3413 = vshll.u32 %v3176, 16
      %v3415 = vrot.slane %v3413, 5
      %v3416 = vsel %vm769, %v3411, %v3415
      %s3417 = scalar_lea.vmem %s3, 256
      %v3418 = vld [vmem:[%s3417] sm:$0xf]
      %v3419 = vld [vmem:[%s3417 + $0x4] sm:$0xf]
      %v3420 = vld [vmem:[%s3417 + $0x8] sm:$0xf]
      %v3421 = vld [vmem:[%s3417 + $0xc] sm:$0xf]
      %v3422 = vld [vmem:[%s3417 + $0x10] sm:$0xf]
      %v3423 = vld [vmem:[%s3417 + $0x14] sm:$0xf]
      %v3424 = vld [vmem:[%s3417 + $0x18] sm:$0xf]
      %v3425 = vld [vmem:[%s3417 + $0x1c] sm:$0xf]
      %v3426 = vld [vmem:[%s3417 + $0x20] sm:$0xf]
      %v3427 = vld [vmem:[%s3417 + $0x24] sm:$0xf]
      %v3428 = vld [vmem:[%s3417 + $0x28] sm:$0xf]
      %v3429 = vld [vmem:[%s3417 + $0x2c] sm:$0xf]
      %v3430 = vld [vmem:[%s3417 + $0x30] sm:$0xf]
      %v3431 = vld [vmem:[%s3417 + $0x34] sm:$0xf]
      %v3432 = vld [vmem:[%s3417 + $0x38] sm:$0xf]
      %v3433 = vld [vmem:[%s3417 + $0x3c] sm:$0xf]
      %v3434 = vunpack.c.l.b16 %v3190
      %v3435 = vunpack.c.l.b16 %v3200
      %v3436 = vunpack.c.l.b16 %v3214
      %v3437 = vunpack.c.l.b16 %v3224
      %v3438 = vunpack.c.l.b16 %v3238
      %v3439 = vunpack.c.l.b16 %v3248
      %v3440 = vunpack.c.l.b16 %v3262
      %v3441 = vunpack.c.l.b16 %v3272
      %v3442 = vunpack.c.l.b16 %v3286
      %v3443 = vunpack.c.l.b16 %v3296
      %v3444 = vunpack.c.l.b16 %v3310
      %v3445 = vunpack.c.l.b16 %v3320
      %v3446 = vunpack.c.l.b16 %v3334
      %v3447 = vunpack.c.l.b16 %v3344
      %v3448 = vunpack.c.l.b16 %v3358
      %v3449 = vunpack.c.l.b16 %v3368
      %v3450 = vunpack.c.l.b16 %v3382
      %v3451 = vunpack.c.l.b16 %v3392
      %v3452 = vunpack.c.l.b16 %v3406
      %v3453 = vunpack.c.l.b16 %v3416
      %v3454 = vpack.c.b16 %v3435, %v3434
      %v3455 = vpack.c.b16 %v3437, %v3436
      %v3456 = vpack.c.b16 %v3439, %v3438
      %v3457 = vpack.c.b16 %v3441, %v3440
      %v3458 = vpack.c.b16 %v3443, %v3442
      %v3459 = vpack.c.b16 %v3445, %v3444
      %v3460 = vpack.c.b16 %v3447, %v3446
      %v3461 = vpack.c.b16 %v3449, %v3448
      %v3462 = vpack.c.b16 %v3451, %v3450
      %v3463 = vpack.c.b16 %v3453, %v3452
      %v3490 = vunpack.c.l.b16 %v3418
      %v3491 = vunpack.c.l.b16 %v3419
      %v3492 = vunpack.c.l.b16 %v3420
      %v3493 = vunpack.c.l.b16 %v3421
      %v3494 = vunpack.c.l.b16 %v3422
      %v3495 = vunpack.c.l.b16 %v3423
      %v3496 = vunpack.c.l.b16 %v3424
      %v3497 = vunpack.c.l.b16 %v3425
      %v3498 = vunpack.c.l.b16 %v3426
      %v3499 = vunpack.c.l.b16 %v3427
      %v3500 = vunpack.c.l.b16 %v3428
      %v3501 = vunpack.c.l.b16 %v3429
      %v3502 = vunpack.c.l.b16 %v3430
      %v3503 = vunpack.c.l.b16 %v3431
      %v3504 = vunpack.c.l.b16 %v3432
      %v3505 = vunpack.c.l.b16 %v3433
      %v3506 = vpack.c.b16 %v3491, %v3490
      %v3507 = vpack.c.b16 %v3493, %v3492
      %v3508 = vpack.c.b16 %v3495, %v3494
      %v3509 = vpack.c.b16 %v3497, %v3496
      %v3510 = vpack.c.b16 %v3499, %v3498
      %v3511 = vpack.c.b16 %v3501, %v3500
      %v3512 = vpack.c.b16 %v3503, %v3502
      %v3513 = vpack.c.b16 %v3505, %v3504
      %3522 = vmatpush.bf16.msra.mxu0 %v3513
      %3523 = vmatpush.bf16.msra.mxu0 %v3512
      %3524 = vmatpush.bf16.msra.mxu0 %v3511
      %3525 = vmatpush.bf16.msra.mxu0 %v3510
      %3526 = vmatpush.bf16.msra.mxu0 %v3509
      %3527 = vmatpush.bf16.msra.mxu0 %v3508
      %3528 = vmatpush.bf16.msra.mxu0 %v3507
      %3529 = vmatpush.bf16.msra.mxu0 %v3506
      %3530 = vmatmul.bf16.gmra.mxu0 %v3454
      %v3531 = vpop.f32.mrf.mxu0
      %v3532 = vadd.f32 0.0, %v3531
      %v3533 = vpop.f32.mrf.mxu0
      %v3534 = vadd.f32 0.0, %v3533
      %3535 = vmatmul.bf16.gmra.mxu0 %v3455
      %v3536 = vpop.f32.mrf.mxu0
      %v3537 = vadd.f32 0.0, %v3536
      %v3538 = vpop.f32.mrf.mxu0
      %v3539 = vadd.f32 0.0, %v3538
      %3540 = vmatmul.bf16.gmra.mxu0 %v3456
      %v3541 = vpop.f32.mrf.mxu0
      %v3542 = vadd.f32 0.0, %v3541
      %v3543 = vpop.f32.mrf.mxu0
      %v3544 = vadd.f32 0.0, %v3543
      %3545 = vmatmul.bf16.gmra.mxu0 %v3457
      %v3546 = vpop.f32.mrf.mxu0
      %v3547 = vadd.f32 0.0, %v3546
      %v3548 = vpop.f32.mrf.mxu0
      %v3549 = vadd.f32 0.0, %v3548
      %3550 = vmatmul.bf16.gmra.mxu0 %v3458
      %v3551 = vpop.f32.mrf.mxu0
      %v3552 = vadd.f32 0.0, %v3551
      %v3553 = vpop.f32.mrf.mxu0
      %v3554 = vadd.f32 0.0, %v3553
      %3555 = vmatmul.bf16.gmra.mxu0 %v3459
      %v3556 = vpop.f32.mrf.mxu0
      %v3557 = vadd.f32 0.0, %v3556
      %v3558 = vpop.f32.mrf.mxu0
      %v3559 = vadd.f32 0.0, %v3558
      %3560 = vmatmul.bf16.gmra.mxu0 %v3460
      %v3561 = vpop.f32.mrf.mxu0
      %v3562 = vadd.f32 0.0, %v3561
      %v3563 = vpop.f32.mrf.mxu0
      %v3564 = vadd.f32 0.0, %v3563
      %3565 = vmatmul.bf16.gmra.mxu0 %v3461
      %v3566 = vpop.f32.mrf.mxu0
      %v3567 = vadd.f32 0.0, %v3566
      %v3568 = vpop.f32.mrf.mxu0
      %v3569 = vadd.f32 0.0, %v3568
      %3570 = vmatmul.bf16.gmra.mxu0 %v3462
      %v3571 = vpop.f32.mrf.mxu0
      %v3572 = vadd.f32 0.0, %v3571
      %v3573 = vpop.f32.mrf.mxu0
      %v3574 = vadd.f32 0.0, %v3573
      %3575 = vmatmul.bf16.gmra.mxu0 %v3463
      %v3576 = vpop.f32.mrf.mxu0
      %v3577 = vadd.f32 0.0, %v3576
      %v3578 = vpop.f32.mrf.mxu0
      %v3579 = vadd.f32 0.0, %v3578
      %3580 = vdwg.mxu0
      %v3581 = vadd.f32 %v3127, %v3532
      %v3582 = vadd.f32 %v3128, %v3534
      %v3583 = vadd.f32 %v3129, %v3537
      %v3584 = vadd.f32 %v3130, %v3539
      %v3585 = vadd.f32 %v3131, %v3542
      %v3586 = vadd.f32 %v3132, %v3544
      %v3587 = vadd.f32 %v3133, %v3547
      %v3588 = vadd.f32 %v3134, %v3549
      %v3589 = vadd.f32 %v3135, %v3552
      %v3590 = vadd.f32 %v3136, %v3554
      %v3591 = vadd.f32 %v3137, %v3557
      %v3592 = vadd.f32 %v3138, %v3559
      %v3593 = vadd.f32 %v3139, %v3562
      %v3594 = vadd.f32 %v3140, %v3564
      %v3595 = vadd.f32 %v3141, %v3567
      %v3596 = vadd.f32 %v3142, %v3569
      %v3597 = vadd.f32 %v3143, %v3572
      %v3598 = vadd.f32 %v3144, %v3574
      %v3599 = vadd.f32 %v3145, %v3577
      %v3600 = vadd.f32 %v3146, %v3579
      %v3601 = vld [vmem:[%s2242] sm:$0xe]
      %v3602 = vld [vmem:[%s2242 + $0xc] sm:$0xe]
      %v3603 = vld [vmem:[%s2242 + $0x18] sm:$0xe]
      %v3604 = vld [vmem:[%s2242 + $0x24] sm:$0xe]
      %v3605 = vld [vmem:[%s2242 + $0x30] sm:$0xe]
      %v3606 = vld [vmem:[%s2242 + $0x3c] sm:$0xe]
      %v3607 = vld [vmem:[%s2242 + $0x48] sm:$0xe]
      %v3608 = vld [vmem:[%s2242 + $0x54] sm:$0xe]
      %v3609 = vld [vmem:[%s2242 + $0x60] sm:$0xe]
      %v3610 = vld [vmem:[%s2242 + $0x6c] sm:$0xe]
      %v3641 = vrot.slane %v3601, 5
      %v3642 = vrot.slane %v3641, 4
      %v3643 = vrot.slane %v2694, 5
      %v3644 = vsel %vm1690, %v3642, %v3643
      %v3645 = vrot.slane %v3643, 4
      %v3646 = vrot.slane %v2695, 5
      %v3647 = vsel %vm1690, %v3645, %v3646
      %v3648 = vrot.slane %v3602, 5
      %v3649 = vrot.slane %v3648, 4
      %v3650 = vrot.slane %v2697, 5
      %v3651 = vsel %vm1690, %v3649, %v3650
      %v3652 = vrot.slane %v3650, 4
      %v3653 = vrot.slane %v2698, 5
      %v3654 = vsel %vm1690, %v3652, %v3653
      %v3655 = vrot.slane %v3603, 5
      %v3656 = vrot.slane %v3655, 4
      %v3657 = vrot.slane %v2700, 5
      %v3658 = vsel %vm1690, %v3656, %v3657
      %v3659 = vrot.slane %v3657, 4
      %v3660 = vrot.slane %v2701, 5
      %v3661 = vsel %vm1690, %v3659, %v3660
      %v3662 = vrot.slane %v3604, 5
      %v3663 = vrot.slane %v3662, 4
      %v3664 = vrot.slane %v2703, 5
      %v3665 = vsel %vm1690, %v3663, %v3664
      %v3666 = vrot.slane %v3664, 4
      %v3667 = vrot.slane %v2704, 5
      %v3668 = vsel %vm1690, %v3666, %v3667
      %v3669 = vrot.slane %v3605, 5
      %v3670 = vrot.slane %v3669, 4
      %v3671 = vrot.slane %v2706, 5
      %v3672 = vsel %vm1690, %v3670, %v3671
      %v3673 = vrot.slane %v3671, 4
      %v3674 = vrot.slane %v2707, 5
      %v3675 = vsel %vm1690, %v3673, %v3674
      %v3676 = vrot.slane %v3606, 5
      %v3677 = vrot.slane %v3676, 4
      %v3678 = vrot.slane %v2709, 5
      %v3679 = vsel %vm1690, %v3677, %v3678
      %v3680 = vrot.slane %v3678, 4
      %v3681 = vrot.slane %v2710, 5
      %v3682 = vsel %vm1690, %v3680, %v3681
      %v3683 = vrot.slane %v3607, 5
      %v3684 = vrot.slane %v3683, 4
      %v3685 = vrot.slane %v2712, 5
      %v3686 = vsel %vm1690, %v3684, %v3685
      %v3687 = vrot.slane %v3685, 4
      %v3688 = vrot.slane %v2713, 5
      %v3689 = vsel %vm1690, %v3687, %v3688
      %v3690 = vrot.slane %v3608, 5
      %v3691 = vrot.slane %v3690, 4
      %v3692 = vrot.slane %v2715, 5
      %v3693 = vsel %vm1690, %v3691, %v3692
      %v3694 = vrot.slane %v3692, 4
      %v3695 = vrot.slane %v2716, 5
      %v3696 = vsel %vm1690, %v3694, %v3695
      %v3697 = vrot.slane %v3609, 5
      %v3698 = vrot.slane %v3697, 4
      %v3699 = vrot.slane %v2718, 5
      %v3700 = vsel %vm1690, %v3698, %v3699
      %v3701 = vrot.slane %v3699, 4
      %v3702 = vrot.slane %v2719, 5
      %v3703 = vsel %vm1690, %v3701, %v3702
      %v3704 = vrot.slane %v3610, 5
      %v3705 = vrot.slane %v3704, 4
      %v3706 = vrot.slane %v2721, 5
      %v3707 = vsel %vm1690, %v3705, %v3706
      %v3708 = vrot.slane %v3706, 4
      %v3709 = vrot.slane %v2722, 5
      %v3710 = vsel %vm1690, %v3708, %v3709
      %s3711 = scalar_lea.vmem %s2, 320
      %v3712 = vld [vmem:[%s3711] sm:$0xf]
      %v3713 = vld [vmem:[%s3711 + $0x4] sm:$0xf]
      %v3714 = vld [vmem:[%s3711 + $0x8] sm:$0xf]
      %v3715 = vld [vmem:[%s3711 + $0xc] sm:$0xf]
      %v3716 = vld [vmem:[%s3711 + $0x10] sm:$0xf]
      %v3717 = vld [vmem:[%s3711 + $0x14] sm:$0xf]
      %v3718 = vld [vmem:[%s3711 + $0x18] sm:$0xf]
      %v3719 = vld [vmem:[%s3711 + $0x1c] sm:$0xf]
      %v3720 = vld [vmem:[%s3711 + $0x20] sm:$0xf]
      %v3721 = vld [vmem:[%s3711 + $0x24] sm:$0xf]
      %v3722 = vld [vmem:[%s3711 + $0x28] sm:$0xf]
      %v3723 = vld [vmem:[%s3711 + $0x2c] sm:$0xf]
      %v3724 = vld [vmem:[%s3711 + $0x30] sm:$0xf]
      %v3725 = vld [vmem:[%s3711 + $0x34] sm:$0xf]
      %v3726 = vld [vmem:[%s3711 + $0x38] sm:$0xf]
      %v3727 = vld [vmem:[%s3711 + $0x3c] sm:$0xf]
      %v3728 = vunpack.c.l.b16 %v3644
      %v3729 = vunpack.c.l.b16 %v3647
      %v3730 = vunpack.c.l.b16 %v3651
      %v3731 = vunpack.c.l.b16 %v3654
      %v3732 = vunpack.c.l.b16 %v3658
      %v3733 = vunpack.c.l.b16 %v3661
      %v3734 = vunpack.c.l.b16 %v3665
      %v3735 = vunpack.c.l.b16 %v3668
      %v3736 = vunpack.c.l.b16 %v3672
      %v3737 = vunpack.c.l.b16 %v3675
      %v3738 = vunpack.c.l.b16 %v3679
      %v3739 = vunpack.c.l.b16 %v3682
      %v3740 = vunpack.c.l.b16 %v3686
      %v3741 = vunpack.c.l.b16 %v3689
      %v3742 = vunpack.c.l.b16 %v3693
      %v3743 = vunpack.c.l.b16 %v3696
      %v3744 = vunpack.c.l.b16 %v3700
      %v3745 = vunpack.c.l.b16 %v3703
      %v3746 = vunpack.c.l.b16 %v3707
      %v3747 = vunpack.c.l.b16 %v3710
      %v3748 = vpack.c.b16 %v3729, %v3728
      %v3749 = vpack.c.b16 %v3731, %v3730
      %v3750 = vpack.c.b16 %v3733, %v3732
      %v3751 = vpack.c.b16 %v3735, %v3734
      %v3752 = vpack.c.b16 %v3737, %v3736
      %v3753 = vpack.c.b16 %v3739, %v3738
      %v3754 = vpack.c.b16 %v3741, %v3740
      %v3755 = vpack.c.b16 %v3743, %v3742
      %v3756 = vpack.c.b16 %v3745, %v3744
      %v3757 = vpack.c.b16 %v3747, %v3746
      %v3784 = vunpack.c.l.b16 %v3712
      %v3785 = vunpack.c.l.b16 %v3713
      %v3786 = vunpack.c.l.b16 %v3714
      %v3787 = vunpack.c.l.b16 %v3715
      %v3788 = vunpack.c.l.b16 %v3716
      %v3789 = vunpack.c.l.b16 %v3717
      %v3790 = vunpack.c.l.b16 %v3718
      %v3791 = vunpack.c.l.b16 %v3719
      %v3792 = vunpack.c.l.b16 %v3720
      %v3793 = vunpack.c.l.b16 %v3721
      %v3794 = vunpack.c.l.b16 %v3722
      %v3795 = vunpack.c.l.b16 %v3723
      %v3796 = vunpack.c.l.b16 %v3724
      %v3797 = vunpack.c.l.b16 %v3725
      %v3798 = vunpack.c.l.b16 %v3726
      %v3799 = vunpack.c.l.b16 %v3727
      %v3800 = vpack.c.b16 %v3785, %v3784
      %v3801 = vpack.c.b16 %v3787, %v3786
      %v3802 = vpack.c.b16 %v3789, %v3788
      %v3803 = vpack.c.b16 %v3791, %v3790
      %v3804 = vpack.c.b16 %v3793, %v3792
      %v3805 = vpack.c.b16 %v3795, %v3794
      %v3806 = vpack.c.b16 %v3797, %v3796
      %v3807 = vpack.c.b16 %v3799, %v3798
      %3816 = vmatpush.bf16.msra.mxu0 %v3807
      %3817 = vmatpush.bf16.msra.mxu0 %v3806
      %3818 = vmatpush.bf16.msra.mxu0 %v3805
      %3819 = vmatpush.bf16.msra.mxu0 %v3804
      %3820 = vmatpush.bf16.msra.mxu0 %v3803
      %3821 = vmatpush.bf16.msra.mxu0 %v3802
      %3822 = vmatpush.bf16.msra.mxu0 %v3801
      %3823 = vmatpush.bf16.msra.mxu0 %v3800
      %3824 = vmatmul.bf16.gmra.mxu0 %v3748
      %v3825 = vpop.f32.mrf.mxu0
      %v3826 = vadd.f32 0.0, %v3825
      %v3827 = vpop.f32.mrf.mxu0
      %v3828 = vadd.f32 0.0, %v3827
      %3829 = vmatmul.bf16.gmra.mxu0 %v3749
      %v3830 = vpop.f32.mrf.mxu0
      %v3831 = vadd.f32 0.0, %v3830
      %v3832 = vpop.f32.mrf.mxu0
      %v3833 = vadd.f32 0.0, %v3832
      %3834 = vmatmul.bf16.gmra.mxu0 %v3750
      %v3835 = vpop.f32.mrf.mxu0
      %v3836 = vadd.f32 0.0, %v3835
      %v3837 = vpop.f32.mrf.mxu0
      %v3838 = vadd.f32 0.0, %v3837
      %3839 = vmatmul.bf16.gmra.mxu0 %v3751
      %v3840 = vpop.f32.mrf.mxu0
      %v3841 = vadd.f32 0.0, %v3840
      %v3842 = vpop.f32.mrf.mxu0
      %v3843 = vadd.f32 0.0, %v3842
      %3844 = vmatmul.bf16.gmra.mxu0 %v3752
      %v3845 = vpop.f32.mrf.mxu0
      %v3846 = vadd.f32 0.0, %v3845
      %v3847 = vpop.f32.mrf.mxu0
      %v3848 = vadd.f32 0.0, %v3847
      %3849 = vmatmul.bf16.gmra.mxu0 %v3753
      %v3850 = vpop.f32.mrf.mxu0
      %v3851 = vadd.f32 0.0, %v3850
      %v3852 = vpop.f32.mrf.mxu0
      %v3853 = vadd.f32 0.0, %v3852
      %3854 = vmatmul.bf16.gmra.mxu0 %v3754
      %v3855 = vpop.f32.mrf.mxu0
      %v3856 = vadd.f32 0.0, %v3855
      %v3857 = vpop.f32.mrf.mxu0
      %v3858 = vadd.f32 0.0, %v3857
      %3859 = vmatmul.bf16.gmra.mxu0 %v3755
      %v3860 = vpop.f32.mrf.mxu0
      %v3861 = vadd.f32 0.0, %v3860
      %v3862 = vpop.f32.mrf.mxu0
      %v3863 = vadd.f32 0.0, %v3862
      %3864 = vmatmul.bf16.gmra.mxu0 %v3756
      %v3865 = vpop.f32.mrf.mxu0
      %v3866 = vadd.f32 0.0, %v3865
      %v3867 = vpop.f32.mrf.mxu0
      %v3868 = vadd.f32 0.0, %v3867
      %3869 = vmatmul.bf16.gmra.mxu0 %v3757
      %v3870 = vpop.f32.mrf.mxu0
      %v3871 = vadd.f32 0.0, %v3870
      %v3872 = vpop.f32.mrf.mxu0
      %v3873 = vadd.f32 0.0, %v3872
      %3874 = vdwg.mxu0
      %v3875 = vadd.f32 %v3581, %v3826
      %v3876 = vadd.f32 %v3582, %v3828
      %v3877 = vadd.f32 %v3583, %v3831
      %v3878 = vadd.f32 %v3584, %v3833
      %v3879 = vadd.f32 %v3585, %v3836
      %v3880 = vadd.f32 %v3586, %v3838
      %v3881 = vadd.f32 %v3587, %v3841
      %v3882 = vadd.f32 %v3588, %v3843
      %v3883 = vadd.f32 %v3589, %v3846
      %v3884 = vadd.f32 %v3590, %v3848
      %v3885 = vadd.f32 %v3591, %v3851
      %v3886 = vadd.f32 %v3592, %v3853
      %v3887 = vadd.f32 %v3593, %v3856
      %v3888 = vadd.f32 %v3594, %v3858
      %v3889 = vadd.f32 %v3595, %v3861
      %v3890 = vadd.f32 %v3596, %v3863
      %v3891 = vadd.f32 %v3597, %v3866
      %v3892 = vadd.f32 %v3598, %v3868
      %v3893 = vadd.f32 %v3599, %v3871
      %v3894 = vadd.f32 %v3600, %v3873
      %v3895 = vld [vmem:[%s2468] sm:$0xe]
      %v3896 = vld [vmem:[%s2468 + $0xc] sm:$0xe]
      %v3897 = vld [vmem:[%s2468 + $0x18] sm:$0xe]
      %v3898 = vld [vmem:[%s2468 + $0x24] sm:$0xe]
      %v3899 = vld [vmem:[%s2468 + $0x30] sm:$0xe]
      %v3900 = vld [vmem:[%s2468 + $0x3c] sm:$0xe]
      %v3901 = vld [vmem:[%s2468 + $0x48] sm:$0xe]
      %v3902 = vld [vmem:[%s2468 + $0x54] sm:$0xe]
      %v3903 = vld [vmem:[%s2468 + $0x60] sm:$0xe]
      %v3904 = vld [vmem:[%s2468 + $0x6c] sm:$0xe]
      %v3935 = vrot.slane %v3895, 5
      %v3936 = vrot.slane %v3935, 4
      %v3937 = vrot.slane %v3148, 5
      %v3938 = vsel %vm1690, %v3936, %v3937
      %v3939 = vrot.slane %v3937, 4
      %v3940 = vrot.slane %v3149, 5
      %v3941 = vsel %vm1690, %v3939, %v3940
      %v3942 = vrot.slane %v3896, 5
      %v3943 = vrot.slane %v3942, 4
      %v3944 = vrot.slane %v3151, 5
      %v3945 = vsel %vm1690, %v3943, %v3944
      %v3946 = vrot.slane %v3944, 4
      %v3947 = vrot.slane %v3152, 5
      %v3948 = vsel %vm1690, %v3946, %v3947
      %v3949 = vrot.slane %v3897, 5
      %v3950 = vrot.slane %v3949, 4
      %v3951 = vrot.slane %v3154, 5
      %v3952 = vsel %vm1690, %v3950, %v3951
      %v3953 = vrot.slane %v3951, 4
      %v3954 = vrot.slane %v3155, 5
      %v3955 = vsel %vm1690, %v3953, %v3954
      %v3956 = vrot.slane %v3898, 5
      %v3957 = vrot.slane %v3956, 4
      %v3958 = vrot.slane %v3157, 5
      %v3959 = vsel %vm1690, %v3957, %v3958
      %v3960 = vrot.slane %v3958, 4
      %v3961 = vrot.slane %v3158, 5
      %v3962 = vsel %vm1690, %v3960, %v3961
      %v3963 = vrot.slane %v3899, 5
      %v3964 = vrot.slane %v3963, 4
      %v3965 = vrot.slane %v3160, 5
      %v3966 = vsel %vm1690, %v3964, %v3965
      %v3967 = vrot.slane %v3965, 4
      %v3968 = vrot.slane %v3161, 5
      %v3969 = vsel %vm1690, %v3967, %v3968
      %v3970 = vrot.slane %v3900, 5
      %v3971 = vrot.slane %v3970, 4
      %v3972 = vrot.slane %v3163, 5
      %v3973 = vsel %vm1690, %v3971, %v3972
      %v3974 = vrot.slane %v3972, 4
      %v3975 = vrot.slane %v3164, 5
      %v3976 = vsel %vm1690, %v3974, %v3975
      %v3977 = vrot.slane %v3901, 5
      %v3978 = vrot.slane %v3977, 4
      %v3979 = vrot.slane %v3166, 5
      %v3980 = vsel %vm1690, %v3978, %v3979
      %v3981 = vrot.slane %v3979, 4
      %v3982 = vrot.slane %v3167, 5
      %v3983 = vsel %vm1690, %v3981, %v3982
      %v3984 = vrot.slane %v3902, 5
      %v3985 = vrot.slane %v3984, 4
      %v3986 = vrot.slane %v3169, 5
      %v3987 = vsel %vm1690, %v3985, %v3986
      %v3988 = vrot.slane %v3986, 4
      %v3989 = vrot.slane %v3170, 5
      %v3990 = vsel %vm1690, %v3988, %v3989
      %v3991 = vrot.slane %v3903, 5
      %v3992 = vrot.slane %v3991, 4
      %v3993 = vrot.slane %v3172, 5
      %v3994 = vsel %vm1690, %v3992, %v3993
      %v3995 = vrot.slane %v3993, 4
      %v3996 = vrot.slane %v3173, 5
      %v3997 = vsel %vm1690, %v3995, %v3996
      %v3998 = vrot.slane %v3904, 5
      %v3999 = vrot.slane %v3998, 4
      %v4000 = vrot.slane %v3175, 5
      %v4001 = vsel %vm1690, %v3999, %v4000
      %v4002 = vrot.slane %v4000, 4
      %v4003 = vrot.slane %v3176, 5
      %v4004 = vsel %vm1690, %v4002, %v4003
      %s4005 = scalar_lea.vmem %s3, 320
      %v4006 = vld [vmem:[%s4005] sm:$0xf]
      %v4007 = vld [vmem:[%s4005 + $0x4] sm:$0xf]
      %v4008 = vld [vmem:[%s4005 + $0x8] sm:$0xf]
      %v4009 = vld [vmem:[%s4005 + $0xc] sm:$0xf]
      %v4010 = vld [vmem:[%s4005 + $0x10] sm:$0xf]
      %v4011 = vld [vmem:[%s4005 + $0x14] sm:$0xf]
      %v4012 = vld [vmem:[%s4005 + $0x18] sm:$0xf]
      %v4013 = vld [vmem:[%s4005 + $0x1c] sm:$0xf]
      %v4014 = vld [vmem:[%s4005 + $0x20] sm:$0xf]
      %v4015 = vld [vmem:[%s4005 + $0x24] sm:$0xf]
      %v4016 = vld [vmem:[%s4005 + $0x28] sm:$0xf]
      %v4017 = vld [vmem:[%s4005 + $0x2c] sm:$0xf]
      %v4018 = vld [vmem:[%s4005 + $0x30] sm:$0xf]
      %v4019 = vld [vmem:[%s4005 + $0x34] sm:$0xf]
      %v4020 = vld [vmem:[%s4005 + $0x38] sm:$0xf]
      %v4021 = vld [vmem:[%s4005 + $0x3c] sm:$0xf]
      %v4022 = vunpack.c.l.b16 %v3938
      %v4023 = vunpack.c.l.b16 %v3941
      %v4024 = vunpack.c.l.b16 %v3945
      %v4025 = vunpack.c.l.b16 %v3948
      %v4026 = vunpack.c.l.b16 %v3952
      %v4027 = vunpack.c.l.b16 %v3955
      %v4028 = vunpack.c.l.b16 %v3959
      %v4029 = vunpack.c.l.b16 %v3962
      %v4030 = vunpack.c.l.b16 %v3966
      %v4031 = vunpack.c.l.b16 %v3969
      %v4032 = vunpack.c.l.b16 %v3973
      %v4033 = vunpack.c.l.b16 %v3976
      %v4034 = vunpack.c.l.b16 %v3980
      %v4035 = vunpack.c.l.b16 %v3983
      %v4036 = vunpack.c.l.b16 %v3987
      %v4037 = vunpack.c.l.b16 %v3990
      %v4038 = vunpack.c.l.b16 %v3994
      %v4039 = vunpack.c.l.b16 %v3997
      %v4040 = vunpack.c.l.b16 %v4001
      %v4041 = vunpack.c.l.b16 %v4004
      %v4042 = vpack.c.b16 %v4023, %v4022
      %v4043 = vpack.c.b16 %v4025, %v4024
      %v4044 = vpack.c.b16 %v4027, %v4026
      %v4045 = vpack.c.b16 %v4029, %v4028
      %v4046 = vpack.c.b16 %v4031, %v4030
      %v4047 = vpack.c.b16 %v4033, %v4032
      %v4048 = vpack.c.b16 %v4035, %v4034
      %v4049 = vpack.c.b16 %v4037, %v4036
      %v4050 = vpack.c.b16 %v4039, %v4038
      %v4051 = vpack.c.b16 %v4041, %v4040
      %v4078 = vunpack.c.l.b16 %v4006
      %v4079 = vunpack.c.l.b16 %v4007
      %v4080 = vunpack.c.l.b16 %v4008
      %v4081 = vunpack.c.l.b16 %v4009
      %v4082 = vunpack.c.l.b16 %v4010
      %v4083 = vunpack.c.l.b16 %v4011
      %v4084 = vunpack.c.l.b16 %v4012
      %v4085 = vunpack.c.l.b16 %v4013
      %v4086 = vunpack.c.l.b16 %v4014
      %v4087 = vunpack.c.l.b16 %v4015
      %v4088 = vunpack.c.l.b16 %v4016
      %v4089 = vunpack.c.l.b16 %v4017
      %v4090 = vunpack.c.l.b16 %v4018
      %v4091 = vunpack.c.l.b16 %v4019
      %v4092 = vunpack.c.l.b16 %v4020
      %v4093 = vunpack.c.l.b16 %v4021
      %v4094 = vpack.c.b16 %v4079, %v4078
      %v4095 = vpack.c.b16 %v4081, %v4080
      %v4096 = vpack.c.b16 %v4083, %v4082
      %v4097 = vpack.c.b16 %v4085, %v4084
      %v4098 = vpack.c.b16 %v4087, %v4086
      %v4099 = vpack.c.b16 %v4089, %v4088
      %v4100 = vpack.c.b16 %v4091, %v4090
      %v4101 = vpack.c.b16 %v4093, %v4092
      %4110 = vmatpush.bf16.msra.mxu0 %v4101
      %4111 = vmatpush.bf16.msra.mxu0 %v4100
      %4112 = vmatpush.bf16.msra.mxu0 %v4099
      %4113 = vmatpush.bf16.msra.mxu0 %v4098
      %4114 = vmatpush.bf16.msra.mxu0 %v4097
      %4115 = vmatpush.bf16.msra.mxu0 %v4096
      %4116 = vmatpush.bf16.msra.mxu0 %v4095
      %4117 = vmatpush.bf16.msra.mxu0 %v4094
      %4118 = vmatmul.bf16.gmra.mxu0 %v4042
      %v4119 = vpop.f32.mrf.mxu0
      %v4120 = vadd.f32 0.0, %v4119
      %v4121 = vpop.f32.mrf.mxu0
      %v4122 = vadd.f32 0.0, %v4121
      %4123 = vmatmul.bf16.gmra.mxu0 %v4043
      %v4124 = vpop.f32.mrf.mxu0
      %v4125 = vadd.f32 0.0, %v4124
      %v4126 = vpop.f32.mrf.mxu0
      %v4127 = vadd.f32 0.0, %v4126
      %4128 = vmatmul.bf16.gmra.mxu0 %v4044
      %v4129 = vpop.f32.mrf.mxu0
      %v4130 = vadd.f32 0.0, %v4129
      %v4131 = vpop.f32.mrf.mxu0
      %v4132 = vadd.f32 0.0, %v4131
      %4133 = vmatmul.bf16.gmra.mxu0 %v4045
      %v4134 = vpop.f32.mrf.mxu0
      %v4135 = vadd.f32 0.0, %v4134
      %v4136 = vpop.f32.mrf.mxu0
      %v4137 = vadd.f32 0.0, %v4136
      %4138 = vmatmul.bf16.gmra.mxu0 %v4046
      %v4139 = vpop.f32.mrf.mxu0
      %v4140 = vadd.f32 0.0, %v4139
      %v4141 = vpop.f32.mrf.mxu0
      %v4142 = vadd.f32 0.0, %v4141
      %4143 = vmatmul.bf16.gmra.mxu0 %v4047
      %v4144 = vpop.f32.mrf.mxu0
      %v4145 = vadd.f32 0.0, %v4144
      %v4146 = vpop.f32.mrf.mxu0
      %v4147 = vadd.f32 0.0, %v4146
      %4148 = vmatmul.bf16.gmra.mxu0 %v4048
      %v4149 = vpop.f32.mrf.mxu0
      %v4150 = vadd.f32 0.0, %v4149
      %v4151 = vpop.f32.mrf.mxu0
      %v4152 = vadd.f32 0.0, %v4151
      %4153 = vmatmul.bf16.gmra.mxu0 %v4049
      %v4154 = vpop.f32.mrf.mxu0
      %v4155 = vadd.f32 0.0, %v4154
      %v4156 = vpop.f32.mrf.mxu0
      %v4157 = vadd.f32 0.0, %v4156
      %4158 = vmatmul.bf16.gmra.mxu0 %v4050
      %v4159 = vpop.f32.mrf.mxu0
      %v4160 = vadd.f32 0.0, %v4159
      %v4161 = vpop.f32.mrf.mxu0
      %v4162 = vadd.f32 0.0, %v4161
      %4163 = vmatmul.bf16.gmra.mxu0 %v4051
      %v4164 = vpop.f32.mrf.mxu0
      %v4165 = vadd.f32 0.0, %v4164
      %v4166 = vpop.f32.mrf.mxu0
      %v4167 = vadd.f32 0.0, %v4166
      %4168 = vdwg.mxu0
      %v4169 = vadd.f32 %v3875, %v4120
      %v4170 = vadd.f32 %v3876, %v4122
      %v4171 = vadd.f32 %v3877, %v4125
      %v4172 = vadd.f32 %v3878, %v4127
      %v4173 = vadd.f32 %v3879, %v4130
      %v4174 = vadd.f32 %v3880, %v4132
      %v4175 = vadd.f32 %v3881, %v4135
      %v4176 = vadd.f32 %v3882, %v4137
      %v4177 = vadd.f32 %v3883, %v4140
      %v4178 = vadd.f32 %v3884, %v4142
      %v4179 = vadd.f32 %v3885, %v4145
      %v4180 = vadd.f32 %v3886, %v4147
      %v4181 = vadd.f32 %v3887, %v4150
      %v4182 = vadd.f32 %v3888, %v4152
      %v4183 = vadd.f32 %v3889, %v4155
      %v4184 = vadd.f32 %v3890, %v4157
      %v4185 = vadd.f32 %v3891, %v4160
      %v4186 = vadd.f32 %v3892, %v4162
      %v4187 = vadd.f32 %v3893, %v4165
      %v4188 = vadd.f32 %v3894, %v4167
      %s4189 = sadd.s32 %s325, 2
      %s4190 = smul.u32 %s4189, 3
      %s4191 = smul.addr %s4190, 4
      %s4192 = scalar_lea.vmem %s307, %s4191
      %v4193 = vld [vmem:[%s4192] sm:$0xf]
      %v4194 = vld [vmem:[%s4192 + $0x4] sm:$0xf]
      %v4195 = vld [vmem:[%s4192 + $0xc] sm:$0xf]
      %v4196 = vld [vmem:[%s4192 + $0x10] sm:$0xf]
      %v4197 = vld [vmem:[%s4192 + $0x18] sm:$0xf]
      %v4198 = vld [vmem:[%s4192 + $0x1c] sm:$0xf]
      %v4199 = vld [vmem:[%s4192 + $0x24] sm:$0xf]
      %v4200 = vld [vmem:[%s4192 + $0x28] sm:$0xf]
      %v4201 = vld [vmem:[%s4192 + $0x30] sm:$0xf]
      %v4202 = vld [vmem:[%s4192 + $0x34] sm:$0xf]
      %v4203 = vld [vmem:[%s4192 + $0x3c] sm:$0xf]
      %v4204 = vld [vmem:[%s4192 + $0x40] sm:$0xf]
      %v4205 = vld [vmem:[%s4192 + $0x48] sm:$0xf]
      %v4206 = vld [vmem:[%s4192 + $0x4c] sm:$0xf]
      %v4207 = vld [vmem:[%s4192 + $0x54] sm:$0xf]
      %v4208 = vld [vmem:[%s4192 + $0x58] sm:$0xf]
      %v4209 = vld [vmem:[%s4192 + $0x60] sm:$0xf]
      %v4210 = vld [vmem:[%s4192 + $0x64] sm:$0xf]
      %v4211 = vld [vmem:[%s4192 + $0x6c] sm:$0xf]
      %v4212 = vld [vmem:[%s4192 + $0x70] sm:$0xf]
      %s4213 = scalar_lea.vmem %s2, 384
      %v4214 = vld [vmem:[%s4213] sm:$0xf]
      %v4215 = vld [vmem:[%s4213 + $0x4] sm:$0xf]
      %v4216 = vld [vmem:[%s4213 + $0x8] sm:$0xf]
      %v4217 = vld [vmem:[%s4213 + $0xc] sm:$0xf]
      %v4218 = vld [vmem:[%s4213 + $0x10] sm:$0xf]
      %v4219 = vld [vmem:[%s4213 + $0x14] sm:$0xf]
      %v4220 = vld [vmem:[%s4213 + $0x18] sm:$0xf]
      %v4221 = vld [vmem:[%s4213 + $0x1c] sm:$0xf]
      %v4222 = vld [vmem:[%s4213 + $0x20] sm:$0xf]
      %v4223 = vld [vmem:[%s4213 + $0x24] sm:$0xf]
      %v4224 = vld [vmem:[%s4213 + $0x28] sm:$0xf]
      %v4225 = vld [vmem:[%s4213 + $0x2c] sm:$0xf]
      %v4226 = vld [vmem:[%s4213 + $0x30] sm:$0xf]
      %v4227 = vld [vmem:[%s4213 + $0x34] sm:$0xf]
      %v4228 = vld [vmem:[%s4213 + $0x38] sm:$0xf]
      %v4229 = vld [vmem:[%s4213 + $0x3c] sm:$0xf]
      %v4250 = vunpack.c.l.b16 %v4193
      %v4251 = vunpack.c.l.b16 %v4194
      %v4252 = vunpack.c.l.b16 %v4195
      %v4253 = vunpack.c.l.b16 %v4196
      %v4254 = vunpack.c.l.b16 %v4197
      %v4255 = vunpack.c.l.b16 %v4198
      %v4256 = vunpack.c.l.b16 %v4199
      %v4257 = vunpack.c.l.b16 %v4200
      %v4258 = vunpack.c.l.b16 %v4201
      %v4259 = vunpack.c.l.b16 %v4202
      %v4260 = vunpack.c.l.b16 %v4203
      %v4261 = vunpack.c.l.b16 %v4204
      %v4262 = vunpack.c.l.b16 %v4205
      %v4263 = vunpack.c.l.b16 %v4206
      %v4264 = vunpack.c.l.b16 %v4207
      %v4265 = vunpack.c.l.b16 %v4208
      %v4266 = vunpack.c.l.b16 %v4209
      %v4267 = vunpack.c.l.b16 %v4210
      %v4268 = vunpack.c.l.b16 %v4211
      %v4269 = vunpack.c.l.b16 %v4212
      %v4270 = vpack.c.b16 %v4251, %v4250
      %v4271 = vpack.c.b16 %v4253, %v4252
      %v4272 = vpack.c.b16 %v4255, %v4254
      %v4273 = vpack.c.b16 %v4257, %v4256
      %v4274 = vpack.c.b16 %v4259, %v4258
      %v4275 = vpack.c.b16 %v4261, %v4260
      %v4276 = vpack.c.b16 %v4263, %v4262
      %v4277 = vpack.c.b16 %v4265, %v4264
      %v4278 = vpack.c.b16 %v4267, %v4266
      %v4279 = vpack.c.b16 %v4269, %v4268
      %v4306 = vunpack.c.l.b16 %v4214
      %v4307 = vunpack.c.l.b16 %v4215
      %v4308 = vunpack.c.l.b16 %v4216
      %v4309 = vunpack.c.l.b16 %v4217
      %v4310 = vunpack.c.l.b16 %v4218
      %v4311 = vunpack.c.l.b16 %v4219
      %v4312 = vunpack.c.l.b16 %v4220
      %v4313 = vunpack.c.l.b16 %v4221
      %v4314 = vunpack.c.l.b16 %v4222
      %v4315 = vunpack.c.l.b16 %v4223
      %v4316 = vunpack.c.l.b16 %v4224
      %v4317 = vunpack.c.l.b16 %v4225
      %v4318 = vunpack.c.l.b16 %v4226
      %v4319 = vunpack.c.l.b16 %v4227
      %v4320 = vunpack.c.l.b16 %v4228
      %v4321 = vunpack.c.l.b16 %v4229
      %v4322 = vpack.c.b16 %v4307, %v4306
      %v4323 = vpack.c.b16 %v4309, %v4308
      %v4324 = vpack.c.b16 %v4311, %v4310
      %v4325 = vpack.c.b16 %v4313, %v4312
      %v4326 = vpack.c.b16 %v4315, %v4314
      %v4327 = vpack.c.b16 %v4317, %v4316
      %v4328 = vpack.c.b16 %v4319, %v4318
      %v4329 = vpack.c.b16 %v4321, %v4320
      %4338 = vmatpush.bf16.msra.mxu0 %v4329
      %4339 = vmatpush.bf16.msra.mxu0 %v4328
      %4340 = vmatpush.bf16.msra.mxu0 %v4327
      %4341 = vmatpush.bf16.msra.mxu0 %v4326
      %4342 = vmatpush.bf16.msra.mxu0 %v4325
      %4343 = vmatpush.bf16.msra.mxu0 %v4324
      %4344 = vmatpush.bf16.msra.mxu0 %v4323
      %4345 = vmatpush.bf16.msra.mxu0 %v4322
      %4346 = vmatmul.bf16.gmra.mxu0 %v4270
      %v4347 = vpop.f32.mrf.mxu0
      %v4348 = vadd.f32 0.0, %v4347
      %v4349 = vpop.f32.mrf.mxu0
      %v4350 = vadd.f32 0.0, %v4349
      %4351 = vmatmul.bf16.gmra.mxu0 %v4271
      %v4352 = vpop.f32.mrf.mxu0
      %v4353 = vadd.f32 0.0, %v4352
      %v4354 = vpop.f32.mrf.mxu0
      %v4355 = vadd.f32 0.0, %v4354
      %4356 = vmatmul.bf16.gmra.mxu0 %v4272
      %v4357 = vpop.f32.mrf.mxu0
      %v4358 = vadd.f32 0.0, %v4357
      %v4359 = vpop.f32.mrf.mxu0
      %v4360 = vadd.f32 0.0, %v4359
      %4361 = vmatmul.bf16.gmra.mxu0 %v4273
      %v4362 = vpop.f32.mrf.mxu0
      %v4363 = vadd.f32 0.0, %v4362
      %v4364 = vpop.f32.mrf.mxu0
      %v4365 = vadd.f32 0.0, %v4364
      %4366 = vmatmul.bf16.gmra.mxu0 %v4274
      %v4367 = vpop.f32.mrf.mxu0
      %v4368 = vadd.f32 0.0, %v4367
      %v4369 = vpop.f32.mrf.mxu0
      %v4370 = vadd.f32 0.0, %v4369
      %4371 = vmatmul.bf16.gmra.mxu0 %v4275
      %v4372 = vpop.f32.mrf.mxu0
      %v4373 = vadd.f32 0.0, %v4372
      %v4374 = vpop.f32.mrf.mxu0
      %v4375 = vadd.f32 0.0, %v4374
      %4376 = vmatmul.bf16.gmra.mxu0 %v4276
      %v4377 = vpop.f32.mrf.mxu0
      %v4378 = vadd.f32 0.0, %v4377
      %v4379 = vpop.f32.mrf.mxu0
      %v4380 = vadd.f32 0.0, %v4379
      %4381 = vmatmul.bf16.gmra.mxu0 %v4277
      %v4382 = vpop.f32.mrf.mxu0
      %v4383 = vadd.f32 0.0, %v4382
      %v4384 = vpop.f32.mrf.mxu0
      %v4385 = vadd.f32 0.0, %v4384
      %4386 = vmatmul.bf16.gmra.mxu0 %v4278
      %v4387 = vpop.f32.mrf.mxu0
      %v4388 = vadd.f32 0.0, %v4387
      %v4389 = vpop.f32.mrf.mxu0
      %v4390 = vadd.f32 0.0, %v4389
      %4391 = vmatmul.bf16.gmra.mxu0 %v4279
      %v4392 = vpop.f32.mrf.mxu0
      %v4393 = vadd.f32 0.0, %v4392
      %v4394 = vpop.f32.mrf.mxu0
      %v4395 = vadd.f32 0.0, %v4394
      %4396 = vdwg.mxu0
      %v4397 = vadd.f32 %v4169, %v4348
      %v4398 = vadd.f32 %v4170, %v4350
      %v4399 = vadd.f32 %v4171, %v4353
      %v4400 = vadd.f32 %v4172, %v4355
      %v4401 = vadd.f32 %v4173, %v4358
      %v4402 = vadd.f32 %v4174, %v4360
      %v4403 = vadd.f32 %v4175, %v4363
      %v4404 = vadd.f32 %v4176, %v4365
      %v4405 = vadd.f32 %v4177, %v4368
      %v4406 = vadd.f32 %v4178, %v4370
      %v4407 = vadd.f32 %v4179, %v4373
      %v4408 = vadd.f32 %v4180, %v4375
      %v4409 = vadd.f32 %v4181, %v4378
      %v4410 = vadd.f32 %v4182, %v4380
      %v4411 = vadd.f32 %v4183, %v4383
      %v4412 = vadd.f32 %v4184, %v4385
      %v4413 = vadd.f32 %v4185, %v4388
      %v4414 = vadd.f32 %v4186, %v4390
      %v4415 = vadd.f32 %v4187, %v4393
      %v4416 = vadd.f32 %v4188, %v4395
      %s4417 = smul.addr %s4190, 4
      %s4418 = scalar_lea.vmem %s312, %s4417
      %v4419 = vld [vmem:[%s4418] sm:$0xf]
      %v4420 = vld [vmem:[%s4418 + $0x4] sm:$0xf]
      %v4421 = vld [vmem:[%s4418 + $0xc] sm:$0xf]
      %v4422 = vld [vmem:[%s4418 + $0x10] sm:$0xf]
      %v4423 = vld [vmem:[%s4418 + $0x18] sm:$0xf]
      %v4424 = vld [vmem:[%s4418 + $0x1c] sm:$0xf]
      %v4425 = vld [vmem:[%s4418 + $0x24] sm:$0xf]
      %v4426 = vld [vmem:[%s4418 + $0x28] sm:$0xf]
      %v4427 = vld [vmem:[%s4418 + $0x30] sm:$0xf]
      %v4428 = vld [vmem:[%s4418 + $0x34] sm:$0xf]
      %v4429 = vld [vmem:[%s4418 + $0x3c] sm:$0xf]
      %v4430 = vld [vmem:[%s4418 + $0x40] sm:$0xf]
      %v4431 = vld [vmem:[%s4418 + $0x48] sm:$0xf]
      %v4432 = vld [vmem:[%s4418 + $0x4c] sm:$0xf]
      %v4433 = vld [vmem:[%s4418 + $0x54] sm:$0xf]
      %v4434 = vld [vmem:[%s4418 + $0x58] sm:$0xf]
      %v4435 = vld [vmem:[%s4418 + $0x60] sm:$0xf]
      %v4436 = vld [vmem:[%s4418 + $0x64] sm:$0xf]
      %v4437 = vld [vmem:[%s4418 + $0x6c] sm:$0xf]
      %v4438 = vld [vmem:[%s4418 + $0x70] sm:$0xf]
      %s4439 = scalar_lea.vmem %s3, 384
      %v4440 = vld [vmem:[%s4439] sm:$0xf]
      %v4441 = vld [vmem:[%s4439 + $0x4] sm:$0xf]
      %v4442 = vld [vmem:[%s4439 + $0x8] sm:$0xf]
      %v4443 = vld [vmem:[%s4439 + $0xc] sm:$0xf]
      %v4444 = vld [vmem:[%s4439 + $0x10] sm:$0xf]
      %v4445 = vld [vmem:[%s4439 + $0x14] sm:$0xf]
      %v4446 = vld [vmem:[%s4439 + $0x18] sm:$0xf]
      %v4447 = vld [vmem:[%s4439 + $0x1c] sm:$0xf]
      %v4448 = vld [vmem:[%s4439 + $0x20] sm:$0xf]
      %v4449 = vld [vmem:[%s4439 + $0x24] sm:$0xf]
      %v4450 = vld [vmem:[%s4439 + $0x28] sm:$0xf]
      %v4451 = vld [vmem:[%s4439 + $0x2c] sm:$0xf]
      %v4452 = vld [vmem:[%s4439 + $0x30] sm:$0xf]
      %v4453 = vld [vmem:[%s4439 + $0x34] sm:$0xf]
      %v4454 = vld [vmem:[%s4439 + $0x38] sm:$0xf]
      %v4455 = vld [vmem:[%s4439 + $0x3c] sm:$0xf]
      %v4476 = vunpack.c.l.b16 %v4419
      %v4477 = vunpack.c.l.b16 %v4420
      %v4478 = vunpack.c.l.b16 %v4421
      %v4479 = vunpack.c.l.b16 %v4422
      %v4480 = vunpack.c.l.b16 %v4423
      %v4481 = vunpack.c.l.b16 %v4424
      %v4482 = vunpack.c.l.b16 %v4425
      %v4483 = vunpack.c.l.b16 %v4426
      %v4484 = vunpack.c.l.b16 %v4427
      %v4485 = vunpack.c.l.b16 %v4428
      %v4486 = vunpack.c.l.b16 %v4429
      %v4487 = vunpack.c.l.b16 %v4430
      %v4488 = vunpack.c.l.b16 %v4431
      %v4489 = vunpack.c.l.b16 %v4432
      %v4490 = vunpack.c.l.b16 %v4433
      %v4491 = vunpack.c.l.b16 %v4434
      %v4492 = vunpack.c.l.b16 %v4435
      %v4493 = vunpack.c.l.b16 %v4436
      %v4494 = vunpack.c.l.b16 %v4437
      %v4495 = vunpack.c.l.b16 %v4438
      %v4496 = vpack.c.b16 %v4477, %v4476
      %v4497 = vpack.c.b16 %v4479, %v4478
      %v4498 = vpack.c.b16 %v4481, %v4480
      %v4499 = vpack.c.b16 %v4483, %v4482
      %v4500 = vpack.c.b16 %v4485, %v4484
      %v4501 = vpack.c.b16 %v4487, %v4486
      %v4502 = vpack.c.b16 %v4489, %v4488
      %v4503 = vpack.c.b16 %v4491, %v4490
      %v4504 = vpack.c.b16 %v4493, %v4492
      %v4505 = vpack.c.b16 %v4495, %v4494
      %v4532 = vunpack.c.l.b16 %v4440
      %v4533 = vunpack.c.l.b16 %v4441
      %v4534 = vunpack.c.l.b16 %v4442
      %v4535 = vunpack.c.l.b16 %v4443
      %v4536 = vunpack.c.l.b16 %v4444
      %v4537 = vunpack.c.l.b16 %v4445
      %v4538 = vunpack.c.l.b16 %v4446
      %v4539 = vunpack.c.l.b16 %v4447
      %v4540 = vunpack.c.l.b16 %v4448
      %v4541 = vunpack.c.l.b16 %v4449
      %v4542 = vunpack.c.l.b16 %v4450
      %v4543 = vunpack.c.l.b16 %v4451
      %v4544 = vunpack.c.l.b16 %v4452
      %v4545 = vunpack.c.l.b16 %v4453
      %v4546 = vunpack.c.l.b16 %v4454
      %v4547 = vunpack.c.l.b16 %v4455
      %v4548 = vpack.c.b16 %v4533, %v4532
      %v4549 = vpack.c.b16 %v4535, %v4534
      %v4550 = vpack.c.b16 %v4537, %v4536
      %v4551 = vpack.c.b16 %v4539, %v4538
      %v4552 = vpack.c.b16 %v4541, %v4540
      %v4553 = vpack.c.b16 %v4543, %v4542
      %v4554 = vpack.c.b16 %v4545, %v4544
      %v4555 = vpack.c.b16 %v4547, %v4546
      %4564 = vmatpush.bf16.msra.mxu0 %v4555
      %4565 = vmatpush.bf16.msra.mxu0 %v4554
      %4566 = vmatpush.bf16.msra.mxu0 %v4553
      %4567 = vmatpush.bf16.msra.mxu0 %v4552
      %4568 = vmatpush.bf16.msra.mxu0 %v4551
      %4569 = vmatpush.bf16.msra.mxu0 %v4550
      %4570 = vmatpush.bf16.msra.mxu0 %v4549
      %4571 = vmatpush.bf16.msra.mxu0 %v4548
      %4572 = vmatmul.bf16.gmra.mxu0 %v4496
      %v4573 = vpop.f32.mrf.mxu0
      %v4574 = vadd.f32 0.0, %v4573
      %v4575 = vpop.f32.mrf.mxu0
      %v4576 = vadd.f32 0.0, %v4575
      %4577 = vmatmul.bf16.gmra.mxu0 %v4497
      %v4578 = vpop.f32.mrf.mxu0
      %v4579 = vadd.f32 0.0, %v4578
      %v4580 = vpop.f32.mrf.mxu0
      %v4581 = vadd.f32 0.0, %v4580
      %4582 = vmatmul.bf16.gmra.mxu0 %v4498
      %v4583 = vpop.f32.mrf.mxu0
      %v4584 = vadd.f32 0.0, %v4583
      %v4585 = vpop.f32.mrf.mxu0
      %v4586 = vadd.f32 0.0, %v4585
      %4587 = vmatmul.bf16.gmra.mxu0 %v4499
      %v4588 = vpop.f32.mrf.mxu0
      %v4589 = vadd.f32 0.0, %v4588
      %v4590 = vpop.f32.mrf.mxu0
      %v4591 = vadd.f32 0.0, %v4590
      %4592 = vmatmul.bf16.gmra.mxu0 %v4500
      %v4593 = vpop.f32.mrf.mxu0
      %v4594 = vadd.f32 0.0, %v4593
      %v4595 = vpop.f32.mrf.mxu0
      %v4596 = vadd.f32 0.0, %v4595
      %4597 = vmatmul.bf16.gmra.mxu0 %v4501
      %v4598 = vpop.f32.mrf.mxu0
      %v4599 = vadd.f32 0.0, %v4598
      %v4600 = vpop.f32.mrf.mxu0
      %v4601 = vadd.f32 0.0, %v4600
      %4602 = vmatmul.bf16.gmra.mxu0 %v4502
      %v4603 = vpop.f32.mrf.mxu0
      %v4604 = vadd.f32 0.0, %v4603
      %v4605 = vpop.f32.mrf.mxu0
      %v4606 = vadd.f32 0.0, %v4605
      %4607 = vmatmul.bf16.gmra.mxu0 %v4503
      %v4608 = vpop.f32.mrf.mxu0
      %v4609 = vadd.f32 0.0, %v4608
      %v4610 = vpop.f32.mrf.mxu0
      %v4611 = vadd.f32 0.0, %v4610
      %4612 = vmatmul.bf16.gmra.mxu0 %v4504
      %v4613 = vpop.f32.mrf.mxu0
      %v4614 = vadd.f32 0.0, %v4613
      %v4615 = vpop.f32.mrf.mxu0
      %v4616 = vadd.f32 0.0, %v4615
      %4617 = vmatmul.bf16.gmra.mxu0 %v4505
      %v4618 = vpop.f32.mrf.mxu0
      %v4619 = vadd.f32 0.0, %v4618
      %v4620 = vpop.f32.mrf.mxu0
      %v4621 = vadd.f32 0.0, %v4620
      %4622 = vdwg.mxu0
      %v4623 = vadd.f32 %v4397, %v4574
      %v4624 = vadd.f32 %v4398, %v4576
      %v4625 = vadd.f32 %v4399, %v4579
      %v4626 = vadd.f32 %v4400, %v4581
      %v4627 = vadd.f32 %v4401, %v4584
      %v4628 = vadd.f32 %v4402, %v4586
      %v4629 = vadd.f32 %v4403, %v4589
      %v4630 = vadd.f32 %v4404, %v4591
      %v4631 = vadd.f32 %v4405, %v4594
      %v4632 = vadd.f32 %v4406, %v4596
      %v4633 = vadd.f32 %v4407, %v4599
      %v4634 = vadd.f32 %v4408, %v4601
      %v4635 = vadd.f32 %v4409, %v4604
      %v4636 = vadd.f32 %v4410, %v4606
      %v4637 = vadd.f32 %v4411, %v4609
      %v4638 = vadd.f32 %v4412, %v4611
      %v4639 = vadd.f32 %v4413, %v4614
      %v4640 = vadd.f32 %v4414, %v4616
      %v4641 = vadd.f32 %v4415, %v4619
      %v4642 = vadd.f32 %v4416, %v4621
      %v4643 = vld [vmem:[%s4192] sm:$0xf]
      %v4644 = vld [vmem:[%s4192 + $0x4] sm:$0xf]
      %v4645 = vld [vmem:[%s4192 + $0x8] sm:$0x1]
      %v4646 = vld [vmem:[%s4192 + $0xc] sm:$0xf]
      %v4647 = vld [vmem:[%s4192 + $0x10] sm:$0xf]
      %v4648 = vld [vmem:[%s4192 + $0x14] sm:$0x1]
      %v4649 = vld [vmem:[%s4192 + $0x18] sm:$0xf]
      %v4650 = vld [vmem:[%s4192 + $0x1c] sm:$0xf]
      %v4651 = vld [vmem:[%s4192 + $0x20] sm:$0x1]
      %v4652 = vld [vmem:[%s4192 + $0x24] sm:$0xf]
      %v4653 = vld [vmem:[%s4192 + $0x28] sm:$0xf]
      %v4654 = vld [vmem:[%s4192 + $0x2c] sm:$0x1]
      %v4655 = vld [vmem:[%s4192 + $0x30] sm:$0xf]
      %v4656 = vld [vmem:[%s4192 + $0x34] sm:$0xf]
      %v4657 = vld [vmem:[%s4192 + $0x38] sm:$0x1]
      %v4658 = vld [vmem:[%s4192 + $0x3c] sm:$0xf]
      %v4659 = vld [vmem:[%s4192 + $0x40] sm:$0xf]
      %v4660 = vld [vmem:[%s4192 + $0x44] sm:$0x1]
      %v4661 = vld [vmem:[%s4192 + $0x48] sm:$0xf]
      %v4662 = vld [vmem:[%s4192 + $0x4c] sm:$0xf]
      %v4663 = vld [vmem:[%s4192 + $0x50] sm:$0x1]
      %v4664 = vld [vmem:[%s4192 + $0x54] sm:$0xf]
      %v4665 = vld [vmem:[%s4192 + $0x58] sm:$0xf]
      %v4666 = vld [vmem:[%s4192 + $0x5c] sm:$0x1]
      %v4667 = vld [vmem:[%s4192 + $0x60] sm:$0xf]
      %v4668 = vld [vmem:[%s4192 + $0x64] sm:$0xf]
      %v4669 = vld [vmem:[%s4192 + $0x68] sm:$0x1]
      %v4670 = vld [vmem:[%s4192 + $0x6c] sm:$0xf]
      %v4671 = vld [vmem:[%s4192 + $0x70] sm:$0xf]
      %v4672 = vld [vmem:[%s4192 + $0x74] sm:$0x1]
      %v4674 = vshrl.u32 %v4643, 16
      %v4676 = vrot.slane %v4674, 4
      %v4677 = vshll.u32 %v4643, 16
      %v4679 = vrot.slane %v4677, 5
      %v4680 = vor.u32 %v4676, %v4679
      %v4681 = vrot.slane %v4680, 4
      %v4683 = vshll.u32 %v4644, 16
      %v4685 = vrot.slane %v4683, 5
      %v4686 = vsel %vm769, %v4681, %v4685
      %v4687 = vshrl.u32 %v4644, 16
      %v4689 = vrot.slane %v4687, 4
      %v4690 = vor.u32 %v4689, %v4685
      %v4691 = vrot.slane %v4690, 4
      %v4693 = vshll.u32 %v4645, 16
      %v4695 = vrot.slane %v4693, 5
      %v4696 = vsel %vm769, %v4691, %v4695
      %v4698 = vshrl.u32 %v4646, 16
      %v4700 = vrot.slane %v4698, 4
      %v4701 = vshll.u32 %v4646, 16
      %v4703 = vrot.slane %v4701, 5
      %v4704 = vor.u32 %v4700, %v4703
      %v4705 = vrot.slane %v4704, 4
      %v4707 = vshll.u32 %v4647, 16
      %v4709 = vrot.slane %v4707, 5
      %v4710 = vsel %vm769, %v4705, %v4709
      %v4711 = vshrl.u32 %v4647, 16
      %v4713 = vrot.slane %v4711, 4
      %v4714 = vor.u32 %v4713, %v4709
      %v4715 = vrot.slane %v4714, 4
      %v4717 = vshll.u32 %v4648, 16
      %v4719 = vrot.slane %v4717, 5
      %v4720 = vsel %vm769, %v4715, %v4719
      %v4722 = vshrl.u32 %v4649, 16
      %v4724 = vrot.slane %v4722, 4
      %v4725 = vshll.u32 %v4649, 16
      %v4727 = vrot.slane %v4725, 5
      %v4728 = vor.u32 %v4724, %v4727
      %v4729 = vrot.slane %v4728, 4
      %v4731 = vshll.u32 %v4650, 16
      %v4733 = vrot.slane %v4731, 5
      %v4734 = vsel %vm769, %v4729, %v4733
      %v4735 = vshrl.u32 %v4650, 16
      %v4737 = vrot.slane %v4735, 4
      %v4738 = vor.u32 %v4737, %v4733
      %v4739 = vrot.slane %v4738, 4
      %v4741 = vshll.u32 %v4651, 16
      %v4743 = vrot.slane %v4741, 5
      %v4744 = vsel %vm769, %v4739, %v4743
      %v4746 = vshrl.u32 %v4652, 16
      %v4748 = vrot.slane %v4746, 4
      %v4749 = vshll.u32 %v4652, 16
      %v4751 = vrot.slane %v4749, 5
      %v4752 = vor.u32 %v4748, %v4751
      %v4753 = vrot.slane %v4752, 4
      %v4755 = vshll.u32 %v4653, 16
      %v4757 = vrot.slane %v4755, 5
      %v4758 = vsel %vm769, %v4753, %v4757
      %v4759 = vshrl.u32 %v4653, 16
      %v4761 = vrot.slane %v4759, 4
      %v4762 = vor.u32 %v4761, %v4757
      %v4763 = vrot.slane %v4762, 4
      %v4765 = vshll.u32 %v4654, 16
      %v4767 = vrot.slane %v4765, 5
      %v4768 = vsel %vm769, %v4763, %v4767
      %v4770 = vshrl.u32 %v4655, 16
      %v4772 = vrot.slane %v4770, 4
      %v4773 = vshll.u32 %v4655, 16
      %v4775 = vrot.slane %v4773, 5
      %v4776 = vor.u32 %v4772, %v4775
      %v4777 = vrot.slane %v4776, 4
      %v4779 = vshll.u32 %v4656, 16
      %v4781 = vrot.slane %v4779, 5
      %v4782 = vsel %vm769, %v4777, %v4781
      %v4783 = vshrl.u32 %v4656, 16
      %v4785 = vrot.slane %v4783, 4
      %v4786 = vor.u32 %v4785, %v4781
      %v4787 = vrot.slane %v4786, 4
      %v4789 = vshll.u32 %v4657, 16
      %v4791 = vrot.slane %v4789, 5
      %v4792 = vsel %vm769, %v4787, %v4791
      %v4794 = vshrl.u32 %v4658, 16
      %v4796 = vrot.slane %v4794, 4
      %v4797 = vshll.u32 %v4658, 16
      %v4799 = vrot.slane %v4797, 5
      %v4800 = vor.u32 %v4796, %v4799
      %v4801 = vrot.slane %v4800, 4
      %v4803 = vshll.u32 %v4659, 16
      %v4805 = vrot.slane %v4803, 5
      %v4806 = vsel %vm769, %v4801, %v4805
      %v4807 = vshrl.u32 %v4659, 16
      %v4809 = vrot.slane %v4807, 4
      %v4810 = vor.u32 %v4809, %v4805
      %v4811 = vrot.slane %v4810, 4
      %v4813 = vshll.u32 %v4660, 16
      %v4815 = vrot.slane %v4813, 5
      %v4816 = vsel %vm769, %v4811, %v4815
      %v4818 = vshrl.u32 %v4661, 16
      %v4820 = vrot.slane %v4818, 4
      %v4821 = vshll.u32 %v4661, 16
      %v4823 = vrot.slane %v4821, 5
      %v4824 = vor.u32 %v4820, %v4823
      %v4825 = vrot.slane %v4824, 4
      %v4827 = vshll.u32 %v4662, 16
      %v4829 = vrot.slane %v4827, 5
      %v4830 = vsel %vm769, %v4825, %v4829
      %v4831 = vshrl.u32 %v4662, 16
      %v4833 = vrot.slane %v4831, 4
      %v4834 = vor.u32 %v4833, %v4829
      %v4835 = vrot.slane %v4834, 4
      %v4837 = vshll.u32 %v4663, 16
      %v4839 = vrot.slane %v4837, 5
      %v4840 = vsel %vm769, %v4835, %v4839
      %v4842 = vshrl.u32 %v4664, 16
      %v4844 = vrot.slane %v4842, 4
      %v4845 = vshll.u32 %v4664, 16
      %v4847 = vrot.slane %v4845, 5
      %v4848 = vor.u32 %v4844, %v4847
      %v4849 = vrot.slane %v4848, 4
      %v4851 = vshll.u32 %v4665, 16
      %v4853 = vrot.slane %v4851, 5
      %v4854 = vsel %vm769, %v4849, %v4853
      %v4855 = vshrl.u32 %v4665, 16
      %v4857 = vrot.slane %v4855, 4
      %v4858 = vor.u32 %v4857, %v4853
      %v4859 = vrot.slane %v4858, 4
      %v4861 = vshll.u32 %v4666, 16
      %v4863 = vrot.slane %v4861, 5
      %v4864 = vsel %vm769, %v4859, %v4863
      %v4866 = vshrl.u32 %v4667, 16
      %v4868 = vrot.slane %v4866, 4
      %v4869 = vshll.u32 %v4667, 16
      %v4871 = vrot.slane %v4869, 5
      %v4872 = vor.u32 %v4868, %v4871
      %v4873 = vrot.slane %v4872, 4
      %v4875 = vshll.u32 %v4668, 16
      %v4877 = vrot.slane %v4875, 5
      %v4878 = vsel %vm769, %v4873, %v4877
      %v4879 = vshrl.u32 %v4668, 16
      %v4881 = vrot.slane %v4879, 4
      %v4882 = vor.u32 %v4881, %v4877
      %v4883 = vrot.slane %v4882, 4
      %v4885 = vshll.u32 %v4669, 16
      %v4887 = vrot.slane %v4885, 5
      %v4888 = vsel %vm769, %v4883, %v4887
      %v4890 = vshrl.u32 %v4670, 16
      %v4892 = vrot.slane %v4890, 4
      %v4893 = vshll.u32 %v4670, 16
      %v4895 = vrot.slane %v4893, 5
      %v4896 = vor.u32 %v4892, %v4895
      %v4897 = vrot.slane %v4896, 4
      %v4899 = vshll.u32 %v4671, 16
      %v4901 = vrot.slane %v4899, 5
      %v4902 = vsel %vm769, %v4897, %v4901
      %v4903 = vshrl.u32 %v4671, 16
      %v4905 = vrot.slane %v4903, 4
      %v4906 = vor.u32 %v4905, %v4901
      %v4907 = vrot.slane %v4906, 4
      %v4909 = vshll.u32 %v4672, 16
      %v4911 = vrot.slane %v4909, 5
      %v4912 = vsel %vm769, %v4907, %v4911
      %s4913 = scalar_lea.vmem %s2, 448
      %v4914 = vld [vmem:[%s4913] sm:$0xf]
      %v4915 = vld [vmem:[%s4913 + $0x4] sm:$0xf]
      %v4916 = vld [vmem:[%s4913 + $0x8] sm:$0xf]
      %v4917 = vld [vmem:[%s4913 + $0xc] sm:$0xf]
      %v4918 = vld [vmem:[%s4913 + $0x10] sm:$0xf]
      %v4919 = vld [vmem:[%s4913 + $0x14] sm:$0xf]
      %v4920 = vld [vmem:[%s4913 + $0x18] sm:$0xf]
      %v4921 = vld [vmem:[%s4913 + $0x1c] sm:$0xf]
      %v4922 = vld [vmem:[%s4913 + $0x20] sm:$0xf]
      %v4923 = vld [vmem:[%s4913 + $0x24] sm:$0xf]
      %v4924 = vld [vmem:[%s4913 + $0x28] sm:$0xf]
      %v4925 = vld [vmem:[%s4913 + $0x2c] sm:$0xf]
      %v4926 = vld [vmem:[%s4913 + $0x30] sm:$0xf]
      %v4927 = vld [vmem:[%s4913 + $0x34] sm:$0xf]
      %v4928 = vld [vmem:[%s4913 + $0x38] sm:$0xf]
      %v4929 = vld [vmem:[%s4913 + $0x3c] sm:$0xf]
      %v4930 = vunpack.c.l.b16 %v4686
      %v4931 = vunpack.c.l.b16 %v4696
      %v4932 = vunpack.c.l.b16 %v4710
      %v4933 = vunpack.c.l.b16 %v4720
      %v4934 = vunpack.c.l.b16 %v4734
      %v4935 = vunpack.c.l.b16 %v4744
      %v4936 = vunpack.c.l.b16 %v4758
      %v4937 = vunpack.c.l.b16 %v4768
      %v4938 = vunpack.c.l.b16 %v4782
      %v4939 = vunpack.c.l.b16 %v4792
      %v4940 = vunpack.c.l.b16 %v4806
      %v4941 = vunpack.c.l.b16 %v4816
      %v4942 = vunpack.c.l.b16 %v4830
      %v4943 = vunpack.c.l.b16 %v4840
      %v4944 = vunpack.c.l.b16 %v4854
      %v4945 = vunpack.c.l.b16 %v4864
      %v4946 = vunpack.c.l.b16 %v4878
      %v4947 = vunpack.c.l.b16 %v4888
      %v4948 = vunpack.c.l.b16 %v4902
      %v4949 = vunpack.c.l.b16 %v4912
      %v4950 = vpack.c.b16 %v4931, %v4930
      %v4951 = vpack.c.b16 %v4933, %v4932
      %v4952 = vpack.c.b16 %v4935, %v4934
      %v4953 = vpack.c.b16 %v4937, %v4936
      %v4954 = vpack.c.b16 %v4939, %v4938
      %v4955 = vpack.c.b16 %v4941, %v4940
      %v4956 = vpack.c.b16 %v4943, %v4942
      %v4957 = vpack.c.b16 %v4945, %v4944
      %v4958 = vpack.c.b16 %v4947, %v4946
      %v4959 = vpack.c.b16 %v4949, %v4948
      %v4986 = vunpack.c.l.b16 %v4914
      %v4987 = vunpack.c.l.b16 %v4915
      %v4988 = vunpack.c.l.b16 %v4916
      %v4989 = vunpack.c.l.b16 %v4917
      %v4990 = vunpack.c.l.b16 %v4918
      %v4991 = vunpack.c.l.b16 %v4919
      %v4992 = vunpack.c.l.b16 %v4920
      %v4993 = vunpack.c.l.b16 %v4921
      %v4994 = vunpack.c.l.b16 %v4922
      %v4995 = vunpack.c.l.b16 %v4923
      %v4996 = vunpack.c.l.b16 %v4924
      %v4997 = vunpack.c.l.b16 %v4925
      %v4998 = vunpack.c.l.b16 %v4926
      %v4999 = vunpack.c.l.b16 %v4927
      %v5000 = vunpack.c.l.b16 %v4928
      %v5001 = vunpack.c.l.b16 %v4929
      %v5002 = vpack.c.b16 %v4987, %v4986
      %v5003 = vpack.c.b16 %v4989, %v4988
      %v5004 = vpack.c.b16 %v4991, %v4990
      %v5005 = vpack.c.b16 %v4993, %v4992
      %v5006 = vpack.c.b16 %v4995, %v4994
      %v5007 = vpack.c.b16 %v4997, %v4996
      %v5008 = vpack.c.b16 %v4999, %v4998
      %v5009 = vpack.c.b16 %v5001, %v5000
      %5018 = vmatpush.bf16.msra.mxu0 %v5009
      %5019 = vmatpush.bf16.msra.mxu0 %v5008
      %5020 = vmatpush.bf16.msra.mxu0 %v5007
      %5021 = vmatpush.bf16.msra.mxu0 %v5006
      %5022 = vmatpush.bf16.msra.mxu0 %v5005
      %5023 = vmatpush.bf16.msra.mxu0 %v5004
      %5024 = vmatpush.bf16.msra.mxu0 %v5003
      %5025 = vmatpush.bf16.msra.mxu0 %v5002
      %5026 = vmatmul.bf16.gmra.mxu0 %v4950
      %v5027 = vpop.f32.mrf.mxu0
      %v5028 = vadd.f32 0.0, %v5027
      %v5029 = vpop.f32.mrf.mxu0
      %v5030 = vadd.f32 0.0, %v5029
      %5031 = vmatmul.bf16.gmra.mxu0 %v4951
      %v5032 = vpop.f32.mrf.mxu0
      %v5033 = vadd.f32 0.0, %v5032
      %v5034 = vpop.f32.mrf.mxu0
      %v5035 = vadd.f32 0.0, %v5034
      %5036 = vmatmul.bf16.gmra.mxu0 %v4952
      %v5037 = vpop.f32.mrf.mxu0
      %v5038 = vadd.f32 0.0, %v5037
      %v5039 = vpop.f32.mrf.mxu0
      %v5040 = vadd.f32 0.0, %v5039
      %5041 = vmatmul.bf16.gmra.mxu0 %v4953
      %v5042 = vpop.f32.mrf.mxu0
      %v5043 = vadd.f32 0.0, %v5042
      %v5044 = vpop.f32.mrf.mxu0
      %v5045 = vadd.f32 0.0, %v5044
      %5046 = vmatmul.bf16.gmra.mxu0 %v4954
      %v5047 = vpop.f32.mrf.mxu0
      %v5048 = vadd.f32 0.0, %v5047
      %v5049 = vpop.f32.mrf.mxu0
      %v5050 = vadd.f32 0.0, %v5049
      %5051 = vmatmul.bf16.gmra.mxu0 %v4955
      %v5052 = vpop.f32.mrf.mxu0
      %v5053 = vadd.f32 0.0, %v5052
      %v5054 = vpop.f32.mrf.mxu0
      %v5055 = vadd.f32 0.0, %v5054
      %5056 = vmatmul.bf16.gmra.mxu0 %v4956
      %v5057 = vpop.f32.mrf.mxu0
      %v5058 = vadd.f32 0.0, %v5057
      %v5059 = vpop.f32.mrf.mxu0
      %v5060 = vadd.f32 0.0, %v5059
      %5061 = vmatmul.bf16.gmra.mxu0 %v4957
      %v5062 = vpop.f32.mrf.mxu0
      %v5063 = vadd.f32 0.0, %v5062
      %v5064 = vpop.f32.mrf.mxu0
      %v5065 = vadd.f32 0.0, %v5064
      %5066 = vmatmul.bf16.gmra.mxu0 %v4958
      %v5067 = vpop.f32.mrf.mxu0
      %v5068 = vadd.f32 0.0, %v5067
      %v5069 = vpop.f32.mrf.mxu0
      %v5070 = vadd.f32 0.0, %v5069
      %5071 = vmatmul.bf16.gmra.mxu0 %v4959
      %v5072 = vpop.f32.mrf.mxu0
      %v5073 = vadd.f32 0.0, %v5072
      %v5074 = vpop.f32.mrf.mxu0
      %v5075 = vadd.f32 0.0, %v5074
      %5076 = vdwg.mxu0
      %v5077 = vadd.f32 %v4623, %v5028
      %v5078 = vadd.f32 %v4624, %v5030
      %v5079 = vadd.f32 %v4625, %v5033
      %v5080 = vadd.f32 %v4626, %v5035
      %v5081 = vadd.f32 %v4627, %v5038
      %v5082 = vadd.f32 %v4628, %v5040
      %v5083 = vadd.f32 %v4629, %v5043
      %v5084 = vadd.f32 %v4630, %v5045
      %v5085 = vadd.f32 %v4631, %v5048
      %v5086 = vadd.f32 %v4632, %v5050
      %v5087 = vadd.f32 %v4633, %v5053
      %v5088 = vadd.f32 %v4634, %v5055
      %v5089 = vadd.f32 %v4635, %v5058
      %v5090 = vadd.f32 %v4636, %v5060
      %v5091 = vadd.f32 %v4637, %v5063
      %v5092 = vadd.f32 %v4638, %v5065
      %v5093 = vadd.f32 %v4639, %v5068
      %v5094 = vadd.f32 %v4640, %v5070
      %v5095 = vadd.f32 %v4641, %v5073
      %v5096 = vadd.f32 %v4642, %v5075
      %v5097 = vld [vmem:[%s4418] sm:$0xf]
      %v5098 = vld [vmem:[%s4418 + $0x4] sm:$0xf]
      %v5099 = vld [vmem:[%s4418 + $0x8] sm:$0x1]
      %v5100 = vld [vmem:[%s4418 + $0xc] sm:$0xf]
      %v5101 = vld [vmem:[%s4418 + $0x10] sm:$0xf]
      %v5102 = vld [vmem:[%s4418 + $0x14] sm:$0x1]
      %v5103 = vld [vmem:[%s4418 + $0x18] sm:$0xf]
      %v5104 = vld [vmem:[%s4418 + $0x1c] sm:$0xf]
      %v5105 = vld [vmem:[%s4418 + $0x20] sm:$0x1]
      %v5106 = vld [vmem:[%s4418 + $0x24] sm:$0xf]
      %v5107 = vld [vmem:[%s4418 + $0x28] sm:$0xf]
      %v5108 = vld [vmem:[%s4418 + $0x2c] sm:$0x1]
      %v5109 = vld [vmem:[%s4418 + $0x30] sm:$0xf]
      %v5110 = vld [vmem:[%s4418 + $0x34] sm:$0xf]
      %v5111 = vld [vmem:[%s4418 + $0x38] sm:$0x1]
      %v5112 = vld [vmem:[%s4418 + $0x3c] sm:$0xf]
      %v5113 = vld [vmem:[%s4418 + $0x40] sm:$0xf]
      %v5114 = vld [vmem:[%s4418 + $0x44] sm:$0x1]
      %v5115 = vld [vmem:[%s4418 + $0x48] sm:$0xf]
      %v5116 = vld [vmem:[%s4418 + $0x4c] sm:$0xf]
      %v5117 = vld [vmem:[%s4418 + $0x50] sm:$0x1]
      %v5118 = vld [vmem:[%s4418 + $0x54] sm:$0xf]
      %v5119 = vld [vmem:[%s4418 + $0x58] sm:$0xf]
      %v5120 = vld [vmem:[%s4418 + $0x5c] sm:$0x1]
      %v5121 = vld [vmem:[%s4418 + $0x60] sm:$0xf]
      %v5122 = vld [vmem:[%s4418 + $0x64] sm:$0xf]
      %v5123 = vld [vmem:[%s4418 + $0x68] sm:$0x1]
      %v5124 = vld [vmem:[%s4418 + $0x6c] sm:$0xf]
      %v5125 = vld [vmem:[%s4418 + $0x70] sm:$0xf]
      %v5126 = vld [vmem:[%s4418 + $0x74] sm:$0x1]
      %v5128 = vshrl.u32 %v5097, 16
      %v5130 = vrot.slane %v5128, 4
      %v5131 = vshll.u32 %v5097, 16
      %v5133 = vrot.slane %v5131, 5
      %v5134 = vor.u32 %v5130, %v5133
      %v5135 = vrot.slane %v5134, 4
      %v5137 = vshll.u32 %v5098, 16
      %v5139 = vrot.slane %v5137, 5
      %v5140 = vsel %vm769, %v5135, %v5139
      %v5141 = vshrl.u32 %v5098, 16
      %v5143 = vrot.slane %v5141, 4
      %v5144 = vor.u32 %v5143, %v5139
      %v5145 = vrot.slane %v5144, 4
      %v5147 = vshll.u32 %v5099, 16
      %v5149 = vrot.slane %v5147, 5
      %v5150 = vsel %vm769, %v5145, %v5149
      %v5152 = vshrl.u32 %v5100, 16
      %v5154 = vrot.slane %v5152, 4
      %v5155 = vshll.u32 %v5100, 16
      %v5157 = vrot.slane %v5155, 5
      %v5158 = vor.u32 %v5154, %v5157
      %v5159 = vrot.slane %v5158, 4
      %v5161 = vshll.u32 %v5101, 16
      %v5163 = vrot.slane %v5161, 5
      %v5164 = vsel %vm769, %v5159, %v5163
      %v5165 = vshrl.u32 %v5101, 16
      %v5167 = vrot.slane %v5165, 4
      %v5168 = vor.u32 %v5167, %v5163
      %v5169 = vrot.slane %v5168, 4
      %v5171 = vshll.u32 %v5102, 16
      %v5173 = vrot.slane %v5171, 5
      %v5174 = vsel %vm769, %v5169, %v5173
      %v5176 = vshrl.u32 %v5103, 16
      %v5178 = vrot.slane %v5176, 4
      %v5179 = vshll.u32 %v5103, 16
      %v5181 = vrot.slane %v5179, 5
      %v5182 = vor.u32 %v5178, %v5181
      %v5183 = vrot.slane %v5182, 4
      %v5185 = vshll.u32 %v5104, 16
      %v5187 = vrot.slane %v5185, 5
      %v5188 = vsel %vm769, %v5183, %v5187
      %v5189 = vshrl.u32 %v5104, 16
      %v5191 = vrot.slane %v5189, 4
      %v5192 = vor.u32 %v5191, %v5187
      %v5193 = vrot.slane %v5192, 4
      %v5195 = vshll.u32 %v5105, 16
      %v5197 = vrot.slane %v5195, 5
      %v5198 = vsel %vm769, %v5193, %v5197
      %v5200 = vshrl.u32 %v5106, 16
      %v5202 = vrot.slane %v5200, 4
      %v5203 = vshll.u32 %v5106, 16
      %v5205 = vrot.slane %v5203, 5
      %v5206 = vor.u32 %v5202, %v5205
      %v5207 = vrot.slane %v5206, 4
      %v5209 = vshll.u32 %v5107, 16
      %v5211 = vrot.slane %v5209, 5
      %v5212 = vsel %vm769, %v5207, %v5211
      %v5213 = vshrl.u32 %v5107, 16
      %v5215 = vrot.slane %v5213, 4
      %v5216 = vor.u32 %v5215, %v5211
      %v5217 = vrot.slane %v5216, 4
      %v5219 = vshll.u32 %v5108, 16
      %v5221 = vrot.slane %v5219, 5
      %v5222 = vsel %vm769, %v5217, %v5221
      %v5224 = vshrl.u32 %v5109, 16
      %v5226 = vrot.slane %v5224, 4
      %v5227 = vshll.u32 %v5109, 16
      %v5229 = vrot.slane %v5227, 5
      %v5230 = vor.u32 %v5226, %v5229
      %v5231 = vrot.slane %v5230, 4
      %v5233 = vshll.u32 %v5110, 16
      %v5235 = vrot.slane %v5233, 5
      %v5236 = vsel %vm769, %v5231, %v5235
      %v5237 = vshrl.u32 %v5110, 16
      %v5239 = vrot.slane %v5237, 4
      %v5240 = vor.u32 %v5239, %v5235
      %v5241 = vrot.slane %v5240, 4
      %v5243 = vshll.u32 %v5111, 16
      %v5245 = vrot.slane %v5243, 5
      %v5246 = vsel %vm769, %v5241, %v5245
      %v5248 = vshrl.u32 %v5112, 16
      %v5250 = vrot.slane %v5248, 4
      %v5251 = vshll.u32 %v5112, 16
      %v5253 = vrot.slane %v5251, 5
      %v5254 = vor.u32 %v5250, %v5253
      %v5255 = vrot.slane %v5254, 4
      %v5257 = vshll.u32 %v5113, 16
      %v5259 = vrot.slane %v5257, 5
      %v5260 = vsel %vm769, %v5255, %v5259
      %v5261 = vshrl.u32 %v5113, 16
      %v5263 = vrot.slane %v5261, 4
      %v5264 = vor.u32 %v5263, %v5259
      %v5265 = vrot.slane %v5264, 4
      %v5267 = vshll.u32 %v5114, 16
      %v5269 = vrot.slane %v5267, 5
      %v5270 = vsel %vm769, %v5265, %v5269
      %v5272 = vshrl.u32 %v5115, 16
      %v5274 = vrot.slane %v5272, 4
      %v5275 = vshll.u32 %v5115, 16
      %v5277 = vrot.slane %v5275, 5
      %v5278 = vor.u32 %v5274, %v5277
      %v5279 = vrot.slane %v5278, 4
      %v5281 = vshll.u32 %v5116, 16
      %v5283 = vrot.slane %v5281, 5
      %v5284 = vsel %vm769, %v5279, %v5283
      %v5285 = vshrl.u32 %v5116, 16
      %v5287 = vrot.slane %v5285, 4
      %v5288 = vor.u32 %v5287, %v5283
      %v5289 = vrot.slane %v5288, 4
      %v5291 = vshll.u32 %v5117, 16
      %v5293 = vrot.slane %v5291, 5
      %v5294 = vsel %vm769, %v5289, %v5293
      %v5296 = vshrl.u32 %v5118, 16
      %v5298 = vrot.slane %v5296, 4
      %v5299 = vshll.u32 %v5118, 16
      %v5301 = vrot.slane %v5299, 5
      %v5302 = vor.u32 %v5298, %v5301
      %v5303 = vrot.slane %v5302, 4
      %v5305 = vshll.u32 %v5119, 16
      %v5307 = vrot.slane %v5305, 5
      %v5308 = vsel %vm769, %v5303, %v5307
      %v5309 = vshrl.u32 %v5119, 16
      %v5311 = vrot.slane %v5309, 4
      %v5312 = vor.u32 %v5311, %v5307
      %v5313 = vrot.slane %v5312, 4
      %v5315 = vshll.u32 %v5120, 16
      %v5317 = vrot.slane %v5315, 5
      %v5318 = vsel %vm769, %v5313, %v5317
      %v5320 = vshrl.u32 %v5121, 16
      %v5322 = vrot.slane %v5320, 4
      %v5323 = vshll.u32 %v5121, 16
      %v5325 = vrot.slane %v5323, 5
      %v5326 = vor.u32 %v5322, %v5325
      %v5327 = vrot.slane %v5326, 4
      %v5329 = vshll.u32 %v5122, 16
      %v5331 = vrot.slane %v5329, 5
      %v5332 = vsel %vm769, %v5327, %v5331
      %v5333 = vshrl.u32 %v5122, 16
      %v5335 = vrot.slane %v5333, 4
      %v5336 = vor.u32 %v5335, %v5331
      %v5337 = vrot.slane %v5336, 4
      %v5339 = vshll.u32 %v5123, 16
      %v5341 = vrot.slane %v5339, 5
      %v5342 = vsel %vm769, %v5337, %v5341
      %v5344 = vshrl.u32 %v5124, 16
      %v5346 = vrot.slane %v5344, 4
      %v5347 = vshll.u32 %v5124, 16
      %v5349 = vrot.slane %v5347, 5
      %v5350 = vor.u32 %v5346, %v5349
      %v5351 = vrot.slane %v5350, 4
      %v5353 = vshll.u32 %v5125, 16
      %v5355 = vrot.slane %v5353, 5
      %v5356 = vsel %vm769, %v5351, %v5355
      %v5357 = vshrl.u32 %v5125, 16
      %v5359 = vrot.slane %v5357, 4
      %v5360 = vor.u32 %v5359, %v5355
      %v5361 = vrot.slane %v5360, 4
      %v5363 = vshll.u32 %v5126, 16
      %v5365 = vrot.slane %v5363, 5
      %v5366 = vsel %vm769, %v5361, %v5365
      %s5367 = scalar_lea.vmem %s3, 448
      %v5368 = vld [vmem:[%s5367] sm:$0xf]
      %v5369 = vld [vmem:[%s5367 + $0x4] sm:$0xf]
      %v5370 = vld [vmem:[%s5367 + $0x8] sm:$0xf]
      %v5371 = vld [vmem:[%s5367 + $0xc] sm:$0xf]
      %v5372 = vld [vmem:[%s5367 + $0x10] sm:$0xf]
      %v5373 = vld [vmem:[%s5367 + $0x14] sm:$0xf]
      %v5374 = vld [vmem:[%s5367 + $0x18] sm:$0xf]
      %v5375 = vld [vmem:[%s5367 + $0x1c] sm:$0xf]
      %v5376 = vld [vmem:[%s5367 + $0x20] sm:$0xf]
      %v5377 = vld [vmem:[%s5367 + $0x24] sm:$0xf]
      %v5378 = vld [vmem:[%s5367 + $0x28] sm:$0xf]
      %v5379 = vld [vmem:[%s5367 + $0x2c] sm:$0xf]
      %v5380 = vld [vmem:[%s5367 + $0x30] sm:$0xf]
      %v5381 = vld [vmem:[%s5367 + $0x34] sm:$0xf]
      %v5382 = vld [vmem:[%s5367 + $0x38] sm:$0xf]
      %v5383 = vld [vmem:[%s5367 + $0x3c] sm:$0xf]
      %v5384 = vunpack.c.l.b16 %v5140
      %v5385 = vunpack.c.l.b16 %v5150
      %v5386 = vunpack.c.l.b16 %v5164
      %v5387 = vunpack.c.l.b16 %v5174
      %v5388 = vunpack.c.l.b16 %v5188
      %v5389 = vunpack.c.l.b16 %v5198
      %v5390 = vunpack.c.l.b16 %v5212
      %v5391 = vunpack.c.l.b16 %v5222
      %v5392 = vunpack.c.l.b16 %v5236
      %v5393 = vunpack.c.l.b16 %v5246
      %v5394 = vunpack.c.l.b16 %v5260
      %v5395 = vunpack.c.l.b16 %v5270
      %v5396 = vunpack.c.l.b16 %v5284
      %v5397 = vunpack.c.l.b16 %v5294
      %v5398 = vunpack.c.l.b16 %v5308
      %v5399 = vunpack.c.l.b16 %v5318
      %v5400 = vunpack.c.l.b16 %v5332
      %v5401 = vunpack.c.l.b16 %v5342
      %v5402 = vunpack.c.l.b16 %v5356
      %v5403 = vunpack.c.l.b16 %v5366
      %v5404 = vpack.c.b16 %v5385, %v5384
      %v5405 = vpack.c.b16 %v5387, %v5386
      %v5406 = vpack.c.b16 %v5389, %v5388
      %v5407 = vpack.c.b16 %v5391, %v5390
      %v5408 = vpack.c.b16 %v5393, %v5392
      %v5409 = vpack.c.b16 %v5395, %v5394
      %v5410 = vpack.c.b16 %v5397, %v5396
      %v5411 = vpack.c.b16 %v5399, %v5398
      %v5412 = vpack.c.b16 %v5401, %v5400
      %v5413 = vpack.c.b16 %v5403, %v5402
      %v5440 = vunpack.c.l.b16 %v5368
      %v5441 = vunpack.c.l.b16 %v5369
      %v5442 = vunpack.c.l.b16 %v5370
      %v5443 = vunpack.c.l.b16 %v5371
      %v5444 = vunpack.c.l.b16 %v5372
      %v5445 = vunpack.c.l.b16 %v5373
      %v5446 = vunpack.c.l.b16 %v5374
      %v5447 = vunpack.c.l.b16 %v5375
      %v5448 = vunpack.c.l.b16 %v5376
      %v5449 = vunpack.c.l.b16 %v5377
      %v5450 = vunpack.c.l.b16 %v5378
      %v5451 = vunpack.c.l.b16 %v5379
      %v5452 = vunpack.c.l.b16 %v5380
      %v5453 = vunpack.c.l.b16 %v5381
      %v5454 = vunpack.c.l.b16 %v5382
      %v5455 = vunpack.c.l.b16 %v5383
      %v5456 = vpack.c.b16 %v5441, %v5440
      %v5457 = vpack.c.b16 %v5443, %v5442
      %v5458 = vpack.c.b16 %v5445, %v5444
      %v5459 = vpack.c.b16 %v5447, %v5446
      %v5460 = vpack.c.b16 %v5449, %v5448
      %v5461 = vpack.c.b16 %v5451, %v5450
      %v5462 = vpack.c.b16 %v5453, %v5452
      %v5463 = vpack.c.b16 %v5455, %v5454
      %5472 = vmatpush.bf16.msra.mxu0 %v5463
      %5473 = vmatpush.bf16.msra.mxu0 %v5462
      %5474 = vmatpush.bf16.msra.mxu0 %v5461
      %5475 = vmatpush.bf16.msra.mxu0 %v5460
      %5476 = vmatpush.bf16.msra.mxu0 %v5459
      %5477 = vmatpush.bf16.msra.mxu0 %v5458
      %5478 = vmatpush.bf16.msra.mxu0 %v5457
      %5479 = vmatpush.bf16.msra.mxu0 %v5456
      %5480 = vmatmul.bf16.gmra.mxu0 %v5404
      %v5481 = vpop.f32.mrf.mxu0
      %v5482 = vadd.f32 0.0, %v5481
      %v5483 = vpop.f32.mrf.mxu0
      %v5484 = vadd.f32 0.0, %v5483
      %5485 = vmatmul.bf16.gmra.mxu0 %v5405
      %v5486 = vpop.f32.mrf.mxu0
      %v5487 = vadd.f32 0.0, %v5486
      %v5488 = vpop.f32.mrf.mxu0
      %v5489 = vadd.f32 0.0, %v5488
      %5490 = vmatmul.bf16.gmra.mxu0 %v5406
      %v5491 = vpop.f32.mrf.mxu0
      %v5492 = vadd.f32 0.0, %v5491
      %v5493 = vpop.f32.mrf.mxu0
      %v5494 = vadd.f32 0.0, %v5493
      %5495 = vmatmul.bf16.gmra.mxu0 %v5407
      %v5496 = vpop.f32.mrf.mxu0
      %v5497 = vadd.f32 0.0, %v5496
      %v5498 = vpop.f32.mrf.mxu0
      %v5499 = vadd.f32 0.0, %v5498
      %5500 = vmatmul.bf16.gmra.mxu0 %v5408
      %v5501 = vpop.f32.mrf.mxu0
      %v5502 = vadd.f32 0.0, %v5501
      %v5503 = vpop.f32.mrf.mxu0
      %v5504 = vadd.f32 0.0, %v5503
      %5505 = vmatmul.bf16.gmra.mxu0 %v5409
      %v5506 = vpop.f32.mrf.mxu0
      %v5507 = vadd.f32 0.0, %v5506
      %v5508 = vpop.f32.mrf.mxu0
      %v5509 = vadd.f32 0.0, %v5508
      %5510 = vmatmul.bf16.gmra.mxu0 %v5410
      %v5511 = vpop.f32.mrf.mxu0
      %v5512 = vadd.f32 0.0, %v5511
      %v5513 = vpop.f32.mrf.mxu0
      %v5514 = vadd.f32 0.0, %v5513
      %5515 = vmatmul.bf16.gmra.mxu0 %v5411
      %v5516 = vpop.f32.mrf.mxu0
      %v5517 = vadd.f32 0.0, %v5516
      %v5518 = vpop.f32.mrf.mxu0
      %v5519 = vadd.f32 0.0, %v5518
      %5520 = vmatmul.bf16.gmra.mxu0 %v5412
      %v5521 = vpop.f32.mrf.mxu0
      %v5522 = vadd.f32 0.0, %v5521
      %v5523 = vpop.f32.mrf.mxu0
      %v5524 = vadd.f32 0.0, %v5523
      %5525 = vmatmul.bf16.gmra.mxu0 %v5413
      %v5526 = vpop.f32.mrf.mxu0
      %v5527 = vadd.f32 0.0, %v5526
      %v5528 = vpop.f32.mrf.mxu0
      %v5529 = vadd.f32 0.0, %v5528
      %5530 = vdwg.mxu0
      %v5531 = vadd.f32 %v5077, %v5482
      %v5532 = vadd.f32 %v5078, %v5484
      %v5533 = vadd.f32 %v5079, %v5487
      %v5534 = vadd.f32 %v5080, %v5489
      %v5535 = vadd.f32 %v5081, %v5492
      %v5536 = vadd.f32 %v5082, %v5494
      %v5537 = vadd.f32 %v5083, %v5497
      %v5538 = vadd.f32 %v5084, %v5499
      %v5539 = vadd.f32 %v5085, %v5502
      %v5540 = vadd.f32 %v5086, %v5504
      %v5541 = vadd.f32 %v5087, %v5507
      %v5542 = vadd.f32 %v5088, %v5509
      %v5543 = vadd.f32 %v5089, %v5512
      %v5544 = vadd.f32 %v5090, %v5514
      %v5545 = vadd.f32 %v5091, %v5517
      %v5546 = vadd.f32 %v5092, %v5519
      %v5547 = vadd.f32 %v5093, %v5522
      %v5548 = vadd.f32 %v5094, %v5524
      %v5549 = vadd.f32 %v5095, %v5527
      %v5550 = vadd.f32 %v5096, %v5529
      %v5551 = vld [vmem:[%s4192] sm:$0xe]
      %v5552 = vld [vmem:[%s4192 + $0xc] sm:$0xe]
      %v5553 = vld [vmem:[%s4192 + $0x18] sm:$0xe]
      %v5554 = vld [vmem:[%s4192 + $0x24] sm:$0xe]
      %v5555 = vld [vmem:[%s4192 + $0x30] sm:$0xe]
      %v5556 = vld [vmem:[%s4192 + $0x3c] sm:$0xe]
      %v5557 = vld [vmem:[%s4192 + $0x48] sm:$0xe]
      %v5558 = vld [vmem:[%s4192 + $0x54] sm:$0xe]
      %v5559 = vld [vmem:[%s4192 + $0x60] sm:$0xe]
      %v5560 = vld [vmem:[%s4192 + $0x6c] sm:$0xe]
      %v5591 = vrot.slane %v5551, 5
      %v5592 = vrot.slane %v5591, 4
      %v5593 = vrot.slane %v4644, 5
      %v5594 = vsel %vm1690, %v5592, %v5593
      %v5595 = vrot.slane %v5593, 4
      %v5596 = vrot.slane %v4645, 5
      %v5597 = vsel %vm1690, %v5595, %v5596
      %v5598 = vrot.slane %v5552, 5
      %v5599 = vrot.slane %v5598, 4
      %v5600 = vrot.slane %v4647, 5
      %v5601 = vsel %vm1690, %v5599, %v5600
      %v5602 = vrot.slane %v5600, 4
      %v5603 = vrot.slane %v4648, 5
      %v5604 = vsel %vm1690, %v5602, %v5603
      %v5605 = vrot.slane %v5553, 5
      %v5606 = vrot.slane %v5605, 4
      %v5607 = vrot.slane %v4650, 5
      %v5608 = vsel %vm1690, %v5606, %v5607
      %v5609 = vrot.slane %v5607, 4
      %v5610 = vrot.slane %v4651, 5
      %v5611 = vsel %vm1690, %v5609, %v5610
      %v5612 = vrot.slane %v5554, 5
      %v5613 = vrot.slane %v5612, 4
      %v5614 = vrot.slane %v4653, 5
      %v5615 = vsel %vm1690, %v5613, %v5614
      %v5616 = vrot.slane %v5614, 4
      %v5617 = vrot.slane %v4654, 5
      %v5618 = vsel %vm1690, %v5616, %v5617
      %v5619 = vrot.slane %v5555, 5
      %v5620 = vrot.slane %v5619, 4
      %v5621 = vrot.slane %v4656, 5
      %v5622 = vsel %vm1690, %v5620, %v5621
      %v5623 = vrot.slane %v5621, 4
      %v5624 = vrot.slane %v4657, 5
      %v5625 = vsel %vm1690, %v5623, %v5624
      %v5626 = vrot.slane %v5556, 5
      %v5627 = vrot.slane %v5626, 4
      %v5628 = vrot.slane %v4659, 5
      %v5629 = vsel %vm1690, %v5627, %v5628
      %v5630 = vrot.slane %v5628, 4
      %v5631 = vrot.slane %v4660, 5
      %v5632 = vsel %vm1690, %v5630, %v5631
      %v5633 = vrot.slane %v5557, 5
      %v5634 = vrot.slane %v5633, 4
      %v5635 = vrot.slane %v4662, 5
      %v5636 = vsel %vm1690, %v5634, %v5635
      %v5637 = vrot.slane %v5635, 4
      %v5638 = vrot.slane %v4663, 5
      %v5639 = vsel %vm1690, %v5637, %v5638
      %v5640 = vrot.slane %v5558, 5
      %v5641 = vrot.slane %v5640, 4
      %v5642 = vrot.slane %v4665, 5
      %v5643 = vsel %vm1690, %v5641, %v5642
      %v5644 = vrot.slane %v5642, 4
      %v5645 = vrot.slane %v4666, 5
      %v5646 = vsel %vm1690, %v5644, %v5645
      %v5647 = vrot.slane %v5559, 5
      %v5648 = vrot.slane %v5647, 4
      %v5649 = vrot.slane %v4668, 5
      %v5650 = vsel %vm1690, %v5648, %v5649
      %v5651 = vrot.slane %v5649, 4
      %v5652 = vrot.slane %v4669, 5
      %v5653 = vsel %vm1690, %v5651, %v5652
      %v5654 = vrot.slane %v5560, 5
      %v5655 = vrot.slane %v5654, 4
      %v5656 = vrot.slane %v4671, 5
      %v5657 = vsel %vm1690, %v5655, %v5656
      %v5658 = vrot.slane %v5656, 4
      %v5659 = vrot.slane %v4672, 5
      %v5660 = vsel %vm1690, %v5658, %v5659
      %s5661 = scalar_lea.vmem %s2, 512
      %v5662 = vld [vmem:[%s5661] sm:$0xf]
      %v5663 = vld [vmem:[%s5661 + $0x4] sm:$0xf]
      %v5664 = vld [vmem:[%s5661 + $0x8] sm:$0xf]
      %v5665 = vld [vmem:[%s5661 + $0xc] sm:$0xf]
      %v5666 = vld [vmem:[%s5661 + $0x10] sm:$0xf]
      %v5667 = vld [vmem:[%s5661 + $0x14] sm:$0xf]
      %v5668 = vld [vmem:[%s5661 + $0x18] sm:$0xf]
      %v5669 = vld [vmem:[%s5661 + $0x1c] sm:$0xf]
      %v5670 = vld [vmem:[%s5661 + $0x20] sm:$0xf]
      %v5671 = vld [vmem:[%s5661 + $0x24] sm:$0xf]
      %v5672 = vld [vmem:[%s5661 + $0x28] sm:$0xf]
      %v5673 = vld [vmem:[%s5661 + $0x2c] sm:$0xf]
      %v5674 = vld [vmem:[%s5661 + $0x30] sm:$0xf]
      %v5675 = vld [vmem:[%s5661 + $0x34] sm:$0xf]
      %v5676 = vld [vmem:[%s5661 + $0x38] sm:$0xf]
      %v5677 = vld [vmem:[%s5661 + $0x3c] sm:$0xf]
      %v5678 = vunpack.c.l.b16 %v5594
      %v5679 = vunpack.c.l.b16 %v5597
      %v5680 = vunpack.c.l.b16 %v5601
      %v5681 = vunpack.c.l.b16 %v5604
      %v5682 = vunpack.c.l.b16 %v5608
      %v5683 = vunpack.c.l.b16 %v5611
      %v5684 = vunpack.c.l.b16 %v5615
      %v5685 = vunpack.c.l.b16 %v5618
      %v5686 = vunpack.c.l.b16 %v5622
      %v5687 = vunpack.c.l.b16 %v5625
      %v5688 = vunpack.c.l.b16 %v5629
      %v5689 = vunpack.c.l.b16 %v5632
      %v5690 = vunpack.c.l.b16 %v5636
      %v5691 = vunpack.c.l.b16 %v5639
      %v5692 = vunpack.c.l.b16 %v5643
      %v5693 = vunpack.c.l.b16 %v5646
      %v5694 = vunpack.c.l.b16 %v5650
      %v5695 = vunpack.c.l.b16 %v5653
      %v5696 = vunpack.c.l.b16 %v5657
      %v5697 = vunpack.c.l.b16 %v5660
      %v5698 = vpack.c.b16 %v5679, %v5678
      %v5699 = vpack.c.b16 %v5681, %v5680
      %v5700 = vpack.c.b16 %v5683, %v5682
      %v5701 = vpack.c.b16 %v5685, %v5684
      %v5702 = vpack.c.b16 %v5687, %v5686
      %v5703 = vpack.c.b16 %v5689, %v5688
      %v5704 = vpack.c.b16 %v5691, %v5690
      %v5705 = vpack.c.b16 %v5693, %v5692
      %v5706 = vpack.c.b16 %v5695, %v5694
      %v5707 = vpack.c.b16 %v5697, %v5696
      %v5734 = vunpack.c.l.b16 %v5662
      %v5735 = vunpack.c.l.b16 %v5663
      %v5736 = vunpack.c.l.b16 %v5664
      %v5737 = vunpack.c.l.b16 %v5665
      %v5738 = vunpack.c.l.b16 %v5666
      %v5739 = vunpack.c.l.b16 %v5667
      %v5740 = vunpack.c.l.b16 %v5668
      %v5741 = vunpack.c.l.b16 %v5669
      %v5742 = vunpack.c.l.b16 %v5670
      %v5743 = vunpack.c.l.b16 %v5671
      %v5744 = vunpack.c.l.b16 %v5672
      %v5745 = vunpack.c.l.b16 %v5673
      %v5746 = vunpack.c.l.b16 %v5674
      %v5747 = vunpack.c.l.b16 %v5675
      %v5748 = vunpack.c.l.b16 %v5676
      %v5749 = vunpack.c.l.b16 %v5677
      %v5750 = vpack.c.b16 %v5735, %v5734
      %v5751 = vpack.c.b16 %v5737, %v5736
      %v5752 = vpack.c.b16 %v5739, %v5738
      %v5753 = vpack.c.b16 %v5741, %v5740
      %v5754 = vpack.c.b16 %v5743, %v5742
      %v5755 = vpack.c.b16 %v5745, %v5744
      %v5756 = vpack.c.b16 %v5747, %v5746
      %v5757 = vpack.c.b16 %v5749, %v5748
      %5766 = vmatpush.bf16.msra.mxu0 %v5757
      %5767 = vmatpush.bf16.msra.mxu0 %v5756
      %5768 = vmatpush.bf16.msra.mxu0 %v5755
      %5769 = vmatpush.bf16.msra.mxu0 %v5754
      %5770 = vmatpush.bf16.msra.mxu0 %v5753
      %5771 = vmatpush.bf16.msra.mxu0 %v5752
      %5772 = vmatpush.bf16.msra.mxu0 %v5751
      %5773 = vmatpush.bf16.msra.mxu0 %v5750
      %5774 = vmatmul.bf16.gmra.mxu0 %v5698
      %v5775 = vpop.f32.mrf.mxu0
      %v5776 = vadd.f32 0.0, %v5775
      %v5777 = vpop.f32.mrf.mxu0
      %v5778 = vadd.f32 0.0, %v5777
      %5779 = vmatmul.bf16.gmra.mxu0 %v5699
      %v5780 = vpop.f32.mrf.mxu0
      %v5781 = vadd.f32 0.0, %v5780
      %v5782 = vpop.f32.mrf.mxu0
      %v5783 = vadd.f32 0.0, %v5782
      %5784 = vmatmul.bf16.gmra.mxu0 %v5700
      %v5785 = vpop.f32.mrf.mxu0
      %v5786 = vadd.f32 0.0, %v5785
      %v5787 = vpop.f32.mrf.mxu0
      %v5788 = vadd.f32 0.0, %v5787
      %5789 = vmatmul.bf16.gmra.mxu0 %v5701
      %v5790 = vpop.f32.mrf.mxu0
      %v5791 = vadd.f32 0.0, %v5790
      %v5792 = vpop.f32.mrf.mxu0
      %v5793 = vadd.f32 0.0, %v5792
      %5794 = vmatmul.bf16.gmra.mxu0 %v5702
      %v5795 = vpop.f32.mrf.mxu0
      %v5796 = vadd.f32 0.0, %v5795
      %v5797 = vpop.f32.mrf.mxu0
      %v5798 = vadd.f32 0.0, %v5797
      %5799 = vmatmul.bf16.gmra.mxu0 %v5703
      %v5800 = vpop.f32.mrf.mxu0
      %v5801 = vadd.f32 0.0, %v5800
      %v5802 = vpop.f32.mrf.mxu0
      %v5803 = vadd.f32 0.0, %v5802
      %5804 = vmatmul.bf16.gmra.mxu0 %v5704
      %v5805 = vpop.f32.mrf.mxu0
      %v5806 = vadd.f32 0.0, %v5805
      %v5807 = vpop.f32.mrf.mxu0
      %v5808 = vadd.f32 0.0, %v5807
      %5809 = vmatmul.bf16.gmra.mxu0 %v5705
      %v5810 = vpop.f32.mrf.mxu0
      %v5811 = vadd.f32 0.0, %v5810
      %v5812 = vpop.f32.mrf.mxu0
      %v5813 = vadd.f32 0.0, %v5812
      %5814 = vmatmul.bf16.gmra.mxu0 %v5706
      %v5815 = vpop.f32.mrf.mxu0
      %v5816 = vadd.f32 0.0, %v5815
      %v5817 = vpop.f32.mrf.mxu0
      %v5818 = vadd.f32 0.0, %v5817
      %5819 = vmatmul.bf16.gmra.mxu0 %v5707
      %v5820 = vpop.f32.mrf.mxu0
      %v5821 = vadd.f32 0.0, %v5820
      %v5822 = vpop.f32.mrf.mxu0
      %v5823 = vadd.f32 0.0, %v5822
      %5824 = vdwg.mxu0
      %v5825 = vadd.f32 %v5531, %v5776
      %v5826 = vadd.f32 %v5532, %v5778
      %v5827 = vadd.f32 %v5533, %v5781
      %v5828 = vadd.f32 %v5534, %v5783
      %v5829 = vadd.f32 %v5535, %v5786
      %v5830 = vadd.f32 %v5536, %v5788
      %v5831 = vadd.f32 %v5537, %v5791
      %v5832 = vadd.f32 %v5538, %v5793
      %v5833 = vadd.f32 %v5539, %v5796
      %v5834 = vadd.f32 %v5540, %v5798
      %v5835 = vadd.f32 %v5541, %v5801
      %v5836 = vadd.f32 %v5542, %v5803
      %v5837 = vadd.f32 %v5543, %v5806
      %v5838 = vadd.f32 %v5544, %v5808
      %v5839 = vadd.f32 %v5545, %v5811
      %v5840 = vadd.f32 %v5546, %v5813
      %v5841 = vadd.f32 %v5547, %v5816
      %v5842 = vadd.f32 %v5548, %v5818
      %v5843 = vadd.f32 %v5549, %v5821
      %v5844 = vadd.f32 %v5550, %v5823
      %v5845 = vld [vmem:[%s4418] sm:$0xe]
      %v5846 = vld [vmem:[%s4418 + $0xc] sm:$0xe]
      %v5847 = vld [vmem:[%s4418 + $0x18] sm:$0xe]
      %v5848 = vld [vmem:[%s4418 + $0x24] sm:$0xe]
      %v5849 = vld [vmem:[%s4418 + $0x30] sm:$0xe]
      %v5850 = vld [vmem:[%s4418 + $0x3c] sm:$0xe]
      %v5851 = vld [vmem:[%s4418 + $0x48] sm:$0xe]
      %v5852 = vld [vmem:[%s4418 + $0x54] sm:$0xe]
      %v5853 = vld [vmem:[%s4418 + $0x60] sm:$0xe]
      %v5854 = vld [vmem:[%s4418 + $0x6c] sm:$0xe]
      %v5885 = vrot.slane %v5845, 5
      %v5886 = vrot.slane %v5885, 4
      %v5887 = vrot.slane %v5098, 5
      %v5888 = vsel %vm1690, %v5886, %v5887
      %v5889 = vrot.slane %v5887, 4
      %v5890 = vrot.slane %v5099, 5
      %v5891 = vsel %vm1690, %v5889, %v5890
      %v5892 = vrot.slane %v5846, 5
      %v5893 = vrot.slane %v5892, 4
      %v5894 = vrot.slane %v5101, 5
      %v5895 = vsel %vm1690, %v5893, %v5894
      %v5896 = vrot.slane %v5894, 4
      %v5897 = vrot.slane %v5102, 5
      %v5898 = vsel %vm1690, %v5896, %v5897
      %v5899 = vrot.slane %v5847, 5
      %v5900 = vrot.slane %v5899, 4
      %v5901 = vrot.slane %v5104, 5
      %v5902 = vsel %vm1690, %v5900, %v5901
      %v5903 = vrot.slane %v5901, 4
      %v5904 = vrot.slane %v5105, 5
      %v5905 = vsel %vm1690, %v5903, %v5904
      %v5906 = vrot.slane %v5848, 5
      %v5907 = vrot.slane %v5906, 4
      %v5908 = vrot.slane %v5107, 5
      %v5909 = vsel %vm1690, %v5907, %v5908
      %v5910 = vrot.slane %v5908, 4
      %v5911 = vrot.slane %v5108, 5
      %v5912 = vsel %vm1690, %v5910, %v5911
      %v5913 = vrot.slane %v5849, 5
      %v5914 = vrot.slane %v5913, 4
      %v5915 = vrot.slane %v5110, 5
      %v5916 = vsel %vm1690, %v5914, %v5915
      %v5917 = vrot.slane %v5915, 4
      %v5918 = vrot.slane %v5111, 5
      %v5919 = vsel %vm1690, %v5917, %v5918
      %v5920 = vrot.slane %v5850, 5
      %v5921 = vrot.slane %v5920, 4
      %v5922 = vrot.slane %v5113, 5
      %v5923 = vsel %vm1690, %v5921, %v5922
      %v5924 = vrot.slane %v5922, 4
      %v5925 = vrot.slane %v5114, 5
      %v5926 = vsel %vm1690, %v5924, %v5925
      %v5927 = vrot.slane %v5851, 5
      %v5928 = vrot.slane %v5927, 4
      %v5929 = vrot.slane %v5116, 5
      %v5930 = vsel %vm1690, %v5928, %v5929
      %v5931 = vrot.slane %v5929, 4
      %v5932 = vrot.slane %v5117, 5
      %v5933 = vsel %vm1690, %v5931, %v5932
      %v5934 = vrot.slane %v5852, 5
      %v5935 = vrot.slane %v5934, 4
      %v5936 = vrot.slane %v5119, 5
      %v5937 = vsel %vm1690, %v5935, %v5936
      %v5938 = vrot.slane %v5936, 4
      %v5939 = vrot.slane %v5120, 5
      %v5940 = vsel %vm1690, %v5938, %v5939
      %v5941 = vrot.slane %v5853, 5
      %v5942 = vrot.slane %v5941, 4
      %v5943 = vrot.slane %v5122, 5
      %v5944 = vsel %vm1690, %v5942, %v5943
      %v5945 = vrot.slane %v5943, 4
      %v5946 = vrot.slane %v5123, 5
      %v5947 = vsel %vm1690, %v5945, %v5946
      %v5948 = vrot.slane %v5854, 5
      %v5949 = vrot.slane %v5948, 4
      %v5950 = vrot.slane %v5125, 5
      %v5951 = vsel %vm1690, %v5949, %v5950
      %v5952 = vrot.slane %v5950, 4
      %v5953 = vrot.slane %v5126, 5
      %v5954 = vsel %vm1690, %v5952, %v5953
      %s5955 = scalar_lea.vmem %s3, 512
      %v5956 = vld [vmem:[%s5955] sm:$0xf]
      %v5957 = vld [vmem:[%s5955 + $0x4] sm:$0xf]
      %v5958 = vld [vmem:[%s5955 + $0x8] sm:$0xf]
      %v5959 = vld [vmem:[%s5955 + $0xc] sm:$0xf]
      %v5960 = vld [vmem:[%s5955 + $0x10] sm:$0xf]
      %v5961 = vld [vmem:[%s5955 + $0x14] sm:$0xf]
      %v5962 = vld [vmem:[%s5955 + $0x18] sm:$0xf]
      %v5963 = vld [vmem:[%s5955 + $0x1c] sm:$0xf]
      %v5964 = vld [vmem:[%s5955 + $0x20] sm:$0xf]
      %v5965 = vld [vmem:[%s5955 + $0x24] sm:$0xf]
      %v5966 = vld [vmem:[%s5955 + $0x28] sm:$0xf]
      %v5967 = vld [vmem:[%s5955 + $0x2c] sm:$0xf]
      %v5968 = vld [vmem:[%s5955 + $0x30] sm:$0xf]
      %v5969 = vld [vmem:[%s5955 + $0x34] sm:$0xf]
      %v5970 = vld [vmem:[%s5955 + $0x38] sm:$0xf]
      %v5971 = vld [vmem:[%s5955 + $0x3c] sm:$0xf]
      %v5972 = vunpack.c.l.b16 %v5888
      %v5973 = vunpack.c.l.b16 %v5891
      %v5974 = vunpack.c.l.b16 %v5895
      %v5975 = vunpack.c.l.b16 %v5898
      %v5976 = vunpack.c.l.b16 %v5902
      %v5977 = vunpack.c.l.b16 %v5905
      %v5978 = vunpack.c.l.b16 %v5909
      %v5979 = vunpack.c.l.b16 %v5912
      %v5980 = vunpack.c.l.b16 %v5916
      %v5981 = vunpack.c.l.b16 %v5919
      %v5982 = vunpack.c.l.b16 %v5923
      %v5983 = vunpack.c.l.b16 %v5926
      %v5984 = vunpack.c.l.b16 %v5930
      %v5985 = vunpack.c.l.b16 %v5933
      %v5986 = vunpack.c.l.b16 %v5937
      %v5987 = vunpack.c.l.b16 %v5940
      %v5988 = vunpack.c.l.b16 %v5944
      %v5989 = vunpack.c.l.b16 %v5947
      %v5990 = vunpack.c.l.b16 %v5951
      %v5991 = vunpack.c.l.b16 %v5954
      %v5992 = vpack.c.b16 %v5973, %v5972
      %v5993 = vpack.c.b16 %v5975, %v5974
      %v5994 = vpack.c.b16 %v5977, %v5976
      %v5995 = vpack.c.b16 %v5979, %v5978
      %v5996 = vpack.c.b16 %v5981, %v5980
      %v5997 = vpack.c.b16 %v5983, %v5982
      %v5998 = vpack.c.b16 %v5985, %v5984
      %v5999 = vpack.c.b16 %v5987, %v5986
      %v6000 = vpack.c.b16 %v5989, %v5988
      %v6001 = vpack.c.b16 %v5991, %v5990
      %v6028 = vunpack.c.l.b16 %v5956
      %v6029 = vunpack.c.l.b16 %v5957
      %v6030 = vunpack.c.l.b16 %v5958
      %v6031 = vunpack.c.l.b16 %v5959
      %v6032 = vunpack.c.l.b16 %v5960
      %v6033 = vunpack.c.l.b16 %v5961
      %v6034 = vunpack.c.l.b16 %v5962
      %v6035 = vunpack.c.l.b16 %v5963
      %v6036 = vunpack.c.l.b16 %v5964
      %v6037 = vunpack.c.l.b16 %v5965
      %v6038 = vunpack.c.l.b16 %v5966
      %v6039 = vunpack.c.l.b16 %v5967
      %v6040 = vunpack.c.l.b16 %v5968
      %v6041 = vunpack.c.l.b16 %v5969
      %v6042 = vunpack.c.l.b16 %v5970
      %v6043 = vunpack.c.l.b16 %v5971
      %v6044 = vpack.c.b16 %v6029, %v6028
      %v6045 = vpack.c.b16 %v6031, %v6030
      %v6046 = vpack.c.b16 %v6033, %v6032
      %v6047 = vpack.c.b16 %v6035, %v6034
      %v6048 = vpack.c.b16 %v6037, %v6036
      %v6049 = vpack.c.b16 %v6039, %v6038
      %v6050 = vpack.c.b16 %v6041, %v6040
      %v6051 = vpack.c.b16 %v6043, %v6042
      %6060 = vmatpush.bf16.msra.mxu0 %v6051
      %6061 = vmatpush.bf16.msra.mxu0 %v6050
      %6062 = vmatpush.bf16.msra.mxu0 %v6049
      %6063 = vmatpush.bf16.msra.mxu0 %v6048
      %6064 = vmatpush.bf16.msra.mxu0 %v6047
      %6065 = vmatpush.bf16.msra.mxu0 %v6046
      %6066 = vmatpush.bf16.msra.mxu0 %v6045
      %6067 = vmatpush.bf16.msra.mxu0 %v6044
      %6068 = vmatmul.bf16.gmra.mxu0 %v5992
      %v6069 = vpop.f32.mrf.mxu0
      %v6070 = vadd.f32 0.0, %v6069
      %v6071 = vpop.f32.mrf.mxu0
      %v6072 = vadd.f32 0.0, %v6071
      %6073 = vmatmul.bf16.gmra.mxu0 %v5993
      %v6074 = vpop.f32.mrf.mxu0
      %v6075 = vadd.f32 0.0, %v6074
      %v6076 = vpop.f32.mrf.mxu0
      %v6077 = vadd.f32 0.0, %v6076
      %6078 = vmatmul.bf16.gmra.mxu0 %v5994
      %v6079 = vpop.f32.mrf.mxu0
      %v6080 = vadd.f32 0.0, %v6079
      %v6081 = vpop.f32.mrf.mxu0
      %v6082 = vadd.f32 0.0, %v6081
      %6083 = vmatmul.bf16.gmra.mxu0 %v5995
      %v6084 = vpop.f32.mrf.mxu0
      %v6085 = vadd.f32 0.0, %v6084
      %v6086 = vpop.f32.mrf.mxu0
      %v6087 = vadd.f32 0.0, %v6086
      %6088 = vmatmul.bf16.gmra.mxu0 %v5996
      %v6089 = vpop.f32.mrf.mxu0
      %v6090 = vadd.f32 0.0, %v6089
      %v6091 = vpop.f32.mrf.mxu0
      %v6092 = vadd.f32 0.0, %v6091
      %6093 = vmatmul.bf16.gmra.mxu0 %v5997
      %v6094 = vpop.f32.mrf.mxu0
      %v6095 = vadd.f32 0.0, %v6094
      %v6096 = vpop.f32.mrf.mxu0
      %v6097 = vadd.f32 0.0, %v6096
      %6098 = vmatmul.bf16.gmra.mxu0 %v5998
      %v6099 = vpop.f32.mrf.mxu0
      %v6100 = vadd.f32 0.0, %v6099
      %v6101 = vpop.f32.mrf.mxu0
      %v6102 = vadd.f32 0.0, %v6101
      %6103 = vmatmul.bf16.gmra.mxu0 %v5999
      %v6104 = vpop.f32.mrf.mxu0
      %v6105 = vadd.f32 0.0, %v6104
      %v6106 = vpop.f32.mrf.mxu0
      %v6107 = vadd.f32 0.0, %v6106
      %6108 = vmatmul.bf16.gmra.mxu0 %v6000
      %v6109 = vpop.f32.mrf.mxu0
      %v6110 = vadd.f32 0.0, %v6109
      %v6111 = vpop.f32.mrf.mxu0
      %v6112 = vadd.f32 0.0, %v6111
      %6113 = vmatmul.bf16.gmra.mxu0 %v6001
      %v6114 = vpop.f32.mrf.mxu0
      %v6115 = vadd.f32 0.0, %v6114
      %v6116 = vpop.f32.mrf.mxu0
      %v6117 = vadd.f32 0.0, %v6116
      %6118 = vdwg.mxu0
      %v6119 = vadd.f32 %v5825, %v6070
      %v6120 = vadd.f32 %v5826, %v6072
      %v6121 = vadd.f32 %v5827, %v6075
      %v6122 = vadd.f32 %v5828, %v6077
      %v6123 = vadd.f32 %v5829, %v6080
      %v6124 = vadd.f32 %v5830, %v6082
      %v6125 = vadd.f32 %v5831, %v6085
      %v6126 = vadd.f32 %v5832, %v6087
      %v6127 = vadd.f32 %v5833, %v6090
      %v6128 = vadd.f32 %v5834, %v6092
      %v6129 = vadd.f32 %v5835, %v6095
      %v6130 = vadd.f32 %v5836, %v6097
      %v6131 = vadd.f32 %v5837, %v6100
      %v6132 = vadd.f32 %v5838, %v6102
      %v6133 = vadd.f32 %v5839, %v6105
      %v6134 = vadd.f32 %v5840, %v6107
      %v6135 = vadd.f32 %v5841, %v6110
      %v6136 = vadd.f32 %v5842, %v6112
      %v6137 = vadd.f32 %v5843, %v6115
      %v6138 = vadd.f32 %v5844, %v6117
      %v6139 = vld [vmem:[%s4] sm:$0x1]
      %v6141 = vperm.slane %v6139, 0
      %v6143 = vadd.f32 %v6119, %v6141
      %v6144 = vadd.f32 %v6120, %v6141
      %v6145 = vadd.f32 %v6121, %v6141
      %v6146 = vadd.f32 %v6122, %v6141
      %v6147 = vadd.f32 %v6123, %v6141
      %v6148 = vadd.f32 %v6124, %v6141
      %v6149 = vadd.f32 %v6125, %v6141
      %v6150 = vadd.f32 %v6126, %v6141
      %v6151 = vadd.f32 %v6127, %v6141
      %v6152 = vadd.f32 %v6128, %v6141
      %v6153 = vadd.f32 %v6129, %v6141
      %v6154 = vadd.f32 %v6130, %v6141
      %v6155 = vadd.f32 %v6131, %v6141
      %v6156 = vadd.f32 %v6132, %v6141
      %v6157 = vadd.f32 %v6133, %v6141
      %v6158 = vadd.f32 %v6134, %v6141
      %v6159 = vadd.f32 %v6135, %v6141
      %v6160 = vadd.f32 %v6136, %v6141
      %v6161 = vadd.f32 %v6137, %v6141
      %v6162 = vadd.f32 %v6138, %v6141
      %v6163 = vmul.f32 %v6143, 0.5
      %v6164 = vmul.f32 %v6144, 0.5
      %v6165 = vmul.f32 %v6145, 0.5
      %v6166 = vmul.f32 %v6146, 0.5
      %v6167 = vmul.f32 %v6147, 0.5
      %v6168 = vmul.f32 %v6148, 0.5
      %v6169 = vmul.f32 %v6149, 0.5
      %v6170 = vmul.f32 %v6150, 0.5
      %v6171 = vmul.f32 %v6151, 0.5
      %v6172 = vmul.f32 %v6152, 0.5
      %v6173 = vmul.f32 %v6153, 0.5
      %v6174 = vmul.f32 %v6154, 0.5
      %v6175 = vmul.f32 %v6155, 0.5
      %v6176 = vmul.f32 %v6156, 0.5
      %v6177 = vmul.f32 %v6157, 0.5
      %v6178 = vmul.f32 %v6158, 0.5
      %v6179 = vmul.f32 %v6159, 0.5
      %v6180 = vmul.f32 %v6160, 0.5
      %v6181 = vmul.f32 %v6161, 0.5
      %v6182 = vmul.f32 %v6162, 0.5
      %v6183 = vmul.f32 %v6143, 0.70710677
      %v6184 = vmul.f32 %v6144, 0.70710677
      %v6185 = vmul.f32 %v6145, 0.70710677
      %v6186 = vmul.f32 %v6146, 0.70710677
      %v6187 = vmul.f32 %v6147, 0.70710677
      %v6188 = vmul.f32 %v6148, 0.70710677
      %v6189 = vmul.f32 %v6149, 0.70710677
      %v6190 = vmul.f32 %v6150, 0.70710677
      %v6191 = vmul.f32 %v6151, 0.70710677
      %v6192 = vmul.f32 %v6152, 0.70710677
      %v6193 = vmul.f32 %v6153, 0.70710677
      %v6194 = vmul.f32 %v6154, 0.70710677
      %v6195 = vmul.f32 %v6155, 0.70710677
      %v6196 = vmul.f32 %v6156, 0.70710677
      %v6197 = vmul.f32 %v6157, 0.70710677
      %v6198 = vmul.f32 %v6158, 0.70710677
      %v6199 = vmul.f32 %v6159, 0.70710677
      %v6200 = vmul.f32 %v6160, 0.70710677
      %v6201 = vmul.f32 %v6161, 0.70710677
      %v6202 = vmul.f32 %v6162, 0.70710677
      %vm6203 = vcmp.lt.f32.partialorder %v6183, 0.0
      %vm6204 = vcmp.lt.f32.partialorder %v6184, 0.0
      %vm6205 = vcmp.lt.f32.partialorder %v6185, 0.0
      %vm6206 = vcmp.lt.f32.partialorder %v6186, 0.0
      %vm6207 = vcmp.lt.f32.partialorder %v6187, 0.0
      %vm6208 = vcmp.lt.f32.partialorder %v6188, 0.0
      %vm6209 = vcmp.lt.f32.partialorder %v6189, 0.0
      %vm6210 = vcmp.lt.f32.partialorder %v6190, 0.0
      %vm6211 = vcmp.lt.f32.partialorder %v6191, 0.0
      %vm6212 = vcmp.lt.f32.partialorder %v6192, 0.0
      %vm6213 = vcmp.lt.f32.partialorder %v6193, 0.0
      %vm6214 = vcmp.lt.f32.partialorder %v6194, 0.0
      %vm6215 = vcmp.lt.f32.partialorder %v6195, 0.0
      %vm6216 = vcmp.lt.f32.partialorder %v6196, 0.0
      %vm6217 = vcmp.lt.f32.partialorder %v6197, 0.0
      %vm6218 = vcmp.lt.f32.partialorder %v6198, 0.0
      %vm6219 = vcmp.lt.f32.partialorder %v6199, 0.0
      %vm6220 = vcmp.lt.f32.partialorder %v6200, 0.0
      %vm6221 = vcmp.lt.f32.partialorder %v6201, 0.0
      %vm6222 = vcmp.lt.f32.partialorder %v6202, 0.0
      %v6223 = vsel %vm6203, -1.0, 1.0
      %v6224 = vsel %vm6204, -1.0, 1.0
      %v6225 = vsel %vm6205, -1.0, 1.0
      %v6226 = vsel %vm6206, -1.0, 1.0
      %v6227 = vsel %vm6207, -1.0, 1.0
      %v6228 = vsel %vm6208, -1.0, 1.0
      %v6229 = vsel %vm6209, -1.0, 1.0
      %v6230 = vsel %vm6210, -1.0, 1.0
      %v6231 = vsel %vm6211, -1.0, 1.0
      %v6232 = vsel %vm6212, -1.0, 1.0
      %v6233 = vsel %vm6213, -1.0, 1.0
      %v6234 = vsel %vm6214, -1.0, 1.0
      %v6235 = vsel %vm6215, -1.0, 1.0
      %v6236 = vsel %vm6216, -1.0, 1.0
      %v6237 = vsel %vm6217, -1.0, 1.0
      %v6238 = vsel %vm6218, -1.0, 1.0
      %v6239 = vsel %vm6219, -1.0, 1.0
      %v6240 = vsel %vm6220, -1.0, 1.0
      %v6241 = vsel %vm6221, -1.0, 1.0
      %v6242 = vsel %vm6222, -1.0, 1.0
      %v6243 = vand.u32 2147483647, %v6183
      %v6244 = vand.u32 2147483647, %v6184
      %v6245 = vand.u32 2147483647, %v6185
      %v6246 = vand.u32 2147483647, %v6186
      %v6247 = vand.u32 2147483647, %v6187
      %v6248 = vand.u32 2147483647, %v6188
      %v6249 = vand.u32 2147483647, %v6189
      %v6250 = vand.u32 2147483647, %v6190
      %v6251 = vand.u32 2147483647, %v6191
      %v6252 = vand.u32 2147483647, %v6192
      %v6253 = vand.u32 2147483647, %v6193
      %v6254 = vand.u32 2147483647, %v6194
      %v6255 = vand.u32 2147483647, %v6195
      %v6256 = vand.u32 2147483647, %v6196
      %v6257 = vand.u32 2147483647, %v6197
      %v6258 = vand.u32 2147483647, %v6198
      %v6259 = vand.u32 2147483647, %v6199
      %v6260 = vand.u32 2147483647, %v6200
      %v6261 = vand.u32 2147483647, %v6201
      %v6262 = vand.u32 2147483647, %v6202
      %v6263 = vmul.f32 %v6243, 0.3275911
      %v6264 = vmul.f32 %v6244, 0.3275911
      %v6265 = vmul.f32 %v6245, 0.3275911
      %v6266 = vmul.f32 %v6246, 0.3275911
      %v6267 = vmul.f32 %v6247, 0.3275911
      %v6268 = vmul.f32 %v6248, 0.3275911
      %v6269 = vmul.f32 %v6249, 0.3275911
      %v6270 = vmul.f32 %v6250, 0.3275911
      %v6271 = vmul.f32 %v6251, 0.3275911
      %v6272 = vmul.f32 %v6252, 0.3275911
      %v6273 = vmul.f32 %v6253, 0.3275911
      %v6274 = vmul.f32 %v6254, 0.3275911
      %v6275 = vmul.f32 %v6255, 0.3275911
      %v6276 = vmul.f32 %v6256, 0.3275911
      %v6277 = vmul.f32 %v6257, 0.3275911
      %v6278 = vmul.f32 %v6258, 0.3275911
      %v6279 = vmul.f32 %v6259, 0.3275911
      %v6280 = vmul.f32 %v6260, 0.3275911
      %v6281 = vmul.f32 %v6261, 0.3275911
      %v6282 = vmul.f32 %v6262, 0.3275911
      %v6283 = vadd.f32 %v6263, 1.0
      %v6284 = vadd.f32 %v6264, 1.0
      %v6285 = vadd.f32 %v6265, 1.0
      %v6286 = vadd.f32 %v6266, 1.0
      %v6287 = vadd.f32 %v6267, 1.0
      %v6288 = vadd.f32 %v6268, 1.0
      %v6289 = vadd.f32 %v6269, 1.0
      %v6290 = vadd.f32 %v6270, 1.0
      %v6291 = vadd.f32 %v6271, 1.0
      %v6292 = vadd.f32 %v6272, 1.0
      %v6293 = vadd.f32 %v6273, 1.0
      %v6294 = vadd.f32 %v6274, 1.0
      %v6295 = vadd.f32 %v6275, 1.0
      %v6296 = vadd.f32 %v6276, 1.0
      %v6297 = vadd.f32 %v6277, 1.0
      %v6298 = vadd.f32 %v6278, 1.0
      %v6299 = vadd.f32 %v6279, 1.0
      %v6300 = vadd.f32 %v6280, 1.0
      %v6301 = vadd.f32 %v6281, 1.0
      %v6302 = vadd.f32 %v6282, 1.0
      %v6303 = vrcp.pop %v6283
      %v6304 = vmul.f32 %v6283, %v6303
      %v6305 = vsub.f32 1.0, %v6304
      %v6306 = vmul.f32 %v6303, %v6305
      %v6307 = vadd.f32 %v6303, %v6306
      %vm6308 = vweird.f32 %v6283
      %vm6309 = vweird.f32 %v6303
      %vm6310 = vmor %vm6308, %vm6309
      %v6311 = vsel %vm6310, %v6303, %v6307
      %v6312 = vand.u32 2147483647, %v6283
      %vm6313 = vcmp.eq.f32.partialorder %v6312, 8.507059e+37
      %v6314 = vand.u32 %v6283, 2147483648
      %v6315 = vor.u32 1.1754944e-38, %v6314
      %v6316 = vsel %vm6313, %v6315, %v6311
      %v6317 = vmul.f32 1.0, %v6316
      %v6318 = vrcp.pop %v6284
      %v6319 = vmul.f32 %v6284, %v6318
      %v6320 = vsub.f32 1.0, %v6319
      %v6321 = vmul.f32 %v6318, %v6320
      %v6322 = vadd.f32 %v6318, %v6321
      %vm6323 = vweird.f32 %v6284
      %vm6324 = vweird.f32 %v6318
      %vm6325 = vmor %vm6323, %vm6324
      %v6326 = vsel %vm6325, %v6318, %v6322
      %v6327 = vand.u32 2147483647, %v6284
      %vm6328 = vcmp.eq.f32.partialorder %v6327, 8.507059e+37
      %v6329 = vand.u32 %v6284, 2147483648
      %v6330 = vor.u32 1.1754944e-38, %v6329
      %v6331 = vsel %vm6328, %v6330, %v6326
      %v6332 = vmul.f32 1.0, %v6331
      %v6333 = vrcp.pop %v6285
      %v6334 = vmul.f32 %v6285, %v6333
      %v6335 = vsub.f32 1.0, %v6334
      %v6336 = vmul.f32 %v6333, %v6335
      %v6337 = vadd.f32 %v6333, %v6336
      %vm6338 = vweird.f32 %v6285
      %vm6339 = vweird.f32 %v6333
      %vm6340 = vmor %vm6338, %vm6339
      %v6341 = vsel %vm6340, %v6333, %v6337
      %v6342 = vand.u32 2147483647, %v6285
      %vm6343 = vcmp.eq.f32.partialorder %v6342, 8.507059e+37
      %v6344 = vand.u32 %v6285, 2147483648
      %v6345 = vor.u32 1.1754944e-38, %v6344
      %v6346 = vsel %vm6343, %v6345, %v6341
      %v6347 = vmul.f32 1.0, %v6346
      %v6348 = vrcp.pop %v6286
      %v6349 = vmul.f32 %v6286, %v6348
      %v6350 = vsub.f32 1.0, %v6349
      %v6351 = vmul.f32 %v6348, %v6350
      %v6352 = vadd.f32 %v6348, %v6351
      %vm6353 = vweird.f32 %v6286
      %vm6354 = vweird.f32 %v6348
      %vm6355 = vmor %vm6353, %vm6354
      %v6356 = vsel %vm6355, %v6348, %v6352
      %v6357 = vand.u32 2147483647, %v6286
      %vm6358 = vcmp.eq.f32.partialorder %v6357, 8.507059e+37
      %v6359 = vand.u32 %v6286, 2147483648
      %v6360 = vor.u32 1.1754944e-38, %v6359
      %v6361 = vsel %vm6358, %v6360, %v6356
      %v6362 = vmul.f32 1.0, %v6361
      %v6363 = vrcp.pop %v6287
      %v6364 = vmul.f32 %v6287, %v6363
      %v6365 = vsub.f32 1.0, %v6364
      %v6366 = vmul.f32 %v6363, %v6365
      %v6367 = vadd.f32 %v6363, %v6366
      %vm6368 = vweird.f32 %v6287
      %vm6369 = vweird.f32 %v6363
      %vm6370 = vmor %vm6368, %vm6369
      %v6371 = vsel %vm6370, %v6363, %v6367
      %v6372 = vand.u32 2147483647, %v6287
      %vm6373 = vcmp.eq.f32.partialorder %v6372, 8.507059e+37
      %v6374 = vand.u32 %v6287, 2147483648
      %v6375 = vor.u32 1.1754944e-38, %v6374
      %v6376 = vsel %vm6373, %v6375, %v6371
      %v6377 = vmul.f32 1.0, %v6376
      %v6378 = vrcp.pop %v6288
      %v6379 = vmul.f32 %v6288, %v6378
      %v6380 = vsub.f32 1.0, %v6379
      %v6381 = vmul.f32 %v6378, %v6380
      %v6382 = vadd.f32 %v6378, %v6381
      %vm6383 = vweird.f32 %v6288
      %vm6384 = vweird.f32 %v6378
      %vm6385 = vmor %vm6383, %vm6384
      %v6386 = vsel %vm6385, %v6378, %v6382
      %v6387 = vand.u32 2147483647, %v6288
      %vm6388 = vcmp.eq.f32.partialorder %v6387, 8.507059e+37
      %v6389 = vand.u32 %v6288, 2147483648
      %v6390 = vor.u32 1.1754944e-38, %v6389
      %v6391 = vsel %vm6388, %v6390, %v6386
      %v6392 = vmul.f32 1.0, %v6391
      %v6393 = vrcp.pop %v6289
      %v6394 = vmul.f32 %v6289, %v6393
      %v6395 = vsub.f32 1.0, %v6394
      %v6396 = vmul.f32 %v6393, %v6395
      %v6397 = vadd.f32 %v6393, %v6396
      %vm6398 = vweird.f32 %v6289
      %vm6399 = vweird.f32 %v6393
      %vm6400 = vmor %vm6398, %vm6399
      %v6401 = vsel %vm6400, %v6393, %v6397
      %v6402 = vand.u32 2147483647, %v6289
      %vm6403 = vcmp.eq.f32.partialorder %v6402, 8.507059e+37
      %v6404 = vand.u32 %v6289, 2147483648
      %v6405 = vor.u32 1.1754944e-38, %v6404
      %v6406 = vsel %vm6403, %v6405, %v6401
      %v6407 = vmul.f32 1.0, %v6406
      %v6408 = vrcp.pop %v6290
      %v6409 = vmul.f32 %v6290, %v6408
      %v6410 = vsub.f32 1.0, %v6409
      %v6411 = vmul.f32 %v6408, %v6410
      %v6412 = vadd.f32 %v6408, %v6411
      %vm6413 = vweird.f32 %v6290
      %vm6414 = vweird.f32 %v6408
      %vm6415 = vmor %vm6413, %vm6414
      %v6416 = vsel %vm6415, %v6408, %v6412
      %v6417 = vand.u32 2147483647, %v6290
      %vm6418 = vcmp.eq.f32.partialorder %v6417, 8.507059e+37
      %v6419 = vand.u32 %v6290, 2147483648
      %v6420 = vor.u32 1.1754944e-38, %v6419
      %v6421 = vsel %vm6418, %v6420, %v6416
      %v6422 = vmul.f32 1.0, %v6421
      %v6423 = vrcp.pop %v6291
      %v6424 = vmul.f32 %v6291, %v6423
      %v6425 = vsub.f32 1.0, %v6424
      %v6426 = vmul.f32 %v6423, %v6425
      %v6427 = vadd.f32 %v6423, %v6426
      %vm6428 = vweird.f32 %v6291
      %vm6429 = vweird.f32 %v6423
      %vm6430 = vmor %vm6428, %vm6429
      %v6431 = vsel %vm6430, %v6423, %v6427
      %v6432 = vand.u32 2147483647, %v6291
      %vm6433 = vcmp.eq.f32.partialorder %v6432, 8.507059e+37
      %v6434 = vand.u32 %v6291, 2147483648
      %v6435 = vor.u32 1.1754944e-38, %v6434
      %v6436 = vsel %vm6433, %v6435, %v6431
      %v6437 = vmul.f32 1.0, %v6436
      %v6438 = vrcp.pop %v6292
      %v6439 = vmul.f32 %v6292, %v6438
      %v6440 = vsub.f32 1.0, %v6439
      %v6441 = vmul.f32 %v6438, %v6440
      %v6442 = vadd.f32 %v6438, %v6441
      %vm6443 = vweird.f32 %v6292
      %vm6444 = vweird.f32 %v6438
      %vm6445 = vmor %vm6443, %vm6444
      %v6446 = vsel %vm6445, %v6438, %v6442
      %v6447 = vand.u32 2147483647, %v6292
      %vm6448 = vcmp.eq.f32.partialorder %v6447, 8.507059e+37
      %v6449 = vand.u32 %v6292, 2147483648
      %v6450 = vor.u32 1.1754944e-38, %v6449
      %v6451 = vsel %vm6448, %v6450, %v6446
      %v6452 = vmul.f32 1.0, %v6451
      %v6453 = vrcp.pop %v6293
      %v6454 = vmul.f32 %v6293, %v6453
      %v6455 = vsub.f32 1.0, %v6454
      %v6456 = vmul.f32 %v6453, %v6455
      %v6457 = vadd.f32 %v6453, %v6456
      %vm6458 = vweird.f32 %v6293
      %vm6459 = vweird.f32 %v6453
      %vm6460 = vmor %vm6458, %vm6459
      %v6461 = vsel %vm6460, %v6453, %v6457
      %v6462 = vand.u32 2147483647, %v6293
      %vm6463 = vcmp.eq.f32.partialorder %v6462, 8.507059e+37
      %v6464 = vand.u32 %v6293, 2147483648
      %v6465 = vor.u32 1.1754944e-38, %v6464
      %v6466 = vsel %vm6463, %v6465, %v6461
      %v6467 = vmul.f32 1.0, %v6466
      %v6468 = vrcp.pop %v6294
      %v6469 = vmul.f32 %v6294, %v6468
      %v6470 = vsub.f32 1.0, %v6469
      %v6471 = vmul.f32 %v6468, %v6470
      %v6472 = vadd.f32 %v6468, %v6471
      %vm6473 = vweird.f32 %v6294
      %vm6474 = vweird.f32 %v6468
      %vm6475 = vmor %vm6473, %vm6474
      %v6476 = vsel %vm6475, %v6468, %v6472
      %v6477 = vand.u32 2147483647, %v6294
      %vm6478 = vcmp.eq.f32.partialorder %v6477, 8.507059e+37
      %v6479 = vand.u32 %v6294, 2147483648
      %v6480 = vor.u32 1.1754944e-38, %v6479
      %v6481 = vsel %vm6478, %v6480, %v6476
      %v6482 = vmul.f32 1.0, %v6481
      %v6483 = vrcp.pop %v6295
      %v6484 = vmul.f32 %v6295, %v6483
      %v6485 = vsub.f32 1.0, %v6484
      %v6486 = vmul.f32 %v6483, %v6485
      %v6487 = vadd.f32 %v6483, %v6486
      %vm6488 = vweird.f32 %v6295
      %vm6489 = vweird.f32 %v6483
      %vm6490 = vmor %vm6488, %vm6489
      %v6491 = vsel %vm6490, %v6483, %v6487
      %v6492 = vand.u32 2147483647, %v6295
      %vm6493 = vcmp.eq.f32.partialorder %v6492, 8.507059e+37
      %v6494 = vand.u32 %v6295, 2147483648
      %v6495 = vor.u32 1.1754944e-38, %v6494
      %v6496 = vsel %vm6493, %v6495, %v6491
      %v6497 = vmul.f32 1.0, %v6496
      %v6498 = vrcp.pop %v6296
      %v6499 = vmul.f32 %v6296, %v6498
      %v6500 = vsub.f32 1.0, %v6499
      %v6501 = vmul.f32 %v6498, %v6500
      %v6502 = vadd.f32 %v6498, %v6501
      %vm6503 = vweird.f32 %v6296
      %vm6504 = vweird.f32 %v6498
      %vm6505 = vmor %vm6503, %vm6504
      %v6506 = vsel %vm6505, %v6498, %v6502
      %v6507 = vand.u32 2147483647, %v6296
      %vm6508 = vcmp.eq.f32.partialorder %v6507, 8.507059e+37
      %v6509 = vand.u32 %v6296, 2147483648
      %v6510 = vor.u32 1.1754944e-38, %v6509
      %v6511 = vsel %vm6508, %v6510, %v6506
      %v6512 = vmul.f32 1.0, %v6511
      %v6513 = vrcp.pop %v6297
      %v6514 = vmul.f32 %v6297, %v6513
      %v6515 = vsub.f32 1.0, %v6514
      %v6516 = vmul.f32 %v6513, %v6515
      %v6517 = vadd.f32 %v6513, %v6516
      %vm6518 = vweird.f32 %v6297
      %vm6519 = vweird.f32 %v6513
      %vm6520 = vmor %vm6518, %vm6519
      %v6521 = vsel %vm6520, %v6513, %v6517
      %v6522 = vand.u32 2147483647, %v6297
      %vm6523 = vcmp.eq.f32.partialorder %v6522, 8.507059e+37
      %v6524 = vand.u32 %v6297, 2147483648
      %v6525 = vor.u32 1.1754944e-38, %v6524
      %v6526 = vsel %vm6523, %v6525, %v6521
      %v6527 = vmul.f32 1.0, %v6526
      %v6528 = vrcp.pop %v6298
      %v6529 = vmul.f32 %v6298, %v6528
      %v6530 = vsub.f32 1.0, %v6529
      %v6531 = vmul.f32 %v6528, %v6530
      %v6532 = vadd.f32 %v6528, %v6531
      %vm6533 = vweird.f32 %v6298
      %vm6534 = vweird.f32 %v6528
      %vm6535 = vmor %vm6533, %vm6534
      %v6536 = vsel %vm6535, %v6528, %v6532
      %v6537 = vand.u32 2147483647, %v6298
      %vm6538 = vcmp.eq.f32.partialorder %v6537, 8.507059e+37
      %v6539 = vand.u32 %v6298, 2147483648
      %v6540 = vor.u32 1.1754944e-38, %v6539
      %v6541 = vsel %vm6538, %v6540, %v6536
      %v6542 = vmul.f32 1.0, %v6541
      %v6543 = vrcp.pop %v6299
      %v6544 = vmul.f32 %v6299, %v6543
      %v6545 = vsub.f32 1.0, %v6544
      %v6546 = vmul.f32 %v6543, %v6545
      %v6547 = vadd.f32 %v6543, %v6546
      %vm6548 = vweird.f32 %v6299
      %vm6549 = vweird.f32 %v6543
      %vm6550 = vmor %vm6548, %vm6549
      %v6551 = vsel %vm6550, %v6543, %v6547
      %v6552 = vand.u32 2147483647, %v6299
      %vm6553 = vcmp.eq.f32.partialorder %v6552, 8.507059e+37
      %v6554 = vand.u32 %v6299, 2147483648
      %v6555 = vor.u32 1.1754944e-38, %v6554
      %v6556 = vsel %vm6553, %v6555, %v6551
      %v6557 = vmul.f32 1.0, %v6556
      %v6558 = vrcp.pop %v6300
      %v6559 = vmul.f32 %v6300, %v6558
      %v6560 = vsub.f32 1.0, %v6559
      %v6561 = vmul.f32 %v6558, %v6560
      %v6562 = vadd.f32 %v6558, %v6561
      %vm6563 = vweird.f32 %v6300
      %vm6564 = vweird.f32 %v6558
      %vm6565 = vmor %vm6563, %vm6564
      %v6566 = vsel %vm6565, %v6558, %v6562
      %v6567 = vand.u32 2147483647, %v6300
      %vm6568 = vcmp.eq.f32.partialorder %v6567, 8.507059e+37
      %v6569 = vand.u32 %v6300, 2147483648
      %v6570 = vor.u32 1.1754944e-38, %v6569
      %v6571 = vsel %vm6568, %v6570, %v6566
      %v6572 = vmul.f32 1.0, %v6571
      %v6573 = vrcp.pop %v6301
      %v6574 = vmul.f32 %v6301, %v6573
      %v6575 = vsub.f32 1.0, %v6574
      %v6576 = vmul.f32 %v6573, %v6575
      %v6577 = vadd.f32 %v6573, %v6576
      %vm6578 = vweird.f32 %v6301
      %vm6579 = vweird.f32 %v6573
      %vm6580 = vmor %vm6578, %vm6579
      %v6581 = vsel %vm6580, %v6573, %v6577
      %v6582 = vand.u32 2147483647, %v6301
      %vm6583 = vcmp.eq.f32.partialorder %v6582, 8.507059e+37
      %v6584 = vand.u32 %v6301, 2147483648
      %v6585 = vor.u32 1.1754944e-38, %v6584
      %v6586 = vsel %vm6583, %v6585, %v6581
      %v6587 = vmul.f32 1.0, %v6586
      %v6588 = vrcp.pop %v6302
      %v6589 = vmul.f32 %v6302, %v6588
      %v6590 = vsub.f32 1.0, %v6589
      %v6591 = vmul.f32 %v6588, %v6590
      %v6592 = vadd.f32 %v6588, %v6591
      %vm6593 = vweird.f32 %v6302
      %vm6594 = vweird.f32 %v6588
      %vm6595 = vmor %vm6593, %vm6594
      %v6596 = vsel %vm6595, %v6588, %v6592
      %v6597 = vand.u32 2147483647, %v6302
      %vm6598 = vcmp.eq.f32.partialorder %v6597, 8.507059e+37
      %v6599 = vand.u32 %v6302, 2147483648
      %v6600 = vor.u32 1.1754944e-38, %v6599
      %v6601 = vsel %vm6598, %v6600, %v6596
      %v6602 = vmul.f32 1.0, %v6601
      %v6603 = vmul.f32 %v6317, 1.0614054
      %v6604 = vmul.f32 %v6332, 1.0614054
      %v6605 = vmul.f32 %v6347, 1.0614054
      %v6606 = vmul.f32 %v6362, 1.0614054
      %v6607 = vmul.f32 %v6377, 1.0614054
      %v6608 = vmul.f32 %v6392, 1.0614054
      %v6609 = vmul.f32 %v6407, 1.0614054
      %v6610 = vmul.f32 %v6422, 1.0614054
      %v6611 = vmul.f32 %v6437, 1.0614054
      %v6612 = vmul.f32 %v6452, 1.0614054
      %v6613 = vmul.f32 %v6467, 1.0614054
      %v6614 = vmul.f32 %v6482, 1.0614054
      %v6615 = vmul.f32 %v6497, 1.0614054
      %v6616 = vmul.f32 %v6512, 1.0614054
      %v6617 = vmul.f32 %v6527, 1.0614054
      %v6618 = vmul.f32 %v6542, 1.0614054
      %v6619 = vmul.f32 %v6557, 1.0614054
      %v6620 = vmul.f32 %v6572, 1.0614054
      %v6621 = vmul.f32 %v6587, 1.0614054
      %v6622 = vmul.f32 %v6602, 1.0614054
      %v6623 = vadd.f32 %v6603, -1.4531521
      %v6624 = vadd.f32 %v6604, -1.4531521
      %v6625 = vadd.f32 %v6605, -1.4531521
      %v6626 = vadd.f32 %v6606, -1.4531521
      %v6627 = vadd.f32 %v6607, -1.4531521
      %v6628 = vadd.f32 %v6608, -1.4531521
      %v6629 = vadd.f32 %v6609, -1.4531521
      %v6630 = vadd.f32 %v6610, -1.4531521
      %v6631 = vadd.f32 %v6611, -1.4531521
      %v6632 = vadd.f32 %v6612, -1.4531521
      %v6633 = vadd.f32 %v6613, -1.4531521
      %v6634 = vadd.f32 %v6614, -1.4531521
      %v6635 = vadd.f32 %v6615, -1.4531521
      %v6636 = vadd.f32 %v6616, -1.4531521
      %v6637 = vadd.f32 %v6617, -1.4531521
      %v6638 = vadd.f32 %v6618, -1.4531521
      %v6639 = vadd.f32 %v6619, -1.4531521
      %v6640 = vadd.f32 %v6620, -1.4531521
      %v6641 = vadd.f32 %v6621, -1.4531521
      %v6642 = vadd.f32 %v6622, -1.4531521
      %v6643 = vmul.f32 %v6623, %v6317
      %v6644 = vmul.f32 %v6624, %v6332
      %v6645 = vmul.f32 %v6625, %v6347
      %v6646 = vmul.f32 %v6626, %v6362
      %v6647 = vmul.f32 %v6627, %v6377
      %v6648 = vmul.f32 %v6628, %v6392
      %v6649 = vmul.f32 %v6629, %v6407
      %v6650 = vmul.f32 %v6630, %v6422
      %v6651 = vmul.f32 %v6631, %v6437
      %v6652 = vmul.f32 %v6632, %v6452
      %v6653 = vmul.f32 %v6633, %v6467
      %v6654 = vmul.f32 %v6634, %v6482
      %v6655 = vmul.f32 %v6635, %v6497
      %v6656 = vmul.f32 %v6636, %v6512
      %v6657 = vmul.f32 %v6637, %v6527
      %v6658 = vmul.f32 %v6638, %v6542
      %v6659 = vmul.f32 %v6639, %v6557
      %v6660 = vmul.f32 %v6640, %v6572
      %v6661 = vmul.f32 %v6641, %v6587
      %v6662 = vmul.f32 %v6642, %v6602
      %v6663 = vadd.f32 %v6643, 1.4214138
      %v6664 = vadd.f32 %v6644, 1.4214138
      %v6665 = vadd.f32 %v6645, 1.4214138
      %v6666 = vadd.f32 %v6646, 1.4214138
      %v6667 = vadd.f32 %v6647, 1.4214138
      %v6668 = vadd.f32 %v6648, 1.4214138
      %v6669 = vadd.f32 %v6649, 1.4214138
      %v6670 = vadd.f32 %v6650, 1.4214138
      %v6671 = vadd.f32 %v6651, 1.4214138
      %v6672 = vadd.f32 %v6652, 1.4214138
      %v6673 = vadd.f32 %v6653, 1.4214138
      %v6674 = vadd.f32 %v6654, 1.4214138
      %v6675 = vadd.f32 %v6655, 1.4214138
      %v6676 = vadd.f32 %v6656, 1.4214138
      %v6677 = vadd.f32 %v6657, 1.4214138
      %v6678 = vadd.f32 %v6658, 1.4214138
      %v6679 = vadd.f32 %v6659, 1.4214138
      %v6680 = vadd.f32 %v6660, 1.4214138
      %v6681 = vadd.f32 %v6661, 1.4214138
      %v6682 = vadd.f32 %v6662, 1.4214138
      %v6683 = vmul.f32 %v6663, %v6317
      %v6684 = vmul.f32 %v6664, %v6332
      %v6685 = vmul.f32 %v6665, %v6347
      %v6686 = vmul.f32 %v6666, %v6362
      %v6687 = vmul.f32 %v6667, %v6377
      %v6688 = vmul.f32 %v6668, %v6392
      %v6689 = vmul.f32 %v6669, %v6407
      %v6690 = vmul.f32 %v6670, %v6422
      %v6691 = vmul.f32 %v6671, %v6437
      %v6692 = vmul.f32 %v6672, %v6452
      %v6693 = vmul.f32 %v6673, %v6467
      %v6694 = vmul.f32 %v6674, %v6482
      %v6695 = vmul.f32 %v6675, %v6497
      %v6696 = vmul.f32 %v6676, %v6512
      %v6697 = vmul.f32 %v6677, %v6527
      %v6698 = vmul.f32 %v6678, %v6542
      %v6699 = vmul.f32 %v6679, %v6557
      %v6700 = vmul.f32 %v6680, %v6572
      %v6701 = vmul.f32 %v6681, %v6587
      %v6702 = vmul.f32 %v6682, %v6602
      %v6703 = vadd.f32 %v6683, -0.28449672
      %v6704 = vadd.f32 %v6684, -0.28449672
      %v6705 = vadd.f32 %v6685, -0.28449672
      %v6706 = vadd.f32 %v6686, -0.28449672
      %v6707 = vadd.f32 %v6687, -0.28449672
      %v6708 = vadd.f32 %v6688, -0.28449672
      %v6709 = vadd.f32 %v6689, -0.28449672
      %v6710 = vadd.f32 %v6690, -0.28449672
      %v6711 = vadd.f32 %v6691, -0.28449672
      %v6712 = vadd.f32 %v6692, -0.28449672
      %v6713 = vadd.f32 %v6693, -0.28449672
      %v6714 = vadd.f32 %v6694, -0.28449672
      %v6715 = vadd.f32 %v6695, -0.28449672
      %v6716 = vadd.f32 %v6696, -0.28449672
      %v6717 = vadd.f32 %v6697, -0.28449672
      %v6718 = vadd.f32 %v6698, -0.28449672
      %v6719 = vadd.f32 %v6699, -0.28449672
      %v6720 = vadd.f32 %v6700, -0.28449672
      %v6721 = vadd.f32 %v6701, -0.28449672
      %v6722 = vadd.f32 %v6702, -0.28449672
      %v6723 = vmul.f32 %v6703, %v6317
      %v6724 = vmul.f32 %v6704, %v6332
      %v6725 = vmul.f32 %v6705, %v6347
      %v6726 = vmul.f32 %v6706, %v6362
      %v6727 = vmul.f32 %v6707, %v6377
      %v6728 = vmul.f32 %v6708, %v6392
      %v6729 = vmul.f32 %v6709, %v6407
      %v6730 = vmul.f32 %v6710, %v6422
      %v6731 = vmul.f32 %v6711, %v6437
      %v6732 = vmul.f32 %v6712, %v6452
      %v6733 = vmul.f32 %v6713, %v6467
      %v6734 = vmul.f32 %v6714, %v6482
      %v6735 = vmul.f32 %v6715, %v6497
      %v6736 = vmul.f32 %v6716, %v6512
      %v6737 = vmul.f32 %v6717, %v6527
      %v6738 = vmul.f32 %v6718, %v6542
      %v6739 = vmul.f32 %v6719, %v6557
      %v6740 = vmul.f32 %v6720, %v6572
      %v6741 = vmul.f32 %v6721, %v6587
      %v6742 = vmul.f32 %v6722, %v6602
      %v6743 = vadd.f32 %v6723, 0.2548296
      %v6744 = vadd.f32 %v6724, 0.2548296
      %v6745 = vadd.f32 %v6725, 0.2548296
      %v6746 = vadd.f32 %v6726, 0.2548296
      %v6747 = vadd.f32 %v6727, 0.2548296
      %v6748 = vadd.f32 %v6728, 0.2548296
      %v6749 = vadd.f32 %v6729, 0.2548296
      %v6750 = vadd.f32 %v6730, 0.2548296
      %v6751 = vadd.f32 %v6731, 0.2548296
      %v6752 = vadd.f32 %v6732, 0.2548296
      %v6753 = vadd.f32 %v6733, 0.2548296
      %v6754 = vadd.f32 %v6734, 0.2548296
      %v6755 = vadd.f32 %v6735, 0.2548296
      %v6756 = vadd.f32 %v6736, 0.2548296
      %v6757 = vadd.f32 %v6737, 0.2548296
      %v6758 = vadd.f32 %v6738, 0.2548296
      %v6759 = vadd.f32 %v6739, 0.2548296
      %v6760 = vadd.f32 %v6740, 0.2548296
      %v6761 = vadd.f32 %v6741, 0.2548296
      %v6762 = vadd.f32 %v6742, 0.2548296
      %v6763 = vmul.f32 %v6743, %v6317
      %v6764 = vmul.f32 %v6744, %v6332
      %v6765 = vmul.f32 %v6745, %v6347
      %v6766 = vmul.f32 %v6746, %v6362
      %v6767 = vmul.f32 %v6747, %v6377
      %v6768 = vmul.f32 %v6748, %v6392
      %v6769 = vmul.f32 %v6749, %v6407
      %v6770 = vmul.f32 %v6750, %v6422
      %v6771 = vmul.f32 %v6751, %v6437
      %v6772 = vmul.f32 %v6752, %v6452
      %v6773 = vmul.f32 %v6753, %v6467
      %v6774 = vmul.f32 %v6754, %v6482
      %v6775 = vmul.f32 %v6755, %v6497
      %v6776 = vmul.f32 %v6756, %v6512
      %v6777 = vmul.f32 %v6757, %v6527
      %v6778 = vmul.f32 %v6758, %v6542
      %v6779 = vmul.f32 %v6759, %v6557
      %v6780 = vmul.f32 %v6760, %v6572
      %v6781 = vmul.f32 %v6761, %v6587
      %v6782 = vmul.f32 %v6762, %v6602
      %v6783 = vsub.f32 0.0, %v6243
      %v6784 = vsub.f32 0.0, %v6244
      %v6785 = vsub.f32 0.0, %v6245
      %v6786 = vsub.f32 0.0, %v6246
      %v6787 = vsub.f32 0.0, %v6247
      %v6788 = vsub.f32 0.0, %v6248
      %v6789 = vsub.f32 0.0, %v6249
      %v6790 = vsub.f32 0.0, %v6250
      %v6791 = vsub.f32 0.0, %v6251
      %v6792 = vsub.f32 0.0, %v6252
      %v6793 = vsub.f32 0.0, %v6253
      %v6794 = vsub.f32 0.0, %v6254
      %v6795 = vsub.f32 0.0, %v6255
      %v6796 = vsub.f32 0.0, %v6256
      %v6797 = vsub.f32 0.0, %v6257
      %v6798 = vsub.f32 0.0, %v6258
      %v6799 = vsub.f32 0.0, %v6259
      %v6800 = vsub.f32 0.0, %v6260
      %v6801 = vsub.f32 0.0, %v6261
      %v6802 = vsub.f32 0.0, %v6262
      %v6803 = vmul.f32 %v6783, %v6243
      %v6804 = vmul.f32 %v6784, %v6244
      %v6805 = vmul.f32 %v6785, %v6245
      %v6806 = vmul.f32 %v6786, %v6246
      %v6807 = vmul.f32 %v6787, %v6247
      %v6808 = vmul.f32 %v6788, %v6248
      %v6809 = vmul.f32 %v6789, %v6249
      %v6810 = vmul.f32 %v6790, %v6250
      %v6811 = vmul.f32 %v6791, %v6251
      %v6812 = vmul.f32 %v6792, %v6252
      %v6813 = vmul.f32 %v6793, %v6253
      %v6814 = vmul.f32 %v6794, %v6254
      %v6815 = vmul.f32 %v6795, %v6255
      %v6816 = vmul.f32 %v6796, %v6256
      %v6817 = vmul.f32 %v6797, %v6257
      %v6818 = vmul.f32 %v6798, %v6258
      %v6819 = vmul.f32 %v6799, %v6259
      %v6820 = vmul.f32 %v6800, %v6260
      %v6821 = vmul.f32 %v6801, %v6261
      %v6822 = vmul.f32 %v6802, %v6262
      %v6823 = vmul.f32 %v6803, 1.442695
      %v6824 = vpow.pop %v6823
      %v6825 = vmul.f32 %v6804, 1.442695
      %v6826 = vpow.pop %v6825
      %v6827 = vmul.f32 %v6805, 1.442695
      %v6828 = vpow.pop %v6827
      %v6829 = vmul.f32 %v6806, 1.442695
      %v6830 = vpow.pop %v6829
      %v6831 = vmul.f32 %v6807, 1.442695
      %v6832 = vpow.pop %v6831
      %v6833 = vmul.f32 %v6808, 1.442695
      %v6834 = vpow.pop %v6833
      %v6835 = vmul.f32 %v6809, 1.442695
      %v6836 = vpow.pop %v6835
      %v6837 = vmul.f32 %v6810, 1.442695
      %v6838 = vpow.pop %v6837
      %v6839 = vmul.f32 %v6811, 1.442695
      %v6840 = vpow.pop %v6839
      %v6841 = vmul.f32 %v6812, 1.442695
      %v6842 = vpow.pop %v6841
      %v6843 = vmul.f32 %v6813, 1.442695
      %v6844 = vpow.pop %v6843
      %v6845 = vmul.f32 %v6814, 1.442695
      %v6846 = vpow.pop %v6845
      %v6847 = vmul.f32 %v6815, 1.442695
      %v6848 = vpow.pop %v6847
      %v6849 = vmul.f32 %v6816, 1.442695
      %v6850 = vpow.pop %v6849
      %v6851 = vmul.f32 %v6817, 1.442695
      %v6852 = vpow.pop %v6851
      %v6853 = vmul.f32 %v6818, 1.442695
      %v6854 = vpow.pop %v6853
      %v6855 = vmul.f32 %v6819, 1.442695
      %v6856 = vpow.pop %v6855
      %v6857 = vmul.f32 %v6820, 1.442695
      %v6858 = vpow.pop %v6857
      %v6859 = vmul.f32 %v6821, 1.442695
      %v6860 = vpow.pop %v6859
      %v6861 = vmul.f32 %v6822, 1.442695
      %v6862 = vpow.pop %v6861
      %v6863 = vmul.f32 %v6763, %v6824
      %v6864 = vmul.f32 %v6764, %v6826
      %v6865 = vmul.f32 %v6765, %v6828
      %v6866 = vmul.f32 %v6766, %v6830
      %v6867 = vmul.f32 %v6767, %v6832
      %v6868 = vmul.f32 %v6768, %v6834
      %v6869 = vmul.f32 %v6769, %v6836
      %v6870 = vmul.f32 %v6770, %v6838
      %v6871 = vmul.f32 %v6771, %v6840
      %v6872 = vmul.f32 %v6772, %v6842
      %v6873 = vmul.f32 %v6773, %v6844
      %v6874 = vmul.f32 %v6774, %v6846
      %v6875 = vmul.f32 %v6775, %v6848
      %v6876 = vmul.f32 %v6776, %v6850
      %v6877 = vmul.f32 %v6777, %v6852
      %v6878 = vmul.f32 %v6778, %v6854
      %v6879 = vmul.f32 %v6779, %v6856
      %v6880 = vmul.f32 %v6780, %v6858
      %v6881 = vmul.f32 %v6781, %v6860
      %v6882 = vmul.f32 %v6782, %v6862
      %v6883 = vsub.f32 1.0, %v6863
      %v6884 = vsub.f32 1.0, %v6864
      %v6885 = vsub.f32 1.0, %v6865
      %v6886 = vsub.f32 1.0, %v6866
      %v6887 = vsub.f32 1.0, %v6867
      %v6888 = vsub.f32 1.0, %v6868
      %v6889 = vsub.f32 1.0, %v6869
      %v6890 = vsub.f32 1.0, %v6870
      %v6891 = vsub.f32 1.0, %v6871
      %v6892 = vsub.f32 1.0, %v6872
      %v6893 = vsub.f32 1.0, %v6873
      %v6894 = vsub.f32 1.0, %v6874
      %v6895 = vsub.f32 1.0, %v6875
      %v6896 = vsub.f32 1.0, %v6876
      %v6897 = vsub.f32 1.0, %v6877
      %v6898 = vsub.f32 1.0, %v6878
      %v6899 = vsub.f32 1.0, %v6879
      %v6900 = vsub.f32 1.0, %v6880
      %v6901 = vsub.f32 1.0, %v6881
      %v6902 = vsub.f32 1.0, %v6882
      %v6903 = vmul.f32 %v6223, %v6883
      %v6904 = vmul.f32 %v6224, %v6884
      %v6905 = vmul.f32 %v6225, %v6885
      %v6906 = vmul.f32 %v6226, %v6886
      %v6907 = vmul.f32 %v6227, %v6887
      %v6908 = vmul.f32 %v6228, %v6888
      %v6909 = vmul.f32 %v6229, %v6889
      %v6910 = vmul.f32 %v6230, %v6890
      %v6911 = vmul.f32 %v6231, %v6891
      %v6912 = vmul.f32 %v6232, %v6892
      %v6913 = vmul.f32 %v6233, %v6893
      %v6914 = vmul.f32 %v6234, %v6894
      %v6915 = vmul.f32 %v6235, %v6895
      %v6916 = vmul.f32 %v6236, %v6896
      %v6917 = vmul.f32 %v6237, %v6897
      %v6918 = vmul.f32 %v6238, %v6898
      %v6919 = vmul.f32 %v6239, %v6899
      %v6920 = vmul.f32 %v6240, %v6900
      %v6921 = vmul.f32 %v6241, %v6901
      %v6922 = vmul.f32 %v6242, %v6902
      %v6923 = vadd.f32 %v6903, 1.0
      %v6924 = vadd.f32 %v6904, 1.0
      %v6925 = vadd.f32 %v6905, 1.0
      %v6926 = vadd.f32 %v6906, 1.0
      %v6927 = vadd.f32 %v6907, 1.0
      %v6928 = vadd.f32 %v6908, 1.0
      %v6929 = vadd.f32 %v6909, 1.0
      %v6930 = vadd.f32 %v6910, 1.0
      %v6931 = vadd.f32 %v6911, 1.0
      %v6932 = vadd.f32 %v6912, 1.0
      %v6933 = vadd.f32 %v6913, 1.0
      %v6934 = vadd.f32 %v6914, 1.0
      %v6935 = vadd.f32 %v6915, 1.0
      %v6936 = vadd.f32 %v6916, 1.0
      %v6937 = vadd.f32 %v6917, 1.0
      %v6938 = vadd.f32 %v6918, 1.0
      %v6939 = vadd.f32 %v6919, 1.0
      %v6940 = vadd.f32 %v6920, 1.0
      %v6941 = vadd.f32 %v6921, 1.0
      %v6942 = vadd.f32 %v6922, 1.0
      %v6943 = vmul.f32 %v6163, %v6923
      %v6944 = vmul.f32 %v6164, %v6924
      %v6945 = vmul.f32 %v6165, %v6925
      %v6946 = vmul.f32 %v6166, %v6926
      %v6947 = vmul.f32 %v6167, %v6927
      %v6948 = vmul.f32 %v6168, %v6928
      %v6949 = vmul.f32 %v6169, %v6929
      %v6950 = vmul.f32 %v6170, %v6930
      %v6951 = vmul.f32 %v6171, %v6931
      %v6952 = vmul.f32 %v6172, %v6932
      %v6953 = vmul.f32 %v6173, %v6933
      %v6954 = vmul.f32 %v6174, %v6934
      %v6955 = vmul.f32 %v6175, %v6935
      %v6956 = vmul.f32 %v6176, %v6936
      %v6957 = vmul.f32 %v6177, %v6937
      %v6958 = vmul.f32 %v6178, %v6938
      %v6959 = vmul.f32 %v6179, %v6939
      %v6960 = vmul.f32 %v6180, %v6940
      %v6961 = vmul.f32 %v6181, %v6941
      %v6962 = vmul.f32 %v6182, %v6942
      %v6963 = vpack.c.bf16 %v6943, %v6943
      %v6964 = vpack.c.bf16 %v6944, %v6944
      %v6965 = vpack.c.bf16 %v6945, %v6945
      %v6966 = vpack.c.bf16 %v6946, %v6946
      %v6967 = vpack.c.bf16 %v6947, %v6947
      %v6968 = vpack.c.bf16 %v6948, %v6948
      %v6969 = vpack.c.bf16 %v6949, %v6949
      %v6970 = vpack.c.bf16 %v6950, %v6950
      %v6971 = vpack.c.bf16 %v6951, %v6951
      %v6972 = vpack.c.bf16 %v6952, %v6952
      %v6973 = vpack.c.bf16 %v6953, %v6953
      %v6974 = vpack.c.bf16 %v6954, %v6954
      %v6975 = vpack.c.bf16 %v6955, %v6955
      %v6976 = vpack.c.bf16 %v6956, %v6956
      %v6977 = vpack.c.bf16 %v6957, %v6957
      %v6978 = vpack.c.bf16 %v6958, %v6958
      %v6979 = vpack.c.bf16 %v6959, %v6959
      %v6980 = vpack.c.bf16 %v6960, %v6960
      %v6981 = vpack.c.bf16 %v6961, %v6961
      %v6982 = vpack.c.bf16 %v6962, %v6962
      %6983 = vst [vmem:[#allocation2] sm:$0xf] 0
      %6984 = vst [vmem:[#allocation2 + $0x10] sm:$0xf] 0
      %6985 = vst [vmem:[#allocation2 + $0x20] sm:$0xf] 0
      %6986 = vst [vmem:[#allocation2 + $0x30] sm:$0xf] 0
      %6987 = vst [vmem:[#allocation2 + $0x40] sm:$0xf] 0
      %6988 = vst [vmem:[#allocation2 + $0x50] sm:$0xf] 0
      %6989 = vst [vmem:[#allocation2 + $0x60] sm:$0xf] 0
      %6990 = vst [vmem:[#allocation2 + $0x70] sm:$0xf] 0
      %6991 = vst [vmem:[#allocation2 + $0x80] sm:$0xf] 0
      %6992 = vst [vmem:[#allocation2 + $0x90] sm:$0xf] 0
      %6993 = vst [vmem:[#allocation2 + $0xc] sm:$0xf] 0
      %6994 = vst [vmem:[#allocation2 + $0x1c] sm:$0xf] 0
      %6995 = vst [vmem:[#allocation2 + $0x2c] sm:$0xf] 0
      %6996 = vst [vmem:[#allocation2 + $0x3c] sm:$0xf] 0
      %6997 = vst [vmem:[#allocation2 + $0x4c] sm:$0xf] 0
      %6998 = vst [vmem:[#allocation2 + $0x5c] sm:$0xf] 0
      %6999 = vst [vmem:[#allocation2 + $0x6c] sm:$0xf] 0
      %7000 = vst [vmem:[#allocation2 + $0x7c] sm:$0xf] 0
      %7001 = vst [vmem:[#allocation2 + $0x8c] sm:$0xf] 0
      %7002 = vst [vmem:[#allocation2 + $0x9c] sm:$0xf] 0
      %7003 = vst [vmem:[#allocation2 + $0x4] sm:$0xf] %v6963
      %7004 = vst [vmem:[#allocation2 + $0x8] sm:$0xf] %v6964
      %7005 = vst [vmem:[#allocation2 + $0x14] sm:$0xf] %v6965
      %7006 = vst [vmem:[#allocation2 + $0x18] sm:$0xf] %v6966
      %7007 = vst [vmem:[#allocation2 + $0x24] sm:$0xf] %v6967
      %7008 = vst [vmem:[#allocation2 + $0x28] sm:$0xf] %v6968
      %7009 = vst [vmem:[#allocation2 + $0x34] sm:$0xf] %v6969
      %7010 = vst [vmem:[#allocation2 + $0x38] sm:$0xf] %v6970
      %7011 = vst [vmem:[#allocation2 + $0x44] sm:$0xf] %v6971
      %7012 = vst [vmem:[#allocation2 + $0x48] sm:$0xf] %v6972
      %7013 = vst [vmem:[#allocation2 + $0x54] sm:$0xf] %v6973
      %7014 = vst [vmem:[#allocation2 + $0x58] sm:$0xf] %v6974
      %7015 = vst [vmem:[#allocation2 + $0x64] sm:$0xf] %v6975
      %7016 = vst [vmem:[#allocation2 + $0x68] sm:$0xf] %v6976
      %7017 = vst [vmem:[#allocation2 + $0x74] sm:$0xf] %v6977
      %7018 = vst [vmem:[#allocation2 + $0x78] sm:$0xf] %v6978
      %7019 = vst [vmem:[#allocation2 + $0x84] sm:$0xf] %v6979
      %7020 = vst [vmem:[#allocation2 + $0x88] sm:$0xf] %v6980
      %7021 = vst [vmem:[#allocation2 + $0x94] sm:$0xf] %v6981
      %7022 = vst [vmem:[#allocation2 + $0x98] sm:$0xf] %v6982
      %p7023 = scmp.eq.s32.totalorder %s23, 0
      // Predicated region
      $region49: #{up_forward.1} parent=47 // pred_check
        %p7024 = pneg %p7023
      $region50: #{up_forward.1} parent=47 // pred_check_branch
        %7026 = sbr.rel (%p7024) target = $region52
      $region51: #{up_forward.1} parent=47 // pred_region
        %7027 = vst [vmem:[#allocation2] sm:$0xf] 0
        %7028 = vst [vmem:[#allocation2 + $0x4] sm:$0xf] 0
        %7029 = vst [vmem:[#allocation2 + $0x8] sm:$0xf] 0
        %7030 = vst [vmem:[#allocation2 + $0xc] sm:$0xf] 0
      $region52: #{up_forward.1} parent=47 // pred_fallthru
        _
      %p7031 = scmp.eq.s32.totalorder %s23, 1
      // Predicated region
      $region53: #{up_forward.1} parent=47 // pred_check
        %p7032 = pneg %p7031
      $region54: #{up_forward.1} parent=47 // pred_check_branch
        %7034 = sbr.rel (%p7032) target = $region56
      $region55: #{up_forward.1} parent=47 // pred_region
        %s7035 = scalar_lea.vmem [#allocation2], 144
        %7036 = vst [vmem:[%s7035] sm:$0xf] 0
        %7037 = vst [vmem:[%s7035 + $0x4] sm:$0xf] 0
        %7038 = vst [vmem:[%s7035 + $0x8] sm:$0xf] 0
        %7039 = vst [vmem:[%s7035 + $0xc] sm:$0xf] 0
      $region56: #{up_forward.1} parent=47 // pred_fallthru
        _
      %v7040 = vld [vmem:[#allocation2] sm:$0x8]
      %v7041 = vld [vmem:[#allocation2 + $0x4] sm:$0xf]
      %v7042 = vld [vmem:[#allocation2 + $0x8] sm:$0xf]
      %v7043 = vld [vmem:[#allocation2 + $0x10] sm:$0x8]
      %v7044 = vld [vmem:[#allocation2 + $0x14] sm:$0xf]
      %v7045 = vld [vmem:[#allocation2 + $0x18] sm:$0xf]
      %v7046 = vld [vmem:[#allocation2 + $0x20] sm:$0x8]
      %v7047 = vld [vmem:[#allocation2 + $0x24] sm:$0xf]
      %v7048 = vld [vmem:[#allocation2 + $0x28] sm:$0xf]
      %v7049 = vld [vmem:[#allocation2 + $0x30] sm:$0x8]
      %v7050 = vld [vmem:[#allocation2 + $0x34] sm:$0xf]
      %v7051 = vld [vmem:[#allocation2 + $0x38] sm:$0xf]
      %v7052 = vld [vmem:[#allocation2 + $0x40] sm:$0x8]
      %v7053 = vld [vmem:[#allocation2 + $0x44] sm:$0xf]
      %v7054 = vld [vmem:[#allocation2 + $0x48] sm:$0xf]
      %v7055 = vld [vmem:[#allocation2 + $0x50] sm:$0x8]
      %v7056 = vld [vmem:[#allocation2 + $0x54] sm:$0xf]
      %v7057 = vld [vmem:[#allocation2 + $0x58] sm:$0xf]
      %v7058 = vld [vmem:[#allocation2 + $0x60] sm:$0x8]
      %v7059 = vld [vmem:[#allocation2 + $0x64] sm:$0xf]
      %v7060 = vld [vmem:[#allocation2 + $0x68] sm:$0xf]
      %v7061 = vld [vmem:[#allocation2 + $0x70] sm:$0x8]
      %v7062 = vld [vmem:[#allocation2 + $0x74] sm:$0xf]
      %v7063 = vld [vmem:[#allocation2 + $0x78] sm:$0xf]
      %vm7064 = vsmask.f32 256
      %vm7065 = vsmask.f32 4368
      %vm7066 = vmor %vm7064, %vm7065
      %v7068 = vshrl.u32 %v7040, 16
      %v7070 = vrot.slane %v7068, 7
      %v7071 = vrot.slane %v7070, 4
      %v7073 = vshrl.u32 %v7041, 16
      %v7075 = vrot.slane %v7073, 7
      %v7076 = vshll.u32 %v7041, 16
      %v7078 = vor.u32 %v7075, %v7076
      %v7079 = vsel %vm7066, %v7071, %v7078
      %v7080 = vrot.slane %v7075, 4
      %v7082 = vshrl.u32 %v7042, 16
      %v7084 = vrot.slane %v7082, 7
      %v7085 = vshll.u32 %v7042, 16
      %v7087 = vor.u32 %v7084, %v7085
      %v7088 = vsel %vm7066, %v7080, %v7087
      %v7090 = vshrl.u32 %v7043, 16
      %v7092 = vrot.slane %v7090, 7
      %v7093 = vrot.slane %v7092, 4
      %v7095 = vshrl.u32 %v7044, 16
      %v7097 = vrot.slane %v7095, 7
      %v7098 = vshll.u32 %v7044, 16
      %v7100 = vor.u32 %v7097, %v7098
      %v7101 = vsel %vm7066, %v7093, %v7100
      %v7102 = vrot.slane %v7097, 4
      %v7104 = vshrl.u32 %v7045, 16
      %v7106 = vrot.slane %v7104, 7
      %v7107 = vshll.u32 %v7045, 16
      %v7109 = vor.u32 %v7106, %v7107
      %v7110 = vsel %vm7066, %v7102, %v7109
      %v7112 = vshrl.u32 %v7046, 16
      %v7114 = vrot.slane %v7112, 7
      %v7115 = vrot.slane %v7114, 4
      %v7117 = vshrl.u32 %v7047, 16
      %v7119 = vrot.slane %v7117, 7
      %v7120 = vshll.u32 %v7047, 16
      %v7122 = vor.u32 %v7119, %v7120
      %v7123 = vsel %vm7066, %v7115, %v7122
      %v7124 = vrot.slane %v7119, 4
      %v7126 = vshrl.u32 %v7048, 16
      %v7128 = vrot.slane %v7126, 7
      %v7129 = vshll.u32 %v7048, 16
      %v7131 = vor.u32 %v7128, %v7129
      %v7132 = vsel %vm7066, %v7124, %v7131
      %v7134 = vshrl.u32 %v7049, 16
      %v7136 = vrot.slane %v7134, 7
      %v7137 = vrot.slane %v7136, 4
      %v7139 = vshrl.u32 %v7050, 16
      %v7141 = vrot.slane %v7139, 7
      %v7142 = vshll.u32 %v7050, 16
      %v7144 = vor.u32 %v7141, %v7142
      %v7145 = vsel %vm7066, %v7137, %v7144
      %v7146 = vrot.slane %v7141, 4
      %v7148 = vshrl.u32 %v7051, 16
      %v7150 = vrot.slane %v7148, 7
      %v7151 = vshll.u32 %v7051, 16
      %v7153 = vor.u32 %v7150, %v7151
      %v7154 = vsel %vm7066, %v7146, %v7153
      %v7156 = vshrl.u32 %v7052, 16
      %v7158 = vrot.slane %v7156, 7
      %v7159 = vrot.slane %v7158, 4
      %v7161 = vshrl.u32 %v7053, 16
      %v7163 = vrot.slane %v7161, 7
      %v7164 = vshll.u32 %v7053, 16
      %v7166 = vor.u32 %v7163, %v7164
      %v7167 = vsel %vm7066, %v7159, %v7166
      %v7168 = vrot.slane %v7163, 4
      %v7170 = vshrl.u32 %v7054, 16
      %v7172 = vrot.slane %v7170, 7
      %v7173 = vshll.u32 %v7054, 16
      %v7175 = vor.u32 %v7172, %v7173
      %v7176 = vsel %vm7066, %v7168, %v7175
      %v7178 = vshrl.u32 %v7055, 16
      %v7180 = vrot.slane %v7178, 7
      %v7181 = vrot.slane %v7180, 4
      %v7183 = vshrl.u32 %v7056, 16
      %v7185 = vrot.slane %v7183, 7
      %v7186 = vshll.u32 %v7056, 16
      %v7188 = vor.u32 %v7185, %v7186
      %v7189 = vsel %vm7066, %v7181, %v7188
      %v7190 = vrot.slane %v7185, 4
      %v7192 = vshrl.u32 %v7057, 16
      %v7194 = vrot.slane %v7192, 7
      %v7195 = vshll.u32 %v7057, 16
      %v7197 = vor.u32 %v7194, %v7195
      %v7198 = vsel %vm7066, %v7190, %v7197
      %v7200 = vshrl.u32 %v7058, 16
      %v7202 = vrot.slane %v7200, 7
      %v7203 = vrot.slane %v7202, 4
      %v7205 = vshrl.u32 %v7059, 16
      %v7207 = vrot.slane %v7205, 7
      %v7208 = vshll.u32 %v7059, 16
      %v7210 = vor.u32 %v7207, %v7208
      %v7211 = vsel %vm7066, %v7203, %v7210
      %v7212 = vrot.slane %v7207, 4
      %v7214 = vshrl.u32 %v7060, 16
      %v7216 = vrot.slane %v7214, 7
      %v7217 = vshll.u32 %v7060, 16
      %v7219 = vor.u32 %v7216, %v7217
      %v7220 = vsel %vm7066, %v7212, %v7219
      %v7222 = vshrl.u32 %v7061, 16
      %v7224 = vrot.slane %v7222, 7
      %v7225 = vrot.slane %v7224, 4
      %v7227 = vshrl.u32 %v7062, 16
      %v7229 = vrot.slane %v7227, 7
      %v7230 = vshll.u32 %v7062, 16
      %v7232 = vor.u32 %v7229, %v7230
      %v7233 = vsel %vm7066, %v7225, %v7232
      %v7234 = vrot.slane %v7229, 4
      %v7236 = vshrl.u32 %v7063, 16
      %v7238 = vrot.slane %v7236, 7
      %v7239 = vshll.u32 %v7063, 16
      %v7241 = vor.u32 %v7238, %v7239
      %v7242 = vsel %vm7066, %v7234, %v7241
      %v7243 = vld [vmem:[%s5] sm:$0xf]
      %v7244 = vld [vmem:[%s5 + $0x4] sm:$0xf]
      %v7245 = vld [vmem:[%s5 + $0x8] sm:$0xf]
      %v7246 = vld [vmem:[%s5 + $0xc] sm:$0xf]
      %v7247 = vld [vmem:[%s5 + $0x10] sm:$0xf]
      %v7248 = vld [vmem:[%s5 + $0x14] sm:$0xf]
      %v7249 = vld [vmem:[%s5 + $0x18] sm:$0xf]
      %v7250 = vld [vmem:[%s5 + $0x1c] sm:$0xf]
      %v7251 = vld [vmem:[%s5 + $0x20] sm:$0xf]
      %v7252 = vld [vmem:[%s5 + $0x24] sm:$0xf]
      %v7253 = vld [vmem:[%s5 + $0x28] sm:$0xf]
      %v7254 = vld [vmem:[%s5 + $0x2c] sm:$0xf]
      %v7255 = vld [vmem:[%s5 + $0x30] sm:$0xf]
      %v7256 = vld [vmem:[%s5 + $0x34] sm:$0xf]
      %v7257 = vld [vmem:[%s5 + $0x38] sm:$0xf]
      %v7258 = vld [vmem:[%s5 + $0x3c] sm:$0xf]
      %s7259 = scalar_lea.vmem %s5, 64
      %v7260 = vld [vmem:[%s7259] sm:$0xf]
      %v7261 = vld [vmem:[%s7259 + $0x4] sm:$0xf]
      %v7262 = vld [vmem:[%s7259 + $0x8] sm:$0xf]
      %v7263 = vld [vmem:[%s7259 + $0xc] sm:$0xf]
      %v7264 = vld [vmem:[%s7259 + $0x10] sm:$0xf]
      %v7265 = vld [vmem:[%s7259 + $0x14] sm:$0xf]
      %v7266 = vld [vmem:[%s7259 + $0x18] sm:$0xf]
      %v7267 = vld [vmem:[%s7259 + $0x1c] sm:$0xf]
      %v7268 = vld [vmem:[%s7259 + $0x20] sm:$0xf]
      %v7269 = vld [vmem:[%s7259 + $0x24] sm:$0xf]
      %v7270 = vld [vmem:[%s7259 + $0x28] sm:$0xf]
      %v7271 = vld [vmem:[%s7259 + $0x2c] sm:$0xf]
      %v7272 = vld [vmem:[%s7259 + $0x30] sm:$0xf]
      %v7273 = vld [vmem:[%s7259 + $0x34] sm:$0xf]
      %v7274 = vld [vmem:[%s7259 + $0x38] sm:$0xf]
      %v7275 = vld [vmem:[%s7259 + $0x3c] sm:$0xf]
      %v7292 = vunpack.c.l.b16 %v7041
      %v7293 = vunpack.c.l.b16 %v7042
      %v7294 = vunpack.c.l.b16 %v7044
      %v7295 = vunpack.c.l.b16 %v7045
      %v7296 = vunpack.c.l.b16 %v7047
      %v7297 = vunpack.c.l.b16 %v7048
      %v7298 = vunpack.c.l.b16 %v7050
      %v7299 = vunpack.c.l.b16 %v7051
      %v7300 = vunpack.c.l.b16 %v7053
      %v7301 = vunpack.c.l.b16 %v7054
      %v7302 = vunpack.c.l.b16 %v7056
      %v7303 = vunpack.c.l.b16 %v7057
      %v7304 = vunpack.c.l.b16 %v7059
      %v7305 = vunpack.c.l.b16 %v7060
      %v7306 = vunpack.c.l.b16 %v7062
      %v7307 = vunpack.c.l.b16 %v7063
      %v7308 = vpack.c.b16 %v7293, %v7292
      %v7309 = vpack.c.b16 %v7295, %v7294
      %v7310 = vpack.c.b16 %v7297, %v7296
      %v7311 = vpack.c.b16 %v7299, %v7298
      %v7312 = vpack.c.b16 %v7301, %v7300
      %v7313 = vpack.c.b16 %v7303, %v7302
      %v7314 = vpack.c.b16 %v7305, %v7304
      %v7315 = vpack.c.b16 %v7307, %v7306
      %v7340 = vunpack.c.l.b16 %v7260
      %v7341 = vunpack.c.l.b16 %v7261
      %v7342 = vunpack.c.l.b16 %v7262
      %v7343 = vunpack.c.l.b16 %v7263
      %v7344 = vunpack.c.l.b16 %v7264
      %v7345 = vunpack.c.l.b16 %v7265
      %v7346 = vunpack.c.l.b16 %v7266
      %v7347 = vunpack.c.l.b16 %v7267
      %v7348 = vunpack.c.l.b16 %v7268
      %v7349 = vunpack.c.l.b16 %v7269
      %v7350 = vunpack.c.l.b16 %v7270
      %v7351 = vunpack.c.l.b16 %v7271
      %v7352 = vunpack.c.l.b16 %v7272
      %v7353 = vunpack.c.l.b16 %v7273
      %v7354 = vunpack.c.l.b16 %v7274
      %v7355 = vunpack.c.l.b16 %v7275
      %v7356 = vpack.c.b16 %v7341, %v7340
      %v7357 = vpack.c.b16 %v7343, %v7342
      %v7358 = vpack.c.b16 %v7345, %v7344
      %v7359 = vpack.c.b16 %v7347, %v7346
      %v7360 = vpack.c.b16 %v7349, %v7348
      %v7361 = vpack.c.b16 %v7351, %v7350
      %v7362 = vpack.c.b16 %v7353, %v7352
      %v7363 = vpack.c.b16 %v7355, %v7354
      %7372 = vmatpush.bf16.msra.mxu0 %v7363
      %7373 = vmatpush.bf16.msra.mxu0 %v7362
      %7374 = vmatpush.bf16.msra.mxu0 %v7361
      %7375 = vmatpush.bf16.msra.mxu0 %v7360
      %7376 = vmatpush.bf16.msra.mxu0 %v7359
      %7377 = vmatpush.bf16.msra.mxu0 %v7358
      %7378 = vmatpush.bf16.msra.mxu0 %v7357
      %7379 = vmatpush.bf16.msra.mxu0 %v7356
      %7380 = vmatmul.bf16.gmra.mxu0 %v7308
      %v7381 = vpop.f32.mrf.mxu0
      %v7382 = vadd.f32 0.0, %v7381
      %v7383 = vpop.f32.mrf.mxu0
      %v7384 = vadd.f32 0.0, %v7383
      %7385 = vmatmul.bf16.gmra.mxu0 %v7309
      %v7386 = vpop.f32.mrf.mxu0
      %v7387 = vadd.f32 0.0, %v7386
      %v7388 = vpop.f32.mrf.mxu0
      %v7389 = vadd.f32 0.0, %v7388
      %7390 = vmatmul.bf16.gmra.mxu0 %v7310
      %v7391 = vpop.f32.mrf.mxu0
      %v7392 = vadd.f32 0.0, %v7391
      %v7393 = vpop.f32.mrf.mxu0
      %v7394 = vadd.f32 0.0, %v7393
      %7395 = vmatmul.bf16.gmra.mxu0 %v7311
      %v7396 = vpop.f32.mrf.mxu0
      %v7397 = vadd.f32 0.0, %v7396
      %v7398 = vpop.f32.mrf.mxu0
      %v7399 = vadd.f32 0.0, %v7398
      %7400 = vmatmul.bf16.gmra.mxu0 %v7312
      %v7401 = vpop.f32.mrf.mxu0
      %v7402 = vadd.f32 0.0, %v7401
      %v7403 = vpop.f32.mrf.mxu0
      %v7404 = vadd.f32 0.0, %v7403
      %7405 = vmatmul.bf16.gmra.mxu0 %v7313
      %v7406 = vpop.f32.mrf.mxu0
      %v7407 = vadd.f32 0.0, %v7406
      %v7408 = vpop.f32.mrf.mxu0
      %v7409 = vadd.f32 0.0, %v7408
      %7410 = vmatmul.bf16.gmra.mxu0 %v7314
      %v7411 = vpop.f32.mrf.mxu0
      %v7412 = vadd.f32 0.0, %v7411
      %v7413 = vpop.f32.mrf.mxu0
      %v7414 = vadd.f32 0.0, %v7413
      %7415 = vmatmul.bf16.gmra.mxu0 %v7315
      %v7416 = vpop.f32.mrf.mxu0
      %v7417 = vadd.f32 0.0, %v7416
      %v7418 = vpop.f32.mrf.mxu0
      %v7419 = vadd.f32 0.0, %v7418
      %7420 = vdwg.mxu0
      %v7421 = vunpack.c.l.b16 %v7079
      %v7422 = vunpack.c.l.b16 %v7088
      %v7423 = vunpack.c.l.b16 %v7101
      %v7424 = vunpack.c.l.b16 %v7110
      %v7425 = vunpack.c.l.b16 %v7123
      %v7426 = vunpack.c.l.b16 %v7132
      %v7427 = vunpack.c.l.b16 %v7145
      %v7428 = vunpack.c.l.b16 %v7154
      %v7429 = vunpack.c.l.b16 %v7167
      %v7430 = vunpack.c.l.b16 %v7176
      %v7431 = vunpack.c.l.b16 %v7189
      %v7432 = vunpack.c.l.b16 %v7198
      %v7433 = vunpack.c.l.b16 %v7211
      %v7434 = vunpack.c.l.b16 %v7220
      %v7435 = vunpack.c.l.b16 %v7233
      %v7436 = vunpack.c.l.b16 %v7242
      %v7437 = vpack.c.b16 %v7422, %v7421
      %v7438 = vpack.c.b16 %v7424, %v7423
      %v7439 = vpack.c.b16 %v7426, %v7425
      %v7440 = vpack.c.b16 %v7428, %v7427
      %v7441 = vpack.c.b16 %v7430, %v7429
      %v7442 = vpack.c.b16 %v7432, %v7431
      %v7443 = vpack.c.b16 %v7434, %v7433
      %v7444 = vpack.c.b16 %v7436, %v7435
      %v7469 = vunpack.c.l.b16 %v7243
      %v7470 = vunpack.c.l.b16 %v7244
      %v7471 = vunpack.c.l.b16 %v7245
      %v7472 = vunpack.c.l.b16 %v7246
      %v7473 = vunpack.c.l.b16 %v7247
      %v7474 = vunpack.c.l.b16 %v7248
      %v7475 = vunpack.c.l.b16 %v7249
      %v7476 = vunpack.c.l.b16 %v7250
      %v7477 = vunpack.c.l.b16 %v7251
      %v7478 = vunpack.c.l.b16 %v7252
      %v7479 = vunpack.c.l.b16 %v7253
      %v7480 = vunpack.c.l.b16 %v7254
      %v7481 = vunpack.c.l.b16 %v7255
      %v7482 = vunpack.c.l.b16 %v7256
      %v7483 = vunpack.c.l.b16 %v7257
      %v7484 = vunpack.c.l.b16 %v7258
      %v7485 = vpack.c.b16 %v7470, %v7469
      %v7486 = vpack.c.b16 %v7472, %v7471
      %v7487 = vpack.c.b16 %v7474, %v7473
      %v7488 = vpack.c.b16 %v7476, %v7475
      %v7489 = vpack.c.b16 %v7478, %v7477
      %v7490 = vpack.c.b16 %v7480, %v7479
      %v7491 = vpack.c.b16 %v7482, %v7481
      %v7492 = vpack.c.b16 %v7484, %v7483
      %7501 = vmatpush.bf16.msra.mxu0 %v7492
      %7502 = vmatpush.bf16.msra.mxu0 %v7491
      %7503 = vmatpush.bf16.msra.mxu0 %v7490
      %7504 = vmatpush.bf16.msra.mxu0 %v7489
      %7505 = vmatpush.bf16.msra.mxu0 %v7488
      %7506 = vmatpush.bf16.msra.mxu0 %v7487
      %7507 = vmatpush.bf16.msra.mxu0 %v7486
      %7508 = vmatpush.bf16.msra.mxu0 %v7485
      %7509 = vmatmul.bf16.gmra.mxu0 %v7437
      %v7510 = vpop.f32.mrf.mxu0
      %v7511 = vadd.f32 %v7382, %v7510
      %v7512 = vpop.f32.mrf.mxu0
      %v7513 = vadd.f32 %v7384, %v7512
      %7514 = vmatmul.bf16.gmra.mxu0 %v7438
      %v7515 = vpop.f32.mrf.mxu0
      %v7516 = vadd.f32 %v7387, %v7515
      %v7517 = vpop.f32.mrf.mxu0
      %v7518 = vadd.f32 %v7389, %v7517
      %7519 = vmatmul.bf16.gmra.mxu0 %v7439
      %v7520 = vpop.f32.mrf.mxu0
      %v7521 = vadd.f32 %v7392, %v7520
      %v7522 = vpop.f32.mrf.mxu0
      %v7523 = vadd.f32 %v7394, %v7522
      %7524 = vmatmul.bf16.gmra.mxu0 %v7440
      %v7525 = vpop.f32.mrf.mxu0
      %v7526 = vadd.f32 %v7397, %v7525
      %v7527 = vpop.f32.mrf.mxu0
      %v7528 = vadd.f32 %v7399, %v7527
      %7529 = vmatmul.bf16.gmra.mxu0 %v7441
      %v7530 = vpop.f32.mrf.mxu0
      %v7531 = vadd.f32 %v7402, %v7530
      %v7532 = vpop.f32.mrf.mxu0
      %v7533 = vadd.f32 %v7404, %v7532
      %7534 = vmatmul.bf16.gmra.mxu0 %v7442
      %v7535 = vpop.f32.mrf.mxu0
      %v7536 = vadd.f32 %v7407, %v7535
      %v7537 = vpop.f32.mrf.mxu0
      %v7538 = vadd.f32 %v7409, %v7537
      %7539 = vmatmul.bf16.gmra.mxu0 %v7443
      %v7540 = vpop.f32.mrf.mxu0
      %v7541 = vadd.f32 %v7412, %v7540
      %v7542 = vpop.f32.mrf.mxu0
      %v7543 = vadd.f32 %v7414, %v7542
      %7544 = vmatmul.bf16.gmra.mxu0 %v7444
      %v7545 = vpop.f32.mrf.mxu0
      %v7546 = vadd.f32 %v7417, %v7545
      %v7547 = vpop.f32.mrf.mxu0
      %v7548 = vadd.f32 %v7419, %v7547
      %7549 = vdwg.mxu0
      %v7550 = vld [vmem:[#allocation2 + $0x4] sm:$0xf]
      %v7551 = vld [vmem:[#allocation2 + $0x8] sm:$0xf]
      %v7552 = vld [vmem:[#allocation2 + $0xc] sm:$0x1]
      %v7553 = vld [vmem:[#allocation2 + $0x14] sm:$0xf]
      %v7554 = vld [vmem:[#allocation2 + $0x18] sm:$0xf]
      %v7555 = vld [vmem:[#allocation2 + $0x1c] sm:$0x1]
      %v7556 = vld [vmem:[#allocation2 + $0x24] sm:$0xf]
      %v7557 = vld [vmem:[#allocation2 + $0x28] sm:$0xf]
      %v7558 = vld [vmem:[#allocation2 + $0x2c] sm:$0x1]
      %v7559 = vld [vmem:[#allocation2 + $0x34] sm:$0xf]
      %v7560 = vld [vmem:[#allocation2 + $0x38] sm:$0xf]
      %v7561 = vld [vmem:[#allocation2 + $0x3c] sm:$0x1]
      %v7562 = vld [vmem:[#allocation2 + $0x44] sm:$0xf]
      %v7563 = vld [vmem:[#allocation2 + $0x48] sm:$0xf]
      %v7564 = vld [vmem:[#allocation2 + $0x4c] sm:$0x1]
      %v7565 = vld [vmem:[#allocation2 + $0x54] sm:$0xf]
      %v7566 = vld [vmem:[#allocation2 + $0x58] sm:$0xf]
      %v7567 = vld [vmem:[#allocation2 + $0x5c] sm:$0x1]
      %v7568 = vld [vmem:[#allocation2 + $0x64] sm:$0xf]
      %v7569 = vld [vmem:[#allocation2 + $0x68] sm:$0xf]
      %v7570 = vld [vmem:[#allocation2 + $0x6c] sm:$0x1]
      %v7571 = vld [vmem:[#allocation2 + $0x74] sm:$0xf]
      %v7572 = vld [vmem:[#allocation2 + $0x78] sm:$0xf]
      %v7573 = vld [vmem:[#allocation2 + $0x7c] sm:$0x1]
      %v7575 = vshrl.u32 %v7550, 16
      %v7577 = vrot.slane %v7575, 4
      %v7578 = vshll.u32 %v7550, 16
      %v7580 = vrot.slane %v7578, 5
      %v7581 = vor.u32 %v7577, %v7580
      %v7582 = vrot.slane %v7581, 4
      %v7584 = vshll.u32 %v7551, 16
      %v7586 = vrot.slane %v7584, 5
      %v7587 = vsel %vm769, %v7582, %v7586
      %v7588 = vshrl.u32 %v7551, 16
      %v7590 = vrot.slane %v7588, 4
      %v7591 = vor.u32 %v7590, %v7586
      %v7592 = vrot.slane %v7591, 4
      %v7594 = vshll.u32 %v7552, 16
      %v7596 = vrot.slane %v7594, 5
      %v7597 = vsel %vm769, %v7592, %v7596
      %v7599 = vshrl.u32 %v7553, 16
      %v7601 = vrot.slane %v7599, 4
      %v7602 = vshll.u32 %v7553, 16
      %v7604 = vrot.slane %v7602, 5
      %v7605 = vor.u32 %v7601, %v7604
      %v7606 = vrot.slane %v7605, 4
      %v7608 = vshll.u32 %v7554, 16
      %v7610 = vrot.slane %v7608, 5
      %v7611 = vsel %vm769, %v7606, %v7610
      %v7612 = vshrl.u32 %v7554, 16
      %v7614 = vrot.slane %v7612, 4
      %v7615 = vor.u32 %v7614, %v7610
      %v7616 = vrot.slane %v7615, 4
      %v7618 = vshll.u32 %v7555, 16
      %v7620 = vrot.slane %v7618, 5
      %v7621 = vsel %vm769, %v7616, %v7620
      %v7623 = vshrl.u32 %v7556, 16
      %v7625 = vrot.slane %v7623, 4
      %v7626 = vshll.u32 %v7556, 16
      %v7628 = vrot.slane %v7626, 5
      %v7629 = vor.u32 %v7625, %v7628
      %v7630 = vrot.slane %v7629, 4
      %v7632 = vshll.u32 %v7557, 16
      %v7634 = vrot.slane %v7632, 5
      %v7635 = vsel %vm769, %v7630, %v7634
      %v7636 = vshrl.u32 %v7557, 16
      %v7638 = vrot.slane %v7636, 4
      %v7639 = vor.u32 %v7638, %v7634
      %v7640 = vrot.slane %v7639, 4
      %v7642 = vshll.u32 %v7558, 16
      %v7644 = vrot.slane %v7642, 5
      %v7645 = vsel %vm769, %v7640, %v7644
      %v7647 = vshrl.u32 %v7559, 16
      %v7649 = vrot.slane %v7647, 4
      %v7650 = vshll.u32 %v7559, 16
      %v7652 = vrot.slane %v7650, 5
      %v7653 = vor.u32 %v7649, %v7652
      %v7654 = vrot.slane %v7653, 4
      %v7656 = vshll.u32 %v7560, 16
      %v7658 = vrot.slane %v7656, 5
      %v7659 = vsel %vm769, %v7654, %v7658
      %v7660 = vshrl.u32 %v7560, 16
      %v7662 = vrot.slane %v7660, 4
      %v7663 = vor.u32 %v7662, %v7658
      %v7664 = vrot.slane %v7663, 4
      %v7666 = vshll.u32 %v7561, 16
      %v7668 = vrot.slane %v7666, 5
      %v7669 = vsel %vm769, %v7664, %v7668
      %v7671 = vshrl.u32 %v7562, 16
      %v7673 = vrot.slane %v7671, 4
      %v7674 = vshll.u32 %v7562, 16
      %v7676 = vrot.slane %v7674, 5
      %v7677 = vor.u32 %v7673, %v7676
      %v7678 = vrot.slane %v7677, 4
      %v7680 = vshll.u32 %v7563, 16
      %v7682 = vrot.slane %v7680, 5
      %v7683 = vsel %vm769, %v7678, %v7682
      %v7684 = vshrl.u32 %v7563, 16
      %v7686 = vrot.slane %v7684, 4
      %v7687 = vor.u32 %v7686, %v7682
      %v7688 = vrot.slane %v7687, 4
      %v7690 = vshll.u32 %v7564, 16
      %v7692 = vrot.slane %v7690, 5
      %v7693 = vsel %vm769, %v7688, %v7692
      %v7695 = vshrl.u32 %v7565, 16
      %v7697 = vrot.slane %v7695, 4
      %v7698 = vshll.u32 %v7565, 16
      %v7700 = vrot.slane %v7698, 5
      %v7701 = vor.u32 %v7697, %v7700
      %v7702 = vrot.slane %v7701, 4
      %v7704 = vshll.u32 %v7566, 16
      %v7706 = vrot.slane %v7704, 5
      %v7707 = vsel %vm769, %v7702, %v7706
      %v7708 = vshrl.u32 %v7566, 16
      %v7710 = vrot.slane %v7708, 4
      %v7711 = vor.u32 %v7710, %v7706
      %v7712 = vrot.slane %v7711, 4
      %v7714 = vshll.u32 %v7567, 16
      %v7716 = vrot.slane %v7714, 5
      %v7717 = vsel %vm769, %v7712, %v7716
      %v7719 = vshrl.u32 %v7568, 16
      %v7721 = vrot.slane %v7719, 4
      %v7722 = vshll.u32 %v7568, 16
      %v7724 = vrot.slane %v7722, 5
      %v7725 = vor.u32 %v7721, %v7724
      %v7726 = vrot.slane %v7725, 4
      %v7728 = vshll.u32 %v7569, 16
      %v7730 = vrot.slane %v7728, 5
      %v7731 = vsel %vm769, %v7726, %v7730
      %v7732 = vshrl.u32 %v7569, 16
      %v7734 = vrot.slane %v7732, 4
      %v7735 = vor.u32 %v7734, %v7730
      %v7736 = vrot.slane %v7735, 4
      %v7738 = vshll.u32 %v7570, 16
      %v7740 = vrot.slane %v7738, 5
      %v7741 = vsel %vm769, %v7736, %v7740
      %v7743 = vshrl.u32 %v7571, 16
      %v7745 = vrot.slane %v7743, 4
      %v7746 = vshll.u32 %v7571, 16
      %v7748 = vrot.slane %v7746, 5
      %v7749 = vor.u32 %v7745, %v7748
      %v7750 = vrot.slane %v7749, 4
      %v7752 = vshll.u32 %v7572, 16
      %v7754 = vrot.slane %v7752, 5
      %v7755 = vsel %vm769, %v7750, %v7754
      %v7756 = vshrl.u32 %v7572, 16
      %v7758 = vrot.slane %v7756, 4
      %v7759 = vor.u32 %v7758, %v7754
      %v7760 = vrot.slane %v7759, 4
      %v7762 = vshll.u32 %v7573, 16
      %v7764 = vrot.slane %v7762, 5
      %v7765 = vsel %vm769, %v7760, %v7764
      %s7766 = scalar_lea.vmem %s5, 128
      %v7767 = vld [vmem:[%s7766] sm:$0xf]
      %v7768 = vld [vmem:[%s7766 + $0x4] sm:$0xf]
      %v7769 = vld [vmem:[%s7766 + $0x8] sm:$0xf]
      %v7770 = vld [vmem:[%s7766 + $0xc] sm:$0xf]
      %v7771 = vld [vmem:[%s7766 + $0x10] sm:$0xf]
      %v7772 = vld [vmem:[%s7766 + $0x14] sm:$0xf]
      %v7773 = vld [vmem:[%s7766 + $0x18] sm:$0xf]
      %v7774 = vld [vmem:[%s7766 + $0x1c] sm:$0xf]
      %v7775 = vld [vmem:[%s7766 + $0x20] sm:$0xf]
      %v7776 = vld [vmem:[%s7766 + $0x24] sm:$0xf]
      %v7777 = vld [vmem:[%s7766 + $0x28] sm:$0xf]
      %v7778 = vld [vmem:[%s7766 + $0x2c] sm:$0xf]
      %v7779 = vld [vmem:[%s7766 + $0x30] sm:$0xf]
      %v7780 = vld [vmem:[%s7766 + $0x34] sm:$0xf]
      %v7781 = vld [vmem:[%s7766 + $0x38] sm:$0xf]
      %v7782 = vld [vmem:[%s7766 + $0x3c] sm:$0xf]
      %v7783 = vunpack.c.l.b16 %v7587
      %v7784 = vunpack.c.l.b16 %v7597
      %v7785 = vunpack.c.l.b16 %v7611
      %v7786 = vunpack.c.l.b16 %v7621
      %v7787 = vunpack.c.l.b16 %v7635
      %v7788 = vunpack.c.l.b16 %v7645
      %v7789 = vunpack.c.l.b16 %v7659
      %v7790 = vunpack.c.l.b16 %v7669
      %v7791 = vunpack.c.l.b16 %v7683
      %v7792 = vunpack.c.l.b16 %v7693
      %v7793 = vunpack.c.l.b16 %v7707
      %v7794 = vunpack.c.l.b16 %v7717
      %v7795 = vunpack.c.l.b16 %v7731
      %v7796 = vunpack.c.l.b16 %v7741
      %v7797 = vunpack.c.l.b16 %v7755
      %v7798 = vunpack.c.l.b16 %v7765
      %v7799 = vpack.c.b16 %v7784, %v7783
      %v7800 = vpack.c.b16 %v7786, %v7785
      %v7801 = vpack.c.b16 %v7788, %v7787
      %v7802 = vpack.c.b16 %v7790, %v7789
      %v7803 = vpack.c.b16 %v7792, %v7791
      %v7804 = vpack.c.b16 %v7794, %v7793
      %v7805 = vpack.c.b16 %v7796, %v7795
      %v7806 = vpack.c.b16 %v7798, %v7797
      %v7831 = vunpack.c.l.b16 %v7767
      %v7832 = vunpack.c.l.b16 %v7768
      %v7833 = vunpack.c.l.b16 %v7769
      %v7834 = vunpack.c.l.b16 %v7770
      %v7835 = vunpack.c.l.b16 %v7771
      %v7836 = vunpack.c.l.b16 %v7772
      %v7837 = vunpack.c.l.b16 %v7773
      %v7838 = vunpack.c.l.b16 %v7774
      %v7839 = vunpack.c.l.b16 %v7775
      %v7840 = vunpack.c.l.b16 %v7776
      %v7841 = vunpack.c.l.b16 %v7777
      %v7842 = vunpack.c.l.b16 %v7778
      %v7843 = vunpack.c.l.b16 %v7779
      %v7844 = vunpack.c.l.b16 %v7780
      %v7845 = vunpack.c.l.b16 %v7781
      %v7846 = vunpack.c.l.b16 %v7782
      %v7847 = vpack.c.b16 %v7832, %v7831
      %v7848 = vpack.c.b16 %v7834, %v7833
      %v7849 = vpack.c.b16 %v7836, %v7835
      %v7850 = vpack.c.b16 %v7838, %v7837
      %v7851 = vpack.c.b16 %v7840, %v7839
      %v7852 = vpack.c.b16 %v7842, %v7841
      %v7853 = vpack.c.b16 %v7844, %v7843
      %v7854 = vpack.c.b16 %v7846, %v7845
      %7863 = vmatpush.bf16.msra.mxu0 %v7854
      %7864 = vmatpush.bf16.msra.mxu0 %v7853
      %7865 = vmatpush.bf16.msra.mxu0 %v7852
      %7866 = vmatpush.bf16.msra.mxu0 %v7851
      %7867 = vmatpush.bf16.msra.mxu0 %v7850
      %7868 = vmatpush.bf16.msra.mxu0 %v7849
      %7869 = vmatpush.bf16.msra.mxu0 %v7848
      %7870 = vmatpush.bf16.msra.mxu0 %v7847
      %7871 = vmatmul.bf16.gmra.mxu0 %v7799
      %v7872 = vpop.f32.mrf.mxu0
      %v7873 = vadd.f32 0.0, %v7872
      %v7874 = vpop.f32.mrf.mxu0
      %v7875 = vadd.f32 0.0, %v7874
      %7876 = vmatmul.bf16.gmra.mxu0 %v7800
      %v7877 = vpop.f32.mrf.mxu0
      %v7878 = vadd.f32 0.0, %v7877
      %v7879 = vpop.f32.mrf.mxu0
      %v7880 = vadd.f32 0.0, %v7879
      %7881 = vmatmul.bf16.gmra.mxu0 %v7801
      %v7882 = vpop.f32.mrf.mxu0
      %v7883 = vadd.f32 0.0, %v7882
      %v7884 = vpop.f32.mrf.mxu0
      %v7885 = vadd.f32 0.0, %v7884
      %7886 = vmatmul.bf16.gmra.mxu0 %v7802
      %v7887 = vpop.f32.mrf.mxu0
      %v7888 = vadd.f32 0.0, %v7887
      %v7889 = vpop.f32.mrf.mxu0
      %v7890 = vadd.f32 0.0, %v7889
      %7891 = vmatmul.bf16.gmra.mxu0 %v7803
      %v7892 = vpop.f32.mrf.mxu0
      %v7893 = vadd.f32 0.0, %v7892
      %v7894 = vpop.f32.mrf.mxu0
      %v7895 = vadd.f32 0.0, %v7894
      %7896 = vmatmul.bf16.gmra.mxu0 %v7804
      %v7897 = vpop.f32.mrf.mxu0
      %v7898 = vadd.f32 0.0, %v7897
      %v7899 = vpop.f32.mrf.mxu0
      %v7900 = vadd.f32 0.0, %v7899
      %7901 = vmatmul.bf16.gmra.mxu0 %v7805
      %v7902 = vpop.f32.mrf.mxu0
      %v7903 = vadd.f32 0.0, %v7902
      %v7904 = vpop.f32.mrf.mxu0
      %v7905 = vadd.f32 0.0, %v7904
      %7906 = vmatmul.bf16.gmra.mxu0 %v7806
      %v7907 = vpop.f32.mrf.mxu0
      %v7908 = vadd.f32 0.0, %v7907
      %v7909 = vpop.f32.mrf.mxu0
      %v7910 = vadd.f32 0.0, %v7909
      %7911 = vdwg.mxu0
      %v7912 = vadd.f32 %v7511, %v7873
      %v7913 = vadd.f32 %v7513, %v7875
      %v7914 = vadd.f32 %v7516, %v7878
      %v7915 = vadd.f32 %v7518, %v7880
      %v7916 = vadd.f32 %v7521, %v7883
      %v7917 = vadd.f32 %v7523, %v7885
      %v7918 = vadd.f32 %v7526, %v7888
      %v7919 = vadd.f32 %v7528, %v7890
      %v7920 = vadd.f32 %v7531, %v7893
      %v7921 = vadd.f32 %v7533, %v7895
      %v7922 = vadd.f32 %v7536, %v7898
      %v7923 = vadd.f32 %v7538, %v7900
      %v7924 = vadd.f32 %v7541, %v7903
      %v7925 = vadd.f32 %v7543, %v7905
      %v7926 = vadd.f32 %v7546, %v7908
      %v7927 = vadd.f32 %v7548, %v7910
      %s7928 = scalar_lea.vmem [#allocation2], 16
      %v7929 = vld [vmem:[%s7928] sm:$0x8]
      %v7930 = vld [vmem:[%s7928 + $0x4] sm:$0xf]
      %v7931 = vld [vmem:[%s7928 + $0x8] sm:$0xf]
      %v7932 = vld [vmem:[%s7928 + $0x10] sm:$0x8]
      %v7933 = vld [vmem:[%s7928 + $0x14] sm:$0xf]
      %v7934 = vld [vmem:[%s7928 + $0x18] sm:$0xf]
      %v7935 = vld [vmem:[%s7928 + $0x20] sm:$0x8]
      %v7936 = vld [vmem:[%s7928 + $0x24] sm:$0xf]
      %v7937 = vld [vmem:[%s7928 + $0x28] sm:$0xf]
      %v7938 = vld [vmem:[%s7928 + $0x30] sm:$0x8]
      %v7939 = vld [vmem:[%s7928 + $0x34] sm:$0xf]
      %v7940 = vld [vmem:[%s7928 + $0x38] sm:$0xf]
      %v7941 = vld [vmem:[%s7928 + $0x40] sm:$0x8]
      %v7942 = vld [vmem:[%s7928 + $0x44] sm:$0xf]
      %v7943 = vld [vmem:[%s7928 + $0x48] sm:$0xf]
      %v7944 = vld [vmem:[%s7928 + $0x50] sm:$0x8]
      %v7945 = vld [vmem:[%s7928 + $0x54] sm:$0xf]
      %v7946 = vld [vmem:[%s7928 + $0x58] sm:$0xf]
      %v7947 = vld [vmem:[%s7928 + $0x60] sm:$0x8]
      %v7948 = vld [vmem:[%s7928 + $0x64] sm:$0xf]
      %v7949 = vld [vmem:[%s7928 + $0x68] sm:$0xf]
      %v7950 = vld [vmem:[%s7928 + $0x70] sm:$0x8]
      %v7951 = vld [vmem:[%s7928 + $0x74] sm:$0xf]
      %v7952 = vld [vmem:[%s7928 + $0x78] sm:$0xf]
      %v7954 = vshrl.u32 %v7929, 16
      %v7956 = vrot.slane %v7954, 7
      %v7957 = vrot.slane %v7956, 4
      %v7959 = vshrl.u32 %v7930, 16
      %v7961 = vrot.slane %v7959, 7
      %v7962 = vshll.u32 %v7930, 16
      %v7964 = vor.u32 %v7961, %v7962
      %v7965 = vsel %vm7066, %v7957, %v7964
      %v7966 = vrot.slane %v7961, 4
      %v7968 = vshrl.u32 %v7931, 16
      %v7970 = vrot.slane %v7968, 7
      %v7971 = vshll.u32 %v7931, 16
      %v7973 = vor.u32 %v7970, %v7971
      %v7974 = vsel %vm7066, %v7966, %v7973
      %v7976 = vshrl.u32 %v7932, 16
      %v7978 = vrot.slane %v7976, 7
      %v7979 = vrot.slane %v7978, 4
      %v7981 = vshrl.u32 %v7933, 16
      %v7983 = vrot.slane %v7981, 7
      %v7984 = vshll.u32 %v7933, 16
      %v7986 = vor.u32 %v7983, %v7984
      %v7987 = vsel %vm7066, %v7979, %v7986
      %v7988 = vrot.slane %v7983, 4
      %v7990 = vshrl.u32 %v7934, 16
      %v7992 = vrot.slane %v7990, 7
      %v7993 = vshll.u32 %v7934, 16
      %v7995 = vor.u32 %v7992, %v7993
      %v7996 = vsel %vm7066, %v7988, %v7995
      %v7998 = vshrl.u32 %v7935, 16
      %v8000 = vrot.slane %v7998, 7
      %v8001 = vrot.slane %v8000, 4
      %v8003 = vshrl.u32 %v7936, 16
      %v8005 = vrot.slane %v8003, 7
      %v8006 = vshll.u32 %v7936, 16
      %v8008 = vor.u32 %v8005, %v8006
      %v8009 = vsel %vm7066, %v8001, %v8008
      %v8010 = vrot.slane %v8005, 4
      %v8012 = vshrl.u32 %v7937, 16
      %v8014 = vrot.slane %v8012, 7
      %v8015 = vshll.u32 %v7937, 16
      %v8017 = vor.u32 %v8014, %v8015
      %v8018 = vsel %vm7066, %v8010, %v8017
      %v8020 = vshrl.u32 %v7938, 16
      %v8022 = vrot.slane %v8020, 7
      %v8023 = vrot.slane %v8022, 4
      %v8025 = vshrl.u32 %v7939, 16
      %v8027 = vrot.slane %v8025, 7
      %v8028 = vshll.u32 %v7939, 16
      %v8030 = vor.u32 %v8027, %v8028
      %v8031 = vsel %vm7066, %v8023, %v8030
      %v8032 = vrot.slane %v8027, 4
      %v8034 = vshrl.u32 %v7940, 16
      %v8036 = vrot.slane %v8034, 7
      %v8037 = vshll.u32 %v7940, 16
      %v8039 = vor.u32 %v8036, %v8037
      %v8040 = vsel %vm7066, %v8032, %v8039
      %v8042 = vshrl.u32 %v7941, 16
      %v8044 = vrot.slane %v8042, 7
      %v8045 = vrot.slane %v8044, 4
      %v8047 = vshrl.u32 %v7942, 16
      %v8049 = vrot.slane %v8047, 7
      %v8050 = vshll.u32 %v7942, 16
      %v8052 = vor.u32 %v8049, %v8050
      %v8053 = vsel %vm7066, %v8045, %v8052
      %v8054 = vrot.slane %v8049, 4
      %v8056 = vshrl.u32 %v7943, 16
      %v8058 = vrot.slane %v8056, 7
      %v8059 = vshll.u32 %v7943, 16
      %v8061 = vor.u32 %v8058, %v8059
      %v8062 = vsel %vm7066, %v8054, %v8061
      %v8064 = vshrl.u32 %v7944, 16
      %v8066 = vrot.slane %v8064, 7
      %v8067 = vrot.slane %v8066, 4
      %v8069 = vshrl.u32 %v7945, 16
      %v8071 = vrot.slane %v8069, 7
      %v8072 = vshll.u32 %v7945, 16
      %v8074 = vor.u32 %v8071, %v8072
      %v8075 = vsel %vm7066, %v8067, %v8074
      %v8076 = vrot.slane %v8071, 4
      %v8078 = vshrl.u32 %v7946, 16
      %v8080 = vrot.slane %v8078, 7
      %v8081 = vshll.u32 %v7946, 16
      %v8083 = vor.u32 %v8080, %v8081
      %v8084 = vsel %vm7066, %v8076, %v8083
      %v8086 = vshrl.u32 %v7947, 16
      %v8088 = vrot.slane %v8086, 7
      %v8089 = vrot.slane %v8088, 4
      %v8091 = vshrl.u32 %v7948, 16
      %v8093 = vrot.slane %v8091, 7
      %v8094 = vshll.u32 %v7948, 16
      %v8096 = vor.u32 %v8093, %v8094
      %v8097 = vsel %vm7066, %v8089, %v8096
      %v8098 = vrot.slane %v8093, 4
      %v8100 = vshrl.u32 %v7949, 16
      %v8102 = vrot.slane %v8100, 7
      %v8103 = vshll.u32 %v7949, 16
      %v8105 = vor.u32 %v8102, %v8103
      %v8106 = vsel %vm7066, %v8098, %v8105
      %v8108 = vshrl.u32 %v7950, 16
      %v8110 = vrot.slane %v8108, 7
      %v8111 = vrot.slane %v8110, 4
      %v8113 = vshrl.u32 %v7951, 16
      %v8115 = vrot.slane %v8113, 7
      %v8116 = vshll.u32 %v7951, 16
      %v8118 = vor.u32 %v8115, %v8116
      %v8119 = vsel %vm7066, %v8111, %v8118
      %v8120 = vrot.slane %v8115, 4
      %v8122 = vshrl.u32 %v7952, 16
      %v8124 = vrot.slane %v8122, 7
      %v8125 = vshll.u32 %v7952, 16
      %v8127 = vor.u32 %v8124, %v8125
      %v8128 = vsel %vm7066, %v8120, %v8127
      %s8129 = scalar_lea.vmem %s5, 192
      %v8130 = vld [vmem:[%s8129] sm:$0xf]
      %v8131 = vld [vmem:[%s8129 + $0x4] sm:$0xf]
      %v8132 = vld [vmem:[%s8129 + $0x8] sm:$0xf]
      %v8133 = vld [vmem:[%s8129 + $0xc] sm:$0xf]
      %v8134 = vld [vmem:[%s8129 + $0x10] sm:$0xf]
      %v8135 = vld [vmem:[%s8129 + $0x14] sm:$0xf]
      %v8136 = vld [vmem:[%s8129 + $0x18] sm:$0xf]
      %v8137 = vld [vmem:[%s8129 + $0x1c] sm:$0xf]
      %v8138 = vld [vmem:[%s8129 + $0x20] sm:$0xf]
      %v8139 = vld [vmem:[%s8129 + $0x24] sm:$0xf]
      %v8140 = vld [vmem:[%s8129 + $0x28] sm:$0xf]
      %v8141 = vld [vmem:[%s8129 + $0x2c] sm:$0xf]
      %v8142 = vld [vmem:[%s8129 + $0x30] sm:$0xf]
      %v8143 = vld [vmem:[%s8129 + $0x34] sm:$0xf]
      %v8144 = vld [vmem:[%s8129 + $0x38] sm:$0xf]
      %v8145 = vld [vmem:[%s8129 + $0x3c] sm:$0xf]
      %v8146 = vunpack.c.l.b16 %v7965
      %v8147 = vunpack.c.l.b16 %v7974
      %v8148 = vunpack.c.l.b16 %v7987
      %v8149 = vunpack.c.l.b16 %v7996
      %v8150 = vunpack.c.l.b16 %v8009
      %v8151 = vunpack.c.l.b16 %v8018
      %v8152 = vunpack.c.l.b16 %v8031
      %v8153 = vunpack.c.l.b16 %v8040
      %v8154 = vunpack.c.l.b16 %v8053
      %v8155 = vunpack.c.l.b16 %v8062
      %v8156 = vunpack.c.l.b16 %v8075
      %v8157 = vunpack.c.l.b16 %v8084
      %v8158 = vunpack.c.l.b16 %v8097
      %v8159 = vunpack.c.l.b16 %v8106
      %v8160 = vunpack.c.l.b16 %v8119
      %v8161 = vunpack.c.l.b16 %v8128
      %v8162 = vpack.c.b16 %v8147, %v8146
      %v8163 = vpack.c.b16 %v8149, %v8148
      %v8164 = vpack.c.b16 %v8151, %v8150
      %v8165 = vpack.c.b16 %v8153, %v8152
      %v8166 = vpack.c.b16 %v8155, %v8154
      %v8167 = vpack.c.b16 %v8157, %v8156
      %v8168 = vpack.c.b16 %v8159, %v8158
      %v8169 = vpack.c.b16 %v8161, %v8160
      %v8194 = vunpack.c.l.b16 %v8130
      %v8195 = vunpack.c.l.b16 %v8131
      %v8196 = vunpack.c.l.b16 %v8132
      %v8197 = vunpack.c.l.b16 %v8133
      %v8198 = vunpack.c.l.b16 %v8134
      %v8199 = vunpack.c.l.b16 %v8135
      %v8200 = vunpack.c.l.b16 %v8136
      %v8201 = vunpack.c.l.b16 %v8137
      %v8202 = vunpack.c.l.b16 %v8138
      %v8203 = vunpack.c.l.b16 %v8139
      %v8204 = vunpack.c.l.b16 %v8140
      %v8205 = vunpack.c.l.b16 %v8141
      %v8206 = vunpack.c.l.b16 %v8142
      %v8207 = vunpack.c.l.b16 %v8143
      %v8208 = vunpack.c.l.b16 %v8144
      %v8209 = vunpack.c.l.b16 %v8145
      %v8210 = vpack.c.b16 %v8195, %v8194
      %v8211 = vpack.c.b16 %v8197, %v8196
      %v8212 = vpack.c.b16 %v8199, %v8198
      %v8213 = vpack.c.b16 %v8201, %v8200
      %v8214 = vpack.c.b16 %v8203, %v8202
      %v8215 = vpack.c.b16 %v8205, %v8204
      %v8216 = vpack.c.b16 %v8207, %v8206
      %v8217 = vpack.c.b16 %v8209, %v8208
      %8226 = vmatpush.bf16.msra.mxu0 %v8217
      %8227 = vmatpush.bf16.msra.mxu0 %v8216
      %8228 = vmatpush.bf16.msra.mxu0 %v8215
      %8229 = vmatpush.bf16.msra.mxu0 %v8214
      %8230 = vmatpush.bf16.msra.mxu0 %v8213
      %8231 = vmatpush.bf16.msra.mxu0 %v8212
      %8232 = vmatpush.bf16.msra.mxu0 %v8211
      %8233 = vmatpush.bf16.msra.mxu0 %v8210
      %8234 = vmatmul.bf16.gmra.mxu0 %v8162
      %v8235 = vpop.f32.mrf.mxu0
      %v8236 = vadd.f32 0.0, %v8235
      %v8237 = vpop.f32.mrf.mxu0
      %v8238 = vadd.f32 0.0, %v8237
      %8239 = vmatmul.bf16.gmra.mxu0 %v8163
      %v8240 = vpop.f32.mrf.mxu0
      %v8241 = vadd.f32 0.0, %v8240
      %v8242 = vpop.f32.mrf.mxu0
      %v8243 = vadd.f32 0.0, %v8242
      %8244 = vmatmul.bf16.gmra.mxu0 %v8164
      %v8245 = vpop.f32.mrf.mxu0
      %v8246 = vadd.f32 0.0, %v8245
      %v8247 = vpop.f32.mrf.mxu0
      %v8248 = vadd.f32 0.0, %v8247
      %8249 = vmatmul.bf16.gmra.mxu0 %v8165
      %v8250 = vpop.f32.mrf.mxu0
      %v8251 = vadd.f32 0.0, %v8250
      %v8252 = vpop.f32.mrf.mxu0
      %v8253 = vadd.f32 0.0, %v8252
      %8254 = vmatmul.bf16.gmra.mxu0 %v8166
      %v8255 = vpop.f32.mrf.mxu0
      %v8256 = vadd.f32 0.0, %v8255
      %v8257 = vpop.f32.mrf.mxu0
      %v8258 = vadd.f32 0.0, %v8257
      %8259 = vmatmul.bf16.gmra.mxu0 %v8167
      %v8260 = vpop.f32.mrf.mxu0
      %v8261 = vadd.f32 0.0, %v8260
      %v8262 = vpop.f32.mrf.mxu0
      %v8263 = vadd.f32 0.0, %v8262
      %8264 = vmatmul.bf16.gmra.mxu0 %v8168
      %v8265 = vpop.f32.mrf.mxu0
      %v8266 = vadd.f32 0.0, %v8265
      %v8267 = vpop.f32.mrf.mxu0
      %v8268 = vadd.f32 0.0, %v8267
      %8269 = vmatmul.bf16.gmra.mxu0 %v8169
      %v8270 = vpop.f32.mrf.mxu0
      %v8271 = vadd.f32 0.0, %v8270
      %v8272 = vpop.f32.mrf.mxu0
      %v8273 = vadd.f32 0.0, %v8272
      %8274 = vdwg.mxu0
      %v8275 = vadd.f32 %v7912, %v8236
      %v8276 = vadd.f32 %v7913, %v8238
      %v8277 = vadd.f32 %v7914, %v8241
      %v8278 = vadd.f32 %v7915, %v8243
      %v8279 = vadd.f32 %v7916, %v8246
      %v8280 = vadd.f32 %v7917, %v8248
      %v8281 = vadd.f32 %v7918, %v8251
      %v8282 = vadd.f32 %v7919, %v8253
      %v8283 = vadd.f32 %v7920, %v8256
      %v8284 = vadd.f32 %v7921, %v8258
      %v8285 = vadd.f32 %v7922, %v8261
      %v8286 = vadd.f32 %v7923, %v8263
      %v8287 = vadd.f32 %v7924, %v8266
      %v8288 = vadd.f32 %v7925, %v8268
      %v8289 = vadd.f32 %v7926, %v8271
      %v8290 = vadd.f32 %v7927, %v8273
      %s8291 = scalar_lea.vmem %s5, 256
      %v8292 = vld [vmem:[%s8291] sm:$0xf]
      %v8293 = vld [vmem:[%s8291 + $0x4] sm:$0xf]
      %v8294 = vld [vmem:[%s8291 + $0x8] sm:$0xf]
      %v8295 = vld [vmem:[%s8291 + $0xc] sm:$0xf]
      %v8296 = vld [vmem:[%s8291 + $0x10] sm:$0xf]
      %v8297 = vld [vmem:[%s8291 + $0x14] sm:$0xf]
      %v8298 = vld [vmem:[%s8291 + $0x18] sm:$0xf]
      %v8299 = vld [vmem:[%s8291 + $0x1c] sm:$0xf]
      %v8300 = vld [vmem:[%s8291 + $0x20] sm:$0xf]
      %v8301 = vld [vmem:[%s8291 + $0x24] sm:$0xf]
      %v8302 = vld [vmem:[%s8291 + $0x28] sm:$0xf]
      %v8303 = vld [vmem:[%s8291 + $0x2c] sm:$0xf]
      %v8304 = vld [vmem:[%s8291 + $0x30] sm:$0xf]
      %v8305 = vld [vmem:[%s8291 + $0x34] sm:$0xf]
      %v8306 = vld [vmem:[%s8291 + $0x38] sm:$0xf]
      %v8307 = vld [vmem:[%s8291 + $0x3c] sm:$0xf]
      %v8324 = vunpack.c.l.b16 %v7930
      %v8325 = vunpack.c.l.b16 %v7931
      %v8326 = vunpack.c.l.b16 %v7933
      %v8327 = vunpack.c.l.b16 %v7934
      %v8328 = vunpack.c.l.b16 %v7936
      %v8329 = vunpack.c.l.b16 %v7937
      %v8330 = vunpack.c.l.b16 %v7939
      %v8331 = vunpack.c.l.b16 %v7940
      %v8332 = vunpack.c.l.b16 %v7942
      %v8333 = vunpack.c.l.b16 %v7943
      %v8334 = vunpack.c.l.b16 %v7945
      %v8335 = vunpack.c.l.b16 %v7946
      %v8336 = vunpack.c.l.b16 %v7948
      %v8337 = vunpack.c.l.b16 %v7949
      %v8338 = vunpack.c.l.b16 %v7951
      %v8339 = vunpack.c.l.b16 %v7952
      %v8340 = vpack.c.b16 %v8325, %v8324
      %v8341 = vpack.c.b16 %v8327, %v8326
      %v8342 = vpack.c.b16 %v8329, %v8328
      %v8343 = vpack.c.b16 %v8331, %v8330
      %v8344 = vpack.c.b16 %v8333, %v8332
      %v8345 = vpack.c.b16 %v8335, %v8334
      %v8346 = vpack.c.b16 %v8337, %v8336
      %v8347 = vpack.c.b16 %v8339, %v8338
      %v8372 = vunpack.c.l.b16 %v8292
      %v8373 = vunpack.c.l.b16 %v8293
      %v8374 = vunpack.c.l.b16 %v8294
      %v8375 = vunpack.c.l.b16 %v8295
      %v8376 = vunpack.c.l.b16 %v8296
      %v8377 = vunpack.c.l.b16 %v8297
      %v8378 = vunpack.c.l.b16 %v8298
      %v8379 = vunpack.c.l.b16 %v8299
      %v8380 = vunpack.c.l.b16 %v8300
      %v8381 = vunpack.c.l.b16 %v8301
      %v8382 = vunpack.c.l.b16 %v8302
      %v8383 = vunpack.c.l.b16 %v8303
      %v8384 = vunpack.c.l.b16 %v8304
      %v8385 = vunpack.c.l.b16 %v8305
      %v8386 = vunpack.c.l.b16 %v8306
      %v8387 = vunpack.c.l.b16 %v8307
      %v8388 = vpack.c.b16 %v8373, %v8372
      %v8389 = vpack.c.b16 %v8375, %v8374
      %v8390 = vpack.c.b16 %v8377, %v8376
      %v8391 = vpack.c.b16 %v8379, %v8378
      %v8392 = vpack.c.b16 %v8381, %v8380
      %v8393 = vpack.c.b16 %v8383, %v8382
      %v8394 = vpack.c.b16 %v8385, %v8384
      %v8395 = vpack.c.b16 %v8387, %v8386
      %8404 = vmatpush.bf16.msra.mxu0 %v8395
      %8405 = vmatpush.bf16.msra.mxu0 %v8394
      %8406 = vmatpush.bf16.msra.mxu0 %v8393
      %8407 = vmatpush.bf16.msra.mxu0 %v8392
      %8408 = vmatpush.bf16.msra.mxu0 %v8391
      %8409 = vmatpush.bf16.msra.mxu0 %v8390
      %8410 = vmatpush.bf16.msra.mxu0 %v8389
      %8411 = vmatpush.bf16.msra.mxu0 %v8388
      %8412 = vmatmul.bf16.gmra.mxu0 %v8340
      %v8413 = vpop.f32.mrf.mxu0
      %v8414 = vadd.f32 0.0, %v8413
      %v8415 = vpop.f32.mrf.mxu0
      %v8416 = vadd.f32 0.0, %v8415
      %8417 = vmatmul.bf16.gmra.mxu0 %v8341
      %v8418 = vpop.f32.mrf.mxu0
      %v8419 = vadd.f32 0.0, %v8418
      %v8420 = vpop.f32.mrf.mxu0
      %v8421 = vadd.f32 0.0, %v8420
      %8422 = vmatmul.bf16.gmra.mxu0 %v8342
      %v8423 = vpop.f32.mrf.mxu0
      %v8424 = vadd.f32 0.0, %v8423
      %v8425 = vpop.f32.mrf.mxu0
      %v8426 = vadd.f32 0.0, %v8425
      %8427 = vmatmul.bf16.gmra.mxu0 %v8343
      %v8428 = vpop.f32.mrf.mxu0
      %v8429 = vadd.f32 0.0, %v8428
      %v8430 = vpop.f32.mrf.mxu0
      %v8431 = vadd.f32 0.0, %v8430
      %8432 = vmatmul.bf16.gmra.mxu0 %v8344
      %v8433 = vpop.f32.mrf.mxu0
      %v8434 = vadd.f32 0.0, %v8433
      %v8435 = vpop.f32.mrf.mxu0
      %v8436 = vadd.f32 0.0, %v8435
      %8437 = vmatmul.bf16.gmra.mxu0 %v8345
      %v8438 = vpop.f32.mrf.mxu0
      %v8439 = vadd.f32 0.0, %v8438
      %v8440 = vpop.f32.mrf.mxu0
      %v8441 = vadd.f32 0.0, %v8440
      %8442 = vmatmul.bf16.gmra.mxu0 %v8346
      %v8443 = vpop.f32.mrf.mxu0
      %v8444 = vadd.f32 0.0, %v8443
      %v8445 = vpop.f32.mrf.mxu0
      %v8446 = vadd.f32 0.0, %v8445
      %8447 = vmatmul.bf16.gmra.mxu0 %v8347
      %v8448 = vpop.f32.mrf.mxu0
      %v8449 = vadd.f32 0.0, %v8448
      %v8450 = vpop.f32.mrf.mxu0
      %v8451 = vadd.f32 0.0, %v8450
      %8452 = vdwg.mxu0
      %v8453 = vadd.f32 %v8275, %v8414
      %v8454 = vadd.f32 %v8276, %v8416
      %v8455 = vadd.f32 %v8277, %v8419
      %v8456 = vadd.f32 %v8278, %v8421
      %v8457 = vadd.f32 %v8279, %v8424
      %v8458 = vadd.f32 %v8280, %v8426
      %v8459 = vadd.f32 %v8281, %v8429
      %v8460 = vadd.f32 %v8282, %v8431
      %v8461 = vadd.f32 %v8283, %v8434
      %v8462 = vadd.f32 %v8284, %v8436
      %v8463 = vadd.f32 %v8285, %v8439
      %v8464 = vadd.f32 %v8286, %v8441
      %v8465 = vadd.f32 %v8287, %v8444
      %v8466 = vadd.f32 %v8288, %v8446
      %v8467 = vadd.f32 %v8289, %v8449
      %v8468 = vadd.f32 %v8290, %v8451
      %v8469 = vld [vmem:[%s7928 + $0x4] sm:$0xf]
      %v8470 = vld [vmem:[%s7928 + $0x8] sm:$0xf]
      %v8471 = vld [vmem:[%s7928 + $0xc] sm:$0x1]
      %v8472 = vld [vmem:[%s7928 + $0x14] sm:$0xf]
      %v8473 = vld [vmem:[%s7928 + $0x18] sm:$0xf]
      %v8474 = vld [vmem:[%s7928 + $0x1c] sm:$0x1]
      %v8475 = vld [vmem:[%s7928 + $0x24] sm:$0xf]
      %v8476 = vld [vmem:[%s7928 + $0x28] sm:$0xf]
      %v8477 = vld [vmem:[%s7928 + $0x2c] sm:$0x1]
      %v8478 = vld [vmem:[%s7928 + $0x34] sm:$0xf]
      %v8479 = vld [vmem:[%s7928 + $0x38] sm:$0xf]
      %v8480 = vld [vmem:[%s7928 + $0x3c] sm:$0x1]
      %v8481 = vld [vmem:[%s7928 + $0x44] sm:$0xf]
      %v8482 = vld [vmem:[%s7928 + $0x48] sm:$0xf]
      %v8483 = vld [vmem:[%s7928 + $0x4c] sm:$0x1]
      %v8484 = vld [vmem:[%s7928 + $0x54] sm:$0xf]
      %v8485 = vld [vmem:[%s7928 + $0x58] sm:$0xf]
      %v8486 = vld [vmem:[%s7928 + $0x5c] sm:$0x1]
      %v8487 = vld [vmem:[%s7928 + $0x64] sm:$0xf]
      %v8488 = vld [vmem:[%s7928 + $0x68] sm:$0xf]
      %v8489 = vld [vmem:[%s7928 + $0x6c] sm:$0x1]
      %v8490 = vld [vmem:[%s7928 + $0x74] sm:$0xf]
      %v8491 = vld [vmem:[%s7928 + $0x78] sm:$0xf]
      %v8492 = vld [vmem:[%s7928 + $0x7c] sm:$0x1]
      %v8494 = vshrl.u32 %v8469, 16
      %v8496 = vrot.slane %v8494, 4
      %v8497 = vshll.u32 %v8469, 16
      %v8499 = vrot.slane %v8497, 5
      %v8500 = vor.u32 %v8496, %v8499
      %v8501 = vrot.slane %v8500, 4
      %v8503 = vshll.u32 %v8470, 16
      %v8505 = vrot.slane %v8503, 5
      %v8506 = vsel %vm769, %v8501, %v8505
      %v8507 = vshrl.u32 %v8470, 16
      %v8509 = vrot.slane %v8507, 4
      %v8510 = vor.u32 %v8509, %v8505
      %v8511 = vrot.slane %v8510, 4
      %v8513 = vshll.u32 %v8471, 16
      %v8515 = vrot.slane %v8513, 5
      %v8516 = vsel %vm769, %v8511, %v8515
      %v8518 = vshrl.u32 %v8472, 16
      %v8520 = vrot.slane %v8518, 4
      %v8521 = vshll.u32 %v8472, 16
      %v8523 = vrot.slane %v8521, 5
      %v8524 = vor.u32 %v8520, %v8523
      %v8525 = vrot.slane %v8524, 4
      %v8527 = vshll.u32 %v8473, 16
      %v8529 = vrot.slane %v8527, 5
      %v8530 = vsel %vm769, %v8525, %v8529
      %v8531 = vshrl.u32 %v8473, 16
      %v8533 = vrot.slane %v8531, 4
      %v8534 = vor.u32 %v8533, %v8529
      %v8535 = vrot.slane %v8534, 4
      %v8537 = vshll.u32 %v8474, 16
      %v8539 = vrot.slane %v8537, 5
      %v8540 = vsel %vm769, %v8535, %v8539
      %v8542 = vshrl.u32 %v8475, 16
      %v8544 = vrot.slane %v8542, 4
      %v8545 = vshll.u32 %v8475, 16
      %v8547 = vrot.slane %v8545, 5
      %v8548 = vor.u32 %v8544, %v8547
      %v8549 = vrot.slane %v8548, 4
      %v8551 = vshll.u32 %v8476, 16
      %v8553 = vrot.slane %v8551, 5
      %v8554 = vsel %vm769, %v8549, %v8553
      %v8555 = vshrl.u32 %v8476, 16
      %v8557 = vrot.slane %v8555, 4
      %v8558 = vor.u32 %v8557, %v8553
      %v8559 = vrot.slane %v8558, 4
      %v8561 = vshll.u32 %v8477, 16
      %v8563 = vrot.slane %v8561, 5
      %v8564 = vsel %vm769, %v8559, %v8563
      %v8566 = vshrl.u32 %v8478, 16
      %v8568 = vrot.slane %v8566, 4
      %v8569 = vshll.u32 %v8478, 16
      %v8571 = vrot.slane %v8569, 5
      %v8572 = vor.u32 %v8568, %v8571
      %v8573 = vrot.slane %v8572, 4
      %v8575 = vshll.u32 %v8479, 16
      %v8577 = vrot.slane %v8575, 5
      %v8578 = vsel %vm769, %v8573, %v8577
      %v8579 = vshrl.u32 %v8479, 16
      %v8581 = vrot.slane %v8579, 4
      %v8582 = vor.u32 %v8581, %v8577
      %v8583 = vrot.slane %v8582, 4
      %v8585 = vshll.u32 %v8480, 16
      %v8587 = vrot.slane %v8585, 5
      %v8588 = vsel %vm769, %v8583, %v8587
      %v8590 = vshrl.u32 %v8481, 16
      %v8592 = vrot.slane %v8590, 4
      %v8593 = vshll.u32 %v8481, 16
      %v8595 = vrot.slane %v8593, 5
      %v8596 = vor.u32 %v8592, %v8595
      %v8597 = vrot.slane %v8596, 4
      %v8599 = vshll.u32 %v8482, 16
      %v8601 = vrot.slane %v8599, 5
      %v8602 = vsel %vm769, %v8597, %v8601
      %v8603 = vshrl.u32 %v8482, 16
      %v8605 = vrot.slane %v8603, 4
      %v8606 = vor.u32 %v8605, %v8601
      %v8607 = vrot.slane %v8606, 4
      %v8609 = vshll.u32 %v8483, 16
      %v8611 = vrot.slane %v8609, 5
      %v8612 = vsel %vm769, %v8607, %v8611
      %v8614 = vshrl.u32 %v8484, 16
      %v8616 = vrot.slane %v8614, 4
      %v8617 = vshll.u32 %v8484, 16
      %v8619 = vrot.slane %v8617, 5
      %v8620 = vor.u32 %v8616, %v8619
      %v8621 = vrot.slane %v8620, 4
      %v8623 = vshll.u32 %v8485, 16
      %v8625 = vrot.slane %v8623, 5
      %v8626 = vsel %vm769, %v8621, %v8625
      %v8627 = vshrl.u32 %v8485, 16
      %v8629 = vrot.slane %v8627, 4
      %v8630 = vor.u32 %v8629, %v8625
      %v8631 = vrot.slane %v8630, 4
      %v8633 = vshll.u32 %v8486, 16
      %v8635 = vrot.slane %v8633, 5
      %v8636 = vsel %vm769, %v8631, %v8635
      %v8638 = vshrl.u32 %v8487, 16
      %v8640 = vrot.slane %v8638, 4
      %v8641 = vshll.u32 %v8487, 16
      %v8643 = vrot.slane %v8641, 5
      %v8644 = vor.u32 %v8640, %v8643
      %v8645 = vrot.slane %v8644, 4
      %v8647 = vshll.u32 %v8488, 16
      %v8649 = vrot.slane %v8647, 5
      %v8650 = vsel %vm769, %v8645, %v8649
      %v8651 = vshrl.u32 %v8488, 16
      %v8653 = vrot.slane %v8651, 4
      %v8654 = vor.u32 %v8653, %v8649
      %v8655 = vrot.slane %v8654, 4
      %v8657 = vshll.u32 %v8489, 16
      %v8659 = vrot.slane %v8657, 5
      %v8660 = vsel %vm769, %v8655, %v8659
      %v8662 = vshrl.u32 %v8490, 16
      %v8664 = vrot.slane %v8662, 4
      %v8665 = vshll.u32 %v8490, 16
      %v8667 = vrot.slane %v8665, 5
      %v8668 = vor.u32 %v8664, %v8667
      %v8669 = vrot.slane %v8668, 4
      %v8671 = vshll.u32 %v8491, 16
      %v8673 = vrot.slane %v8671, 5
      %v8674 = vsel %vm769, %v8669, %v8673
      %v8675 = vshrl.u32 %v8491, 16
      %v8677 = vrot.slane %v8675, 4
      %v8678 = vor.u32 %v8677, %v8673
      %v8679 = vrot.slane %v8678, 4
      %v8681 = vshll.u32 %v8492, 16
      %v8683 = vrot.slane %v8681, 5
      %v8684 = vsel %vm769, %v8679, %v8683
      %s8685 = scalar_lea.vmem %s5, 320
      %v8686 = vld [vmem:[%s8685] sm:$0xf]
      %v8687 = vld [vmem:[%s8685 + $0x4] sm:$0xf]
      %v8688 = vld [vmem:[%s8685 + $0x8] sm:$0xf]
      %v8689 = vld [vmem:[%s8685 + $0xc] sm:$0xf]
      %v8690 = vld [vmem:[%s8685 + $0x10] sm:$0xf]
      %v8691 = vld [vmem:[%s8685 + $0x14] sm:$0xf]
      %v8692 = vld [vmem:[%s8685 + $0x18] sm:$0xf]
      %v8693 = vld [vmem:[%s8685 + $0x1c] sm:$0xf]
      %v8694 = vld [vmem:[%s8685 + $0x20] sm:$0xf]
      %v8695 = vld [vmem:[%s8685 + $0x24] sm:$0xf]
      %v8696 = vld [vmem:[%s8685 + $0x28] sm:$0xf]
      %v8697 = vld [vmem:[%s8685 + $0x2c] sm:$0xf]
      %v8698 = vld [vmem:[%s8685 + $0x30] sm:$0xf]
      %v8699 = vld [vmem:[%s8685 + $0x34] sm:$0xf]
      %v8700 = vld [vmem:[%s8685 + $0x38] sm:$0xf]
      %v8701 = vld [vmem:[%s8685 + $0x3c] sm:$0xf]
      %v8702 = vunpack.c.l.b16 %v8506
      %v8703 = vunpack.c.l.b16 %v8516
      %v8704 = vunpack.c.l.b16 %v8530
      %v8705 = vunpack.c.l.b16 %v8540
      %v8706 = vunpack.c.l.b16 %v8554
      %v8707 = vunpack.c.l.b16 %v8564
      %v8708 = vunpack.c.l.b16 %v8578
      %v8709 = vunpack.c.l.b16 %v8588
      %v8710 = vunpack.c.l.b16 %v8602
      %v8711 = vunpack.c.l.b16 %v8612
      %v8712 = vunpack.c.l.b16 %v8626
      %v8713 = vunpack.c.l.b16 %v8636
      %v8714 = vunpack.c.l.b16 %v8650
      %v8715 = vunpack.c.l.b16 %v8660
      %v8716 = vunpack.c.l.b16 %v8674
      %v8717 = vunpack.c.l.b16 %v8684
      %v8718 = vpack.c.b16 %v8703, %v8702
      %v8719 = vpack.c.b16 %v8705, %v8704
      %v8720 = vpack.c.b16 %v8707, %v8706
      %v8721 = vpack.c.b16 %v8709, %v8708
      %v8722 = vpack.c.b16 %v8711, %v8710
      %v8723 = vpack.c.b16 %v8713, %v8712
      %v8724 = vpack.c.b16 %v8715, %v8714
      %v8725 = vpack.c.b16 %v8717, %v8716
      %v8750 = vunpack.c.l.b16 %v8686
      %v8751 = vunpack.c.l.b16 %v8687
      %v8752 = vunpack.c.l.b16 %v8688
      %v8753 = vunpack.c.l.b16 %v8689
      %v8754 = vunpack.c.l.b16 %v8690
      %v8755 = vunpack.c.l.b16 %v8691
      %v8756 = vunpack.c.l.b16 %v8692
      %v8757 = vunpack.c.l.b16 %v8693
      %v8758 = vunpack.c.l.b16 %v8694
      %v8759 = vunpack.c.l.b16 %v8695
      %v8760 = vunpack.c.l.b16 %v8696
      %v8761 = vunpack.c.l.b16 %v8697
      %v8762 = vunpack.c.l.b16 %v8698
      %v8763 = vunpack.c.l.b16 %v8699
      %v8764 = vunpack.c.l.b16 %v8700
      %v8765 = vunpack.c.l.b16 %v8701
      %v8766 = vpack.c.b16 %v8751, %v8750
      %v8767 = vpack.c.b16 %v8753, %v8752
      %v8768 = vpack.c.b16 %v8755, %v8754
      %v8769 = vpack.c.b16 %v8757, %v8756
      %v8770 = vpack.c.b16 %v8759, %v8758
      %v8771 = vpack.c.b16 %v8761, %v8760
      %v8772 = vpack.c.b16 %v8763, %v8762
      %v8773 = vpack.c.b16 %v8765, %v8764
      %8782 = vmatpush.bf16.msra.mxu0 %v8773
      %8783 = vmatpush.bf16.msra.mxu0 %v8772
      %8784 = vmatpush.bf16.msra.mxu0 %v8771
      %8785 = vmatpush.bf16.msra.mxu0 %v8770
      %8786 = vmatpush.bf16.msra.mxu0 %v8769
      %8787 = vmatpush.bf16.msra.mxu0 %v8768
      %8788 = vmatpush.bf16.msra.mxu0 %v8767
      %8789 = vmatpush.bf16.msra.mxu0 %v8766
      %8790 = vmatmul.bf16.gmra.mxu0 %v8718
      %v8791 = vpop.f32.mrf.mxu0
      %v8792 = vadd.f32 0.0, %v8791
      %v8793 = vpop.f32.mrf.mxu0
      %v8794 = vadd.f32 0.0, %v8793
      %8795 = vmatmul.bf16.gmra.mxu0 %v8719
      %v8796 = vpop.f32.mrf.mxu0
      %v8797 = vadd.f32 0.0, %v8796
      %v8798 = vpop.f32.mrf.mxu0
      %v8799 = vadd.f32 0.0, %v8798
      %8800 = vmatmul.bf16.gmra.mxu0 %v8720
      %v8801 = vpop.f32.mrf.mxu0
      %v8802 = vadd.f32 0.0, %v8801
      %v8803 = vpop.f32.mrf.mxu0
      %v8804 = vadd.f32 0.0, %v8803
      %8805 = vmatmul.bf16.gmra.mxu0 %v8721
      %v8806 = vpop.f32.mrf.mxu0
      %v8807 = vadd.f32 0.0, %v8806
      %v8808 = vpop.f32.mrf.mxu0
      %v8809 = vadd.f32 0.0, %v8808
      %8810 = vmatmul.bf16.gmra.mxu0 %v8722
      %v8811 = vpop.f32.mrf.mxu0
      %v8812 = vadd.f32 0.0, %v8811
      %v8813 = vpop.f32.mrf.mxu0
      %v8814 = vadd.f32 0.0, %v8813
      %8815 = vmatmul.bf16.gmra.mxu0 %v8723
      %v8816 = vpop.f32.mrf.mxu0
      %v8817 = vadd.f32 0.0, %v8816
      %v8818 = vpop.f32.mrf.mxu0
      %v8819 = vadd.f32 0.0, %v8818
      %8820 = vmatmul.bf16.gmra.mxu0 %v8724
      %v8821 = vpop.f32.mrf.mxu0
      %v8822 = vadd.f32 0.0, %v8821
      %v8823 = vpop.f32.mrf.mxu0
      %v8824 = vadd.f32 0.0, %v8823
      %8825 = vmatmul.bf16.gmra.mxu0 %v8725
      %v8826 = vpop.f32.mrf.mxu0
      %v8827 = vadd.f32 0.0, %v8826
      %v8828 = vpop.f32.mrf.mxu0
      %v8829 = vadd.f32 0.0, %v8828
      %8830 = vdwg.mxu0
      %v8831 = vadd.f32 %v8453, %v8792
      %v8832 = vadd.f32 %v8454, %v8794
      %v8833 = vadd.f32 %v8455, %v8797
      %v8834 = vadd.f32 %v8456, %v8799
      %v8835 = vadd.f32 %v8457, %v8802
      %v8836 = vadd.f32 %v8458, %v8804
      %v8837 = vadd.f32 %v8459, %v8807
      %v8838 = vadd.f32 %v8460, %v8809
      %v8839 = vadd.f32 %v8461, %v8812
      %v8840 = vadd.f32 %v8462, %v8814
      %v8841 = vadd.f32 %v8463, %v8817
      %v8842 = vadd.f32 %v8464, %v8819
      %v8843 = vadd.f32 %v8465, %v8822
      %v8844 = vadd.f32 %v8466, %v8824
      %v8845 = vadd.f32 %v8467, %v8827
      %v8846 = vadd.f32 %v8468, %v8829
      %s8847 = scalar_lea.vmem [#allocation2], 32
      %v8848 = vld [vmem:[%s8847] sm:$0x8]
      %v8849 = vld [vmem:[%s8847 + $0x4] sm:$0xf]
      %v8850 = vld [vmem:[%s8847 + $0x8] sm:$0xf]
      %v8851 = vld [vmem:[%s8847 + $0x10] sm:$0x8]
      %v8852 = vld [vmem:[%s8847 + $0x14] sm:$0xf]
      %v8853 = vld [vmem:[%s8847 + $0x18] sm:$0xf]
      %v8854 = vld [vmem:[%s8847 + $0x20] sm:$0x8]
      %v8855 = vld [vmem:[%s8847 + $0x24] sm:$0xf]
      %v8856 = vld [vmem:[%s8847 + $0x28] sm:$0xf]
      %v8857 = vld [vmem:[%s8847 + $0x30] sm:$0x8]
      %v8858 = vld [vmem:[%s8847 + $0x34] sm:$0xf]
      %v8859 = vld [vmem:[%s8847 + $0x38] sm:$0xf]
      %v8860 = vld [vmem:[%s8847 + $0x40] sm:$0x8]
      %v8861 = vld [vmem:[%s8847 + $0x44] sm:$0xf]
      %v8862 = vld [vmem:[%s8847 + $0x48] sm:$0xf]
      %v8863 = vld [vmem:[%s8847 + $0x50] sm:$0x8]
      %v8864 = vld [vmem:[%s8847 + $0x54] sm:$0xf]
      %v8865 = vld [vmem:[%s8847 + $0x58] sm:$0xf]
      %v8866 = vld [vmem:[%s8847 + $0x60] sm:$0x8]
      %v8867 = vld [vmem:[%s8847 + $0x64] sm:$0xf]
      %v8868 = vld [vmem:[%s8847 + $0x68] sm:$0xf]
      %v8869 = vld [vmem:[%s8847 + $0x70] sm:$0x8]
      %v8870 = vld [vmem:[%s8847 + $0x74] sm:$0xf]
      %v8871 = vld [vmem:[%s8847 + $0x78] sm:$0xf]
      %v8873 = vshrl.u32 %v8848, 16
      %v8875 = vrot.slane %v8873, 7
      %v8876 = vrot.slane %v8875, 4
      %v8878 = vshrl.u32 %v8849, 16
      %v8880 = vrot.slane %v8878, 7
      %v8881 = vshll.u32 %v8849, 16
      %v8883 = vor.u32 %v8880, %v8881
      %v8884 = vsel %vm7066, %v8876, %v8883
      %v8885 = vrot.slane %v8880, 4
      %v8887 = vshrl.u32 %v8850, 16
      %v8889 = vrot.slane %v8887, 7
      %v8890 = vshll.u32 %v8850, 16
      %v8892 = vor.u32 %v8889, %v8890
      %v8893 = vsel %vm7066, %v8885, %v8892
      %v8895 = vshrl.u32 %v8851, 16
      %v8897 = vrot.slane %v8895, 7
      %v8898 = vrot.slane %v8897, 4
      %v8900 = vshrl.u32 %v8852, 16
      %v8902 = vrot.slane %v8900, 7
      %v8903 = vshll.u32 %v8852, 16
      %v8905 = vor.u32 %v8902, %v8903
      %v8906 = vsel %vm7066, %v8898, %v8905
      %v8907 = vrot.slane %v8902, 4
      %v8909 = vshrl.u32 %v8853, 16
      %v8911 = vrot.slane %v8909, 7
      %v8912 = vshll.u32 %v8853, 16
      %v8914 = vor.u32 %v8911, %v8912
      %v8915 = vsel %vm7066, %v8907, %v8914
      %v8917 = vshrl.u32 %v8854, 16
      %v8919 = vrot.slane %v8917, 7
      %v8920 = vrot.slane %v8919, 4
      %v8922 = vshrl.u32 %v8855, 16
      %v8924 = vrot.slane %v8922, 7
      %v8925 = vshll.u32 %v8855, 16
      %v8927 = vor.u32 %v8924, %v8925
      %v8928 = vsel %vm7066, %v8920, %v8927
      %v8929 = vrot.slane %v8924, 4
      %v8931 = vshrl.u32 %v8856, 16
      %v8933 = vrot.slane %v8931, 7
      %v8934 = vshll.u32 %v8856, 16
      %v8936 = vor.u32 %v8933, %v8934
      %v8937 = vsel %vm7066, %v8929, %v8936
      %v8939 = vshrl.u32 %v8857, 16
      %v8941 = vrot.slane %v8939, 7
      %v8942 = vrot.slane %v8941, 4
      %v8944 = vshrl.u32 %v8858, 16
      %v8946 = vrot.slane %v8944, 7
      %v8947 = vshll.u32 %v8858, 16
      %v8949 = vor.u32 %v8946, %v8947
      %v8950 = vsel %vm7066, %v8942, %v8949
      %v8951 = vrot.slane %v8946, 4
      %v8953 = vshrl.u32 %v8859, 16
      %v8955 = vrot.slane %v8953, 7
      %v8956 = vshll.u32 %v8859, 16
      %v8958 = vor.u32 %v8955, %v8956
      %v8959 = vsel %vm7066, %v8951, %v8958
      %v8961 = vshrl.u32 %v8860, 16
      %v8963 = vrot.slane %v8961, 7
      %v8964 = vrot.slane %v8963, 4
      %v8966 = vshrl.u32 %v8861, 16
      %v8968 = vrot.slane %v8966, 7
      %v8969 = vshll.u32 %v8861, 16
      %v8971 = vor.u32 %v8968, %v8969
      %v8972 = vsel %vm7066, %v8964, %v8971
      %v8973 = vrot.slane %v8968, 4
      %v8975 = vshrl.u32 %v8862, 16
      %v8977 = vrot.slane %v8975, 7
      %v8978 = vshll.u32 %v8862, 16
      %v8980 = vor.u32 %v8977, %v8978
      %v8981 = vsel %vm7066, %v8973, %v8980
      %v8983 = vshrl.u32 %v8863, 16
      %v8985 = vrot.slane %v8983, 7
      %v8986 = vrot.slane %v8985, 4
      %v8988 = vshrl.u32 %v8864, 16
      %v8990 = vrot.slane %v8988, 7
      %v8991 = vshll.u32 %v8864, 16
      %v8993 = vor.u32 %v8990, %v8991
      %v8994 = vsel %vm7066, %v8986, %v8993
      %v8995 = vrot.slane %v8990, 4
      %v8997 = vshrl.u32 %v8865, 16
      %v8999 = vrot.slane %v8997, 7
      %v9000 = vshll.u32 %v8865, 16
      %v9002 = vor.u32 %v8999, %v9000
      %v9003 = vsel %vm7066, %v8995, %v9002
      %v9005 = vshrl.u32 %v8866, 16
      %v9007 = vrot.slane %v9005, 7
      %v9008 = vrot.slane %v9007, 4
      %v9010 = vshrl.u32 %v8867, 16
      %v9012 = vrot.slane %v9010, 7
      %v9013 = vshll.u32 %v8867, 16
      %v9015 = vor.u32 %v9012, %v9013
      %v9016 = vsel %vm7066, %v9008, %v9015
      %v9017 = vrot.slane %v9012, 4
      %v9019 = vshrl.u32 %v8868, 16
      %v9021 = vrot.slane %v9019, 7
      %v9022 = vshll.u32 %v8868, 16
      %v9024 = vor.u32 %v9021, %v9022
      %v9025 = vsel %vm7066, %v9017, %v9024
      %v9027 = vshrl.u32 %v8869, 16
      %v9029 = vrot.slane %v9027, 7
      %v9030 = vrot.slane %v9029, 4
      %v9032 = vshrl.u32 %v8870, 16
      %v9034 = vrot.slane %v9032, 7
      %v9035 = vshll.u32 %v8870, 16
      %v9037 = vor.u32 %v9034, %v9035
      %v9038 = vsel %vm7066, %v9030, %v9037
      %v9039 = vrot.slane %v9034, 4
      %v9041 = vshrl.u32 %v8871, 16
      %v9043 = vrot.slane %v9041, 7
      %v9044 = vshll.u32 %v8871, 16
      %v9046 = vor.u32 %v9043, %v9044
      %v9047 = vsel %vm7066, %v9039, %v9046
      %s9048 = scalar_lea.vmem %s5, 384
      %v9049 = vld [vmem:[%s9048] sm:$0xf]
      %v9050 = vld [vmem:[%s9048 + $0x4] sm:$0xf]
      %v9051 = vld [vmem:[%s9048 + $0x8] sm:$0xf]
      %v9052 = vld [vmem:[%s9048 + $0xc] sm:$0xf]
      %v9053 = vld [vmem:[%s9048 + $0x10] sm:$0xf]
      %v9054 = vld [vmem:[%s9048 + $0x14] sm:$0xf]
      %v9055 = vld [vmem:[%s9048 + $0x18] sm:$0xf]
      %v9056 = vld [vmem:[%s9048 + $0x1c] sm:$0xf]
      %v9057 = vld [vmem:[%s9048 + $0x20] sm:$0xf]
      %v9058 = vld [vmem:[%s9048 + $0x24] sm:$0xf]
      %v9059 = vld [vmem:[%s9048 + $0x28] sm:$0xf]
      %v9060 = vld [vmem:[%s9048 + $0x2c] sm:$0xf]
      %v9061 = vld [vmem:[%s9048 + $0x30] sm:$0xf]
      %v9062 = vld [vmem:[%s9048 + $0x34] sm:$0xf]
      %v9063 = vld [vmem:[%s9048 + $0x38] sm:$0xf]
      %v9064 = vld [vmem:[%s9048 + $0x3c] sm:$0xf]
      %v9065 = vunpack.c.l.b16 %v8884
      %v9066 = vunpack.c.l.b16 %v8893
      %v9067 = vunpack.c.l.b16 %v8906
      %v9068 = vunpack.c.l.b16 %v8915
      %v9069 = vunpack.c.l.b16 %v8928
      %v9070 = vunpack.c.l.b16 %v8937
      %v9071 = vunpack.c.l.b16 %v8950
      %v9072 = vunpack.c.l.b16 %v8959
      %v9073 = vunpack.c.l.b16 %v8972
      %v9074 = vunpack.c.l.b16 %v8981
      %v9075 = vunpack.c.l.b16 %v8994
      %v9076 = vunpack.c.l.b16 %v9003
      %v9077 = vunpack.c.l.b16 %v9016
      %v9078 = vunpack.c.l.b16 %v9025
      %v9079 = vunpack.c.l.b16 %v9038
      %v9080 = vunpack.c.l.b16 %v9047
      %v9081 = vpack.c.b16 %v9066, %v9065
      %v9082 = vpack.c.b16 %v9068, %v9067
      %v9083 = vpack.c.b16 %v9070, %v9069
      %v9084 = vpack.c.b16 %v9072, %v9071
      %v9085 = vpack.c.b16 %v9074, %v9073
      %v9086 = vpack.c.b16 %v9076, %v9075
      %v9087 = vpack.c.b16 %v9078, %v9077
      %v9088 = vpack.c.b16 %v9080, %v9079
      %v9113 = vunpack.c.l.b16 %v9049
      %v9114 = vunpack.c.l.b16 %v9050
      %v9115 = vunpack.c.l.b16 %v9051
      %v9116 = vunpack.c.l.b16 %v9052
      %v9117 = vunpack.c.l.b16 %v9053
      %v9118 = vunpack.c.l.b16 %v9054
      %v9119 = vunpack.c.l.b16 %v9055
      %v9120 = vunpack.c.l.b16 %v9056
      %v9121 = vunpack.c.l.b16 %v9057
      %v9122 = vunpack.c.l.b16 %v9058
      %v9123 = vunpack.c.l.b16 %v9059
      %v9124 = vunpack.c.l.b16 %v9060
      %v9125 = vunpack.c.l.b16 %v9061
      %v9126 = vunpack.c.l.b16 %v9062
      %v9127 = vunpack.c.l.b16 %v9063
      %v9128 = vunpack.c.l.b16 %v9064
      %v9129 = vpack.c.b16 %v9114, %v9113
      %v9130 = vpack.c.b16 %v9116, %v9115
      %v9131 = vpack.c.b16 %v9118, %v9117
      %v9132 = vpack.c.b16 %v9120, %v9119
      %v9133 = vpack.c.b16 %v9122, %v9121
      %v9134 = vpack.c.b16 %v9124, %v9123
      %v9135 = vpack.c.b16 %v9126, %v9125
      %v9136 = vpack.c.b16 %v9128, %v9127
      %9145 = vmatpush.bf16.msra.mxu0 %v9136
      %9146 = vmatpush.bf16.msra.mxu0 %v9135
      %9147 = vmatpush.bf16.msra.mxu0 %v9134
      %9148 = vmatpush.bf16.msra.mxu0 %v9133
      %9149 = vmatpush.bf16.msra.mxu0 %v9132
      %9150 = vmatpush.bf16.msra.mxu0 %v9131
      %9151 = vmatpush.bf16.msra.mxu0 %v9130
      %9152 = vmatpush.bf16.msra.mxu0 %v9129
      %9153 = vmatmul.bf16.gmra.mxu0 %v9081
      %v9154 = vpop.f32.mrf.mxu0
      %v9155 = vadd.f32 0.0, %v9154
      %v9156 = vpop.f32.mrf.mxu0
      %v9157 = vadd.f32 0.0, %v9156
      %9158 = vmatmul.bf16.gmra.mxu0 %v9082
      %v9159 = vpop.f32.mrf.mxu0
      %v9160 = vadd.f32 0.0, %v9159
      %v9161 = vpop.f32.mrf.mxu0
      %v9162 = vadd.f32 0.0, %v9161
      %9163 = vmatmul.bf16.gmra.mxu0 %v9083
      %v9164 = vpop.f32.mrf.mxu0
      %v9165 = vadd.f32 0.0, %v9164
      %v9166 = vpop.f32.mrf.mxu0
      %v9167 = vadd.f32 0.0, %v9166
      %9168 = vmatmul.bf16.gmra.mxu0 %v9084
      %v9169 = vpop.f32.mrf.mxu0
      %v9170 = vadd.f32 0.0, %v9169
      %v9171 = vpop.f32.mrf.mxu0
      %v9172 = vadd.f32 0.0, %v9171
      %9173 = vmatmul.bf16.gmra.mxu0 %v9085
      %v9174 = vpop.f32.mrf.mxu0
      %v9175 = vadd.f32 0.0, %v9174
      %v9176 = vpop.f32.mrf.mxu0
      %v9177 = vadd.f32 0.0, %v9176
      %9178 = vmatmul.bf16.gmra.mxu0 %v9086
      %v9179 = vpop.f32.mrf.mxu0
      %v9180 = vadd.f32 0.0, %v9179
      %v9181 = vpop.f32.mrf.mxu0
      %v9182 = vadd.f32 0.0, %v9181
      %9183 = vmatmul.bf16.gmra.mxu0 %v9087
      %v9184 = vpop.f32.mrf.mxu0
      %v9185 = vadd.f32 0.0, %v9184
      %v9186 = vpop.f32.mrf.mxu0
      %v9187 = vadd.f32 0.0, %v9186
      %9188 = vmatmul.bf16.gmra.mxu0 %v9088
      %v9189 = vpop.f32.mrf.mxu0
      %v9190 = vadd.f32 0.0, %v9189
      %v9191 = vpop.f32.mrf.mxu0
      %v9192 = vadd.f32 0.0, %v9191
      %9193 = vdwg.mxu0
      %v9194 = vadd.f32 %v8831, %v9155
      %v9195 = vadd.f32 %v8832, %v9157
      %v9196 = vadd.f32 %v8833, %v9160
      %v9197 = vadd.f32 %v8834, %v9162
      %v9198 = vadd.f32 %v8835, %v9165
      %v9199 = vadd.f32 %v8836, %v9167
      %v9200 = vadd.f32 %v8837, %v9170
      %v9201 = vadd.f32 %v8838, %v9172
      %v9202 = vadd.f32 %v8839, %v9175
      %v9203 = vadd.f32 %v8840, %v9177
      %v9204 = vadd.f32 %v8841, %v9180
      %v9205 = vadd.f32 %v8842, %v9182
      %v9206 = vadd.f32 %v8843, %v9185
      %v9207 = vadd.f32 %v8844, %v9187
      %v9208 = vadd.f32 %v8845, %v9190
      %v9209 = vadd.f32 %v8846, %v9192
      %s9210 = scalar_lea.vmem %s5, 448
      %v9211 = vld [vmem:[%s9210] sm:$0xf]
      %v9212 = vld [vmem:[%s9210 + $0x4] sm:$0xf]
      %v9213 = vld [vmem:[%s9210 + $0x8] sm:$0xf]
      %v9214 = vld [vmem:[%s9210 + $0xc] sm:$0xf]
      %v9215 = vld [vmem:[%s9210 + $0x10] sm:$0xf]
      %v9216 = vld [vmem:[%s9210 + $0x14] sm:$0xf]
      %v9217 = vld [vmem:[%s9210 + $0x18] sm:$0xf]
      %v9218 = vld [vmem:[%s9210 + $0x1c] sm:$0xf]
      %v9219 = vld [vmem:[%s9210 + $0x20] sm:$0xf]
      %v9220 = vld [vmem:[%s9210 + $0x24] sm:$0xf]
      %v9221 = vld [vmem:[%s9210 + $0x28] sm:$0xf]
      %v9222 = vld [vmem:[%s9210 + $0x2c] sm:$0xf]
      %v9223 = vld [vmem:[%s9210 + $0x30] sm:$0xf]
      %v9224 = vld [vmem:[%s9210 + $0x34] sm:$0xf]
      %v9225 = vld [vmem:[%s9210 + $0x38] sm:$0xf]
      %v9226 = vld [vmem:[%s9210 + $0x3c] sm:$0xf]
      %v9243 = vunpack.c.l.b16 %v8849
      %v9244 = vunpack.c.l.b16 %v8850
      %v9245 = vunpack.c.l.b16 %v8852
      %v9246 = vunpack.c.l.b16 %v8853
      %v9247 = vunpack.c.l.b16 %v8855
      %v9248 = vunpack.c.l.b16 %v8856
      %v9249 = vunpack.c.l.b16 %v8858
      %v9250 = vunpack.c.l.b16 %v8859
      %v9251 = vunpack.c.l.b16 %v8861
      %v9252 = vunpack.c.l.b16 %v8862
      %v9253 = vunpack.c.l.b16 %v8864
      %v9254 = vunpack.c.l.b16 %v8865
      %v9255 = vunpack.c.l.b16 %v8867
      %v9256 = vunpack.c.l.b16 %v8868
      %v9257 = vunpack.c.l.b16 %v8870
      %v9258 = vunpack.c.l.b16 %v8871
      %v9259 = vpack.c.b16 %v9244, %v9243
      %v9260 = vpack.c.b16 %v9246, %v9245
      %v9261 = vpack.c.b16 %v9248, %v9247
      %v9262 = vpack.c.b16 %v9250, %v9249
      %v9263 = vpack.c.b16 %v9252, %v9251
      %v9264 = vpack.c.b16 %v9254, %v9253
      %v9265 = vpack.c.b16 %v9256, %v9255
      %v9266 = vpack.c.b16 %v9258, %v9257
      %v9291 = vunpack.c.l.b16 %v9211
      %v9292 = vunpack.c.l.b16 %v9212
      %v9293 = vunpack.c.l.b16 %v9213
      %v9294 = vunpack.c.l.b16 %v9214
      %v9295 = vunpack.c.l.b16 %v9215
      %v9296 = vunpack.c.l.b16 %v9216
      %v9297 = vunpack.c.l.b16 %v9217
      %v9298 = vunpack.c.l.b16 %v9218
      %v9299 = vunpack.c.l.b16 %v9219
      %v9300 = vunpack.c.l.b16 %v9220
      %v9301 = vunpack.c.l.b16 %v9221
      %v9302 = vunpack.c.l.b16 %v9222
      %v9303 = vunpack.c.l.b16 %v9223
      %v9304 = vunpack.c.l.b16 %v9224
      %v9305 = vunpack.c.l.b16 %v9225
      %v9306 = vunpack.c.l.b16 %v9226
      %v9307 = vpack.c.b16 %v9292, %v9291
      %v9308 = vpack.c.b16 %v9294, %v9293
      %v9309 = vpack.c.b16 %v9296, %v9295
      %v9310 = vpack.c.b16 %v9298, %v9297
      %v9311 = vpack.c.b16 %v9300, %v9299
      %v9312 = vpack.c.b16 %v9302, %v9301
      %v9313 = vpack.c.b16 %v9304, %v9303
      %v9314 = vpack.c.b16 %v9306, %v9305
      %9323 = vmatpush.bf16.msra.mxu0 %v9314
      %9324 = vmatpush.bf16.msra.mxu0 %v9313
      %9325 = vmatpush.bf16.msra.mxu0 %v9312
      %9326 = vmatpush.bf16.msra.mxu0 %v9311
      %9327 = vmatpush.bf16.msra.mxu0 %v9310
      %9328 = vmatpush.bf16.msra.mxu0 %v9309
      %9329 = vmatpush.bf16.msra.mxu0 %v9308
      %9330 = vmatpush.bf16.msra.mxu0 %v9307
      %9331 = vmatmul.bf16.gmra.mxu0 %v9259
      %v9332 = vpop.f32.mrf.mxu0
      %v9333 = vadd.f32 0.0, %v9332
      %v9334 = vpop.f32.mrf.mxu0
      %v9335 = vadd.f32 0.0, %v9334
      %9336 = vmatmul.bf16.gmra.mxu0 %v9260
      %v9337 = vpop.f32.mrf.mxu0
      %v9338 = vadd.f32 0.0, %v9337
      %v9339 = vpop.f32.mrf.mxu0
      %v9340 = vadd.f32 0.0, %v9339
      %9341 = vmatmul.bf16.gmra.mxu0 %v9261
      %v9342 = vpop.f32.mrf.mxu0
      %v9343 = vadd.f32 0.0, %v9342
      %v9344 = vpop.f32.mrf.mxu0
      %v9345 = vadd.f32 0.0, %v9344
      %9346 = vmatmul.bf16.gmra.mxu0 %v9262
      %v9347 = vpop.f32.mrf.mxu0
      %v9348 = vadd.f32 0.0, %v9347
      %v9349 = vpop.f32.mrf.mxu0
      %v9350 = vadd.f32 0.0, %v9349
      %9351 = vmatmul.bf16.gmra.mxu0 %v9263
      %v9352 = vpop.f32.mrf.mxu0
      %v9353 = vadd.f32 0.0, %v9352
      %v9354 = vpop.f32.mrf.mxu0
      %v9355 = vadd.f32 0.0, %v9354
      %9356 = vmatmul.bf16.gmra.mxu0 %v9264
      %v9357 = vpop.f32.mrf.mxu0
      %v9358 = vadd.f32 0.0, %v9357
      %v9359 = vpop.f32.mrf.mxu0
      %v9360 = vadd.f32 0.0, %v9359
      %9361 = vmatmul.bf16.gmra.mxu0 %v9265
      %v9362 = vpop.f32.mrf.mxu0
      %v9363 = vadd.f32 0.0, %v9362
      %v9364 = vpop.f32.mrf.mxu0
      %v9365 = vadd.f32 0.0, %v9364
      %9366 = vmatmul.bf16.gmra.mxu0 %v9266
      %v9367 = vpop.f32.mrf.mxu0
      %v9368 = vadd.f32 0.0, %v9367
      %v9369 = vpop.f32.mrf.mxu0
      %v9370 = vadd.f32 0.0, %v9369
      %9371 = vdwg.mxu0
      %v9372 = vadd.f32 %v9194, %v9333
      %v9373 = vadd.f32 %v9195, %v9335
      %v9374 = vadd.f32 %v9196, %v9338
      %v9375 = vadd.f32 %v9197, %v9340
      %v9376 = vadd.f32 %v9198, %v9343
      %v9377 = vadd.f32 %v9199, %v9345
      %v9378 = vadd.f32 %v9200, %v9348
      %v9379 = vadd.f32 %v9201, %v9350
      %v9380 = vadd.f32 %v9202, %v9353
      %v9381 = vadd.f32 %v9203, %v9355
      %v9382 = vadd.f32 %v9204, %v9358
      %v9383 = vadd.f32 %v9205, %v9360
      %v9384 = vadd.f32 %v9206, %v9363
      %v9385 = vadd.f32 %v9207, %v9365
      %v9386 = vadd.f32 %v9208, %v9368
      %v9387 = vadd.f32 %v9209, %v9370
      %v9388 = vld [vmem:[%s8847 + $0x4] sm:$0xf]
      %v9389 = vld [vmem:[%s8847 + $0x8] sm:$0xf]
      %v9390 = vld [vmem:[%s8847 + $0xc] sm:$0x1]
      %v9391 = vld [vmem:[%s8847 + $0x14] sm:$0xf]
      %v9392 = vld [vmem:[%s8847 + $0x18] sm:$0xf]
      %v9393 = vld [vmem:[%s8847 + $0x1c] sm:$0x1]
      %v9394 = vld [vmem:[%s8847 + $0x24] sm:$0xf]
      %v9395 = vld [vmem:[%s8847 + $0x28] sm:$0xf]
      %v9396 = vld [vmem:[%s8847 + $0x2c] sm:$0x1]
      %v9397 = vld [vmem:[%s8847 + $0x34] sm:$0xf]
      %v9398 = vld [vmem:[%s8847 + $0x38] sm:$0xf]
      %v9399 = vld [vmem:[%s8847 + $0x3c] sm:$0x1]
      %v9400 = vld [vmem:[%s8847 + $0x44] sm:$0xf]
      %v9401 = vld [vmem:[%s8847 + $0x48] sm:$0xf]
      %v9402 = vld [vmem:[%s8847 + $0x4c] sm:$0x1]
      %v9403 = vld [vmem:[%s8847 + $0x54] sm:$0xf]
      %v9404 = vld [vmem:[%s8847 + $0x58] sm:$0xf]
      %v9405 = vld [vmem:[%s8847 + $0x5c] sm:$0x1]
      %v9406 = vld [vmem:[%s8847 + $0x64] sm:$0xf]
      %v9407 = vld [vmem:[%s8847 + $0x68] sm:$0xf]
      %v9408 = vld [vmem:[%s8847 + $0x6c] sm:$0x1]
      %v9409 = vld [vmem:[%s8847 + $0x74] sm:$0xf]
      %v9410 = vld [vmem:[%s8847 + $0x78] sm:$0xf]
      %v9411 = vld [vmem:[%s8847 + $0x7c] sm:$0x1]
      %v9413 = vshrl.u32 %v9388, 16
      %v9415 = vrot.slane %v9413, 4
      %v9416 = vshll.u32 %v9388, 16
      %v9418 = vrot.slane %v9416, 5
      %v9419 = vor.u32 %v9415, %v9418
      %v9420 = vrot.slane %v9419, 4
      %v9422 = vshll.u32 %v9389, 16
      %v9424 = vrot.slane %v9422, 5
      %v9425 = vsel %vm769, %v9420, %v9424
      %v9426 = vshrl.u32 %v9389, 16
      %v9428 = vrot.slane %v9426, 4
      %v9429 = vor.u32 %v9428, %v9424
      %v9430 = vrot.slane %v9429, 4
      %v9432 = vshll.u32 %v9390, 16
      %v9434 = vrot.slane %v9432, 5
      %v9435 = vsel %vm769, %v9430, %v9434
      %v9437 = vshrl.u32 %v9391, 16
      %v9439 = vrot.slane %v9437, 4
      %v9440 = vshll.u32 %v9391, 16
      %v9442 = vrot.slane %v9440, 5
      %v9443 = vor.u32 %v9439, %v9442
      %v9444 = vrot.slane %v9443, 4
      %v9446 = vshll.u32 %v9392, 16
      %v9448 = vrot.slane %v9446, 5
      %v9449 = vsel %vm769, %v9444, %v9448
      %v9450 = vshrl.u32 %v9392, 16
      %v9452 = vrot.slane %v9450, 4
      %v9453 = vor.u32 %v9452, %v9448
      %v9454 = vrot.slane %v9453, 4
      %v9456 = vshll.u32 %v9393, 16
      %v9458 = vrot.slane %v9456, 5
      %v9459 = vsel %vm769, %v9454, %v9458
      %v9461 = vshrl.u32 %v9394, 16
      %v9463 = vrot.slane %v9461, 4
      %v9464 = vshll.u32 %v9394, 16
      %v9466 = vrot.slane %v9464, 5
      %v9467 = vor.u32 %v9463, %v9466
      %v9468 = vrot.slane %v9467, 4
      %v9470 = vshll.u32 %v9395, 16
      %v9472 = vrot.slane %v9470, 5
      %v9473 = vsel %vm769, %v9468, %v9472
      %v9474 = vshrl.u32 %v9395, 16
      %v9476 = vrot.slane %v9474, 4
      %v9477 = vor.u32 %v9476, %v9472
      %v9478 = vrot.slane %v9477, 4
      %v9480 = vshll.u32 %v9396, 16
      %v9482 = vrot.slane %v9480, 5
      %v9483 = vsel %vm769, %v9478, %v9482
      %v9485 = vshrl.u32 %v9397, 16
      %v9487 = vrot.slane %v9485, 4
      %v9488 = vshll.u32 %v9397, 16
      %v9490 = vrot.slane %v9488, 5
      %v9491 = vor.u32 %v9487, %v9490
      %v9492 = vrot.slane %v9491, 4
      %v9494 = vshll.u32 %v9398, 16
      %v9496 = vrot.slane %v9494, 5
      %v9497 = vsel %vm769, %v9492, %v9496
      %v9498 = vshrl.u32 %v9398, 16
      %v9500 = vrot.slane %v9498, 4
      %v9501 = vor.u32 %v9500, %v9496
      %v9502 = vrot.slane %v9501, 4
      %v9504 = vshll.u32 %v9399, 16
      %v9506 = vrot.slane %v9504, 5
      %v9507 = vsel %vm769, %v9502, %v9506
      %v9509 = vshrl.u32 %v9400, 16
      %v9511 = vrot.slane %v9509, 4
      %v9512 = vshll.u32 %v9400, 16
      %v9514 = vrot.slane %v9512, 5
      %v9515 = vor.u32 %v9511, %v9514
      %v9516 = vrot.slane %v9515, 4
      %v9518 = vshll.u32 %v9401, 16
      %v9520 = vrot.slane %v9518, 5
      %v9521 = vsel %vm769, %v9516, %v9520
      %v9522 = vshrl.u32 %v9401, 16
      %v9524 = vrot.slane %v9522, 4
      %v9525 = vor.u32 %v9524, %v9520
      %v9526 = vrot.slane %v9525, 4
      %v9528 = vshll.u32 %v9402, 16
      %v9530 = vrot.slane %v9528, 5
      %v9531 = vsel %vm769, %v9526, %v9530
      %v9533 = vshrl.u32 %v9403, 16
      %v9535 = vrot.slane %v9533, 4
      %v9536 = vshll.u32 %v9403, 16
      %v9538 = vrot.slane %v9536, 5
      %v9539 = vor.u32 %v9535, %v9538
      %v9540 = vrot.slane %v9539, 4
      %v9542 = vshll.u32 %v9404, 16
      %v9544 = vrot.slane %v9542, 5
      %v9545 = vsel %vm769, %v9540, %v9544
      %v9546 = vshrl.u32 %v9404, 16
      %v9548 = vrot.slane %v9546, 4
      %v9549 = vor.u32 %v9548, %v9544
      %v9550 = vrot.slane %v9549, 4
      %v9552 = vshll.u32 %v9405, 16
      %v9554 = vrot.slane %v9552, 5
      %v9555 = vsel %vm769, %v9550, %v9554
      %v9557 = vshrl.u32 %v9406, 16
      %v9559 = vrot.slane %v9557, 4
      %v9560 = vshll.u32 %v9406, 16
      %v9562 = vrot.slane %v9560, 5
      %v9563 = vor.u32 %v9559, %v9562
      %v9564 = vrot.slane %v9563, 4
      %v9566 = vshll.u32 %v9407, 16
      %v9568 = vrot.slane %v9566, 5
      %v9569 = vsel %vm769, %v9564, %v9568
      %v9570 = vshrl.u32 %v9407, 16
      %v9572 = vrot.slane %v9570, 4
      %v9573 = vor.u32 %v9572, %v9568
      %v9574 = vrot.slane %v9573, 4
      %v9576 = vshll.u32 %v9408, 16
      %v9578 = vrot.slane %v9576, 5
      %v9579 = vsel %vm769, %v9574, %v9578
      %v9581 = vshrl.u32 %v9409, 16
      %v9583 = vrot.slane %v9581, 4
      %v9584 = vshll.u32 %v9409, 16
      %v9586 = vrot.slane %v9584, 5
      %v9587 = vor.u32 %v9583, %v9586
      %v9588 = vrot.slane %v9587, 4
      %v9590 = vshll.u32 %v9410, 16
      %v9592 = vrot.slane %v9590, 5
      %v9593 = vsel %vm769, %v9588, %v9592
      %v9594 = vshrl.u32 %v9410, 16
      %v9596 = vrot.slane %v9594, 4
      %v9597 = vor.u32 %v9596, %v9592
      %v9598 = vrot.slane %v9597, 4
      %v9600 = vshll.u32 %v9411, 16
      %v9602 = vrot.slane %v9600, 5
      %v9603 = vsel %vm769, %v9598, %v9602
      %s9604 = scalar_lea.vmem %s5, 512
      %v9605 = vld [vmem:[%s9604] sm:$0xf]
      %v9606 = vld [vmem:[%s9604 + $0x4] sm:$0xf]
      %v9607 = vld [vmem:[%s9604 + $0x8] sm:$0xf]
      %v9608 = vld [vmem:[%s9604 + $0xc] sm:$0xf]
      %v9609 = vld [vmem:[%s9604 + $0x10] sm:$0xf]
      %v9610 = vld [vmem:[%s9604 + $0x14] sm:$0xf]
      %v9611 = vld [vmem:[%s9604 + $0x18] sm:$0xf]
      %v9612 = vld [vmem:[%s9604 + $0x1c] sm:$0xf]
      %v9613 = vld [vmem:[%s9604 + $0x20] sm:$0xf]
      %v9614 = vld [vmem:[%s9604 + $0x24] sm:$0xf]
      %v9615 = vld [vmem:[%s9604 + $0x28] sm:$0xf]
      %v9616 = vld [vmem:[%s9604 + $0x2c] sm:$0xf]
      %v9617 = vld [vmem:[%s9604 + $0x30] sm:$0xf]
      %v9618 = vld [vmem:[%s9604 + $0x34] sm:$0xf]
      %v9619 = vld [vmem:[%s9604 + $0x38] sm:$0xf]
      %v9620 = vld [vmem:[%s9604 + $0x3c] sm:$0xf]
      %v9621 = vunpack.c.l.b16 %v9425
      %v9622 = vunpack.c.l.b16 %v9435
      %v9623 = vunpack.c.l.b16 %v9449
      %v9624 = vunpack.c.l.b16 %v9459
      %v9625 = vunpack.c.l.b16 %v9473
      %v9626 = vunpack.c.l.b16 %v9483
      %v9627 = vunpack.c.l.b16 %v9497
      %v9628 = vunpack.c.l.b16 %v9507
      %v9629 = vunpack.c.l.b16 %v9521
      %v9630 = vunpack.c.l.b16 %v9531
      %v9631 = vunpack.c.l.b16 %v9545
      %v9632 = vunpack.c.l.b16 %v9555
      %v9633 = vunpack.c.l.b16 %v9569
      %v9634 = vunpack.c.l.b16 %v9579
      %v9635 = vunpack.c.l.b16 %v9593
      %v9636 = vunpack.c.l.b16 %v9603
      %v9637 = vpack.c.b16 %v9622, %v9621
      %v9638 = vpack.c.b16 %v9624, %v9623
      %v9639 = vpack.c.b16 %v9626, %v9625
      %v9640 = vpack.c.b16 %v9628, %v9627
      %v9641 = vpack.c.b16 %v9630, %v9629
      %v9642 = vpack.c.b16 %v9632, %v9631
      %v9643 = vpack.c.b16 %v9634, %v9633
      %v9644 = vpack.c.b16 %v9636, %v9635
      %v9669 = vunpack.c.l.b16 %v9605
      %v9670 = vunpack.c.l.b16 %v9606
      %v9671 = vunpack.c.l.b16 %v9607
      %v9672 = vunpack.c.l.b16 %v9608
      %v9673 = vunpack.c.l.b16 %v9609
      %v9674 = vunpack.c.l.b16 %v9610
      %v9675 = vunpack.c.l.b16 %v9611
      %v9676 = vunpack.c.l.b16 %v9612
      %v9677 = vunpack.c.l.b16 %v9613
      %v9678 = vunpack.c.l.b16 %v9614
      %v9679 = vunpack.c.l.b16 %v9615
      %v9680 = vunpack.c.l.b16 %v9616
      %v9681 = vunpack.c.l.b16 %v9617
      %v9682 = vunpack.c.l.b16 %v9618
      %v9683 = vunpack.c.l.b16 %v9619
      %v9684 = vunpack.c.l.b16 %v9620
      %v9685 = vpack.c.b16 %v9670, %v9669
      %v9686 = vpack.c.b16 %v9672, %v9671
      %v9687 = vpack.c.b16 %v9674, %v9673
      %v9688 = vpack.c.b16 %v9676, %v9675
      %v9689 = vpack.c.b16 %v9678, %v9677
      %v9690 = vpack.c.b16 %v9680, %v9679
      %v9691 = vpack.c.b16 %v9682, %v9681
      %v9692 = vpack.c.b16 %v9684, %v9683
      %9701 = vmatpush.bf16.msra.mxu0 %v9692
      %9702 = vmatpush.bf16.msra.mxu0 %v9691
      %9703 = vmatpush.bf16.msra.mxu0 %v9690
      %9704 = vmatpush.bf16.msra.mxu0 %v9689
      %9705 = vmatpush.bf16.msra.mxu0 %v9688
      %9706 = vmatpush.bf16.msra.mxu0 %v9687
      %9707 = vmatpush.bf16.msra.mxu0 %v9686
      %9708 = vmatpush.bf16.msra.mxu0 %v9685
      %9709 = vmatmul.bf16.gmra.mxu0 %v9637
      %v9710 = vpop.f32.mrf.mxu0
      %v9711 = vadd.f32 0.0, %v9710
      %v9712 = vpop.f32.mrf.mxu0
      %v9713 = vadd.f32 0.0, %v9712
      %9714 = vmatmul.bf16.gmra.mxu0 %v9638
      %v9715 = vpop.f32.mrf.mxu0
      %v9716 = vadd.f32 0.0, %v9715
      %v9717 = vpop.f32.mrf.mxu0
      %v9718 = vadd.f32 0.0, %v9717
      %9719 = vmatmul.bf16.gmra.mxu0 %v9639
      %v9720 = vpop.f32.mrf.mxu0
      %v9721 = vadd.f32 0.0, %v9720
      %v9722 = vpop.f32.mrf.mxu0
      %v9723 = vadd.f32 0.0, %v9722
      %9724 = vmatmul.bf16.gmra.mxu0 %v9640
      %v9725 = vpop.f32.mrf.mxu0
      %v9726 = vadd.f32 0.0, %v9725
      %v9727 = vpop.f32.mrf.mxu0
      %v9728 = vadd.f32 0.0, %v9727
      %9729 = vmatmul.bf16.gmra.mxu0 %v9641
      %v9730 = vpop.f32.mrf.mxu0
      %v9731 = vadd.f32 0.0, %v9730
      %v9732 = vpop.f32.mrf.mxu0
      %v9733 = vadd.f32 0.0, %v9732
      %9734 = vmatmul.bf16.gmra.mxu0 %v9642
      %v9735 = vpop.f32.mrf.mxu0
      %v9736 = vadd.f32 0.0, %v9735
      %v9737 = vpop.f32.mrf.mxu0
      %v9738 = vadd.f32 0.0, %v9737
      %9739 = vmatmul.bf16.gmra.mxu0 %v9643
      %v9740 = vpop.f32.mrf.mxu0
      %v9741 = vadd.f32 0.0, %v9740
      %v9742 = vpop.f32.mrf.mxu0
      %v9743 = vadd.f32 0.0, %v9742
      %9744 = vmatmul.bf16.gmra.mxu0 %v9644
      %v9745 = vpop.f32.mrf.mxu0
      %v9746 = vadd.f32 0.0, %v9745
      %v9747 = vpop.f32.mrf.mxu0
      %v9748 = vadd.f32 0.0, %v9747
      %9749 = vdwg.mxu0
      %v9750 = vadd.f32 %v9372, %v9711
      %v9751 = vadd.f32 %v9373, %v9713
      %v9752 = vadd.f32 %v9374, %v9716
      %v9753 = vadd.f32 %v9375, %v9718
      %v9754 = vadd.f32 %v9376, %v9721
      %v9755 = vadd.f32 %v9377, %v9723
      %v9756 = vadd.f32 %v9378, %v9726
      %v9757 = vadd.f32 %v9379, %v9728
      %v9758 = vadd.f32 %v9380, %v9731
      %v9759 = vadd.f32 %v9381, %v9733
      %v9760 = vadd.f32 %v9382, %v9736
      %v9761 = vadd.f32 %v9383, %v9738
      %v9762 = vadd.f32 %v9384, %v9741
      %v9763 = vadd.f32 %v9385, %v9743
      %v9764 = vadd.f32 %v9386, %v9746
      %v9765 = vadd.f32 %v9387, %v9748
      %v9766 = vld [vmem:[%s6] sm:$0x1]
      %v9768 = vperm.slane %v9766, 0
      %v9770 = vadd.f32 %v9750, %v9768
      %v9771 = vadd.f32 %v9751, %v9768
      %v9772 = vadd.f32 %v9752, %v9768
      %v9773 = vadd.f32 %v9753, %v9768
      %v9774 = vadd.f32 %v9754, %v9768
      %v9775 = vadd.f32 %v9755, %v9768
      %v9776 = vadd.f32 %v9756, %v9768
      %v9777 = vadd.f32 %v9757, %v9768
      %v9778 = vadd.f32 %v9758, %v9768
      %v9779 = vadd.f32 %v9759, %v9768
      %v9780 = vadd.f32 %v9760, %v9768
      %v9781 = vadd.f32 %v9761, %v9768
      %v9782 = vadd.f32 %v9762, %v9768
      %v9783 = vadd.f32 %v9763, %v9768
      %v9784 = vadd.f32 %v9764, %v9768
      %v9785 = vadd.f32 %v9765, %v9768
      %v9786 = vmul.f32 %v9770, 0.5
      %v9787 = vmul.f32 %v9771, 0.5
      %v9788 = vmul.f32 %v9772, 0.5
      %v9789 = vmul.f32 %v9773, 0.5
      %v9790 = vmul.f32 %v9774, 0.5
      %v9791 = vmul.f32 %v9775, 0.5
      %v9792 = vmul.f32 %v9776, 0.5
      %v9793 = vmul.f32 %v9777, 0.5
      %v9794 = vmul.f32 %v9778, 0.5
      %v9795 = vmul.f32 %v9779, 0.5
      %v9796 = vmul.f32 %v9780, 0.5
      %v9797 = vmul.f32 %v9781, 0.5
      %v9798 = vmul.f32 %v9782, 0.5
      %v9799 = vmul.f32 %v9783, 0.5
      %v9800 = vmul.f32 %v9784, 0.5
      %v9801 = vmul.f32 %v9785, 0.5
      %v9802 = vmul.f32 %v9770, 0.70710677
      %v9803 = vmul.f32 %v9771, 0.70710677
      %v9804 = vmul.f32 %v9772, 0.70710677
      %v9805 = vmul.f32 %v9773, 0.70710677
      %v9806 = vmul.f32 %v9774, 0.70710677
      %v9807 = vmul.f32 %v9775, 0.70710677
      %v9808 = vmul.f32 %v9776, 0.70710677
      %v9809 = vmul.f32 %v9777, 0.70710677
      %v9810 = vmul.f32 %v9778, 0.70710677
      %v9811 = vmul.f32 %v9779, 0.70710677
      %v9812 = vmul.f32 %v9780, 0.70710677
      %v9813 = vmul.f32 %v9781, 0.70710677
      %v9814 = vmul.f32 %v9782, 0.70710677
      %v9815 = vmul.f32 %v9783, 0.70710677
      %v9816 = vmul.f32 %v9784, 0.70710677
      %v9817 = vmul.f32 %v9785, 0.70710677
      %vm9818 = vcmp.lt.f32.partialorder %v9802, 0.0
      %vm9819 = vcmp.lt.f32.partialorder %v9803, 0.0
      %vm9820 = vcmp.lt.f32.partialorder %v9804, 0.0
      %vm9821 = vcmp.lt.f32.partialorder %v9805, 0.0
      %vm9822 = vcmp.lt.f32.partialorder %v9806, 0.0
      %vm9823 = vcmp.lt.f32.partialorder %v9807, 0.0
      %vm9824 = vcmp.lt.f32.partialorder %v9808, 0.0
      %vm9825 = vcmp.lt.f32.partialorder %v9809, 0.0
      %vm9826 = vcmp.lt.f32.partialorder %v9810, 0.0
      %vm9827 = vcmp.lt.f32.partialorder %v9811, 0.0
      %vm9828 = vcmp.lt.f32.partialorder %v9812, 0.0
      %vm9829 = vcmp.lt.f32.partialorder %v9813, 0.0
      %vm9830 = vcmp.lt.f32.partialorder %v9814, 0.0
      %vm9831 = vcmp.lt.f32.partialorder %v9815, 0.0
      %vm9832 = vcmp.lt.f32.partialorder %v9816, 0.0
      %vm9833 = vcmp.lt.f32.partialorder %v9817, 0.0
      %v9834 = vsel %vm9818, -1.0, 1.0
      %v9835 = vsel %vm9819, -1.0, 1.0
      %v9836 = vsel %vm9820, -1.0, 1.0
      %v9837 = vsel %vm9821, -1.0, 1.0
      %v9838 = vsel %vm9822, -1.0, 1.0
      %v9839 = vsel %vm9823, -1.0, 1.0
      %v9840 = vsel %vm9824, -1.0, 1.0
      %v9841 = vsel %vm9825, -1.0, 1.0
      %v9842 = vsel %vm9826, -1.0, 1.0
      %v9843 = vsel %vm9827, -1.0, 1.0
      %v9844 = vsel %vm9828, -1.0, 1.0
      %v9845 = vsel %vm9829, -1.0, 1.0
      %v9846 = vsel %vm9830, -1.0, 1.0
      %v9847 = vsel %vm9831, -1.0, 1.0
      %v9848 = vsel %vm9832, -1.0, 1.0
      %v9849 = vsel %vm9833, -1.0, 1.0
      %v9850 = vand.u32 2147483647, %v9802
      %v9851 = vand.u32 2147483647, %v9803
      %v9852 = vand.u32 2147483647, %v9804
      %v9853 = vand.u32 2147483647, %v9805
      %v9854 = vand.u32 2147483647, %v9806
      %v9855 = vand.u32 2147483647, %v9807
      %v9856 = vand.u32 2147483647, %v9808
      %v9857 = vand.u32 2147483647, %v9809
      %v9858 = vand.u32 2147483647, %v9810
      %v9859 = vand.u32 2147483647, %v9811
      %v9860 = vand.u32 2147483647, %v9812
      %v9861 = vand.u32 2147483647, %v9813
      %v9862 = vand.u32 2147483647, %v9814
      %v9863 = vand.u32 2147483647, %v9815
      %v9864 = vand.u32 2147483647, %v9816
      %v9865 = vand.u32 2147483647, %v9817
      %v9866 = vmul.f32 %v9850, 0.3275911
      %v9867 = vmul.f32 %v9851, 0.3275911
      %v9868 = vmul.f32 %v9852, 0.3275911
      %v9869 = vmul.f32 %v9853, 0.3275911
      %v9870 = vmul.f32 %v9854, 0.3275911
      %v9871 = vmul.f32 %v9855, 0.3275911
      %v9872 = vmul.f32 %v9856, 0.3275911
      %v9873 = vmul.f32 %v9857, 0.3275911
      %v9874 = vmul.f32 %v9858, 0.3275911
      %v9875 = vmul.f32 %v9859, 0.3275911
      %v9876 = vmul.f32 %v9860, 0.3275911
      %v9877 = vmul.f32 %v9861, 0.3275911
      %v9878 = vmul.f32 %v9862, 0.3275911
      %v9879 = vmul.f32 %v9863, 0.3275911
      %v9880 = vmul.f32 %v9864, 0.3275911
      %v9881 = vmul.f32 %v9865, 0.3275911
      %v9882 = vadd.f32 %v9866, 1.0
      %v9883 = vadd.f32 %v9867, 1.0
      %v9884 = vadd.f32 %v9868, 1.0
      %v9885 = vadd.f32 %v9869, 1.0
      %v9886 = vadd.f32 %v9870, 1.0
      %v9887 = vadd.f32 %v9871, 1.0
      %v9888 = vadd.f32 %v9872, 1.0
      %v9889 = vadd.f32 %v9873, 1.0
      %v9890 = vadd.f32 %v9874, 1.0
      %v9891 = vadd.f32 %v9875, 1.0
      %v9892 = vadd.f32 %v9876, 1.0
      %v9893 = vadd.f32 %v9877, 1.0
      %v9894 = vadd.f32 %v9878, 1.0
      %v9895 = vadd.f32 %v9879, 1.0
      %v9896 = vadd.f32 %v9880, 1.0
      %v9897 = vadd.f32 %v9881, 1.0
      %v9898 = vrcp.pop %v9882
      %v9899 = vmul.f32 %v9882, %v9898
      %v9900 = vsub.f32 1.0, %v9899
      %v9901 = vmul.f32 %v9898, %v9900
      %v9902 = vadd.f32 %v9898, %v9901
      %vm9903 = vweird.f32 %v9882
      %vm9904 = vweird.f32 %v9898
      %vm9905 = vmor %vm9903, %vm9904
      %v9906 = vsel %vm9905, %v9898, %v9902
      %v9907 = vand.u32 2147483647, %v9882
      %vm9908 = vcmp.eq.f32.partialorder %v9907, 8.507059e+37
      %v9909 = vand.u32 %v9882, 2147483648
      %v9910 = vor.u32 1.1754944e-38, %v9909
      %v9911 = vsel %vm9908, %v9910, %v9906
      %v9912 = vmul.f32 1.0, %v9911
      %v9913 = vrcp.pop %v9883
      %v9914 = vmul.f32 %v9883, %v9913
      %v9915 = vsub.f32 1.0, %v9914
      %v9916 = vmul.f32 %v9913, %v9915
      %v9917 = vadd.f32 %v9913, %v9916
      %vm9918 = vweird.f32 %v9883
      %vm9919 = vweird.f32 %v9913
      %vm9920 = vmor %vm9918, %vm9919
      %v9921 = vsel %vm9920, %v9913, %v9917
      %v9922 = vand.u32 2147483647, %v9883
      %vm9923 = vcmp.eq.f32.partialorder %v9922, 8.507059e+37
      %v9924 = vand.u32 %v9883, 2147483648
      %v9925 = vor.u32 1.1754944e-38, %v9924
      %v9926 = vsel %vm9923, %v9925, %v9921
      %v9927 = vmul.f32 1.0, %v9926
      %v9928 = vrcp.pop %v9884
      %v9929 = vmul.f32 %v9884, %v9928
      %v9930 = vsub.f32 1.0, %v9929
      %v9931 = vmul.f32 %v9928, %v9930
      %v9932 = vadd.f32 %v9928, %v9931
      %vm9933 = vweird.f32 %v9884
      %vm9934 = vweird.f32 %v9928
      %vm9935 = vmor %vm9933, %vm9934
      %v9936 = vsel %vm9935, %v9928, %v9932
      %v9937 = vand.u32 2147483647, %v9884
      %vm9938 = vcmp.eq.f32.partialorder %v9937, 8.507059e+37
      %v9939 = vand.u32 %v9884, 2147483648
      %v9940 = vor.u32 1.1754944e-38, %v9939
      %v9941 = vsel %vm9938, %v9940, %v9936
      %v9942 = vmul.f32 1.0, %v9941
      %v9943 = vrcp.pop %v9885
      %v9944 = vmul.f32 %v9885, %v9943
      %v9945 = vsub.f32 1.0, %v9944
      %v9946 = vmul.f32 %v9943, %v9945
      %v9947 = vadd.f32 %v9943, %v9946
      %vm9948 = vweird.f32 %v9885
      %vm9949 = vweird.f32 %v9943
      %vm9950 = vmor %vm9948, %vm9949
      %v9951 = vsel %vm9950, %v9943, %v9947
      %v9952 = vand.u32 2147483647, %v9885
      %vm9953 = vcmp.eq.f32.partialorder %v9952, 8.507059e+37
      %v9954 = vand.u32 %v9885, 2147483648
      %v9955 = vor.u32 1.1754944e-38, %v9954
      %v9956 = vsel %vm9953, %v9955, %v9951
      %v9957 = vmul.f32 1.0, %v9956
      %v9958 = vrcp.pop %v9886
      %v9959 = vmul.f32 %v9886, %v9958
      %v9960 = vsub.f32 1.0, %v9959
      %v9961 = vmul.f32 %v9958, %v9960
      %v9962 = vadd.f32 %v9958, %v9961
      %vm9963 = vweird.f32 %v9886
      %vm9964 = vweird.f32 %v9958
      %vm9965 = vmor %vm9963, %vm9964
      %v9966 = vsel %vm9965, %v9958, %v9962
      %v9967 = vand.u32 2147483647, %v9886
      %vm9968 = vcmp.eq.f32.partialorder %v9967, 8.507059e+37
      %v9969 = vand.u32 %v9886, 2147483648
      %v9970 = vor.u32 1.1754944e-38, %v9969
      %v9971 = vsel %vm9968, %v9970, %v9966
      %v9972 = vmul.f32 1.0, %v9971
      %v9973 = vrcp.pop %v9887
      %v9974 = vmul.f32 %v9887, %v9973
      %v9975 = vsub.f32 1.0, %v9974
      %v9976 = vmul.f32 %v9973, %v9975
      %v9977 = vadd.f32 %v9973, %v9976
      %vm9978 = vweird.f32 %v9887
      %vm9979 = vweird.f32 %v9973
      %vm9980 = vmor %vm9978, %vm9979
      %v9981 = vsel %vm9980, %v9973, %v9977
      %v9982 = vand.u32 2147483647, %v9887
      %vm9983 = vcmp.eq.f32.partialorder %v9982, 8.507059e+37
      %v9984 = vand.u32 %v9887, 2147483648
      %v9985 = vor.u32 1.1754944e-38, %v9984
      %v9986 = vsel %vm9983, %v9985, %v9981
      %v9987 = vmul.f32 1.0, %v9986
      %v9988 = vrcp.pop %v9888
      %v9989 = vmul.f32 %v9888, %v9988
      %v9990 = vsub.f32 1.0, %v9989
      %v9991 = vmul.f32 %v9988, %v9990
      %v9992 = vadd.f32 %v9988, %v9991
      %vm9993 = vweird.f32 %v9888
      %vm9994 = vweird.f32 %v9988
      %vm9995 = vmor %vm9993, %vm9994
      %v9996 = vsel %vm9995, %v9988, %v9992
      %v9997 = vand.u32 2147483647, %v9888
      %vm9998 = vcmp.eq.f32.partialorder %v9997, 8.507059e+37
      %v9999 = vand.u32 %v9888, 2147483648
      %v10000 = vor.u32 1.1754944e-38, %v9999
      %v10001 = vsel %vm9998, %v10000, %v9996
      %v10002 = vmul.f32 1.0, %v10001
      %v10003 = vrcp.pop %v9889
      %v10004 = vmul.f32 %v9889, %v10003
      %v10005 = vsub.f32 1.0, %v10004
      %v10006 = vmul.f32 %v10003, %v10005
      %v10007 = vadd.f32 %v10003, %v10006
      %vm10008 = vweird.f32 %v9889
      %vm10009 = vweird.f32 %v10003
      %vm10010 = vmor %vm10008, %vm10009
      %v10011 = vsel %vm10010, %v10003, %v10007
      %v10012 = vand.u32 2147483647, %v9889
      %vm10013 = vcmp.eq.f32.partialorder %v10012, 8.507059e+37
      %v10014 = vand.u32 %v9889, 2147483648
      %v10015 = vor.u32 1.1754944e-38, %v10014
      %v10016 = vsel %vm10013, %v10015, %v10011
      %v10017 = vmul.f32 1.0, %v10016
      %v10018 = vrcp.pop %v9890
      %v10019 = vmul.f32 %v9890, %v10018
      %v10020 = vsub.f32 1.0, %v10019
      %v10021 = vmul.f32 %v10018, %v10020
      %v10022 = vadd.f32 %v10018, %v10021
      %vm10023 = vweird.f32 %v9890
      %vm10024 = vweird.f32 %v10018
      %vm10025 = vmor %vm10023, %vm10024
      %v10026 = vsel %vm10025, %v10018, %v10022
      %v10027 = vand.u32 2147483647, %v9890
      %vm10028 = vcmp.eq.f32.partialorder %v10027, 8.507059e+37
      %v10029 = vand.u32 %v9890, 2147483648
      %v10030 = vor.u32 1.1754944e-38, %v10029
      %v10031 = vsel %vm10028, %v10030, %v10026
      %v10032 = vmul.f32 1.0, %v10031
      %v10033 = vrcp.pop %v9891
      %v10034 = vmul.f32 %v9891, %v10033
      %v10035 = vsub.f32 1.0, %v10034
      %v10036 = vmul.f32 %v10033, %v10035
      %v10037 = vadd.f32 %v10033, %v10036
      %vm10038 = vweird.f32 %v9891
      %vm10039 = vweird.f32 %v10033
      %vm10040 = vmor %vm10038, %vm10039
      %v10041 = vsel %vm10040, %v10033, %v10037
      %v10042 = vand.u32 2147483647, %v9891
      %vm10043 = vcmp.eq.f32.partialorder %v10042, 8.507059e+37
      %v10044 = vand.u32 %v9891, 2147483648
      %v10045 = vor.u32 1.1754944e-38, %v10044
      %v10046 = vsel %vm10043, %v10045, %v10041
      %v10047 = vmul.f32 1.0, %v10046
      %v10048 = vrcp.pop %v9892
      %v10049 = vmul.f32 %v9892, %v10048
      %v10050 = vsub.f32 1.0, %v10049
      %v10051 = vmul.f32 %v10048, %v10050
      %v10052 = vadd.f32 %v10048, %v10051
      %vm10053 = vweird.f32 %v9892
      %vm10054 = vweird.f32 %v10048
      %vm10055 = vmor %vm10053, %vm10054
      %v10056 = vsel %vm10055, %v10048, %v10052
      %v10057 = vand.u32 2147483647, %v9892
      %vm10058 = vcmp.eq.f32.partialorder %v10057, 8.507059e+37
      %v10059 = vand.u32 %v9892, 2147483648
      %v10060 = vor.u32 1.1754944e-38, %v10059
      %v10061 = vsel %vm10058, %v10060, %v10056
      %v10062 = vmul.f32 1.0, %v10061
      %v10063 = vrcp.pop %v9893
      %v10064 = vmul.f32 %v9893, %v10063
      %v10065 = vsub.f32 1.0, %v10064
      %v10066 = vmul.f32 %v10063, %v10065
      %v10067 = vadd.f32 %v10063, %v10066
      %vm10068 = vweird.f32 %v9893
      %vm10069 = vweird.f32 %v10063
      %vm10070 = vmor %vm10068, %vm10069
      %v10071 = vsel %vm10070, %v10063, %v10067
      %v10072 = vand.u32 2147483647, %v9893
      %vm10073 = vcmp.eq.f32.partialorder %v10072, 8.507059e+37
      %v10074 = vand.u32 %v9893, 2147483648
      %v10075 = vor.u32 1.1754944e-38, %v10074
      %v10076 = vsel %vm10073, %v10075, %v10071
      %v10077 = vmul.f32 1.0, %v10076
      %v10078 = vrcp.pop %v9894
      %v10079 = vmul.f32 %v9894, %v10078
      %v10080 = vsub.f32 1.0, %v10079
      %v10081 = vmul.f32 %v10078, %v10080
      %v10082 = vadd.f32 %v10078, %v10081
      %vm10083 = vweird.f32 %v9894
      %vm10084 = vweird.f32 %v10078
      %vm10085 = vmor %vm10083, %vm10084
      %v10086 = vsel %vm10085, %v10078, %v10082
      %v10087 = vand.u32 2147483647, %v9894
      %vm10088 = vcmp.eq.f32.partialorder %v10087, 8.507059e+37
      %v10089 = vand.u32 %v9894, 2147483648
      %v10090 = vor.u32 1.1754944e-38, %v10089
      %v10091 = vsel %vm10088, %v10090, %v10086
      %v10092 = vmul.f32 1.0, %v10091
      %v10093 = vrcp.pop %v9895
      %v10094 = vmul.f32 %v9895, %v10093
      %v10095 = vsub.f32 1.0, %v10094
      %v10096 = vmul.f32 %v10093, %v10095
      %v10097 = vadd.f32 %v10093, %v10096
      %vm10098 = vweird.f32 %v9895
      %vm10099 = vweird.f32 %v10093
      %vm10100 = vmor %vm10098, %vm10099
      %v10101 = vsel %vm10100, %v10093, %v10097
      %v10102 = vand.u32 2147483647, %v9895
      %vm10103 = vcmp.eq.f32.partialorder %v10102, 8.507059e+37
      %v10104 = vand.u32 %v9895, 2147483648
      %v10105 = vor.u32 1.1754944e-38, %v10104
      %v10106 = vsel %vm10103, %v10105, %v10101
      %v10107 = vmul.f32 1.0, %v10106
      %v10108 = vrcp.pop %v9896
      %v10109 = vmul.f32 %v9896, %v10108
      %v10110 = vsub.f32 1.0, %v10109
      %v10111 = vmul.f32 %v10108, %v10110
      %v10112 = vadd.f32 %v10108, %v10111
      %vm10113 = vweird.f32 %v9896
      %vm10114 = vweird.f32 %v10108
      %vm10115 = vmor %vm10113, %vm10114
      %v10116 = vsel %vm10115, %v10108, %v10112
      %v10117 = vand.u32 2147483647, %v9896
      %vm10118 = vcmp.eq.f32.partialorder %v10117, 8.507059e+37
      %v10119 = vand.u32 %v9896, 2147483648
      %v10120 = vor.u32 1.1754944e-38, %v10119
      %v10121 = vsel %vm10118, %v10120, %v10116
      %v10122 = vmul.f32 1.0, %v10121
      %v10123 = vrcp.pop %v9897
      %v10124 = vmul.f32 %v9897, %v10123
      %v10125 = vsub.f32 1.0, %v10124
      %v10126 = vmul.f32 %v10123, %v10125
      %v10127 = vadd.f32 %v10123, %v10126
      %vm10128 = vweird.f32 %v9897
      %vm10129 = vweird.f32 %v10123
      %vm10130 = vmor %vm10128, %vm10129
      %v10131 = vsel %vm10130, %v10123, %v10127
      %v10132 = vand.u32 2147483647, %v9897
      %vm10133 = vcmp.eq.f32.partialorder %v10132, 8.507059e+37
      %v10134 = vand.u32 %v9897, 2147483648
      %v10135 = vor.u32 1.1754944e-38, %v10134
      %v10136 = vsel %vm10133, %v10135, %v10131
      %v10137 = vmul.f32 1.0, %v10136
      %v10138 = vmul.f32 %v9912, 1.0614054
      %v10139 = vmul.f32 %v9927, 1.0614054
      %v10140 = vmul.f32 %v9942, 1.0614054
      %v10141 = vmul.f32 %v9957, 1.0614054
      %v10142 = vmul.f32 %v9972, 1.0614054
      %v10143 = vmul.f32 %v9987, 1.0614054
      %v10144 = vmul.f32 %v10002, 1.0614054
      %v10145 = vmul.f32 %v10017, 1.0614054
      %v10146 = vmul.f32 %v10032, 1.0614054
      %v10147 = vmul.f32 %v10047, 1.0614054
      %v10148 = vmul.f32 %v10062, 1.0614054
      %v10149 = vmul.f32 %v10077, 1.0614054
      %v10150 = vmul.f32 %v10092, 1.0614054
      %v10151 = vmul.f32 %v10107, 1.0614054
      %v10152 = vmul.f32 %v10122, 1.0614054
      %v10153 = vmul.f32 %v10137, 1.0614054
      %v10154 = vadd.f32 %v10138, -1.4531521
      %v10155 = vadd.f32 %v10139, -1.4531521
      %v10156 = vadd.f32 %v10140, -1.4531521
      %v10157 = vadd.f32 %v10141, -1.4531521
      %v10158 = vadd.f32 %v10142, -1.4531521
      %v10159 = vadd.f32 %v10143, -1.4531521
      %v10160 = vadd.f32 %v10144, -1.4531521
      %v10161 = vadd.f32 %v10145, -1.4531521
      %v10162 = vadd.f32 %v10146, -1.4531521
      %v10163 = vadd.f32 %v10147, -1.4531521
      %v10164 = vadd.f32 %v10148, -1.4531521
      %v10165 = vadd.f32 %v10149, -1.4531521
      %v10166 = vadd.f32 %v10150, -1.4531521
      %v10167 = vadd.f32 %v10151, -1.4531521
      %v10168 = vadd.f32 %v10152, -1.4531521
      %v10169 = vadd.f32 %v10153, -1.4531521
      %v10170 = vmul.f32 %v10154, %v9912
      %v10171 = vmul.f32 %v10155, %v9927
      %v10172 = vmul.f32 %v10156, %v9942
      %v10173 = vmul.f32 %v10157, %v9957
      %v10174 = vmul.f32 %v10158, %v9972
      %v10175 = vmul.f32 %v10159, %v9987
      %v10176 = vmul.f32 %v10160, %v10002
      %v10177 = vmul.f32 %v10161, %v10017
      %v10178 = vmul.f32 %v10162, %v10032
      %v10179 = vmul.f32 %v10163, %v10047
      %v10180 = vmul.f32 %v10164, %v10062
      %v10181 = vmul.f32 %v10165, %v10077
      %v10182 = vmul.f32 %v10166, %v10092
      %v10183 = vmul.f32 %v10167, %v10107
      %v10184 = vmul.f32 %v10168, %v10122
      %v10185 = vmul.f32 %v10169, %v10137
      %v10186 = vadd.f32 %v10170, 1.4214138
      %v10187 = vadd.f32 %v10171, 1.4214138
      %v10188 = vadd.f32 %v10172, 1.4214138
      %v10189 = vadd.f32 %v10173, 1.4214138
      %v10190 = vadd.f32 %v10174, 1.4214138
      %v10191 = vadd.f32 %v10175, 1.4214138
      %v10192 = vadd.f32 %v10176, 1.4214138
      %v10193 = vadd.f32 %v10177, 1.4214138
      %v10194 = vadd.f32 %v10178, 1.4214138
      %v10195 = vadd.f32 %v10179, 1.4214138
      %v10196 = vadd.f32 %v10180, 1.4214138
      %v10197 = vadd.f32 %v10181, 1.4214138
      %v10198 = vadd.f32 %v10182, 1.4214138
      %v10199 = vadd.f32 %v10183, 1.4214138
      %v10200 = vadd.f32 %v10184, 1.4214138
      %v10201 = vadd.f32 %v10185, 1.4214138
      %v10202 = vmul.f32 %v10186, %v9912
      %v10203 = vmul.f32 %v10187, %v9927
      %v10204 = vmul.f32 %v10188, %v9942
      %v10205 = vmul.f32 %v10189, %v9957
      %v10206 = vmul.f32 %v10190, %v9972
      %v10207 = vmul.f32 %v10191, %v9987
      %v10208 = vmul.f32 %v10192, %v10002
      %v10209 = vmul.f32 %v10193, %v10017
      %v10210 = vmul.f32 %v10194, %v10032
      %v10211 = vmul.f32 %v10195, %v10047
      %v10212 = vmul.f32 %v10196, %v10062
      %v10213 = vmul.f32 %v10197, %v10077
      %v10214 = vmul.f32 %v10198, %v10092
      %v10215 = vmul.f32 %v10199, %v10107
      %v10216 = vmul.f32 %v10200, %v10122
      %v10217 = vmul.f32 %v10201, %v10137
      %v10218 = vadd.f32 %v10202, -0.28449672
      %v10219 = vadd.f32 %v10203, -0.28449672
      %v10220 = vadd.f32 %v10204, -0.28449672
      %v10221 = vadd.f32 %v10205, -0.28449672
      %v10222 = vadd.f32 %v10206, -0.28449672
      %v10223 = vadd.f32 %v10207, -0.28449672
      %v10224 = vadd.f32 %v10208, -0.28449672
      %v10225 = vadd.f32 %v10209, -0.28449672
      %v10226 = vadd.f32 %v10210, -0.28449672
      %v10227 = vadd.f32 %v10211, -0.28449672
      %v10228 = vadd.f32 %v10212, -0.28449672
      %v10229 = vadd.f32 %v10213, -0.28449672
      %v10230 = vadd.f32 %v10214, -0.28449672
      %v10231 = vadd.f32 %v10215, -0.28449672
      %v10232 = vadd.f32 %v10216, -0.28449672
      %v10233 = vadd.f32 %v10217, -0.28449672
      %v10234 = vmul.f32 %v10218, %v9912
      %v10235 = vmul.f32 %v10219, %v9927
      %v10236 = vmul.f32 %v10220, %v9942
      %v10237 = vmul.f32 %v10221, %v9957
      %v10238 = vmul.f32 %v10222, %v9972
      %v10239 = vmul.f32 %v10223, %v9987
      %v10240 = vmul.f32 %v10224, %v10002
      %v10241 = vmul.f32 %v10225, %v10017
      %v10242 = vmul.f32 %v10226, %v10032
      %v10243 = vmul.f32 %v10227, %v10047
      %v10244 = vmul.f32 %v10228, %v10062
      %v10245 = vmul.f32 %v10229, %v10077
      %v10246 = vmul.f32 %v10230, %v10092
      %v10247 = vmul.f32 %v10231, %v10107
      %v10248 = vmul.f32 %v10232, %v10122
      %v10249 = vmul.f32 %v10233, %v10137
      %v10250 = vadd.f32 %v10234, 0.2548296
      %v10251 = vadd.f32 %v10235, 0.2548296
      %v10252 = vadd.f32 %v10236, 0.2548296
      %v10253 = vadd.f32 %v10237, 0.2548296
      %v10254 = vadd.f32 %v10238, 0.2548296
      %v10255 = vadd.f32 %v10239, 0.2548296
      %v10256 = vadd.f32 %v10240, 0.2548296
      %v10257 = vadd.f32 %v10241, 0.2548296
      %v10258 = vadd.f32 %v10242, 0.2548296
      %v10259 = vadd.f32 %v10243, 0.2548296
      %v10260 = vadd.f32 %v10244, 0.2548296
      %v10261 = vadd.f32 %v10245, 0.2548296
      %v10262 = vadd.f32 %v10246, 0.2548296
      %v10263 = vadd.f32 %v10247, 0.2548296
      %v10264 = vadd.f32 %v10248, 0.2548296
      %v10265 = vadd.f32 %v10249, 0.2548296
      %v10266 = vmul.f32 %v10250, %v9912
      %v10267 = vmul.f32 %v10251, %v9927
      %v10268 = vmul.f32 %v10252, %v9942
      %v10269 = vmul.f32 %v10253, %v9957
      %v10270 = vmul.f32 %v10254, %v9972
      %v10271 = vmul.f32 %v10255, %v9987
      %v10272 = vmul.f32 %v10256, %v10002
      %v10273 = vmul.f32 %v10257, %v10017
      %v10274 = vmul.f32 %v10258, %v10032
      %v10275 = vmul.f32 %v10259, %v10047
      %v10276 = vmul.f32 %v10260, %v10062
      %v10277 = vmul.f32 %v10261, %v10077
      %v10278 = vmul.f32 %v10262, %v10092
      %v10279 = vmul.f32 %v10263, %v10107
      %v10280 = vmul.f32 %v10264, %v10122
      %v10281 = vmul.f32 %v10265, %v10137
      %v10282 = vsub.f32 0.0, %v9850
      %v10283 = vsub.f32 0.0, %v9851
      %v10284 = vsub.f32 0.0, %v9852
      %v10285 = vsub.f32 0.0, %v9853
      %v10286 = vsub.f32 0.0, %v9854
      %v10287 = vsub.f32 0.0, %v9855
      %v10288 = vsub.f32 0.0, %v9856
      %v10289 = vsub.f32 0.0, %v9857
      %v10290 = vsub.f32 0.0, %v9858
      %v10291 = vsub.f32 0.0, %v9859
      %v10292 = vsub.f32 0.0, %v9860
      %v10293 = vsub.f32 0.0, %v9861
      %v10294 = vsub.f32 0.0, %v9862
      %v10295 = vsub.f32 0.0, %v9863
      %v10296 = vsub.f32 0.0, %v9864
      %v10297 = vsub.f32 0.0, %v9865
      %v10298 = vmul.f32 %v10282, %v9850
      %v10299 = vmul.f32 %v10283, %v9851
      %v10300 = vmul.f32 %v10284, %v9852
      %v10301 = vmul.f32 %v10285, %v9853
      %v10302 = vmul.f32 %v10286, %v9854
      %v10303 = vmul.f32 %v10287, %v9855
      %v10304 = vmul.f32 %v10288, %v9856
      %v10305 = vmul.f32 %v10289, %v9857
      %v10306 = vmul.f32 %v10290, %v9858
      %v10307 = vmul.f32 %v10291, %v9859
      %v10308 = vmul.f32 %v10292, %v9860
      %v10309 = vmul.f32 %v10293, %v9861
      %v10310 = vmul.f32 %v10294, %v9862
      %v10311 = vmul.f32 %v10295, %v9863
      %v10312 = vmul.f32 %v10296, %v9864
      %v10313 = vmul.f32 %v10297, %v9865
      %v10314 = vmul.f32 %v10298, 1.442695
      %v10315 = vpow.pop %v10314
      %v10316 = vmul.f32 %v10299, 1.442695
      %v10317 = vpow.pop %v10316
      %v10318 = vmul.f32 %v10300, 1.442695
      %v10319 = vpow.pop %v10318
      %v10320 = vmul.f32 %v10301, 1.442695
      %v10321 = vpow.pop %v10320
      %v10322 = vmul.f32 %v10302, 1.442695
      %v10323 = vpow.pop %v10322
      %v10324 = vmul.f32 %v10303, 1.442695
      %v10325 = vpow.pop %v10324
      %v10326 = vmul.f32 %v10304, 1.442695
      %v10327 = vpow.pop %v10326
      %v10328 = vmul.f32 %v10305, 1.442695
      %v10329 = vpow.pop %v10328
      %v10330 = vmul.f32 %v10306, 1.442695
      %v10331 = vpow.pop %v10330
      %v10332 = vmul.f32 %v10307, 1.442695
      %v10333 = vpow.pop %v10332
      %v10334 = vmul.f32 %v10308, 1.442695
      %v10335 = vpow.pop %v10334
      %v10336 = vmul.f32 %v10309, 1.442695
      %v10337 = vpow.pop %v10336
      %v10338 = vmul.f32 %v10310, 1.442695
      %v10339 = vpow.pop %v10338
      %v10340 = vmul.f32 %v10311, 1.442695
      %v10341 = vpow.pop %v10340
      %v10342 = vmul.f32 %v10312, 1.442695
      %v10343 = vpow.pop %v10342
      %v10344 = vmul.f32 %v10313, 1.442695
      %v10345 = vpow.pop %v10344
      %v10346 = vmul.f32 %v10266, %v10315
      %v10347 = vmul.f32 %v10267, %v10317
      %v10348 = vmul.f32 %v10268, %v10319
      %v10349 = vmul.f32 %v10269, %v10321
      %v10350 = vmul.f32 %v10270, %v10323
      %v10351 = vmul.f32 %v10271, %v10325
      %v10352 = vmul.f32 %v10272, %v10327
      %v10353 = vmul.f32 %v10273, %v10329
      %v10354 = vmul.f32 %v10274, %v10331
      %v10355 = vmul.f32 %v10275, %v10333
      %v10356 = vmul.f32 %v10276, %v10335
      %v10357 = vmul.f32 %v10277, %v10337
      %v10358 = vmul.f32 %v10278, %v10339
      %v10359 = vmul.f32 %v10279, %v10341
      %v10360 = vmul.f32 %v10280, %v10343
      %v10361 = vmul.f32 %v10281, %v10345
      %v10362 = vsub.f32 1.0, %v10346
      %v10363 = vsub.f32 1.0, %v10347
      %v10364 = vsub.f32 1.0, %v10348
      %v10365 = vsub.f32 1.0, %v10349
      %v10366 = vsub.f32 1.0, %v10350
      %v10367 = vsub.f32 1.0, %v10351
      %v10368 = vsub.f32 1.0, %v10352
      %v10369 = vsub.f32 1.0, %v10353
      %v10370 = vsub.f32 1.0, %v10354
      %v10371 = vsub.f32 1.0, %v10355
      %v10372 = vsub.f32 1.0, %v10356
      %v10373 = vsub.f32 1.0, %v10357
      %v10374 = vsub.f32 1.0, %v10358
      %v10375 = vsub.f32 1.0, %v10359
      %v10376 = vsub.f32 1.0, %v10360
      %v10377 = vsub.f32 1.0, %v10361
      %v10378 = vmul.f32 %v9834, %v10362
      %v10379 = vmul.f32 %v9835, %v10363
      %v10380 = vmul.f32 %v9836, %v10364
      %v10381 = vmul.f32 %v9837, %v10365
      %v10382 = vmul.f32 %v9838, %v10366
      %v10383 = vmul.f32 %v9839, %v10367
      %v10384 = vmul.f32 %v9840, %v10368
      %v10385 = vmul.f32 %v9841, %v10369
      %v10386 = vmul.f32 %v9842, %v10370
      %v10387 = vmul.f32 %v9843, %v10371
      %v10388 = vmul.f32 %v9844, %v10372
      %v10389 = vmul.f32 %v9845, %v10373
      %v10390 = vmul.f32 %v9846, %v10374
      %v10391 = vmul.f32 %v9847, %v10375
      %v10392 = vmul.f32 %v9848, %v10376
      %v10393 = vmul.f32 %v9849, %v10377
      %v10394 = vadd.f32 %v10378, 1.0
      %v10395 = vadd.f32 %v10379, 1.0
      %v10396 = vadd.f32 %v10380, 1.0
      %v10397 = vadd.f32 %v10381, 1.0
      %v10398 = vadd.f32 %v10382, 1.0
      %v10399 = vadd.f32 %v10383, 1.0
      %v10400 = vadd.f32 %v10384, 1.0
      %v10401 = vadd.f32 %v10385, 1.0
      %v10402 = vadd.f32 %v10386, 1.0
      %v10403 = vadd.f32 %v10387, 1.0
      %v10404 = vadd.f32 %v10388, 1.0
      %v10405 = vadd.f32 %v10389, 1.0
      %v10406 = vadd.f32 %v10390, 1.0
      %v10407 = vadd.f32 %v10391, 1.0
      %v10408 = vadd.f32 %v10392, 1.0
      %v10409 = vadd.f32 %v10393, 1.0
      %v10410 = vmul.f32 %v9786, %v10394
      %v10411 = vmul.f32 %v9787, %v10395
      %v10412 = vmul.f32 %v9788, %v10396
      %v10413 = vmul.f32 %v9789, %v10397
      %v10414 = vmul.f32 %v9790, %v10398
      %v10415 = vmul.f32 %v9791, %v10399
      %v10416 = vmul.f32 %v9792, %v10400
      %v10417 = vmul.f32 %v9793, %v10401
      %v10418 = vmul.f32 %v9794, %v10402
      %v10419 = vmul.f32 %v9795, %v10403
      %v10420 = vmul.f32 %v9796, %v10404
      %v10421 = vmul.f32 %v9797, %v10405
      %v10422 = vmul.f32 %v9798, %v10406
      %v10423 = vmul.f32 %v9799, %v10407
      %v10424 = vmul.f32 %v9800, %v10408
      %v10425 = vmul.f32 %v9801, %v10409
      %10426 = vst [vmem:[%s322] sm:$0xff] %v10410
      %10427 = vst [vmem:[%s322 + $0x8] sm:$0xff] %v10411
      %10428 = vst [vmem:[%s322 + $0x10] sm:$0xff] %v10412
      %10429 = vst [vmem:[%s322 + $0x18] sm:$0xff] %v10413
      %10430 = vst [vmem:[%s322 + $0x20] sm:$0xff] %v10414
      %10431 = vst [vmem:[%s322 + $0x28] sm:$0xff] %v10415
      %10432 = vst [vmem:[%s322 + $0x30] sm:$0xff] %v10416
      %10433 = vst [vmem:[%s322 + $0x38] sm:$0xff] %v10417
      %10434 = vst [vmem:[%s322 + $0x40] sm:$0xff] %v10418
      %10435 = vst [vmem:[%s322 + $0x48] sm:$0xff] %v10419
      %10436 = vst [vmem:[%s322 + $0x50] sm:$0xff] %v10420
      %10437 = vst [vmem:[%s322 + $0x58] sm:$0xff] %v10421
      %10438 = vst [vmem:[%s322 + $0x60] sm:$0xff] %v10422
      %10439 = vst [vmem:[%s322 + $0x68] sm:$0xff] %v10423
      %10440 = vst [vmem:[%s322 + $0x70] sm:$0xff] %v10424
      %10441 = vst [vmem:[%s322 + $0x78] sm:$0xff] %v10425
      %s10442 = smul.u32 8, %s23
      %p10443 = scmp.lt.s32.totalorder %s22, 1
      %s10444 = scalar_select %p10443, %s22, 1
      %p10445 = scmp.lt.s32.totalorder %s10442, 15
      %s10446 = scalar_select %p10445, %s10442, 15
      %s10447 = smul.addr %s10446, 2
      %s10448 = smul.addr %s10444, 32
      %s10449 = sadd.s32 %s10447, %s10448
      %s10450 = smul.addr %s10449, 8
      %s10451 = scalar_lea.vmem %s7, %s10450
      // Predicated region
      $region57: #{up_forward.1} parent=47 // pred_check
        %p10452 = pneg %p207
      $region58: #{up_forward.1} parent=47 // pred_check_branch
        %10454 = sbr.rel (%p10452) target = $region60
      $region59: #{up_forward.1} parent=47 // pred_region
        %s10455 = smul.u32 8, %s23
      $region60: #{up_forward.1} parent=47 // pred_fallthru
        _
    $region48: #{up_forward.1} parent=5 // pred_fallthru
      _
    %p10456 = scmp.le.s32.totalorder 2, %s13
    // Predicated region
    $region61: #{up_forward.1} parent=5 // pred_check
      %p10457 = pneg %p10456
    $region62: #{up_forward.1} parent=5 // pred_check_branch
      %10459 = sbr.rel (%p10457) target = $region64
    $region63: #{up_forward.1} parent=5 // pred_region
      %s10460 = ssub.s32 %s13, 2
      // Predicated region
      $region65: #{up_forward.1} parent=63 // pred_check
        %p10461 = pneg %p213
      $region66: #{up_forward.1} parent=63 // pred_check_branch
        %10463 = sbr.rel (%p10461) target = $region68
      $region67: #{up_forward.1} parent=63 // pred_region
        %s10464 = smul.u32 8, %s25
        %p10465 = scmp.lt.s32.totalorder %s24, 1
        %s10466 = scalar_select %p10465, %s24, 1
        %p10467 = scmp.lt.s32.totalorder %s10464, 15
        %s10468 = scalar_select %p10467, %s10464, 15
        %s10469 = smul.addr %s10468, 2
        %s10470 = smul.addr %s10466, 32
        %s10471 = sadd.s32 %s10469, %s10470
        %s10472 = smul.addr %s10471, 8
        %s10473 = scalar_lea.vmem %s7, %s10472
      $region68: #{up_forward.1} parent=63 // pred_fallthru
        _
    $region64: #{up_forward.1} parent=5 // pred_fallthru
      _
  $region6: #{up_forward.1} parent=0 // loop_footer
    %s17 = sadd.s32 1, %s13
  $region7: #{up_forward.1} parent=0 // loop_footer_branch
    %12 = sbr.rel target = $region3
  $region8: #{up_forward.1} parent=0 // loop_exit
    _

</llo_original>
